<compile_context>
chip_gen: v7x
topology: tpu7x:2x2x1
jax: 0.10.0
libtpu: 0.0.40
codegen_flags: <defaults>
</compile_context>

<pallas_src>
import jax
import jax.numpy as jnp
from jax import lax
from jax.experimental import pallas as pl
from jax.experimental.pallas import tpu as pltpu

# ----------------------------- small config ---------------------------------
N_FFT = 16
HOP = N_FFT // 2                        # torch module uses hop = n_fft/2
N_FFT_H = N_FFT // 2 + 1                # 9
NUM_SPK = 2
DF_FREQ = N_FFT_H * (NUM_SPK * 2 + 1)   # 45
BN_DIM = 16
H_DIM = 32                              # keeps H = 2*BN (same ratio as 512/256)
LAYER = 2
STACK = 2
NB = LAYER * STACK                      # number of DepthConv1d blocks
DILATIONS = tuple(2 ** i for _ in range(STACK) for i in range(LAYER))  # (1,2,1,2)
OUT_CH = NUM_SPK * N_FFT_H              # 18
T_FRAMES = 16                           # STFT frames per sample
NUM_SAMPLES = HOP * (T_FRAMES - 1)      # 120 -> stft frames == T_FRAMES
EPS = 1e-8

assert (T_FRAMES & (T_FRAMES - 1)) == 0
LOG2_T = T_FRAMES.bit_length() - 1
SAMPLES_PER_STEP = 8                    # batch fold along lanes
LANES = SAMPLES_PER_STEP * T_FRAMES     # 128 dense lanes per grid step


# ----------------------------- kernel helpers -------------------------------
def _prelu(x, a):
    # a is a scalar (single-parameter nn.PReLU)
    return jnp.where(x > 0, x, a * x)


# ----------------------------- fused Pallas kernel ---------------------------
def fused_tcn_kernel(alphas_ref,                      # SMEM (2*NB + 1,)
                     df_ref, re_ref, im_ref,          # (DF, L), (F, L), (F, L)
                     ln_gb_ref,                       # (DF, 2)    [gamma | beta]
                     w_bn_ref,                        # (BN, DF+1) [W | b]
                     w_out_ref,                       # (OUT, BN+1)[W | b]
                     w_mats_ref,                      # (BN, NB*3*BN) [w1|wr_e|wr_o]/block
                     vecs_ref,                        # (BN, NB*16) per-block vectors
                     ore_ref, oim_ref):               # (OUT, L) outputs
    l = df_ref.shape[-1]                              # = SAMPLES_PER_STEP * T_FRAMES

    # --- per-step constants: same-sample segment matrix + in-sample position --
    ri = lax.broadcasted_iota(jnp.int32, (l, l), 0) >> LOG2_T
    ci = lax.broadcasted_iota(jnp.int32, (l, l), 1) >> LOG2_T
    seg = jnp.where(ri == ci, 1.0, 0.0)               # (L, L) 0/1 indicator
    pos = lax.broadcasted_iota(jnp.int32, (1, l), 1) & (T_FRAMES - 1)

    def seg_norm(parts, gammas, betas, c_total):
        # GroupNorm(num_groups=1) with per-sample (lane-segmented) statistics.
        # Per-lane channel sums of x and x^2, then one MXU matmul against `seg`
        # broadcasts each sample's sums back to all of its lanes.
        s1 = parts[0].sum(axis=0, keepdims=True)
        s2 = (parts[0] * parts[0]).sum(axis=0, keepdims=True)
        for p in parts[1:]:
            s1 = s1 + p.sum(axis=0, keepdims=True)
            s2 = s2 + (p * p).sum(axis=0, keepdims=True)
        moms = jnp.dot(jnp.concatenate([s1, s2], axis=0), seg,
                       preferred_element_type=jnp.float32)
        moms = moms * (1.0 / (c_total * T_FRAMES))
        mean = moms[0:1, :]
        rstd = lax.rsqrt(jnp.maximum(moms[1:2, :] - mean * mean, 0.0) + EPS)
        return [(p - mean) * rstd * g + b for p, g, b in zip(parts, gammas, betas)]

    # --- TCN front: GroupNorm(1, DF) + bottleneck 1x1 conv --------------------
    (x,) = seg_norm([df_ref[...]], [ln_gb_ref[:, 0:1]], [ln_gb_ref[:, 1:2]], DF_FREQ)
    h = (jnp.dot(w_bn_ref[:, :DF_FREQ], x, preferred_element_type=jnp.float32)
         + w_bn_ref[:, DF_FREQ:DF_FREQ + 1])                            # (BN, L)

    # --- STACK*LAYER DepthConv1d blocks, statically unrolled; h stays resident
    for j, d in enumerate(DILATIONS):
        v = vecs_ref[:, 16 * j:16 * (j + 1)]                            # (BN, 16)
        w1 = w_mats_ref[:, 48 * j:48 * j + BN_DIM]
        wr_e = w_mats_ref[:, 48 * j + BN_DIM:48 * j + 2 * BN_DIM]
        wr_o = w_mats_ref[:, 48 * j + 2 * BN_DIM:48 * j + 3 * BN_DIM]
        a1 = alphas_ref[2 * j]
        a2 = alphas_ref[2 * j + 1]

        # 1x1 conv + PReLU + GroupNorm(1, BN)
        y = jnp.dot(w1, h, preferred_element_type=jnp.float32) + v[:, 0:1]
        (y,) = seg_norm([_prelu(y, a1)], [v[:, 1:2]], [v[:, 2:3]], BN_DIM)

        # grouped dilated conv Conv1d(BN -> H=2*BN, k=3, groups=BN, pad=dil=d):
        # output channels 2c / 2c+1 both read input channel c; taps at t-d, t,
        # t+d with zeros outside each sample.  roll(+d)[i] = y[i-d]; the edge
        # masks keep taps from crossing the 16-frame per-sample boundary.
        y_l = jnp.where(pos >= d, pltpu.roll(y, d, axis=1), 0.0)
        y_r = jnp.where(pos < T_FRAMES - d, pltpu.roll(y, l - d, axis=1), 0.0)
        z_e = v[:, 10:11] * y_l + v[:, 11:12] * y + v[:, 12:13] * y_r + v[:, 4:5]
        z_o = v[:, 13:14] * y_l + v[:, 14:15] * y + v[:, 15:16] * y_r + v[:, 5:6]

        # PReLU + GroupNorm(1, H) with stats over both halves (never
        # concatenated), then residual 1x1 back to BN accumulated per half.
        z_e, z_o = seg_norm([_prelu(z_e, a2), _prelu(z_o, a2)],
                            [v[:, 6:7], v[:, 7:8]], [v[:, 8:9], v[:, 9:10]], H_DIM)
        h = (h + v[:, 3:4]
             + jnp.dot(wr_e, z_e, preferred_element_type=jnp.float32)
             + jnp.dot(wr_o, z_o, preferred_element_type=jnp.float32))

    # --- TCN head: PReLU + 1x1 conv + sigmoid -> per-speaker masks ------------
    m = _prelu(h, alphas_ref[2 * NB])
    m = jax.nn.sigmoid(
        jnp.dot(w_out_ref[:, :BN_DIM], m, preferred_element_type=jnp.float32)
        + w_out_ref[:, BN_DIM:BN_DIM + 1])                              # (S*F, L)

    # --- fused mask application on the (untiled) complex STFT -----------------
    rr = re_ref[...]
    ii = im_ref[...]
    re2 = jnp.concatenate([rr, rr], axis=0)                             # (S*F, L)
    im2 = jnp.concatenate([ii, ii], axis=0)
    ore_ref[...] = m * re2
    oim_ref[...] = m * im2


# ----------------------------- Pallas wrapper --------------------------------
def fused_tcn_mask(df2, re2, im2, p):
    """df2: (DF, B*T); re2/im2: (F, B*T) — batch folded along lanes, T fastest."""
    _, bt = df2.shape
    assert bt % LANES == 0, bt
    n_steps = bt // LANES
    return pl.pallas_call(
        fused_tcn_kernel,
        out_shape=(jax.ShapeDtypeStruct((OUT_CH, bt), jnp.float32),
                   jax.ShapeDtypeStruct((OUT_CH, bt), jnp.float32)),
        grid=(n_steps,),
        in_specs=[
            pl.BlockSpec(memory_space=pltpu.MemorySpace.SMEM),           # PReLU alphas
            pl.BlockSpec((DF_FREQ, LANES), lambda g: (0, g)),            # df slab
            pl.BlockSpec((N_FFT_H, LANES), lambda g: (0, g)),            # stft real
            pl.BlockSpec((N_FFT_H, LANES), lambda g: (0, g)),            # stft imag
            pl.BlockSpec((DF_FREQ, 2), lambda g: (0, 0)),                # front LN gamma|beta
            pl.BlockSpec((BN_DIM, DF_FREQ + 1), lambda g: (0, 0)),       # bottleneck W|b
            pl.BlockSpec((OUT_CH, BN_DIM + 1), lambda g: (0, 0)),        # head W|b
            pl.BlockSpec((BN_DIM, 3 * BN_DIM * NB), lambda g: (0, 0)),   # [w1|wr_e|wr_o]/block
            pl.BlockSpec((BN_DIM, 16 * NB), lambda g: (0, 0)),           # packed per-block vecs
        ],
        out_specs=(pl.BlockSpec((OUT_CH, LANES), lambda g: (0, g)),
                   pl.BlockSpec((OUT_CH, LANES), lambda g: (0, g))),
        compiler_params=pltpu.CompilerParams(
            dimension_semantics=("parallel",)),      # 2 steps -> both TCs on v7x
    )(p["alphas"], df2, re2, im2, p["ln_gb"], p["w_bn_b"], p["w_out_b"],
      p["w_mats"], p["vecs"])


# ----------------------------- STFT / ISTFT glue (jnp.fft) -------------------
def _hann(n_fft):
    return 0.5 - 0.5 * jnp.cos(2.0 * jnp.pi * jnp.arange(n_fft) / n_fft)  # periodic


def stft_jax(x, n_fft, hop):
    # x: (B, ch, num_samples) -> complex (B, ch, F, frames). center=True, reflect pad.
    pad = n_fft // 2
    xp = jnp.pad(x, ((0, 0), (0, 0), (pad, pad)), mode="reflect")
    n_frames = x.shape[-1] // hop + 1
    idx = (jnp.arange(n_frames) * hop)[:, None] + jnp.arange(n_fft)[None, :]
    frames = xp[:, :, idx]                                   # (B, ch, frames, n_fft)
    spec = jnp.fft.rfft(frames * _hann(n_fft), axis=-1)      # (B, ch, frames, F)
    return jnp.transpose(spec, (0, 1, 3, 2))                 # (B, ch, F, frames)


def istft_jax(spec, n_fft, hop, length):
    # spec: (B, S, F, frames) complex -> (B, S, length). center=True, win normalization.
    B, S, F, n_frames = spec.shape
    win = _hann(n_fft)
    frames = jnp.fft.irfft(jnp.transpose(spec, (0, 1, 3, 2)), n=n_fft, axis=-1) * win
    total = n_fft + hop * (n_frames - 1)
    idx = (jnp.arange(n_frames) * hop)[:, None] + jnp.arange(n_fft)[None, :]
    ola = jnp.zeros((B, S, total), jnp.float32).at[:, :, idx].add(frames)
    wsq = jnp.zeros((total,), jnp.float32).at[idx].add(win * win)
    pad = n_fft // 2
    return ola[:, :, pad:pad + length] / wsq[pad:pad + length]


# ----------------------------- parameters -----------------------------------
def init_params(key):
    def nrm(k, shape, scale=0.1):
        return (scale * jax.random.normal(k, shape)).astype(jnp.float32)

    keys = iter(jax.random.split(key, 64))

    ln_gb = jnp.concatenate([jnp.ones((DF_FREQ, 1), jnp.float32),
                             jnp.zeros((DF_FREQ, 1), jnp.float32)], axis=1)
    w_bn_b = jnp.concatenate([nrm(next(keys), (BN_DIM, DF_FREQ)),
                              nrm(next(keys), (BN_DIM, 1))], axis=1)
    w_out_b = jnp.concatenate([nrm(next(keys), (OUT_CH, BN_DIM)),
                               nrm(next(keys), (OUT_CH, 1))], axis=1)

    w_mats_cols, vec_cols, alphas = [], [], []
    for _ in range(NB):
        w1 = nrm(next(keys), (BN_DIM, BN_DIM))               # conv1d (1x1) weight
        b1 = nrm(next(keys), (BN_DIM,))
        g1 = jnp.ones((BN_DIM,), jnp.float32)
        be1 = jnp.zeros((BN_DIM,), jnp.float32)
        wd = nrm(next(keys), (H_DIM, 1, 3))                  # dconv1d weight (H,1,3)
        bd = nrm(next(keys), (H_DIM,))
        g2 = jnp.ones((H_DIM,), jnp.float32)
        be2 = jnp.zeros((H_DIM,), jnp.float32)
        wr = nrm(next(keys), (BN_DIM, H_DIM))                # res_out (1x1) weight
        br = nrm(next(keys), (BN_DIM,))

        # grouped conv: out channels 2c (even) / 2c+1 (odd) both read in-channel c
        we = wd[0::2, 0, :]                                  # (BN, 3) even outputs
        wo = wd[1::2, 0, :]                                  # (BN, 3) odd outputs
        vec_cols.append(jnp.stack(
            [b1, g1, be1, br,
             bd[0::2], bd[1::2], g2[0::2], g2[1::2], be2[0::2], be2[1::2],
             we[:, 0], we[:, 1], we[:, 2], wo[:, 0], wo[:, 1], wo[:, 2]],
            axis=1))                                         # (BN, 16)
        w_mats_cols.append(jnp.concatenate(
            [w1, wr[:, 0::2], wr[:, 1::2]], axis=1))         # (BN, 48)
        alphas += [0.25, 0.25]                               # PReLU defaults
    alphas.append(0.25)                                      # head PReLU

    return {
        "alphas": jnp.asarray(alphas, jnp.float32),          # (2*NB + 1,)
        "ln_gb": ln_gb,                                      # (DF, 2)
        "w_bn_b": w_bn_b,                                    # (BN, DF+1)
        "w_out_b": w_out_b,                                  # (OUT, BN+1)
        "w_mats": jnp.concatenate(w_mats_cols, axis=1),      # (BN, 48*NB)
        "vecs": jnp.concatenate(vec_cols, axis=1),           # (BN, 16*NB)
    }


# ----------------------------- full forward ---------------------------------
def separation_model_forward(params, x, doa, df):
    del doa  # unused by the torch forward as well
    df = df.astype(jnp.float32)
    B = x.shape[0]
    num_samples = x.shape[-1]

    stft = stft_jax(x, N_FFT, HOP)                    # (B, ch, F, frames) complex
    stft = stft.at[:, :, 0, :].set(0.0)               # stft[:, :, 0, :] = 0
    # TODO(synk): the power-spectrum + AmplitudeToDB branch of the torch forward
    # is dead code (its result is never consumed); skipped.

    s0 = stft[:, 0]                                   # (B, F, T)
    t = s0.shape[-1]

    # lane-fold the batch: (B, C, T) -> (C, B*T) with T fastest (contiguous
    # 16-frame segments per sample; 8 samples fill one 128-lane grid step).
    df2 = jnp.transpose(df, (1, 0, 2)).reshape(DF_FREQ, B * t)
    re2 = jnp.transpose(jnp.real(s0).astype(jnp.float32), (1, 0, 2)).reshape(N_FFT_H, B * t)
    im2 = jnp.transpose(jnp.imag(s0).astype(jnp.float32), (1, 0, 2)).reshape(N_FFT_H, B * t)

    # Fused TCN mask estimator + mask application (single Pallas kernel).
    est_re, est_im = fused_tcn_mask(df2, re2, im2, params)   # (S*F, B*T) each

    est = (est_re + 1j * est_im).astype(jnp.complex64)
    est = est.reshape(NUM_SPK, N_FFT_H, B, t)
    est = jnp.transpose(est, (2, 0, 1, 3))            # (B, S, F, T)
    return istft_jax(est, N_FFT, HOP, num_samples)    # (B, num_spk, num_samples)


# ----------------------------- main ------------------------------------------
if __name__ == "__main__":
    key = jax.random.PRNGKey(0)
    k_x, k_doa, k_df, k_p = jax.random.split(key, 4)

    B = 16                                            # 2 lane-dense grid steps
    x = jax.random.normal(k_x, (B, 1, NUM_SAMPLES), dtype=jnp.float32)
    doa = jax.random.normal(k_doa, (B, 2), dtype=jnp.float32)            # unused
    df = jax.random.normal(k_df, (B, DF_FREQ, T_FRAMES), dtype=jnp.float32)

    params = init_params(k_p)

    fwd = jax.jit(separation_model_forward)
    out = jax.block_until_ready(fwd(params, x, doa, df))
    assert out.shape == (B, NUM_SPK, NUM_SAMPLES), out.shape
    assert bool(jnp.all(jnp.isfinite(out)))
    print("KERNEL_OK")
</pallas_src>

<mosaic_0001>
module attributes {stable_mosaic.version = 11 : i64} {
  func.func private @main(%arg0: i32) attributes {dimension_semantics = [#tpu.dimension_semantics<core_parallel>], iteration_bounds = array<i64: 2>, tpu.core_type = #tpu.core_type<sc_scalar_subcore>, window_params = []} {
    return
  }
}

module attributes {stable_mosaic.version = 11 : i64} {
  func.func private @main(%arg0: i32) attributes {dimension_semantics = [#tpu.dimension_semantics<core_parallel>], iteration_bounds = array<i64: 2>, tpu.core_type = #tpu.core_type<sc_scalar_subcore>, window_params = []} {
    return
  }
}

module attributes {stable_mosaic.version = 11 : i64} {
  func.func @fused_tcn_kernel(%arg0: i32, %arg1: memref<9xf32, #tpu.memory_space<smem>>, %arg2: memref<45x128xf32, #tpu.memory_space<vmem>>, %arg3: memref<9x128xf32, #tpu.memory_space<vmem>>, %arg4: memref<9x128xf32, #tpu.memory_space<vmem>>, %arg5: memref<45x2xf32, #tpu.memory_space<vmem>>, %arg6: memref<16x46xf32, #tpu.memory_space<vmem>>, %arg7: memref<18x17xf32, #tpu.memory_space<vmem>>, %arg8: memref<16x192xf32, #tpu.memory_space<vmem>>, %arg9: memref<16x64xf32, #tpu.memory_space<vmem>>, %arg10: memref<18x128xf32, #tpu.memory_space<vmem>>, %arg11: memref<18x128xf32, #tpu.memory_space<vmem>>) attributes {dimension_semantics = [#tpu.dimension_semantics<parallel>], iteration_bounds = array<i64: 2>, scalar_prefetch = 0 : i64, scratch_operands = 0 : i64, tpu.core_type = #tpu.core_type<tc>, window_params = [{transform_indices = @transform_0, window_bounds = array<i64: 9>}, {transform_indices = @transform_1, window_bounds = array<i64: 45, 128>}, {transform_indices = @transform_2, window_bounds = array<i64: 9, 128>}, {transform_indices = @transform_3, window_bounds = array<i64: 9, 128>}, {pipeline_mode = #tpu.pipeline_mode<synchronous>, transform_indices = @transform_4, window_bounds = array<i64: 45, 2>}, {pipeline_mode = #tpu.pipeline_mode<synchronous>, transform_indices = @transform_5, window_bounds = array<i64: 16, 46>}, {pipeline_mode = #tpu.pipeline_mode<synchronous>, transform_indices = @transform_6, window_bounds = array<i64: 18, 17>}, {pipeline_mode = #tpu.pipeline_mode<synchronous>, transform_indices = @transform_7, window_bounds = array<i64: 16, 192>}, {pipeline_mode = #tpu.pipeline_mode<synchronous>, transform_indices = @transform_8, window_bounds = array<i64: 16, 64>}, {transform_indices = @transform_9, window_bounds = array<i64: 18, 128>}, {transform_indices = @transform_10, window_bounds = array<i64: 18, 128>}]} {
    %0 = tpu.iota {dimensions = array<i32: 0>} : vector<128x128xi32>
    %c4_i32 = arith.constant 4 : i32
    %1 = vector.broadcast %c4_i32 : i32 to vector<128x128xi32>
    %2 = arith.shrsi %0, %1 : vector<128x128xi32>
    %3 = tpu.iota {dimensions = array<i32: 1>} : vector<128x128xi32>
    %c4_i32_0 = arith.constant 4 : i32
    %4 = vector.broadcast %c4_i32_0 : i32 to vector<128x128xi32>
    %5 = arith.shrsi %3, %4 : vector<128x128xi32>
    %6 = arith.cmpi eq, %2, %5 : vector<128x128xi32>
    %cst = arith.constant 1.000000e+00 : f32
    %cst_1 = arith.constant 0.000000e+00 : f32
    %7 = vector.broadcast %cst : f32 to vector<128x128xf32>
    %8 = vector.broadcast %cst_1 : f32 to vector<128x128xf32>
    %9 = arith.select %6, %7, %8 : vector<128x128xi1>, vector<128x128xf32>
    %10 = tpu.iota {dimensions = array<i32: 1>} : vector<1x128xi32>
    %c15_i32 = arith.constant 15 : i32
    %11 = vector.broadcast %c15_i32 : i32 to vector<1x128xi32>
    %12 = arith.andi %10, %11 : vector<1x128xi32>
    %c0 = arith.constant 0 : index
    %c0_2 = arith.constant 0 : index
    %13 = vector.load %arg2[%c0, %c0_2] : memref<45x128xf32, #tpu.memory_space<vmem>>, vector<45x128xf32>
    %c0_3 = arith.constant 0 : index
    %c0_4 = arith.constant 0 : index
    %14 = vector.load %arg5[%c0_3, %c0_4] : memref<45x2xf32, #tpu.memory_space<vmem>>, vector<45x1xf32>
    %c0_5 = arith.constant 0 : index
    %c1 = arith.constant 1 : index
    %15 = vector.load %arg5[%c0_5, %c1] : memref<45x2xf32, #tpu.memory_space<vmem>>, vector<45x1xf32>
    %cst_6 = arith.constant dense<0.000000e+00> : vector<128xf32>
    %16 = vector.multi_reduction <add>, %13, %cst_6 [0] : vector<45x128xf32> to vector<128xf32>
    %17 = vector.shape_cast %16 : vector<128xf32> to vector<1x128xf32>
    %18 = arith.mulf %13, %13 : vector<45x128xf32>
    %cst_7 = arith.constant dense<0.000000e+00> : vector<128xf32>
    %19 = vector.multi_reduction <add>, %18, %cst_7 [0] : vector<45x128xf32> to vector<128xf32>
    %20 = vector.shape_cast %19 : vector<128xf32> to vector<1x128xf32>
    %21 = tpu.concatenate %17, %20 in 0 : vector<1x128xf32>, vector<1x128xf32> -> vector<2x128xf32>
    %cst_8 = arith.constant dense<0.000000e+00> : vector<2x128xf32>
    %22 = tpu.matmul %21, %9, %cst_8 {dimension_numbers = #tpu.dot_dimension_numbers<[1], [0], [0], [1], [0, 0, 1, 1], [], []>} : vector<2x128xf32>, vector<128x128xf32>, vector<2x128xf32> -> vector<2x128xf32>
    %cst_9 = arith.constant 0.00138888892 : f32
    %23 = vector.broadcast %cst_9 : f32 to vector<2x128xf32>
    %24 = arith.mulf %22, %23 : vector<2x128xf32>
    %25 = vector.extract_strided_slice %24 {offsets = [0, 0], sizes = [1, 128], strides = [1, 1]} : vector<2x128xf32> to vector<1x128xf32>
    %26 = vector.extract_strided_slice %24 {offsets = [1, 0], sizes = [1, 128], strides = [1, 1]} : vector<2x128xf32> to vector<1x128xf32>
    %27 = arith.mulf %25, %25 : vector<1x128xf32>
    %28 = arith.subf %26, %27 : vector<1x128xf32>
    %cst_10 = arith.constant 0.000000e+00 : f32
    %29 = vector.broadcast %cst_10 : f32 to vector<1x128xf32>
    %30 = arith.maximumf %28, %29 : vector<1x128xf32>
    %cst_11 = arith.constant 9.99999993E-9 : f32
    %31 = vector.broadcast %cst_11 : f32 to vector<1x128xf32>
    %32 = arith.addf %30, %31 : vector<1x128xf32>
    %33 = math.rsqrt %32 : vector<1x128xf32>
    %34 = vector.broadcast %25 : vector<1x128xf32> to vector<45x128xf32>
    %35 = arith.subf %13, %34 : vector<45x128xf32>
    %36 = vector.broadcast %33 : vector<1x128xf32> to vector<45x128xf32>
    %37 = arith.mulf %35, %36 : vector<45x128xf32>
    %38 = vector.broadcast %14 : vector<45x1xf32> to vector<45x128xf32>
    %39 = arith.mulf %37, %38 : vector<45x128xf32>
    %40 = vector.broadcast %15 : vector<45x1xf32> to vector<45x128xf32>
    %41 = arith.addf %39, %40 : vector<45x128xf32>
    %c0_12 = arith.constant 0 : index
    %c0_13 = arith.constant 0 : index
    %42 = vector.load %arg6[%c0_12, %c0_13] : memref<16x46xf32, #tpu.memory_space<vmem>>, vector<16x45xf32>
    %cst_14 = arith.constant dense<0.000000e+00> : vector<16x128xf32>
    %43 = tpu.matmul %42, %41, %cst_14 {dimension_numbers = #tpu.dot_dimension_numbers<[1], [0], [0], [1], [0, 0, 1, 1], [], []>} : vector<16x45xf32>, vector<45x128xf32>, vector<16x128xf32> -> vector<16x128xf32>
    %c0_15 = arith.constant 0 : index
    %c45 = arith.constant 45 : index
    %44 = vector.load %arg6[%c0_15, %c45] : memref<16x46xf32, #tpu.memory_space<vmem>>, vector<16x1xf32>
    %45 = vector.broadcast %44 : vector<16x1xf32> to vector<16x128xf32>
    %46 = arith.addf %43, %45 : vector<16x128xf32>
    %c0_16 = arith.constant 0 : index
    %c0_17 = arith.constant 0 : index
    %47 = vector.load %arg9[%c0_16, %c0_17] : memref<16x64xf32, #tpu.memory_space<vmem>>, vector<16x16xf32>
    %c0_18 = arith.constant 0 : index
    %c0_19 = arith.constant 0 : index
    %48 = vector.load %arg8[%c0_18, %c0_19] : memref<16x192xf32, #tpu.memory_space<vmem>>, vector<16x16xf32>
    %c0_20 = arith.constant 0 : index
    %c16 = arith.constant 16 : index
    %49 = vector.load %arg8[%c0_20, %c16] : memref<16x192xf32, #tpu.memory_space<vmem>>, vector<16x16xf32>
    %c0_21 = arith.constant 0 : index
    %c32 = arith.constant 32 : index
    %50 = vector.load %arg8[%c0_21, %c32] : memref<16x192xf32, #tpu.memory_space<vmem>>, vector<16x16xf32>
    %c0_22 = arith.constant 0 : index
    %51 = memref.load %arg1[%c0_22] : memref<9xf32, #tpu.memory_space<smem>>
    %c1_23 = arith.constant 1 : index
    %52 = memref.load %arg1[%c1_23] : memref<9xf32, #tpu.memory_space<smem>>
    %cst_24 = arith.constant dense<0.000000e+00> : vector<16x128xf32>
    %53 = tpu.matmul %48, %46, %cst_24 {dimension_numbers = #tpu.dot_dimension_numbers<[1], [0], [0], [1], [0, 0, 1, 1], [], []>} : vector<16x16xf32>, vector<16x128xf32>, vector<16x128xf32> -> vector<16x128xf32>
    %54 = vector.extract_strided_slice %47 {offsets = [0, 0], sizes = [16, 1], strides = [1, 1]} : vector<16x16xf32> to vector<16x1xf32>
    %55 = vector.broadcast %54 : vector<16x1xf32> to vector<16x128xf32>
    %56 = arith.addf %53, %55 : vector<16x128xf32>
    %cst_25 = arith.constant 0.000000e+00 : f32
    %57 = vector.broadcast %cst_25 : f32 to vector<16x128xf32>
    %58 = arith.cmpf ogt, %56, %57 : vector<16x128xf32>
    %59 = vector.broadcast %51 : f32 to vector<16x128xf32>
    %60 = arith.mulf %59, %56 : vector<16x128xf32>
    %61 = arith.select %58, %56, %60 : vector<16x128xi1>, vector<16x128xf32>
    %62 = vector.extract_strided_slice %47 {offsets = [0, 1], sizes = [16, 1], strides = [1, 1]} : vector<16x16xf32> to vector<16x1xf32>
    %63 = vector.extract_strided_slice %47 {offsets = [0, 2], sizes = [16, 1], strides = [1, 1]} : vector<16x16xf32> to vector<16x1xf32>
    %cst_26 = arith.constant dense<0.000000e+00> : vector<128xf32>
    %64 = vector.multi_reduction <add>, %61, %cst_26 [0] : vector<16x128xf32> to vector<128xf32>
    %65 = vector.shape_cast %64 : vector<128xf32> to vector<1x128xf32>
    %66 = arith.mulf %61, %61 : vector<16x128xf32>
    %cst_27 = arith.constant dense<0.000000e+00> : vector<128xf32>
    %67 = vector.multi_reduction <add>, %66, %cst_27 [0] : vector<16x128xf32> to vector<128xf32>
    %68 = vector.shape_cast %67 : vector<128xf32> to vector<1x128xf32>
    %69 = tpu.concatenate %65, %68 in 0 : vector<1x128xf32>, vector<1x128xf32> -> vector<2x128xf32>
    %cst_28 = arith.constant dense<0.000000e+00> : vector<2x128xf32>
    %70 = tpu.matmul %69, %9, %cst_28 {dimension_numbers = #tpu.dot_dimension_numbers<[1], [0], [0], [1], [0, 0, 1, 1], [], []>} : vector<2x128xf32>, vector<128x128xf32>, vector<2x128xf32> -> vector<2x128xf32>
    %cst_29 = arith.constant 3.906250e-03 : f32
    %71 = vector.broadcast %cst_29 : f32 to vector<2x128xf32>
    %72 = arith.mulf %70, %71 : vector<2x128xf32>
    %73 = vector.extract_strided_slice %72 {offsets = [0, 0], sizes = [1, 128], strides = [1, 1]} : vector<2x128xf32> to vector<1x128xf32>
    %74 = vector.extract_strided_slice %72 {offsets = [1, 0], sizes = [1, 128], strides = [1, 1]} : vector<2x128xf32> to vector<1x128xf32>
    %75 = arith.mulf %73, %73 : vector<1x128xf32>
    %76 = arith.subf %74, %75 : vector<1x128xf32>
    %cst_30 = arith.constant 0.000000e+00 : f32
    %77 = vector.broadcast %cst_30 : f32 to vector<1x128xf32>
    %78 = arith.maximumf %76, %77 : vector<1x128xf32>
    %cst_31 = arith.constant 9.99999993E-9 : f32
    %79 = vector.broadcast %cst_31 : f32 to vector<1x128xf32>
    %80 = arith.addf %78, %79 : vector<1x128xf32>
    %81 = math.rsqrt %80 : vector<1x128xf32>
    %82 = vector.broadcast %73 : vector<1x128xf32> to vector<16x128xf32>
    %83 = arith.subf %61, %82 : vector<16x128xf32>
    %84 = vector.broadcast %81 : vector<1x128xf32> to vector<16x128xf32>
    %85 = arith.mulf %83, %84 : vector<16x128xf32>
    %86 = vector.broadcast %62 : vector<16x1xf32> to vector<16x128xf32>
    %87 = arith.mulf %85, %86 : vector<16x128xf32>
    %88 = vector.broadcast %63 : vector<16x1xf32> to vector<16x128xf32>
    %89 = arith.addf %87, %88 : vector<16x128xf32>
    %c1_i32 = arith.constant 1 : i32
    %90 = vector.broadcast %c1_i32 : i32 to vector<1x128xi32>
    %91 = arith.cmpi sge, %12, %90 : vector<1x128xi32>
    %c1_i32_32 = arith.constant 1 : i32
    %92 = tpu.dynamic_rotate %89 by %c1_i32_32 dim 1 : vector<16x128xf32>, i32 -> vector<16x128xf32>
    %cst_33 = arith.constant 0.000000e+00 : f32
    %93 = vector.shape_cast %91 : vector<1x128xi1> to vector<1x128xi1>
    %94 = vector.broadcast %93 : vector<1x128xi1> to vector<16x128xi1>
    %95 = vector.broadcast %cst_33 : f32 to vector<16x128xf32>
    %96 = arith.select %94, %92, %95 : vector<16x128xi1>, vector<16x128xf32>
    %c15_i32_34 = arith.constant 15 : i32
    %97 = vector.broadcast %c15_i32_34 : i32 to vector<1x128xi32>
    %98 = arith.cmpi slt, %12, %97 : vector<1x128xi32>
    %c127_i32 = arith.constant 127 : i32
    %99 = tpu.dynamic_rotate %89 by %c127_i32 dim 1 : vector<16x128xf32>, i32 -> vector<16x128xf32>
    %cst_35 = arith.constant 0.000000e+00 : f32
    %100 = vector.shape_cast %98 : vector<1x128xi1> to vector<1x128xi1>
    %101 = vector.broadcast %100 : vector<1x128xi1> to vector<16x128xi1>
    %102 = vector.broadcast %cst_35 : f32 to vector<16x128xf32>
    %103 = arith.select %101, %99, %102 : vector<16x128xi1>, vector<16x128xf32>
    %104 = vector.extract_strided_slice %47 {offsets = [0, 10], sizes = [16, 1], strides = [1, 1]} : vector<16x16xf32> to vector<16x1xf32>
    %105 = vector.broadcast %104 : vector<16x1xf32> to vector<16x128xf32>
    %106 = arith.mulf %105, %96 : vector<16x128xf32>
    %107 = vector.extract_strided_slice %47 {offsets = [0, 11], sizes = [16, 1], strides = [1, 1]} : vector<16x16xf32> to vector<16x1xf32>
    %108 = vector.broadcast %107 : vector<16x1xf32> to vector<16x128xf32>
    %109 = arith.mulf %108, %89 : vector<16x128xf32>
    %110 = arith.addf %106, %109 : vector<16x128xf32>
    %111 = vector.extract_strided_slice %47 {offsets = [0, 12], sizes = [16, 1], strides = [1, 1]} : vector<16x16xf32> to vector<16x1xf32>
    %112 = vector.broadcast %111 : vector<16x1xf32> to vector<16x128xf32>
    %113 = arith.mulf %112, %103 : vector<16x128xf32>
    %114 = arith.addf %110, %113 : vector<16x128xf32>
    %115 = vector.extract_strided_slice %47 {offsets = [0, 4], sizes = [16, 1], strides = [1, 1]} : vector<16x16xf32> to vector<16x1xf32>
    %116 = vector.broadcast %115 : vector<16x1xf32> to vector<16x128xf32>
    %117 = arith.addf %114, %116 : vector<16x128xf32>
    %118 = vector.extract_strided_slice %47 {offsets = [0, 13], sizes = [16, 1], strides = [1, 1]} : vector<16x16xf32> to vector<16x1xf32>
    %119 = vector.broadcast %118 : vector<16x1xf32> to vector<16x128xf32>
    %120 = arith.mulf %119, %96 : vector<16x128xf32>
    %121 = vector.extract_strided_slice %47 {offsets = [0, 14], sizes = [16, 1], strides = [1, 1]} : vector<16x16xf32> to vector<16x1xf32>
    %122 = vector.broadcast %121 : vector<16x1xf32> to vector<16x128xf32>
    %123 = arith.mulf %122, %89 : vector<16x128xf32>
    %124 = arith.addf %120, %123 : vector<16x128xf32>
    %125 = vector.extract_strided_slice %47 {offsets = [0, 15], sizes = [16, 1], strides = [1, 1]} : vector<16x16xf32> to vector<16x1xf32>
    %126 = vector.broadcast %125 : vector<16x1xf32> to vector<16x128xf32>
    %127 = arith.mulf %126, %103 : vector<16x128xf32>
    %128 = arith.addf %124, %127 : vector<16x128xf32>
    %129 = vector.extract_strided_slice %47 {offsets = [0, 5], sizes = [16, 1], strides = [1, 1]} : vector<16x16xf32> to vector<16x1xf32>
    %130 = vector.broadcast %129 : vector<16x1xf32> to vector<16x128xf32>
    %131 = arith.addf %128, %130 : vector<16x128xf32>
    %cst_36 = arith.constant 0.000000e+00 : f32
    %132 = vector.broadcast %cst_36 : f32 to vector<16x128xf32>
    %133 = arith.cmpf ogt, %117, %132 : vector<16x128xf32>
    %134 = vector.broadcast %52 : f32 to vector<16x128xf32>
    %135 = arith.mulf %134, %117 : vector<16x128xf32>
    %136 = arith.select %133, %117, %135 : vector<16x128xi1>, vector<16x128xf32>
    %cst_37 = arith.constant 0.000000e+00 : f32
    %137 = vector.broadcast %cst_37 : f32 to vector<16x128xf32>
    %138 = arith.cmpf ogt, %131, %137 : vector<16x128xf32>
    %139 = vector.broadcast %52 : f32 to vector<16x128xf32>
    %140 = arith.mulf %139, %131 : vector<16x128xf32>
    %141 = arith.select %138, %131, %140 : vector<16x128xi1>, vector<16x128xf32>
    %142 = vector.extract_strided_slice %47 {offsets = [0, 6], sizes = [16, 1], strides = [1, 1]} : vector<16x16xf32> to vector<16x1xf32>
    %143 = vector.extract_strided_slice %47 {offsets = [0, 7], sizes = [16, 1], strides = [1, 1]} : vector<16x16xf32> to vector<16x1xf32>
    %144 = vector.extract_strided_slice %47 {offsets = [0, 8], sizes = [16, 1], strides = [1, 1]} : vector<16x16xf32> to vector<16x1xf32>
    %145 = vector.extract_strided_slice %47 {offsets = [0, 9], sizes = [16, 1], strides = [1, 1]} : vector<16x16xf32> to vector<16x1xf32>
    %cst_38 = arith.constant dense<0.000000e+00> : vector<128xf32>
    %146 = vector.multi_reduction <add>, %136, %cst_38 [0] : vector<16x128xf32> to vector<128xf32>
    %147 = vector.shape_cast %146 : vector<128xf32> to vector<1x128xf32>
    %148 = arith.mulf %136, %136 : vector<16x128xf32>
    %cst_39 = arith.constant dense<0.000000e+00> : vector<128xf32>
    %149 = vector.multi_reduction <add>, %148, %cst_39 [0] : vector<16x128xf32> to vector<128xf32>
    %150 = vector.shape_cast %149 : vector<128xf32> to vector<1x128xf32>
    %cst_40 = arith.constant dense<0.000000e+00> : vector<128xf32>
    %151 = vector.multi_reduction <add>, %141, %cst_40 [0] : vector<16x128xf32> to vector<128xf32>
    %152 = vector.shape_cast %151 : vector<128xf32> to vector<1x128xf32>
    %153 = arith.addf %147, %152 : vector<1x128xf32>
    %154 = arith.mulf %141, %141 : vector<16x128xf32>
    %cst_41 = arith.constant dense<0.000000e+00> : vector<128xf32>
    %155 = vector.multi_reduction <add>, %154, %cst_41 [0] : vector<16x128xf32> to vector<128xf32>
    %156 = vector.shape_cast %155 : vector<128xf32> to vector<1x128xf32>
    %157 = arith.addf %150, %156 : vector<1x128xf32>
    %158 = tpu.concatenate %153, %157 in 0 : vector<1x128xf32>, vector<1x128xf32> -> vector<2x128xf32>
    %cst_42 = arith.constant dense<0.000000e+00> : vector<2x128xf32>
    %159 = tpu.matmul %158, %9, %cst_42 {dimension_numbers = #tpu.dot_dimension_numbers<[1], [0], [0], [1], [0, 0, 1, 1], [], []>} : vector<2x128xf32>, vector<128x128xf32>, vector<2x128xf32> -> vector<2x128xf32>
    %cst_43 = arith.constant 0.001953125 : f32
    %160 = vector.broadcast %cst_43 : f32 to vector<2x128xf32>
    %161 = arith.mulf %159, %160 : vector<2x128xf32>
    %162 = vector.extract_strided_slice %161 {offsets = [0, 0], sizes = [1, 128], strides = [1, 1]} : vector<2x128xf32> to vector<1x128xf32>
    %163 = vector.extract_strided_slice %161 {offsets = [1, 0], sizes = [1, 128], strides = [1, 1]} : vector<2x128xf32> to vector<1x128xf32>
    %164 = arith.mulf %162, %162 : vector<1x128xf32>
    %165 = arith.subf %163, %164 : vector<1x128xf32>
    %cst_44 = arith.constant 0.000000e+00 : f32
    %166 = vector.broadcast %cst_44 : f32 to vector<1x128xf32>
    %167 = arith.maximumf %165, %166 : vector<1x128xf32>
    %cst_45 = arith.constant 9.99999993E-9 : f32
    %168 = vector.broadcast %cst_45 : f32 to vector<1x128xf32>
    %169 = arith.addf %167, %168 : vector<1x128xf32>
    %170 = math.rsqrt %169 : vector<1x128xf32>
    %171 = vector.broadcast %162 : vector<1x128xf32> to vector<16x128xf32>
    %172 = arith.subf %136, %171 : vector<16x128xf32>
    %173 = vector.broadcast %170 : vector<1x128xf32> to vector<16x128xf32>
    %174 = arith.mulf %172, %173 : vector<16x128xf32>
    %175 = vector.broadcast %142 : vector<16x1xf32> to vector<16x128xf32>
    %176 = arith.mulf %174, %175 : vector<16x128xf32>
    %177 = vector.broadcast %144 : vector<16x1xf32> to vector<16x128xf32>
    %178 = arith.addf %176, %177 : vector<16x128xf32>
    %179 = vector.broadcast %162 : vector<1x128xf32> to vector<16x128xf32>
    %180 = arith.subf %141, %179 : vector<16x128xf32>
    %181 = vector.broadcast %170 : vector<1x128xf32> to vector<16x128xf32>
    %182 = arith.mulf %180, %181 : vector<16x128xf32>
    %183 = vector.broadcast %143 : vector<16x1xf32> to vector<16x128xf32>
    %184 = arith.mulf %182, %183 : vector<16x128xf32>
    %185 = vector.broadcast %145 : vector<16x1xf32> to vector<16x128xf32>
    %186 = arith.addf %184, %185 : vector<16x128xf32>
    %187 = vector.extract_strided_slice %47 {offsets = [0, 3], sizes = [16, 1], strides = [1, 1]} : vector<16x16xf32> to vector<16x1xf32>
    %188 = vector.broadcast %187 : vector<16x1xf32> to vector<16x128xf32>
    %189 = arith.addf %46, %188 : vector<16x128xf32>
    %cst_46 = arith.constant dense<0.000000e+00> : vector<16x128xf32>
    %190 = tpu.matmul %49, %178, %cst_46 {dimension_numbers = #tpu.dot_dimension_numbers<[1], [0], [0], [1], [0, 0, 1, 1], [], []>} : vector<16x16xf32>, vector<16x128xf32>, vector<16x128xf32> -> vector<16x128xf32>
    %191 = arith.addf %189, %190 : vector<16x128xf32>
    %cst_47 = arith.constant dense<0.000000e+00> : vector<16x128xf32>
    %192 = tpu.matmul %50, %186, %cst_47 {dimension_numbers = #tpu.dot_dimension_numbers<[1], [0], [0], [1], [0, 0, 1, 1], [], []>} : vector<16x16xf32>, vector<16x128xf32>, vector<16x128xf32> -> vector<16x128xf32>
    %193 = arith.addf %191, %192 : vector<16x128xf32>
    %c0_48 = arith.constant 0 : index
    %c16_49 = arith.constant 16 : index
    %194 = vector.load %arg9[%c0_48, %c16_49] : memref<16x64xf32, #tpu.memory_space<vmem>>, vector<16x16xf32>
    %c0_50 = arith.constant 0 : index
    %c48 = arith.constant 48 : index
    %195 = vector.load %arg8[%c0_50, %c48] : memref<16x192xf32, #tpu.memory_space<vmem>>, vector<16x16xf32>
    %c0_51 = arith.constant 0 : index
    %c64 = arith.constant 64 : index
    %196 = vector.load %arg8[%c0_51, %c64] : memref<16x192xf32, #tpu.memory_space<vmem>>, vector<16x16xf32>
    %c0_52 = arith.constant 0 : index
    %c80 = arith.constant 80 : index
    %197 = vector.load %arg8[%c0_52, %c80] : memref<16x192xf32, #tpu.memory_space<vmem>>, vector<16x16xf32>
    %c2 = arith.constant 2 : index
    %198 = memref.load %arg1[%c2] : memref<9xf32, #tpu.memory_space<smem>>
    %c3 = arith.constant 3 : index
    %199 = memref.load %arg1[%c3] : memref<9xf32, #tpu.memory_space<smem>>
    %cst_53 = arith.constant dense<0.000000e+00> : vector<16x128xf32>
    %200 = tpu.matmul %195, %193, %cst_53 {dimension_numbers = #tpu.dot_dimension_numbers<[1], [0], [0], [1], [0, 0, 1, 1], [], []>} : vector<16x16xf32>, vector<16x128xf32>, vector<16x128xf32> -> vector<16x128xf32>
    %201 = vector.extract_strided_slice %194 {offsets = [0, 0], sizes = [16, 1], strides = [1, 1]} : vector<16x16xf32> to vector<16x1xf32>
    %202 = vector.broadcast %201 : vector<16x1xf32> to vector<16x128xf32>
    %203 = arith.addf %200, %202 : vector<16x128xf32>
    %cst_54 = arith.constant 0.000000e+00 : f32
    %204 = vector.broadcast %cst_54 : f32 to vector<16x128xf32>
    %205 = arith.cmpf ogt, %203, %204 : vector<16x128xf32>
    %206 = vector.broadcast %198 : f32 to vector<16x128xf32>
    %207 = arith.mulf %206, %203 : vector<16x128xf32>
    %208 = arith.select %205, %203, %207 : vector<16x128xi1>, vector<16x128xf32>
    %209 = vector.extract_strided_slice %194 {offsets = [0, 1], sizes = [16, 1], strides = [1, 1]} : vector<16x16xf32> to vector<16x1xf32>
    %210 = vector.extract_strided_slice %194 {offsets = [0, 2], sizes = [16, 1], strides = [1, 1]} : vector<16x16xf32> to vector<16x1xf32>
    %cst_55 = arith.constant dense<0.000000e+00> : vector<128xf32>
    %211 = vector.multi_reduction <add>, %208, %cst_55 [0] : vector<16x128xf32> to vector<128xf32>
    %212 = vector.shape_cast %211 : vector<128xf32> to vector<1x128xf32>
    %213 = arith.mulf %208, %208 : vector<16x128xf32>
    %cst_56 = arith.constant dense<0.000000e+00> : vector<128xf32>
    %214 = vector.multi_reduction <add>, %213, %cst_56 [0] : vector<16x128xf32> to vector<128xf32>
    %215 = vector.shape_cast %214 : vector<128xf32> to vector<1x128xf32>
    %216 = tpu.concatenate %212, %215 in 0 : vector<1x128xf32>, vector<1x128xf32> -> vector<2x128xf32>
    %cst_57 = arith.constant dense<0.000000e+00> : vector<2x128xf32>
    %217 = tpu.matmul %216, %9, %cst_57 {dimension_numbers = #tpu.dot_dimension_numbers<[1], [0], [0], [1], [0, 0, 1, 1], [], []>} : vector<2x128xf32>, vector<128x128xf32>, vector<2x128xf32> -> vector<2x128xf32>
    %cst_58 = arith.constant 3.906250e-03 : f32
    %218 = vector.broadcast %cst_58 : f32 to vector<2x128xf32>
    %219 = arith.mulf %217, %218 : vector<2x128xf32>
    %220 = vector.extract_strided_slice %219 {offsets = [0, 0], sizes = [1, 128], strides = [1, 1]} : vector<2x128xf32> to vector<1x128xf32>
    %221 = vector.extract_strided_slice %219 {offsets = [1, 0], sizes = [1, 128], strides = [1, 1]} : vector<2x128xf32> to vector<1x128xf32>
    %222 = arith.mulf %220, %220 : vector<1x128xf32>
    %223 = arith.subf %221, %222 : vector<1x128xf32>
    %cst_59 = arith.constant 0.000000e+00 : f32
    %224 = vector.broadcast %cst_59 : f32 to vector<1x128xf32>
    %225 = arith.maximumf %223, %224 : vector<1x128xf32>
    %cst_60 = arith.constant 9.99999993E-9 : f32
    %226 = vector.broadcast %cst_60 : f32 to vector<1x128xf32>
    %227 = arith.addf %225, %226 : vector<1x128xf32>
    %228 = math.rsqrt %227 : vector<1x128xf32>
    %229 = vector.broadcast %220 : vector<1x128xf32> to vector<16x128xf32>
    %230 = arith.subf %208, %229 : vector<16x128xf32>
    %231 = vector.broadcast %228 : vector<1x128xf32> to vector<16x128xf32>
    %232 = arith.mulf %230, %231 : vector<16x128xf32>
    %233 = vector.broadcast %209 : vector<16x1xf32> to vector<16x128xf32>
    %234 = arith.mulf %232, %233 : vector<16x128xf32>
    %235 = vector.broadcast %210 : vector<16x1xf32> to vector<16x128xf32>
    %236 = arith.addf %234, %235 : vector<16x128xf32>
    %c2_i32 = arith.constant 2 : i32
    %237 = vector.broadcast %c2_i32 : i32 to vector<1x128xi32>
    %238 = arith.cmpi sge, %12, %237 : vector<1x128xi32>
    %c2_i32_61 = arith.constant 2 : i32
    %239 = tpu.dynamic_rotate %236 by %c2_i32_61 dim 1 : vector<16x128xf32>, i32 -> vector<16x128xf32>
    %cst_62 = arith.constant 0.000000e+00 : f32
    %240 = vector.shape_cast %238 : vector<1x128xi1> to vector<1x128xi1>
    %241 = vector.broadcast %240 : vector<1x128xi1> to vector<16x128xi1>
    %242 = vector.broadcast %cst_62 : f32 to vector<16x128xf32>
    %243 = arith.select %241, %239, %242 : vector<16x128xi1>, vector<16x128xf32>
    %c14_i32 = arith.constant 14 : i32
    %244 = vector.broadcast %c14_i32 : i32 to vector<1x128xi32>
    %245 = arith.cmpi slt, %12, %244 : vector<1x128xi32>
    %c126_i32 = arith.constant 126 : i32
    %246 = tpu.dynamic_rotate %236 by %c126_i32 dim 1 : vector<16x128xf32>, i32 -> vector<16x128xf32>
    %cst_63 = arith.constant 0.000000e+00 : f32
    %247 = vector.shape_cast %245 : vector<1x128xi1> to vector<1x128xi1>
    %248 = vector.broadcast %247 : vector<1x128xi1> to vector<16x128xi1>
    %249 = vector.broadcast %cst_63 : f32 to vector<16x128xf32>
    %250 = arith.select %248, %246, %249 : vector<16x128xi1>, vector<16x128xf32>
    %251 = vector.extract_strided_slice %194 {offsets = [0, 10], sizes = [16, 1], strides = [1, 1]} : vector<16x16xf32> to vector<16x1xf32>
    %252 = vector.broadcast %251 : vector<16x1xf32> to vector<16x128xf32>
    %253 = arith.mulf %252, %243 : vector<16x128xf32>
    %254 = vector.extract_strided_slice %194 {offsets = [0, 11], sizes = [16, 1], strides = [1, 1]} : vector<16x16xf32> to vector<16x1xf32>
    %255 = vector.broadcast %254 : vector<16x1xf32> to vector<16x128xf32>
    %256 = arith.mulf %255, %236 : vector<16x128xf32>
    %257 = arith.addf %253, %256 : vector<16x128xf32>
    %258 = vector.extract_strided_slice %194 {offsets = [0, 12], sizes = [16, 1], strides = [1, 1]} : vector<16x16xf32> to vector<16x1xf32>
    %259 = vector.broadcast %258 : vector<16x1xf32> to vector<16x128xf32>
    %260 = arith.mulf %259, %250 : vector<16x128xf32>
    %261 = arith.addf %257, %260 : vector<16x128xf32>
    %262 = vector.extract_strided_slice %194 {offsets = [0, 4], sizes = [16, 1], strides = [1, 1]} : vector<16x16xf32> to vector<16x1xf32>
    %263 = vector.broadcast %262 : vector<16x1xf32> to vector<16x128xf32>
    %264 = arith.addf %261, %263 : vector<16x128xf32>
    %265 = vector.extract_strided_slice %194 {offsets = [0, 13], sizes = [16, 1], strides = [1, 1]} : vector<16x16xf32> to vector<16x1xf32>
    %266 = vector.broadcast %265 : vector<16x1xf32> to vector<16x128xf32>
    %267 = arith.mulf %266, %243 : vector<16x128xf32>
    %268 = vector.extract_strided_slice %194 {offsets = [0, 14], sizes = [16, 1], strides = [1, 1]} : vector<16x16xf32> to vector<16x1xf32>
    %269 = vector.broadcast %268 : vector<16x1xf32> to vector<16x128xf32>
    %270 = arith.mulf %269, %236 : vector<16x128xf32>
    %271 = arith.addf %267, %270 : vector<16x128xf32>
    %272 = vector.extract_strided_slice %194 {offsets = [0, 15], sizes = [16, 1], strides = [1, 1]} : vector<16x16xf32> to vector<16x1xf32>
    %273 = vector.broadcast %272 : vector<16x1xf32> to vector<16x128xf32>
    %274 = arith.mulf %273, %250 : vector<16x128xf32>
    %275 = arith.addf %271, %274 : vector<16x128xf32>
    %276 = vector.extract_strided_slice %194 {offsets = [0, 5], sizes = [16, 1], strides = [1, 1]} : vector<16x16xf32> to vector<16x1xf32>
    %277 = vector.broadcast %276 : vector<16x1xf32> to vector<16x128xf32>
    %278 = arith.addf %275, %277 : vector<16x128xf32>
    %cst_64 = arith.constant 0.000000e+00 : f32
    %279 = vector.broadcast %cst_64 : f32 to vector<16x128xf32>
    %280 = arith.cmpf ogt, %264, %279 : vector<16x128xf32>
    %281 = vector.broadcast %199 : f32 to vector<16x128xf32>
    %282 = arith.mulf %281, %264 : vector<16x128xf32>
    %283 = arith.select %280, %264, %282 : vector<16x128xi1>, vector<16x128xf32>
    %cst_65 = arith.constant 0.000000e+00 : f32
    %284 = vector.broadcast %cst_65 : f32 to vector<16x128xf32>
    %285 = arith.cmpf ogt, %278, %284 : vector<16x128xf32>
    %286 = vector.broadcast %199 : f32 to vector<16x128xf32>
    %287 = arith.mulf %286, %278 : vector<16x128xf32>
    %288 = arith.select %285, %278, %287 : vector<16x128xi1>, vector<16x128xf32>
    %289 = vector.extract_strided_slice %194 {offsets = [0, 6], sizes = [16, 1], strides = [1, 1]} : vector<16x16xf32> to vector<16x1xf32>
    %290 = vector.extract_strided_slice %194 {offsets = [0, 7], sizes = [16, 1], strides = [1, 1]} : vector<16x16xf32> to vector<16x1xf32>
    %291 = vector.extract_strided_slice %194 {offsets = [0, 8], sizes = [16, 1], strides = [1, 1]} : vector<16x16xf32> to vector<16x1xf32>
    %292 = vector.extract_strided_slice %194 {offsets = [0, 9], sizes = [16, 1], strides = [1, 1]} : vector<16x16xf32> to vector<16x1xf32>
    %cst_66 = arith.constant dense<0.000000e+00> : vector<128xf32>
    %293 = vector.multi_reduction <add>, %283, %cst_66 [0] : vector<16x128xf32> to vector<128xf32>
    %294 = vector.shape_cast %293 : vector<128xf32> to vector<1x128xf32>
    %295 = arith.mulf %283, %283 : vector<16x128xf32>
    %cst_67 = arith.constant dense<0.000000e+00> : vector<128xf32>
    %296 = vector.multi_reduction <add>, %295, %cst_67 [0] : vector<16x128xf32> to vector<128xf32>
    %297 = vector.shape_cast %296 : vector<128xf32> to vector<1x128xf32>
    %cst_68 = arith.constant dense<0.000000e+00> : vector<128xf32>
    %298 = vector.multi_reduction <add>, %288, %cst_68 [0] : vector<16x128xf32> to vector<128xf32>
    %299 = vector.shape_cast %298 : vector<128xf32> to vector<1x128xf32>
    %300 = arith.addf %294, %299 : vector<1x128xf32>
    %301 = arith.mulf %288, %288 : vector<16x128xf32>
    %cst_69 = arith.constant dense<0.000000e+00> : vector<128xf32>
    %302 = vector.multi_reduction <add>, %301, %cst_69 [0] : vector<16x128xf32> to vector<128xf32>
    %303 = vector.shape_cast %302 : vector<128xf32> to vector<1x128xf32>
    %304 = arith.addf %297, %303 : vector<1x128xf32>
    %305 = tpu.concatenate %300, %304 in 0 : vector<1x128xf32>, vector<1x128xf32> -> vector<2x128xf32>
    %cst_70 = arith.constant dense<0.000000e+00> : vector<2x128xf32>
    %306 = tpu.matmul %305, %9, %cst_70 {dimension_numbers = #tpu.dot_dimension_numbers<[1], [0], [0], [1], [0, 0, 1, 1], [], []>} : vector<2x128xf32>, vector<128x128xf32>, vector<2x128xf32> -> vector<2x128xf32>
    %cst_71 = arith.constant 0.001953125 : f32
    %307 = vector.broadcast %cst_71 : f32 to vector<2x128xf32>
    %308 = arith.mulf %306, %307 : vector<2x128xf32>
    %309 = vector.extract_strided_slice %308 {offsets = [0, 0], sizes = [1, 128], strides = [1, 1]} : vector<2x128xf32> to vector<1x128xf32>
    %310 = vector.extract_strided_slice %308 {offsets = [1, 0], sizes = [1, 128], strides = [1, 1]} : vector<2x128xf32> to vector<1x128xf32>
    %311 = arith.mulf %309, %309 : vector<1x128xf32>
    %312 = arith.subf %310, %311 : vector<1x128xf32>
    %cst_72 = arith.constant 0.000000e+00 : f32
    %313 = vector.broadcast %cst_72 : f32 to vector<1x128xf32>
    %314 = arith.maximumf %312, %313 : vector<1x128xf32>
    %cst_73 = arith.constant 9.99999993E-9 : f32
    %315 = vector.broadcast %cst_73 : f32 to vector<1x128xf32>
    %316 = arith.addf %314, %315 : vector<1x128xf32>
    %317 = math.rsqrt %316 : vector<1x128xf32>
    %318 = vector.broadcast %309 : vector<1x128xf32> to vector<16x128xf32>
    %319 = arith.subf %283, %318 : vector<16x128xf32>
    %320 = vector.broadcast %317 : vector<1x128xf32> to vector<16x128xf32>
    %321 = arith.mulf %319, %320 : vector<16x128xf32>
    %322 = vector.broadcast %289 : vector<16x1xf32> to vector<16x128xf32>
    %323 = arith.mulf %321, %322 : vector<16x128xf32>
    %324 = vector.broadcast %291 : vector<16x1xf32> to vector<16x128xf32>
    %325 = arith.addf %323, %324 : vector<16x128xf32>
    %326 = vector.broadcast %309 : vector<1x128xf32> to vector<16x128xf32>
    %327 = arith.subf %288, %326 : vector<16x128xf32>
    %328 = vector.broadcast %317 : vector<1x128xf32> to vector<16x128xf32>
    %329 = arith.mulf %327, %328 : vector<16x128xf32>
    %330 = vector.broadcast %290 : vector<16x1xf32> to vector<16x128xf32>
    %331 = arith.mulf %329, %330 : vector<16x128xf32>
    %332 = vector.broadcast %292 : vector<16x1xf32> to vector<16x128xf32>
    %333 = arith.addf %331, %332 : vector<16x128xf32>
    %334 = vector.extract_strided_slice %194 {offsets = [0, 3], sizes = [16, 1], strides = [1, 1]} : vector<16x16xf32> to vector<16x1xf32>
    %335 = vector.broadcast %334 : vector<16x1xf32> to vector<16x128xf32>
    %336 = arith.addf %193, %335 : vector<16x128xf32>
    %cst_74 = arith.constant dense<0.000000e+00> : vector<16x128xf32>
    %337 = tpu.matmul %196, %325, %cst_74 {dimension_numbers = #tpu.dot_dimension_numbers<[1], [0], [0], [1], [0, 0, 1, 1], [], []>} : vector<16x16xf32>, vector<16x128xf32>, vector<16x128xf32> -> vector<16x128xf32>
    %338 = arith.addf %336, %337 : vector<16x128xf32>
    %cst_75 = arith.constant dense<0.000000e+00> : vector<16x128xf32>
    %339 = tpu.matmul %197, %333, %cst_75 {dimension_numbers = #tpu.dot_dimension_numbers<[1], [0], [0], [1], [0, 0, 1, 1], [], []>} : vector<16x16xf32>, vector<16x128xf32>, vector<16x128xf32> -> vector<16x128xf32>
    %340 = arith.addf %338, %339 : vector<16x128xf32>
    %c0_76 = arith.constant 0 : index
    %c32_77 = arith.constant 32 : index
    %341 = vector.load %arg9[%c0_76, %c32_77] : memref<16x64xf32, #tpu.memory_space<vmem>>, vector<16x16xf32>
    %c0_78 = arith.constant 0 : index
    %c96 = arith.constant 96 : index
    %342 = vector.load %arg8[%c0_78, %c96] : memref<16x192xf32, #tpu.memory_space<vmem>>, vector<16x16xf32>
    %c0_79 = arith.constant 0 : index
    %c112 = arith.constant 112 : index
    %343 = vector.load %arg8[%c0_79, %c112] : memref<16x192xf32, #tpu.memory_space<vmem>>, vector<16x16xf32>
    %c0_80 = arith.constant 0 : index
    %c128 = arith.constant 128 : index
    %344 = vector.load %arg8[%c0_80, %c128] : memref<16x192xf32, #tpu.memory_space<vmem>>, vector<16x16xf32>
    %c4 = arith.constant 4 : index
    %345 = memref.load %arg1[%c4] : memref<9xf32, #tpu.memory_space<smem>>
    %c5 = arith.constant 5 : index
    %346 = memref.load %arg1[%c5] : memref<9xf32, #tpu.memory_space<smem>>
    %cst_81 = arith.constant dense<0.000000e+00> : vector<16x128xf32>
    %347 = tpu.matmul %342, %340, %cst_81 {dimension_numbers = #tpu.dot_dimension_numbers<[1], [0], [0], [1], [0, 0, 1, 1], [], []>} : vector<16x16xf32>, vector<16x128xf32>, vector<16x128xf32> -> vector<16x128xf32>
    %348 = vector.extract_strided_slice %341 {offsets = [0, 0], sizes = [16, 1], strides = [1, 1]} : vector<16x16xf32> to vector<16x1xf32>
    %349 = vector.broadcast %348 : vector<16x1xf32> to vector<16x128xf32>
    %350 = arith.addf %347, %349 : vector<16x128xf32>
    %cst_82 = arith.constant 0.000000e+00 : f32
    %351 = vector.broadcast %cst_82 : f32 to vector<16x128xf32>
    %352 = arith.cmpf ogt, %350, %351 : vector<16x128xf32>
    %353 = vector.broadcast %345 : f32 to vector<16x128xf32>
    %354 = arith.mulf %353, %350 : vector<16x128xf32>
    %355 = arith.select %352, %350, %354 : vector<16x128xi1>, vector<16x128xf32>
    %356 = vector.extract_strided_slice %341 {offsets = [0, 1], sizes = [16, 1], strides = [1, 1]} : vector<16x16xf32> to vector<16x1xf32>
    %357 = vector.extract_strided_slice %341 {offsets = [0, 2], sizes = [16, 1], strides = [1, 1]} : vector<16x16xf32> to vector<16x1xf32>
    %cst_83 = arith.constant dense<0.000000e+00> : vector<128xf32>
    %358 = vector.multi_reduction <add>, %355, %cst_83 [0] : vector<16x128xf32> to vector<128xf32>
    %359 = vector.shape_cast %358 : vector<128xf32> to vector<1x128xf32>
    %360 = arith.mulf %355, %355 : vector<16x128xf32>
    %cst_84 = arith.constant dense<0.000000e+00> : vector<128xf32>
    %361 = vector.multi_reduction <add>, %360, %cst_84 [0] : vector<16x128xf32> to vector<128xf32>
    %362 = vector.shape_cast %361 : vector<128xf32> to vector<1x128xf32>
    %363 = tpu.concatenate %359, %362 in 0 : vector<1x128xf32>, vector<1x128xf32> -> vector<2x128xf32>
    %cst_85 = arith.constant dense<0.000000e+00> : vector<2x128xf32>
    %364 = tpu.matmul %363, %9, %cst_85 {dimension_numbers = #tpu.dot_dimension_numbers<[1], [0], [0], [1], [0, 0, 1, 1], [], []>} : vector<2x128xf32>, vector<128x128xf32>, vector<2x128xf32> -> vector<2x128xf32>
    %cst_86 = arith.constant 3.906250e-03 : f32
    %365 = vector.broadcast %cst_86 : f32 to vector<2x128xf32>
    %366 = arith.mulf %364, %365 : vector<2x128xf32>
    %367 = vector.extract_strided_slice %366 {offsets = [0, 0], sizes = [1, 128], strides = [1, 1]} : vector<2x128xf32> to vector<1x128xf32>
    %368 = vector.extract_strided_slice %366 {offsets = [1, 0], sizes = [1, 128], strides = [1, 1]} : vector<2x128xf32> to vector<1x128xf32>
    %369 = arith.mulf %367, %367 : vector<1x128xf32>
    %370 = arith.subf %368, %369 : vector<1x128xf32>
    %cst_87 = arith.constant 0.000000e+00 : f32
    %371 = vector.broadcast %cst_87 : f32 to vector<1x128xf32>
    %372 = arith.maximumf %370, %371 : vector<1x128xf32>
    %cst_88 = arith.constant 9.99999993E-9 : f32
    %373 = vector.broadcast %cst_88 : f32 to vector<1x128xf32>
    %374 = arith.addf %372, %373 : vector<1x128xf32>
    %375 = math.rsqrt %374 : vector<1x128xf32>
    %376 = vector.broadcast %367 : vector<1x128xf32> to vector<16x128xf32>
    %377 = arith.subf %355, %376 : vector<16x128xf32>
    %378 = vector.broadcast %375 : vector<1x128xf32> to vector<16x128xf32>
    %379 = arith.mulf %377, %378 : vector<16x128xf32>
    %380 = vector.broadcast %356 : vector<16x1xf32> to vector<16x128xf32>
    %381 = arith.mulf %379, %380 : vector<16x128xf32>
    %382 = vector.broadcast %357 : vector<16x1xf32> to vector<16x128xf32>
    %383 = arith.addf %381, %382 : vector<16x128xf32>
    %c1_i32_89 = arith.constant 1 : i32
    %384 = vector.broadcast %c1_i32_89 : i32 to vector<1x128xi32>
    %385 = arith.cmpi sge, %12, %384 : vector<1x128xi32>
    %c1_i32_90 = arith.constant 1 : i32
    %386 = tpu.dynamic_rotate %383 by %c1_i32_90 dim 1 : vector<16x128xf32>, i32 -> vector<16x128xf32>
    %cst_91 = arith.constant 0.000000e+00 : f32
    %387 = vector.shape_cast %385 : vector<1x128xi1> to vector<1x128xi1>
    %388 = vector.broadcast %387 : vector<1x128xi1> to vector<16x128xi1>
    %389 = vector.broadcast %cst_91 : f32 to vector<16x128xf32>
    %390 = arith.select %388, %386, %389 : vector<16x128xi1>, vector<16x128xf32>
    %c15_i32_92 = arith.constant 15 : i32
    %391 = vector.broadcast %c15_i32_92 : i32 to vector<1x128xi32>
    %392 = arith.cmpi slt, %12, %391 : vector<1x128xi32>
    %c127_i32_93 = arith.constant 127 : i32
    %393 = tpu.dynamic_rotate %383 by %c127_i32_93 dim 1 : vector<16x128xf32>, i32 -> vector<16x128xf32>
    %cst_94 = arith.constant 0.000000e+00 : f32
    %394 = vector.shape_cast %392 : vector<1x128xi1> to vector<1x128xi1>
    %395 = vector.broadcast %394 : vector<1x128xi1> to vector<16x128xi1>
    %396 = vector.broadcast %cst_94 : f32 to vector<16x128xf32>
    %397 = arith.select %395, %393, %396 : vector<16x128xi1>, vector<16x128xf32>
    %398 = vector.extract_strided_slice %341 {offsets = [0, 10], sizes = [16, 1], strides = [1, 1]} : vector<16x16xf32> to vector<16x1xf32>
    %399 = vector.broadcast %398 : vector<16x1xf32> to vector<16x128xf32>
    %400 = arith.mulf %399, %390 : vector<16x128xf32>
    %401 = vector.extract_strided_slice %341 {offsets = [0, 11], sizes = [16, 1], strides = [1, 1]} : vector<16x16xf32> to vector<16x1xf32>
    %402 = vector.broadcast %401 : vector<16x1xf32> to vector<16x128xf32>
    %403 = arith.mulf %402, %383 : vector<16x128xf32>
    %404 = arith.addf %400, %403 : vector<16x128xf32>
    %405 = vector.extract_strided_slice %341 {offsets = [0, 12], sizes = [16, 1], strides = [1, 1]} : vector<16x16xf32> to vector<16x1xf32>
    %406 = vector.broadcast %405 : vector<16x1xf32> to vector<16x128xf32>
    %407 = arith.mulf %406, %397 : vector<16x128xf32>
    %408 = arith.addf %404, %407 : vector<16x128xf32>
    %409 = vector.extract_strided_slice %341 {offsets = [0, 4], sizes = [16, 1], strides = [1, 1]} : vector<16x16xf32> to vector<16x1xf32>
    %410 = vector.broadcast %409 : vector<16x1xf32> to vector<16x128xf32>
    %411 = arith.addf %408, %410 : vector<16x128xf32>
    %412 = vector.extract_strided_slice %341 {offsets = [0, 13], sizes = [16, 1], strides = [1, 1]} : vector<16x16xf32> to vector<16x1xf32>
    %413 = vector.broadcast %412 : vector<16x1xf32> to vector<16x128xf32>
    %414 = arith.mulf %413, %390 : vector<16x128xf32>
    %415 = vector.extract_strided_slice %341 {offsets = [0, 14], sizes = [16, 1], strides = [1, 1]} : vector<16x16xf32> to vector<16x1xf32>
    %416 = vector.broadcast %415 : vector<16x1xf32> to vector<16x128xf32>
    %417 = arith.mulf %416, %383 : vector<16x128xf32>
    %418 = arith.addf %414, %417 : vector<16x128xf32>
    %419 = vector.extract_strided_slice %341 {offsets = [0, 15], sizes = [16, 1], strides = [1, 1]} : vector<16x16xf32> to vector<16x1xf32>
    %420 = vector.broadcast %419 : vector<16x1xf32> to vector<16x128xf32>
    %421 = arith.mulf %420, %397 : vector<16x128xf32>
    %422 = arith.addf %418, %421 : vector<16x128xf32>
    %423 = vector.extract_strided_slice %341 {offsets = [0, 5], sizes = [16, 1], strides = [1, 1]} : vector<16x16xf32> to vector<16x1xf32>
    %424 = vector.broadcast %423 : vector<16x1xf32> to vector<16x128xf32>
    %425 = arith.addf %422, %424 : vector<16x128xf32>
    %cst_95 = arith.constant 0.000000e+00 : f32
    %426 = vector.broadcast %cst_95 : f32 to vector<16x128xf32>
    %427 = arith.cmpf ogt, %411, %426 : vector<16x128xf32>
    %428 = vector.broadcast %346 : f32 to vector<16x128xf32>
    %429 = arith.mulf %428, %411 : vector<16x128xf32>
    %430 = arith.select %427, %411, %429 : vector<16x128xi1>, vector<16x128xf32>
    %cst_96 = arith.constant 0.000000e+00 : f32
    %431 = vector.broadcast %cst_96 : f32 to vector<16x128xf32>
    %432 = arith.cmpf ogt, %425, %431 : vector<16x128xf32>
    %433 = vector.broadcast %346 : f32 to vector<16x128xf32>
    %434 = arith.mulf %433, %425 : vector<16x128xf32>
    %435 = arith.select %432, %425, %434 : vector<16x128xi1>, vector<16x128xf32>
    %436 = vector.extract_strided_slice %341 {offsets = [0, 6], sizes = [16, 1], strides = [1, 1]} : vector<16x16xf32> to vector<16x1xf32>
    %437 = vector.extract_strided_slice %341 {offsets = [0, 7], sizes = [16, 1], strides = [1, 1]} : vector<16x16xf32> to vector<16x1xf32>
    %438 = vector.extract_strided_slice %341 {offsets = [0, 8], sizes = [16, 1], strides = [1, 1]} : vector<16x16xf32> to vector<16x1xf32>
    %439 = vector.extract_strided_slice %341 {offsets = [0, 9], sizes = [16, 1], strides = [1, 1]} : vector<16x16xf32> to vector<16x1xf32>
    %cst_97 = arith.constant dense<0.000000e+00> : vector<128xf32>
    %440 = vector.multi_reduction <add>, %430, %cst_97 [0] : vector<16x128xf32> to vector<128xf32>
    %441 = vector.shape_cast %440 : vector<128xf32> to vector<1x128xf32>
    %442 = arith.mulf %430, %430 : vector<16x128xf32>
    %cst_98 = arith.constant dense<0.000000e+00> : vector<128xf32>
    %443 = vector.multi_reduction <add>, %442, %cst_98 [0] : vector<16x128xf32> to vector<128xf32>
    %444 = vector.shape_cast %443 : vector<128xf32> to vector<1x128xf32>
    %cst_99 = arith.constant dense<0.000000e+00> : vector<128xf32>
    %445 = vector.multi_reduction <add>, %435, %cst_99 [0] : vector<16x128xf32> to vector<128xf32>
    %446 = vector.shape_cast %445 : vector<128xf32> to vector<1x128xf32>
    %447 = arith.addf %441, %446 : vector<1x128xf32>
    %448 = arith.mulf %435, %435 : vector<16x128xf32>
    %cst_100 = arith.constant dense<0.000000e+00> : vector<128xf32>
    %449 = vector.multi_reduction <add>, %448, %cst_100 [0] : vector<16x128xf32> to vector<128xf32>
    %450 = vector.shape_cast %449 : vector<128xf32> to vector<1x128xf32>
    %451 = arith.addf %444, %450 : vector<1x128xf32>
    %452 = tpu.concatenate %447, %451 in 0 : vector<1x128xf32>, vector<1x128xf32> -> vector<2x128xf32>
    %cst_101 = arith.constant dense<0.000000e+00> : vector<2x128xf32>
    %453 = tpu.matmul %452, %9, %cst_101 {dimension_numbers = #tpu.dot_dimension_numbers<[1], [0], [0], [1], [0, 0, 1, 1], [], []>} : vector<2x128xf32>, vector<128x128xf32>, vector<2x128xf32> -> vector<2x128xf32>
    %cst_102 = arith.constant 0.001953125 : f32
    %454 = vector.broadcast %cst_102 : f32 to vector<2x128xf32>
    %455 = arith.mulf %453, %454 : vector<2x128xf32>
    %456 = vector.extract_strided_slice %455 {offsets = [0, 0], sizes = [1, 128], strides = [1, 1]} : vector<2x128xf32> to vector<1x128xf32>
    %457 = vector.extract_strided_slice %455 {offsets = [1, 0], sizes = [1, 128], strides = [1, 1]} : vector<2x128xf32> to vector<1x128xf32>
    %458 = arith.mulf %456, %456 : vector<1x128xf32>
    %459 = arith.subf %457, %458 : vector<1x128xf32>
    %cst_103 = arith.constant 0.000000e+00 : f32
    %460 = vector.broadcast %cst_103 : f32 to vector<1x128xf32>
    %461 = arith.maximumf %459, %460 : vector<1x128xf32>
    %cst_104 = arith.constant 9.99999993E-9 : f32
    %462 = vector.broadcast %cst_104 : f32 to vector<1x128xf32>
    %463 = arith.addf %461, %462 : vector<1x128xf32>
    %464 = math.rsqrt %463 : vector<1x128xf32>
    %465 = vector.broadcast %456 : vector<1x128xf32> to vector<16x128xf32>
    %466 = arith.subf %430, %465 : vector<16x128xf32>
    %467 = vector.broadcast %464 : vector<1x128xf32> to vector<16x128xf32>
    %468 = arith.mulf %466, %467 : vector<16x128xf32>
    %469 = vector.broadcast %436 : vector<16x1xf32> to vector<16x128xf32>
    %470 = arith.mulf %468, %469 : vector<16x128xf32>
    %471 = vector.broadcast %438 : vector<16x1xf32> to vector<16x128xf32>
    %472 = arith.addf %470, %471 : vector<16x128xf32>
    %473 = vector.broadcast %456 : vector<1x128xf32> to vector<16x128xf32>
    %474 = arith.subf %435, %473 : vector<16x128xf32>
    %475 = vector.broadcast %464 : vector<1x128xf32> to vector<16x128xf32>
    %476 = arith.mulf %474, %475 : vector<16x128xf32>
    %477 = vector.broadcast %437 : vector<16x1xf32> to vector<16x128xf32>
    %478 = arith.mulf %476, %477 : vector<16x128xf32>
    %479 = vector.broadcast %439 : vector<16x1xf32> to vector<16x128xf32>
    %480 = arith.addf %478, %479 : vector<16x128xf32>
    %481 = vector.extract_strided_slice %341 {offsets = [0, 3], sizes = [16, 1], strides = [1, 1]} : vector<16x16xf32> to vector<16x1xf32>
    %482 = vector.broadcast %481 : vector<16x1xf32> to vector<16x128xf32>
    %483 = arith.addf %340, %482 : vector<16x128xf32>
    %cst_105 = arith.constant dense<0.000000e+00> : vector<16x128xf32>
    %484 = tpu.matmul %343, %472, %cst_105 {dimension_numbers = #tpu.dot_dimension_numbers<[1], [0], [0], [1], [0, 0, 1, 1], [], []>} : vector<16x16xf32>, vector<16x128xf32>, vector<16x128xf32> -> vector<16x128xf32>
    %485 = arith.addf %483, %484 : vector<16x128xf32>
    %cst_106 = arith.constant dense<0.000000e+00> : vector<16x128xf32>
    %486 = tpu.matmul %344, %480, %cst_106 {dimension_numbers = #tpu.dot_dimension_numbers<[1], [0], [0], [1], [0, 0, 1, 1], [], []>} : vector<16x16xf32>, vector<16x128xf32>, vector<16x128xf32> -> vector<16x128xf32>
    %487 = arith.addf %485, %486 : vector<16x128xf32>
    %c0_107 = arith.constant 0 : index
    %c48_108 = arith.constant 48 : index
    %488 = vector.load %arg9[%c0_107, %c48_108] : memref<16x64xf32, #tpu.memory_space<vmem>>, vector<16x16xf32>
    %c0_109 = arith.constant 0 : index
    %c144 = arith.constant 144 : index
    %489 = vector.load %arg8[%c0_109, %c144] : memref<16x192xf32, #tpu.memory_space<vmem>>, vector<16x16xf32>
    %c0_110 = arith.constant 0 : index
    %c160 = arith.constant 160 : index
    %490 = vector.load %arg8[%c0_110, %c160] : memref<16x192xf32, #tpu.memory_space<vmem>>, vector<16x16xf32>
    %c0_111 = arith.constant 0 : index
    %c176 = arith.constant 176 : index
    %491 = vector.load %arg8[%c0_111, %c176] : memref<16x192xf32, #tpu.memory_space<vmem>>, vector<16x16xf32>
    %c6 = arith.constant 6 : index
    %492 = memref.load %arg1[%c6] : memref<9xf32, #tpu.memory_space<smem>>
    %c7 = arith.constant 7 : index
    %493 = memref.load %arg1[%c7] : memref<9xf32, #tpu.memory_space<smem>>
    %cst_112 = arith.constant dense<0.000000e+00> : vector<16x128xf32>
    %494 = tpu.matmul %489, %487, %cst_112 {dimension_numbers = #tpu.dot_dimension_numbers<[1], [0], [0], [1], [0, 0, 1, 1], [], []>} : vector<16x16xf32>, vector<16x128xf32>, vector<16x128xf32> -> vector<16x128xf32>
    %495 = vector.extract_strided_slice %488 {offsets = [0, 0], sizes = [16, 1], strides = [1, 1]} : vector<16x16xf32> to vector<16x1xf32>
    %496 = vector.broadcast %495 : vector<16x1xf32> to vector<16x128xf32>
    %497 = arith.addf %494, %496 : vector<16x128xf32>
    %cst_113 = arith.constant 0.000000e+00 : f32
    %498 = vector.broadcast %cst_113 : f32 to vector<16x128xf32>
    %499 = arith.cmpf ogt, %497, %498 : vector<16x128xf32>
    %500 = vector.broadcast %492 : f32 to vector<16x128xf32>
    %501 = arith.mulf %500, %497 : vector<16x128xf32>
    %502 = arith.select %499, %497, %501 : vector<16x128xi1>, vector<16x128xf32>
    %503 = vector.extract_strided_slice %488 {offsets = [0, 1], sizes = [16, 1], strides = [1, 1]} : vector<16x16xf32> to vector<16x1xf32>
    %504 = vector.extract_strided_slice %488 {offsets = [0, 2], sizes = [16, 1], strides = [1, 1]} : vector<16x16xf32> to vector<16x1xf32>
    %cst_114 = arith.constant dense<0.000000e+00> : vector<128xf32>
    %505 = vector.multi_reduction <add>, %502, %cst_114 [0] : vector<16x128xf32> to vector<128xf32>
    %506 = vector.shape_cast %505 : vector<128xf32> to vector<1x128xf32>
    %507 = arith.mulf %502, %502 : vector<16x128xf32>
    %cst_115 = arith.constant dense<0.000000e+00> : vector<128xf32>
    %508 = vector.multi_reduction <add>, %507, %cst_115 [0] : vector<16x128xf32> to vector<128xf32>
    %509 = vector.shape_cast %508 : vector<128xf32> to vector<1x128xf32>
    %510 = tpu.concatenate %506, %509 in 0 : vector<1x128xf32>, vector<1x128xf32> -> vector<2x128xf32>
    %cst_116 = arith.constant dense<0.000000e+00> : vector<2x128xf32>
    %511 = tpu.matmul %510, %9, %cst_116 {dimension_numbers = #tpu.dot_dimension_numbers<[1], [0], [0], [1], [0, 0, 1, 1], [], []>} : vector<2x128xf32>, vector<128x128xf32>, vector<2x128xf32> -> vector<2x128xf32>
    %cst_117 = arith.constant 3.906250e-03 : f32
    %512 = vector.broadcast %cst_117 : f32 to vector<2x128xf32>
    %513 = arith.mulf %511, %512 : vector<2x128xf32>
    %514 = vector.extract_strided_slice %513 {offsets = [0, 0], sizes = [1, 128], strides = [1, 1]} : vector<2x128xf32> to vector<1x128xf32>
    %515 = vector.extract_strided_slice %513 {offsets = [1, 0], sizes = [1, 128], strides = [1, 1]} : vector<2x128xf32> to vector<1x128xf32>
    %516 = arith.mulf %514, %514 : vector<1x128xf32>
    %517 = arith.subf %515, %516 : vector<1x128xf32>
    %cst_118 = arith.constant 0.000000e+00 : f32
    %518 = vector.broadcast %cst_118 : f32 to vector<1x128xf32>
    %519 = arith.maximumf %517, %518 : vector<1x128xf32>
    %cst_119 = arith.constant 9.99999993E-9 : f32
    %520 = vector.broadcast %cst_119 : f32 to vector<1x128xf32>
    %521 = arith.addf %519, %520 : vector<1x128xf32>
    %522 = math.rsqrt %521 : vector<1x128xf32>
    %523 = vector.broadcast %514 : vector<1x128xf32> to vector<16x128xf32>
    %524 = arith.subf %502, %523 : vector<16x128xf32>
    %525 = vector.broadcast %522 : vector<1x128xf32> to vector<16x128xf32>
    %526 = arith.mulf %524, %525 : vector<16x128xf32>
    %527 = vector.broadcast %503 : vector<16x1xf32> to vector<16x128xf32>
    %528 = arith.mulf %526, %527 : vector<16x128xf32>
    %529 = vector.broadcast %504 : vector<16x1xf32> to vector<16x128xf32>
    %530 = arith.addf %528, %529 : vector<16x128xf32>
    %c2_i32_120 = arith.constant 2 : i32
    %531 = vector.broadcast %c2_i32_120 : i32 to vector<1x128xi32>
    %532 = arith.cmpi sge, %12, %531 : vector<1x128xi32>
    %c2_i32_121 = arith.constant 2 : i32
    %533 = tpu.dynamic_rotate %530 by %c2_i32_121 dim 1 : vector<16x128xf32>, i32 -> vector<16x128xf32>
    %cst_122 = arith.constant 0.000000e+00 : f32
    %534 = vector.shape_cast %532 : vector<1x128xi1> to vector<1x128xi1>
    %535 = vector.broadcast %534 : vector<1x128xi1> to vector<16x128xi1>
    %536 = vector.broadcast %cst_122 : f32 to vector<16x128xf32>
    %537 = arith.select %535, %533, %536 : vector<16x128xi1>, vector<16x128xf32>
    %c14_i32_123 = arith.constant 14 : i32
    %538 = vector.broadcast %c14_i32_123 : i32 to vector<1x128xi32>
    %539 = arith.cmpi slt, %12, %538 : vector<1x128xi32>
    %c126_i32_124 = arith.constant 126 : i32
    %540 = tpu.dynamic_rotate %530 by %c126_i32_124 dim 1 : vector<16x128xf32>, i32 -> vector<16x128xf32>
    %cst_125 = arith.constant 0.000000e+00 : f32
    %541 = vector.shape_cast %539 : vector<1x128xi1> to vector<1x128xi1>
    %542 = vector.broadcast %541 : vector<1x128xi1> to vector<16x128xi1>
    %543 = vector.broadcast %cst_125 : f32 to vector<16x128xf32>
    %544 = arith.select %542, %540, %543 : vector<16x128xi1>, vector<16x128xf32>
    %545 = vector.extract_strided_slice %488 {offsets = [0, 10], sizes = [16, 1], strides = [1, 1]} : vector<16x16xf32> to vector<16x1xf32>
    %546 = vector.broadcast %545 : vector<16x1xf32> to vector<16x128xf32>
    %547 = arith.mulf %546, %537 : vector<16x128xf32>
    %548 = vector.extract_strided_slice %488 {offsets = [0, 11], sizes = [16, 1], strides = [1, 1]} : vector<16x16xf32> to vector<16x1xf32>
    %549 = vector.broadcast %548 : vector<16x1xf32> to vector<16x128xf32>
    %550 = arith.mulf %549, %530 : vector<16x128xf32>
    %551 = arith.addf %547, %550 : vector<16x128xf32>
    %552 = vector.extract_strided_slice %488 {offsets = [0, 12], sizes = [16, 1], strides = [1, 1]} : vector<16x16xf32> to vector<16x1xf32>
    %553 = vector.broadcast %552 : vector<16x1xf32> to vector<16x128xf32>
    %554 = arith.mulf %553, %544 : vector<16x128xf32>
    %555 = arith.addf %551, %554 : vector<16x128xf32>
    %556 = vector.extract_strided_slice %488 {offsets = [0, 4], sizes = [16, 1], strides = [1, 1]} : vector<16x16xf32> to vector<16x1xf32>
    %557 = vector.broadcast %556 : vector<16x1xf32> to vector<16x128xf32>
    %558 = arith.addf %555, %557 : vector<16x128xf32>
    %559 = vector.extract_strided_slice %488 {offsets = [0, 13], sizes = [16, 1], strides = [1, 1]} : vector<16x16xf32> to vector<16x1xf32>
    %560 = vector.broadcast %559 : vector<16x1xf32> to vector<16x128xf32>
    %561 = arith.mulf %560, %537 : vector<16x128xf32>
    %562 = vector.extract_strided_slice %488 {offsets = [0, 14], sizes = [16, 1], strides = [1, 1]} : vector<16x16xf32> to vector<16x1xf32>
    %563 = vector.broadcast %562 : vector<16x1xf32> to vector<16x128xf32>
    %564 = arith.mulf %563, %530 : vector<16x128xf32>
    %565 = arith.addf %561, %564 : vector<16x128xf32>
    %566 = vector.extract_strided_slice %488 {offsets = [0, 15], sizes = [16, 1], strides = [1, 1]} : vector<16x16xf32> to vector<16x1xf32>
    %567 = vector.broadcast %566 : vector<16x1xf32> to vector<16x128xf32>
    %568 = arith.mulf %567, %544 : vector<16x128xf32>
    %569 = arith.addf %565, %568 : vector<16x128xf32>
    %570 = vector.extract_strided_slice %488 {offsets = [0, 5], sizes = [16, 1], strides = [1, 1]} : vector<16x16xf32> to vector<16x1xf32>
    %571 = vector.broadcast %570 : vector<16x1xf32> to vector<16x128xf32>
    %572 = arith.addf %569, %571 : vector<16x128xf32>
    %cst_126 = arith.constant 0.000000e+00 : f32
    %573 = vector.broadcast %cst_126 : f32 to vector<16x128xf32>
    %574 = arith.cmpf ogt, %558, %573 : vector<16x128xf32>
    %575 = vector.broadcast %493 : f32 to vector<16x128xf32>
    %576 = arith.mulf %575, %558 : vector<16x128xf32>
    %577 = arith.select %574, %558, %576 : vector<16x128xi1>, vector<16x128xf32>
    %cst_127 = arith.constant 0.000000e+00 : f32
    %578 = vector.broadcast %cst_127 : f32 to vector<16x128xf32>
    %579 = arith.cmpf ogt, %572, %578 : vector<16x128xf32>
    %580 = vector.broadcast %493 : f32 to vector<16x128xf32>
    %581 = arith.mulf %580, %572 : vector<16x128xf32>
    %582 = arith.select %579, %572, %581 : vector<16x128xi1>, vector<16x128xf32>
    %583 = vector.extract_strided_slice %488 {offsets = [0, 6], sizes = [16, 1], strides = [1, 1]} : vector<16x16xf32> to vector<16x1xf32>
    %584 = vector.extract_strided_slice %488 {offsets = [0, 7], sizes = [16, 1], strides = [1, 1]} : vector<16x16xf32> to vector<16x1xf32>
    %585 = vector.extract_strided_slice %488 {offsets = [0, 8], sizes = [16, 1], strides = [1, 1]} : vector<16x16xf32> to vector<16x1xf32>
    %586 = vector.extract_strided_slice %488 {offsets = [0, 9], sizes = [16, 1], strides = [1, 1]} : vector<16x16xf32> to vector<16x1xf32>
    %cst_128 = arith.constant dense<0.000000e+00> : vector<128xf32>
    %587 = vector.multi_reduction <add>, %577, %cst_128 [0] : vector<16x128xf32> to vector<128xf32>
    %588 = vector.shape_cast %587 : vector<128xf32> to vector<1x128xf32>
    %589 = arith.mulf %577, %577 : vector<16x128xf32>
    %cst_129 = arith.constant dense<0.000000e+00> : vector<128xf32>
    %590 = vector.multi_reduction <add>, %589, %cst_129 [0] : vector<16x128xf32> to vector<128xf32>
    %591 = vector.shape_cast %590 : vector<128xf32> to vector<1x128xf32>
    %cst_130 = arith.constant dense<0.000000e+00> : vector<128xf32>
    %592 = vector.multi_reduction <add>, %582, %cst_130 [0] : vector<16x128xf32> to vector<128xf32>
    %593 = vector.shape_cast %592 : vector<128xf32> to vector<1x128xf32>
    %594 = arith.addf %588, %593 : vector<1x128xf32>
    %595 = arith.mulf %582, %582 : vector<16x128xf32>
    %cst_131 = arith.constant dense<0.000000e+00> : vector<128xf32>
    %596 = vector.multi_reduction <add>, %595, %cst_131 [0] : vector<16x128xf32> to vector<128xf32>
    %597 = vector.shape_cast %596 : vector<128xf32> to vector<1x128xf32>
    %598 = arith.addf %591, %597 : vector<1x128xf32>
    %599 = tpu.concatenate %594, %598 in 0 : vector<1x128xf32>, vector<1x128xf32> -> vector<2x128xf32>
    %cst_132 = arith.constant dense<0.000000e+00> : vector<2x128xf32>
    %600 = tpu.matmul %599, %9, %cst_132 {dimension_numbers = #tpu.dot_dimension_numbers<[1], [0], [0], [1], [0, 0, 1, 1], [], []>} : vector<2x128xf32>, vector<128x128xf32>, vector<2x128xf32> -> vector<2x128xf32>
    %cst_133 = arith.constant 0.001953125 : f32
    %601 = vector.broadcast %cst_133 : f32 to vector<2x128xf32>
    %602 = arith.mulf %600, %601 : vector<2x128xf32>
    %603 = vector.extract_strided_slice %602 {offsets = [0, 0], sizes = [1, 128], strides = [1, 1]} : vector<2x128xf32> to vector<1x128xf32>
    %604 = vector.extract_strided_slice %602 {offsets = [1, 0], sizes = [1, 128], strides = [1, 1]} : vector<2x128xf32> to vector<1x128xf32>
    %605 = arith.mulf %603, %603 : vector<1x128xf32>
    %606 = arith.subf %604, %605 : vector<1x128xf32>
    %cst_134 = arith.constant 0.000000e+00 : f32
    %607 = vector.broadcast %cst_134 : f32 to vector<1x128xf32>
    %608 = arith.maximumf %606, %607 : vector<1x128xf32>
    %cst_135 = arith.constant 9.99999993E-9 : f32
    %609 = vector.broadcast %cst_135 : f32 to vector<1x128xf32>
    %610 = arith.addf %608, %609 : vector<1x128xf32>
    %611 = math.rsqrt %610 : vector<1x128xf32>
    %612 = vector.broadcast %603 : vector<1x128xf32> to vector<16x128xf32>
    %613 = arith.subf %577, %612 : vector<16x128xf32>
    %614 = vector.broadcast %611 : vector<1x128xf32> to vector<16x128xf32>
    %615 = arith.mulf %613, %614 : vector<16x128xf32>
    %616 = vector.broadcast %583 : vector<16x1xf32> to vector<16x128xf32>
    %617 = arith.mulf %615, %616 : vector<16x128xf32>
    %618 = vector.broadcast %585 : vector<16x1xf32> to vector<16x128xf32>
    %619 = arith.addf %617, %618 : vector<16x128xf32>
    %620 = vector.broadcast %603 : vector<1x128xf32> to vector<16x128xf32>
    %621 = arith.subf %582, %620 : vector<16x128xf32>
    %622 = vector.broadcast %611 : vector<1x128xf32> to vector<16x128xf32>
    %623 = arith.mulf %621, %622 : vector<16x128xf32>
    %624 = vector.broadcast %584 : vector<16x1xf32> to vector<16x128xf32>
    %625 = arith.mulf %623, %624 : vector<16x128xf32>
    %626 = vector.broadcast %586 : vector<16x1xf32> to vector<16x128xf32>
    %627 = arith.addf %625, %626 : vector<16x128xf32>
    %628 = vector.extract_strided_slice %488 {offsets = [0, 3], sizes = [16, 1], strides = [1, 1]} : vector<16x16xf32> to vector<16x1xf32>
    %629 = vector.broadcast %628 : vector<16x1xf32> to vector<16x128xf32>
    %630 = arith.addf %487, %629 : vector<16x128xf32>
    %cst_136 = arith.constant dense<0.000000e+00> : vector<16x128xf32>
    %631 = tpu.matmul %490, %619, %cst_136 {dimension_numbers = #tpu.dot_dimension_numbers<[1], [0], [0], [1], [0, 0, 1, 1], [], []>} : vector<16x16xf32>, vector<16x128xf32>, vector<16x128xf32> -> vector<16x128xf32>
    %632 = arith.addf %630, %631 : vector<16x128xf32>
    %cst_137 = arith.constant dense<0.000000e+00> : vector<16x128xf32>
    %633 = tpu.matmul %491, %627, %cst_137 {dimension_numbers = #tpu.dot_dimension_numbers<[1], [0], [0], [1], [0, 0, 1, 1], [], []>} : vector<16x16xf32>, vector<16x128xf32>, vector<16x128xf32> -> vector<16x128xf32>
    %634 = arith.addf %632, %633 : vector<16x128xf32>
    %c8 = arith.constant 8 : index
    %635 = memref.load %arg1[%c8] : memref<9xf32, #tpu.memory_space<smem>>
    %cst_138 = arith.constant 0.000000e+00 : f32
    %636 = vector.broadcast %cst_138 : f32 to vector<16x128xf32>
    %637 = arith.cmpf ogt, %634, %636 : vector<16x128xf32>
    %638 = vector.broadcast %635 : f32 to vector<16x128xf32>
    %639 = arith.mulf %638, %634 : vector<16x128xf32>
    %640 = arith.select %637, %634, %639 : vector<16x128xi1>, vector<16x128xf32>
    %c0_139 = arith.constant 0 : index
    %c0_140 = arith.constant 0 : index
    %641 = vector.load %arg7[%c0_139, %c0_140] : memref<18x17xf32, #tpu.memory_space<vmem>>, vector<18x16xf32>
    %cst_141 = arith.constant dense<0.000000e+00> : vector<18x128xf32>
    %642 = tpu.matmul %641, %640, %cst_141 {dimension_numbers = #tpu.dot_dimension_numbers<[1], [0], [0], [1], [0, 0, 1, 1], [], []>} : vector<18x16xf32>, vector<16x128xf32>, vector<18x128xf32> -> vector<18x128xf32>
    %c0_142 = arith.constant 0 : index
    %c16_143 = arith.constant 16 : index
    %643 = vector.load %arg7[%c0_142, %c16_143] : memref<18x17xf32, #tpu.memory_space<vmem>>, vector<18x1xf32>
    %644 = vector.broadcast %643 : vector<18x1xf32> to vector<18x128xf32>
    %645 = arith.addf %642, %644 : vector<18x128xf32>
    %646 = arith.negf %645 : vector<18x128xf32>
    %647 = math.exp %646 : vector<18x128xf32>
    %cst_144 = arith.constant 1.000000e+00 : f32
    %648 = vector.broadcast %cst_144 : f32 to vector<18x128xf32>
    %649 = arith.addf %648, %647 : vector<18x128xf32>
    %650 = arith.divf %648, %649 : vector<18x128xf32>
    %c0_145 = arith.constant 0 : index
    %c0_146 = arith.constant 0 : index
    %651 = vector.load %arg3[%c0_145, %c0_146] : memref<9x128xf32, #tpu.memory_space<vmem>>, vector<9x128xf32>
    %c0_147 = arith.constant 0 : index
    %c0_148 = arith.constant 0 : index
    %652 = vector.load %arg4[%c0_147, %c0_148] : memref<9x128xf32, #tpu.memory_space<vmem>>, vector<9x128xf32>
    %653 = tpu.concatenate %651, %651 in 0 : vector<9x128xf32>, vector<9x128xf32> -> vector<18x128xf32>
    %654 = tpu.concatenate %652, %652 in 0 : vector<9x128xf32>, vector<9x128xf32> -> vector<18x128xf32>
    %655 = arith.mulf %650, %653 : vector<18x128xf32>
    %c0_149 = arith.constant 0 : index
    %c0_150 = arith.constant 0 : index
    %656 = vector.load %arg10[%c0_149, %c0_150] : memref<18x128xf32, #tpu.memory_space<vmem>>, vector<18x128xf32>
    tpu.vector_store %arg10[%c0_149, %c0_150], %655 {strides = array<i32>} : memref<18x128xf32, #tpu.memory_space<vmem>>, vector<18x128xf32>,
    %657 = arith.mulf %650, %654 : vector<18x128xf32>
    %c0_151 = arith.constant 0 : index
    %c0_152 = arith.constant 0 : index
    %658 = vector.load %arg11[%c0_151, %c0_152] : memref<18x128xf32, #tpu.memory_space<vmem>>, vector<18x128xf32>
    tpu.vector_store %arg11[%c0_151, %c0_152], %657 {strides = array<i32>} : memref<18x128xf32, #tpu.memory_space<vmem>>, vector<18x128xf32>,
    return
  }
  func.func @transform_0(%arg0: i32) -> i32 {
    %c0_i32 = arith.constant 0 : i32
    %c0_i32_0 = arith.constant 0 : i32
    return %c0_i32 : i32
  }
  func.func @transform_1(%arg0: i32) -> (i32, i32) {
    %c0_i32 = arith.constant 0 : i32
    %c0_i32_0 = arith.constant 0 : i32
    return %c0_i32, %arg0 : i32, i32
  }
  func.func @transform_2(%arg0: i32) -> (i32, i32) {
    %c0_i32 = arith.constant 0 : i32
    %c0_i32_0 = arith.constant 0 : i32
    return %c0_i32, %arg0 : i32, i32
  }
  func.func @transform_3(%arg0: i32) -> (i32, i32) {
    %c0_i32 = arith.constant 0 : i32
    %c0_i32_0 = arith.constant 0 : i32
    return %c0_i32, %arg0 : i32, i32
  }
  func.func @transform_4(%arg0: i32) -> (i32, i32) {
    %c0_i32 = arith.constant 0 : i32
    %c0_i32_0 = arith.constant 0 : i32
    %c0_i32_1 = arith.constant 0 : i32
    return %c0_i32, %c0_i32_0 : i32, i32
  }
  func.func @transform_5(%arg0: i32) -> (i32, i32) {
    %c0_i32 = arith.constant 0 : i32
    %c0_i32_0 = arith.constant 0 : i32
    %c0_i32_1 = arith.constant 0 : i32
    return %c0_i32, %c0_i32_0 : i32, i32
  }
  func.func @transform_6(%arg0: i32) -> (i32, i32) {
    %c0_i32 = arith.constant 0 : i32
    %c0_i32_0 = arith.constant 0 : i32
    %c0_i32_1 = arith.constant 0 : i32
    return %c0_i32, %c0_i32_0 : i32, i32
  }
  func.func @transform_7(%arg0: i32) -> (i32, i32) {
    %c0_i32 = arith.constant 0 : i32
    %c0_i32_0 = arith.constant 0 : i32
    %c0_i32_1 = arith.constant 0 : i32
    return %c0_i32, %c0_i32_0 : i32, i32
  }
  func.func @transform_8(%arg0: i32) -> (i32, i32) {
    %c0_i32 = arith.constant 0 : i32
    %c0_i32_0 = arith.constant 0 : i32
    %c0_i32_1 = arith.constant 0 : i32
    return %c0_i32, %c0_i32_0 : i32, i32
  }
  func.func @transform_9(%arg0: i32) -> (i32, i32) {
    %c0_i32 = arith.constant 0 : i32
    %c0_i32_0 = arith.constant 0 : i32
    return %c0_i32, %arg0 : i32, i32
  }
  func.func @transform_10(%arg0: i32) -> (i32, i32) {
    %c0_i32 = arith.constant 0 : i32
    %c0_i32_0 = arith.constant 0 : i32
    return %c0_i32, %arg0 : i32, i32
  }
}

</mosaic_0001>

<llo_original>
// kernel: reverse.1
$region0: #{reverse.1}
  %s0 = inlined_call_operand.vmem [shape: f32[16,2,16,7], index: 0, kind: input, shape index: {}]
  %s1 = inlined_call_operand.vmem [shape: f32[16,2,16,7], index: 1, kind: output, shape index: {}]
  %v2 = vlaneseq
  %v3 = vsub.s32 6, %v2
  %4 = vset.pattern.permute.xlu0 %v3
  $region1: #{reverse.1} parent=0
    #allocation0 [shape = 'u8[262144]{0}', space=vmem, size = 0x40000, scoped, tag = 'operand span for operand 0']
    #allocation1 [shape = 'u8[262144]{0}', space=vmem, size = 0x40000, scoped, tag = 'operand span for operand 1']
    // Predicated region
    $region2: #{reverse.1} parent=1 // pred_check
      _
    $region3: #{reverse.1} parent=1 // pred_check_branch
      %6 = sbr.rel (0) target = $region5
    $region4: #{reverse.1} parent=1 // pred_region
      // Predicated region
      $region6: #{reverse.1} parent=4 // pred_check
        _
      $region7: #{reverse.1} parent=4 // pred_check_branch
        %8 = sbr.rel (0) target = $region9
      $region8: #{reverse.1} parent=4 // pred_region
        // Predicated region
        $region21: #{reverse.1} parent=8 // pred_check
          _
        $region22: #{reverse.1} parent=8 // pred_check_branch
          %149 = sbr.rel (0) target = $region24
        $region23: #{reverse.1} parent=8 // pred_region
          loop: start=0, step=1, limit=1
          $region25: #{reverse.1} parent=23 // loop_pre_header
            _
          $region26: #{reverse.1} parent=23 // loop_header
            %s151 = sphi 0, %s155
            %p152 = scmp.ge.s32.totalorder %s151, 1
            %s156 = sphi %s0, %s0
            %s157 = sphi [#allocation0], [#allocation0]
          $region27: #{reverse.1} parent=23 // loop_header_branch
            %154 = sbr.rel (%p152) target = $region31
          $region28: #{reverse.1} parent=23 // loop_body
            %v158 = vld [vmem:[%s156] sm:$0xff]
            %159 = vst [vmem:[%s157] sm:$0xff] %v158
            %v160 = vld [vmem:[%s156 + $0x8] sm:$0xff]
            %161 = vst [vmem:[%s157 + $0x8] sm:$0xff] %v160
            %v162 = vld [vmem:[%s156 + $0x10] sm:$0xff]
            %163 = vst [vmem:[%s157 + $0x10] sm:$0xff] %v162
            %v164 = vld [vmem:[%s156 + $0x18] sm:$0xff]
            %165 = vst [vmem:[%s157 + $0x18] sm:$0xff] %v164
            %v166 = vld [vmem:[%s156 + $0x20] sm:$0xff]
            %167 = vst [vmem:[%s157 + $0x20] sm:$0xff] %v166
            %v168 = vld [vmem:[%s156 + $0x28] sm:$0xff]
            %169 = vst [vmem:[%s157 + $0x28] sm:$0xff] %v168
            %v170 = vld [vmem:[%s156 + $0x30] sm:$0xff]
            %171 = vst [vmem:[%s157 + $0x30] sm:$0xff] %v170
            %v172 = vld [vmem:[%s156 + $0x38] sm:$0xff]
            %173 = vst [vmem:[%s157 + $0x38] sm:$0xff] %v172
            %v174 = vld [vmem:[%s156 + $0x40] sm:$0xff]
            %175 = vst [vmem:[%s157 + $0x40] sm:$0xff] %v174
            %v176 = vld [vmem:[%s156 + $0x48] sm:$0xff]
            %177 = vst [vmem:[%s157 + $0x48] sm:$0xff] %v176
            %v178 = vld [vmem:[%s156 + $0x50] sm:$0xff]
            %179 = vst [vmem:[%s157 + $0x50] sm:$0xff] %v178
            %v180 = vld [vmem:[%s156 + $0x58] sm:$0xff]
            %181 = vst [vmem:[%s157 + $0x58] sm:$0xff] %v180
            %v182 = vld [vmem:[%s156 + $0x60] sm:$0xff]
            %183 = vst [vmem:[%s157 + $0x60] sm:$0xff] %v182
            %v184 = vld [vmem:[%s156 + $0x68] sm:$0xff]
            %185 = vst [vmem:[%s157 + $0x68] sm:$0xff] %v184
            %v186 = vld [vmem:[%s156 + $0x70] sm:$0xff]
            %187 = vst [vmem:[%s157 + $0x70] sm:$0xff] %v186
            %v188 = vld [vmem:[%s156 + $0x78] sm:$0xff]
            %189 = vst [vmem:[%s157 + $0x78] sm:$0xff] %v188
            %v190 = vld [vmem:[%s156 + $0x80] sm:$0xff]
            %191 = vst [vmem:[%s157 + $0x80] sm:$0xff] %v190
            %v192 = vld [vmem:[%s156 + $0x88] sm:$0xff]
            %193 = vst [vmem:[%s157 + $0x88] sm:$0xff] %v192
            %v194 = vld [vmem:[%s156 + $0x90] sm:$0xff]
            %195 = vst [vmem:[%s157 + $0x90] sm:$0xff] %v194
            %v196 = vld [vmem:[%s156 + $0x98] sm:$0xff]
            %197 = vst [vmem:[%s157 + $0x98] sm:$0xff] %v196
            %v198 = vld [vmem:[%s156 + $0xa0] sm:$0xff]
            %199 = vst [vmem:[%s157 + $0xa0] sm:$0xff] %v198
            %v200 = vld [vmem:[%s156 + $0xa8] sm:$0xff]
            %201 = vst [vmem:[%s157 + $0xa8] sm:$0xff] %v200
            %v202 = vld [vmem:[%s156 + $0xb0] sm:$0xff]
            %203 = vst [vmem:[%s157 + $0xb0] sm:$0xff] %v202
            %v204 = vld [vmem:[%s156 + $0xb8] sm:$0xff]
            %205 = vst [vmem:[%s157 + $0xb8] sm:$0xff] %v204
            %v206 = vld [vmem:[%s156 + $0xc0] sm:$0xff]
            %207 = vst [vmem:[%s157 + $0xc0] sm:$0xff] %v206
            %v208 = vld [vmem:[%s156 + $0xc8] sm:$0xff]
            %209 = vst [vmem:[%s157 + $0xc8] sm:$0xff] %v208
            %v210 = vld [vmem:[%s156 + $0xd0] sm:$0xff]
            %211 = vst [vmem:[%s157 + $0xd0] sm:$0xff] %v210
            %v212 = vld [vmem:[%s156 + $0xd8] sm:$0xff]
            %213 = vst [vmem:[%s157 + $0xd8] sm:$0xff] %v212
            %v214 = vld [vmem:[%s156 + $0xe0] sm:$0xff]
            %215 = vst [vmem:[%s157 + $0xe0] sm:$0xff] %v214
            %v216 = vld [vmem:[%s156 + $0xe8] sm:$0xff]
            %217 = vst [vmem:[%s157 + $0xe8] sm:$0xff] %v216
            %v218 = vld [vmem:[%s156 + $0xf0] sm:$0xff]
            %219 = vst [vmem:[%s157 + $0xf0] sm:$0xff] %v218
            %v220 = vld [vmem:[%s156 + $0xf8] sm:$0xff]
            %221 = vst [vmem:[%s157 + $0xf8] sm:$0xff] %v220
            %v222 = vld [vmem:[%s156 + $0x100] sm:$0xff]
            %223 = vst [vmem:[%s157 + $0x100] sm:$0xff] %v222
            %v224 = vld [vmem:[%s156 + $0x108] sm:$0xff]
            %225 = vst [vmem:[%s157 + $0x108] sm:$0xff] %v224
            %v226 = vld [vmem:[%s156 + $0x110] sm:$0xff]
            %227 = vst [vmem:[%s157 + $0x110] sm:$0xff] %v226
            %v228 = vld [vmem:[%s156 + $0x118] sm:$0xff]
            %229 = vst [vmem:[%s157 + $0x118] sm:$0xff] %v228
            %v230 = vld [vmem:[%s156 + $0x120] sm:$0xff]
            %231 = vst [vmem:[%s157 + $0x120] sm:$0xff] %v230
            %v232 = vld [vmem:[%s156 + $0x128] sm:$0xff]
            %233 = vst [vmem:[%s157 + $0x128] sm:$0xff] %v232
            %v234 = vld [vmem:[%s156 + $0x130] sm:$0xff]
            %235 = vst [vmem:[%s157 + $0x130] sm:$0xff] %v234
            %v236 = vld [vmem:[%s156 + $0x138] sm:$0xff]
            %237 = vst [vmem:[%s157 + $0x138] sm:$0xff] %v236
            %v238 = vld [vmem:[%s156 + $0x140] sm:$0xff]
            %239 = vst [vmem:[%s157 + $0x140] sm:$0xff] %v238
            %v240 = vld [vmem:[%s156 + $0x148] sm:$0xff]
            %241 = vst [vmem:[%s157 + $0x148] sm:$0xff] %v240
            %v242 = vld [vmem:[%s156 + $0x150] sm:$0xff]
            %243 = vst [vmem:[%s157 + $0x150] sm:$0xff] %v242
            %v244 = vld [vmem:[%s156 + $0x158] sm:$0xff]
            %245 = vst [vmem:[%s157 + $0x158] sm:$0xff] %v244
            %v246 = vld [vmem:[%s156 + $0x160] sm:$0xff]
            %247 = vst [vmem:[%s157 + $0x160] sm:$0xff] %v246
            %v248 = vld [vmem:[%s156 + $0x168] sm:$0xff]
            %249 = vst [vmem:[%s157 + $0x168] sm:$0xff] %v248
            %v250 = vld [vmem:[%s156 + $0x170] sm:$0xff]
            %251 = vst [vmem:[%s157 + $0x170] sm:$0xff] %v250
            %v252 = vld [vmem:[%s156 + $0x178] sm:$0xff]
            %253 = vst [vmem:[%s157 + $0x178] sm:$0xff] %v252
            %v254 = vld [vmem:[%s156 + $0x180] sm:$0xff]
            %255 = vst [vmem:[%s157 + $0x180] sm:$0xff] %v254
            %v256 = vld [vmem:[%s156 + $0x188] sm:$0xff]
            %257 = vst [vmem:[%s157 + $0x188] sm:$0xff] %v256
            %v258 = vld [vmem:[%s156 + $0x190] sm:$0xff]
            %259 = vst [vmem:[%s157 + $0x190] sm:$0xff] %v258
            %v260 = vld [vmem:[%s156 + $0x198] sm:$0xff]
            %261 = vst [vmem:[%s157 + $0x198] sm:$0xff] %v260
            %v262 = vld [vmem:[%s156 + $0x1a0] sm:$0xff]
            %263 = vst [vmem:[%s157 + $0x1a0] sm:$0xff] %v262
            %v264 = vld [vmem:[%s156 + $0x1a8] sm:$0xff]
            %265 = vst [vmem:[%s157 + $0x1a8] sm:$0xff] %v264
            %v266 = vld [vmem:[%s156 + $0x1b0] sm:$0xff]
            %267 = vst [vmem:[%s157 + $0x1b0] sm:$0xff] %v266
            %v268 = vld [vmem:[%s156 + $0x1b8] sm:$0xff]
            %269 = vst [vmem:[%s157 + $0x1b8] sm:$0xff] %v268
            %v270 = vld [vmem:[%s156 + $0x1c0] sm:$0xff]
            %271 = vst [vmem:[%s157 + $0x1c0] sm:$0xff] %v270
            %v272 = vld [vmem:[%s156 + $0x1c8] sm:$0xff]
            %273 = vst [vmem:[%s157 + $0x1c8] sm:$0xff] %v272
            %v274 = vld [vmem:[%s156 + $0x1d0] sm:$0xff]
            %275 = vst [vmem:[%s157 + $0x1d0] sm:$0xff] %v274
            %v276 = vld [vmem:[%s156 + $0x1d8] sm:$0xff]
            %277 = vst [vmem:[%s157 + $0x1d8] sm:$0xff] %v276
            %v278 = vld [vmem:[%s156 + $0x1e0] sm:$0xff]
            %279 = vst [vmem:[%s157 + $0x1e0] sm:$0xff] %v278
            %v280 = vld [vmem:[%s156 + $0x1e8] sm:$0xff]
            %281 = vst [vmem:[%s157 + $0x1e8] sm:$0xff] %v280
            %v282 = vld [vmem:[%s156 + $0x1f0] sm:$0xff]
            %283 = vst [vmem:[%s157 + $0x1f0] sm:$0xff] %v282
            %v284 = vld [vmem:[%s156 + $0x1f8] sm:$0xff]
            %285 = vst [vmem:[%s157 + $0x1f8] sm:$0xff] %v284
          $region29: #{reverse.1} parent=23 // loop_footer
            %s155 = sadd.s32 1, %s151
          $region30: #{reverse.1} parent=23 // loop_footer_branch
            %150 = sbr.rel target = $region26
          $region31: #{reverse.1} parent=23 // loop_exit
            _
        $region24: #{reverse.1} parent=8 // pred_fallthru
          _
        // Predicated region
        $region32: #{reverse.1} parent=8 // pred_check
          _
        $region33: #{reverse.1} parent=8 // pred_check_branch
          %287 = sbr.rel target = $region35
        $region34: #{reverse.1} parent=8 // pred_region
          _
        $region35: #{reverse.1} parent=8 // pred_fallthru
          _
      $region9: #{reverse.1} parent=4 // pred_fallthru
        _
      // Predicated region
      $region10: #{reverse.1} parent=4 // pred_check
        _
      $region11: #{reverse.1} parent=4 // pred_check_branch
        %10 = sbr.rel target = $region13
      $region12: #{reverse.1} parent=4 // pred_region
        loop: start=0, step=1, limit=1
        $region14: #{reverse.1} parent=12 // loop_pre_header
          _
        $region15: #{reverse.1} parent=12 // loop_header
          %s13 = sphi 0, %s17
          %p14 = scmp.ge.s32.totalorder %s13, 1
          %s18 = sphi %s0, %s0
          %s19 = sphi [#allocation0], [#allocation0]
        $region16: #{reverse.1} parent=12 // loop_header_branch
          %16 = sbr.rel (%p14) target = $region20
        $region17: #{reverse.1} parent=12 // loop_body
          %v20 = vld [vmem:[%s18] sm:$0xff]
          %21 = vst [vmem:[%s19] sm:$0xff] %v20
          %v22 = vld [vmem:[%s18 + $0x8] sm:$0xff]
          %23 = vst [vmem:[%s19 + $0x8] sm:$0xff] %v22
          %v24 = vld [vmem:[%s18 + $0x10] sm:$0xff]
          %25 = vst [vmem:[%s19 + $0x10] sm:$0xff] %v24
          %v26 = vld [vmem:[%s18 + $0x18] sm:$0xff]
          %27 = vst [vmem:[%s19 + $0x18] sm:$0xff] %v26
          %v28 = vld [vmem:[%s18 + $0x20] sm:$0xff]
          %29 = vst [vmem:[%s19 + $0x20] sm:$0xff] %v28
          %v30 = vld [vmem:[%s18 + $0x28] sm:$0xff]
          %31 = vst [vmem:[%s19 + $0x28] sm:$0xff] %v30
          %v32 = vld [vmem:[%s18 + $0x30] sm:$0xff]
          %33 = vst [vmem:[%s19 + $0x30] sm:$0xff] %v32
          %v34 = vld [vmem:[%s18 + $0x38] sm:$0xff]
          %35 = vst [vmem:[%s19 + $0x38] sm:$0xff] %v34
          %v36 = vld [vmem:[%s18 + $0x40] sm:$0xff]
          %37 = vst [vmem:[%s19 + $0x40] sm:$0xff] %v36
          %v38 = vld [vmem:[%s18 + $0x48] sm:$0xff]
          %39 = vst [vmem:[%s19 + $0x48] sm:$0xff] %v38
          %v40 = vld [vmem:[%s18 + $0x50] sm:$0xff]
          %41 = vst [vmem:[%s19 + $0x50] sm:$0xff] %v40
          %v42 = vld [vmem:[%s18 + $0x58] sm:$0xff]
          %43 = vst [vmem:[%s19 + $0x58] sm:$0xff] %v42
          %v44 = vld [vmem:[%s18 + $0x60] sm:$0xff]
          %45 = vst [vmem:[%s19 + $0x60] sm:$0xff] %v44
          %v46 = vld [vmem:[%s18 + $0x68] sm:$0xff]
          %47 = vst [vmem:[%s19 + $0x68] sm:$0xff] %v46
          %v48 = vld [vmem:[%s18 + $0x70] sm:$0xff]
          %49 = vst [vmem:[%s19 + $0x70] sm:$0xff] %v48
          %v50 = vld [vmem:[%s18 + $0x78] sm:$0xff]
          %51 = vst [vmem:[%s19 + $0x78] sm:$0xff] %v50
          %v52 = vld [vmem:[%s18 + $0x80] sm:$0xff]
          %53 = vst [vmem:[%s19 + $0x80] sm:$0xff] %v52
          %v54 = vld [vmem:[%s18 + $0x88] sm:$0xff]
          %55 = vst [vmem:[%s19 + $0x88] sm:$0xff] %v54
          %v56 = vld [vmem:[%s18 + $0x90] sm:$0xff]
          %57 = vst [vmem:[%s19 + $0x90] sm:$0xff] %v56
          %v58 = vld [vmem:[%s18 + $0x98] sm:$0xff]
          %59 = vst [vmem:[%s19 + $0x98] sm:$0xff] %v58
          %v60 = vld [vmem:[%s18 + $0xa0] sm:$0xff]
          %61 = vst [vmem:[%s19 + $0xa0] sm:$0xff] %v60
          %v62 = vld [vmem:[%s18 + $0xa8] sm:$0xff]
          %63 = vst [vmem:[%s19 + $0xa8] sm:$0xff] %v62
          %v64 = vld [vmem:[%s18 + $0xb0] sm:$0xff]
          %65 = vst [vmem:[%s19 + $0xb0] sm:$0xff] %v64
          %v66 = vld [vmem:[%s18 + $0xb8] sm:$0xff]
          %67 = vst [vmem:[%s19 + $0xb8] sm:$0xff] %v66
          %v68 = vld [vmem:[%s18 + $0xc0] sm:$0xff]
          %69 = vst [vmem:[%s19 + $0xc0] sm:$0xff] %v68
          %v70 = vld [vmem:[%s18 + $0xc8] sm:$0xff]
          %71 = vst [vmem:[%s19 + $0xc8] sm:$0xff] %v70
          %v72 = vld [vmem:[%s18 + $0xd0] sm:$0xff]
          %73 = vst [vmem:[%s19 + $0xd0] sm:$0xff] %v72
          %v74 = vld [vmem:[%s18 + $0xd8] sm:$0xff]
          %75 = vst [vmem:[%s19 + $0xd8] sm:$0xff] %v74
          %v76 = vld [vmem:[%s18 + $0xe0] sm:$0xff]
          %77 = vst [vmem:[%s19 + $0xe0] sm:$0xff] %v76
          %v78 = vld [vmem:[%s18 + $0xe8] sm:$0xff]
          %79 = vst [vmem:[%s19 + $0xe8] sm:$0xff] %v78
          %v80 = vld [vmem:[%s18 + $0xf0] sm:$0xff]
          %81 = vst [vmem:[%s19 + $0xf0] sm:$0xff] %v80
          %v82 = vld [vmem:[%s18 + $0xf8] sm:$0xff]
          %83 = vst [vmem:[%s19 + $0xf8] sm:$0xff] %v82
          %v84 = vld [vmem:[%s18 + $0x100] sm:$0xff]
          %85 = vst [vmem:[%s19 + $0x100] sm:$0xff] %v84
          %v86 = vld [vmem:[%s18 + $0x108] sm:$0xff]
          %87 = vst [vmem:[%s19 + $0x108] sm:$0xff] %v86
          %v88 = vld [vmem:[%s18 + $0x110] sm:$0xff]
          %89 = vst [vmem:[%s19 + $0x110] sm:$0xff] %v88
          %v90 = vld [vmem:[%s18 + $0x118] sm:$0xff]
          %91 = vst [vmem:[%s19 + $0x118] sm:$0xff] %v90
          %v92 = vld [vmem:[%s18 + $0x120] sm:$0xff]
          %93 = vst [vmem:[%s19 + $0x120] sm:$0xff] %v92
          %v94 = vld [vmem:[%s18 + $0x128] sm:$0xff]
          %95 = vst [vmem:[%s19 + $0x128] sm:$0xff] %v94
          %v96 = vld [vmem:[%s18 + $0x130] sm:$0xff]
          %97 = vst [vmem:[%s19 + $0x130] sm:$0xff] %v96
          %v98 = vld [vmem:[%s18 + $0x138] sm:$0xff]
          %99 = vst [vmem:[%s19 + $0x138] sm:$0xff] %v98
          %v100 = vld [vmem:[%s18 + $0x140] sm:$0xff]
          %101 = vst [vmem:[%s19 + $0x140] sm:$0xff] %v100
          %v102 = vld [vmem:[%s18 + $0x148] sm:$0xff]
          %103 = vst [vmem:[%s19 + $0x148] sm:$0xff] %v102
          %v104 = vld [vmem:[%s18 + $0x150] sm:$0xff]
          %105 = vst [vmem:[%s19 + $0x150] sm:$0xff] %v104
          %v106 = vld [vmem:[%s18 + $0x158] sm:$0xff]
          %107 = vst [vmem:[%s19 + $0x158] sm:$0xff] %v106
          %v108 = vld [vmem:[%s18 + $0x160] sm:$0xff]
          %109 = vst [vmem:[%s19 + $0x160] sm:$0xff] %v108
          %v110 = vld [vmem:[%s18 + $0x168] sm:$0xff]
          %111 = vst [vmem:[%s19 + $0x168] sm:$0xff] %v110
          %v112 = vld [vmem:[%s18 + $0x170] sm:$0xff]
          %113 = vst [vmem:[%s19 + $0x170] sm:$0xff] %v112
          %v114 = vld [vmem:[%s18 + $0x178] sm:$0xff]
          %115 = vst [vmem:[%s19 + $0x178] sm:$0xff] %v114
          %v116 = vld [vmem:[%s18 + $0x180] sm:$0xff]
          %117 = vst [vmem:[%s19 + $0x180] sm:$0xff] %v116
          %v118 = vld [vmem:[%s18 + $0x188] sm:$0xff]
          %119 = vst [vmem:[%s19 + $0x188] sm:$0xff] %v118
          %v120 = vld [vmem:[%s18 + $0x190] sm:$0xff]
          %121 = vst [vmem:[%s19 + $0x190] sm:$0xff] %v120
          %v122 = vld [vmem:[%s18 + $0x198] sm:$0xff]
          %123 = vst [vmem:[%s19 + $0x198] sm:$0xff] %v122
          %v124 = vld [vmem:[%s18 + $0x1a0] sm:$0xff]
          %125 = vst [vmem:[%s19 + $0x1a0] sm:$0xff] %v124
          %v126 = vld [vmem:[%s18 + $0x1a8] sm:$0xff]
          %127 = vst [vmem:[%s19 + $0x1a8] sm:$0xff] %v126
          %v128 = vld [vmem:[%s18 + $0x1b0] sm:$0xff]
          %129 = vst [vmem:[%s19 + $0x1b0] sm:$0xff] %v128
          %v130 = vld [vmem:[%s18 + $0x1b8] sm:$0xff]
          %131 = vst [vmem:[%s19 + $0x1b8] sm:$0xff] %v130
          %v132 = vld [vmem:[%s18 + $0x1c0] sm:$0xff]
          %133 = vst [vmem:[%s19 + $0x1c0] sm:$0xff] %v132
          %v134 = vld [vmem:[%s18 + $0x1c8] sm:$0xff]
          %135 = vst [vmem:[%s19 + $0x1c8] sm:$0xff] %v134
          %v136 = vld [vmem:[%s18 + $0x1d0] sm:$0xff]
          %137 = vst [vmem:[%s19 + $0x1d0] sm:$0xff] %v136
          %v138 = vld [vmem:[%s18 + $0x1d8] sm:$0xff]
          %139 = vst [vmem:[%s19 + $0x1d8] sm:$0xff] %v138
          %v140 = vld [vmem:[%s18 + $0x1e0] sm:$0xff]
          %141 = vst [vmem:[%s19 + $0x1e0] sm:$0xff] %v140
          %v142 = vld [vmem:[%s18 + $0x1e8] sm:$0xff]
          %143 = vst [vmem:[%s19 + $0x1e8] sm:$0xff] %v142
          %v144 = vld [vmem:[%s18 + $0x1f0] sm:$0xff]
          %145 = vst [vmem:[%s19 + $0x1f0] sm:$0xff] %v144
          %v146 = vld [vmem:[%s18 + $0x1f8] sm:$0xff]
          %147 = vst [vmem:[%s19 + $0x1f8] sm:$0xff] %v146
        $region18: #{reverse.1} parent=12 // loop_footer
          %s17 = sadd.s32 1, %s13
        $region19: #{reverse.1} parent=12 // loop_footer_branch
          %12 = sbr.rel target = $region15
        $region20: #{reverse.1} parent=12 // loop_exit
          _
      $region13: #{reverse.1} parent=4 // pred_fallthru
        _
    $region5: #{reverse.1} parent=1 // pred_fallthru
      _
    %288 = vnop
    %v289 = vld [vmem:[#allocation0] sm:$0xff]
    %290 = vperm.xlu0 %4, %v289
    %v291 = vpop.permute.xlu0 %290
    %292 = vst [vmem:[#allocation1] sm:$0xff] %v291
    %s293 = scalar_lea.vmem [#allocation1], 8
    %s294 = scalar_lea.vmem [#allocation0], 8
    %v295 = vld [vmem:[%s294] sm:$0xff]
    %296 = vperm.xlu0 %4, %v295
    %v297 = vpop.permute.xlu0 %296
    %298 = vst [vmem:[%s293] sm:$0xff] %v297
    %s299 = scalar_lea.vmem [#allocation1], 16
    %s300 = scalar_lea.vmem [#allocation0], 16
    %v301 = vld [vmem:[%s300] sm:$0xff]
    %302 = vperm.xlu0 %4, %v301
    %v303 = vpop.permute.xlu0 %302
    %304 = vst [vmem:[%s299] sm:$0xff] %v303
    %s305 = scalar_lea.vmem %s299, 8 [#allocation1]
    %s306 = scalar_lea.vmem %s300, 8 [#allocation0]
    %v307 = vld [vmem:[%s306] sm:$0xff]
    %308 = vperm.xlu0 %4, %v307
    %v309 = vpop.permute.xlu0 %308
    %310 = vst [vmem:[%s305] sm:$0xff] %v309
    %s311 = scalar_lea.vmem [#allocation1], 32
    %s312 = scalar_lea.vmem [#allocation0], 32
    %v313 = vld [vmem:[%s312] sm:$0xff]
    %314 = vperm.xlu0 %4, %v313
    %v315 = vpop.permute.xlu0 %314
    %316 = vst [vmem:[%s311] sm:$0xff] %v315
    %s317 = scalar_lea.vmem %s311, 8 [#allocation1]
    %s318 = scalar_lea.vmem %s312, 8 [#allocation0]
    %v319 = vld [vmem:[%s318] sm:$0xff]
    %320 = vperm.xlu0 %4, %v319
    %v321 = vpop.permute.xlu0 %320
    %322 = vst [vmem:[%s317] sm:$0xff] %v321
    %s323 = scalar_lea.vmem [#allocation1], 48
    %s324 = scalar_lea.vmem [#allocation0], 48
    %v325 = vld [vmem:[%s324] sm:$0xff]
    %326 = vperm.xlu0 %4, %v325
    %v327 = vpop.permute.xlu0 %326
    %328 = vst [vmem:[%s323] sm:$0xff] %v327
    %s329 = scalar_lea.vmem %s323, 8 [#allocation1]
    %s330 = scalar_lea.vmem %s324, 8 [#allocation0]
    %v331 = vld [vmem:[%s330] sm:$0xff]
    %332 = vperm.xlu0 %4, %v331
    %v333 = vpop.permute.xlu0 %332
    %334 = vst [vmem:[%s329] sm:$0xff] %v333
    %s335 = scalar_lea.vmem [#allocation1], 64
    %s336 = scalar_lea.vmem [#allocation0], 64
    %v337 = vld [vmem:[%s336] sm:$0xff]
    %338 = vperm.xlu0 %4, %v337
    %v339 = vpop.permute.xlu0 %338
    %340 = vst [vmem:[%s335] sm:$0xff] %v339
    %s341 = scalar_lea.vmem %s335, 8 [#allocation1]
    %s342 = scalar_lea.vmem %s336, 8 [#allocation0]
    %v343 = vld [vmem:[%s342] sm:$0xff]
    %344 = vperm.xlu0 %4, %v343
    %v345 = vpop.permute.xlu0 %344
    %346 = vst [vmem:[%s341] sm:$0xff] %v345
    %s347 = scalar_lea.vmem [#allocation1], 80
    %s348 = scalar_lea.vmem [#allocation0], 80
    %v349 = vld [vmem:[%s348] sm:$0xff]
    %350 = vperm.xlu0 %4, %v349
    %v351 = vpop.permute.xlu0 %350
    %352 = vst [vmem:[%s347] sm:$0xff] %v351
    %s353 = scalar_lea.vmem %s347, 8 [#allocation1]
    %s354 = scalar_lea.vmem %s348, 8 [#allocation0]
    %v355 = vld [vmem:[%s354] sm:$0xff]
    %356 = vperm.xlu0 %4, %v355
    %v357 = vpop.permute.xlu0 %356
    %358 = vst [vmem:[%s353] sm:$0xff] %v357
    %s359 = scalar_lea.vmem [#allocation1], 96
    %s360 = scalar_lea.vmem [#allocation0], 96
    %v361 = vld [vmem:[%s360] sm:$0xff]
    %362 = vperm.xlu0 %4, %v361
    %v363 = vpop.permute.xlu0 %362
    %364 = vst [vmem:[%s359] sm:$0xff] %v363
    %s365 = scalar_lea.vmem %s359, 8 [#allocation1]
    %s366 = scalar_lea.vmem %s360, 8 [#allocation0]
    %v367 = vld [vmem:[%s366] sm:$0xff]
    %368 = vperm.xlu0 %4, %v367
    %v369 = vpop.permute.xlu0 %368
    %370 = vst [vmem:[%s365] sm:$0xff] %v369
    %s371 = scalar_lea.vmem [#allocation1], 112
    %s372 = scalar_lea.vmem [#allocation0], 112
    %v373 = vld [vmem:[%s372] sm:$0xff]
    %374 = vperm.xlu0 %4, %v373
    %v375 = vpop.permute.xlu0 %374
    %376 = vst [vmem:[%s371] sm:$0xff] %v375
    %s377 = scalar_lea.vmem %s371, 8 [#allocation1]
    %s378 = scalar_lea.vmem %s372, 8 [#allocation0]
    %v379 = vld [vmem:[%s378] sm:$0xff]
    %380 = vperm.xlu0 %4, %v379
    %v381 = vpop.permute.xlu0 %380
    %382 = vst [vmem:[%s377] sm:$0xff] %v381
    %s383 = scalar_lea.vmem [#allocation1], 128
    %s384 = scalar_lea.vmem [#allocation0], 128
    %v385 = vld [vmem:[%s384] sm:$0xff]
    %386 = vperm.xlu0 %4, %v385
    %v387 = vpop.permute.xlu0 %386
    %388 = vst [vmem:[%s383] sm:$0xff] %v387
    %s389 = scalar_lea.vmem %s383, 8 [#allocation1]
    %s390 = scalar_lea.vmem %s384, 8 [#allocation0]
    %v391 = vld [vmem:[%s390] sm:$0xff]
    %392 = vperm.xlu0 %4, %v391
    %v393 = vpop.permute.xlu0 %392
    %394 = vst [vmem:[%s389] sm:$0xff] %v393
    %s395 = scalar_lea.vmem [#allocation1], 144
    %s396 = scalar_lea.vmem [#allocation0], 144
    %v397 = vld [vmem:[%s396] sm:$0xff]
    %398 = vperm.xlu0 %4, %v397
    %v399 = vpop.permute.xlu0 %398
    %400 = vst [vmem:[%s395] sm:$0xff] %v399
    %s401 = scalar_lea.vmem %s395, 8 [#allocation1]
    %s402 = scalar_lea.vmem %s396, 8 [#allocation0]
    %v403 = vld [vmem:[%s402] sm:$0xff]
    %404 = vperm.xlu0 %4, %v403
    %v405 = vpop.permute.xlu0 %404
    %406 = vst [vmem:[%s401] sm:$0xff] %v405
    %s407 = scalar_lea.vmem [#allocation1], 160
    %s408 = scalar_lea.vmem [#allocation0], 160
    %v409 = vld [vmem:[%s408] sm:$0xff]
    %410 = vperm.xlu0 %4, %v409
    %v411 = vpop.permute.xlu0 %410
    %412 = vst [vmem:[%s407] sm:$0xff] %v411
    %s413 = scalar_lea.vmem %s407, 8 [#allocation1]
    %s414 = scalar_lea.vmem %s408, 8 [#allocation0]
    %v415 = vld [vmem:[%s414] sm:$0xff]
    %416 = vperm.xlu0 %4, %v415
    %v417 = vpop.permute.xlu0 %416
    %418 = vst [vmem:[%s413] sm:$0xff] %v417
    %s419 = scalar_lea.vmem [#allocation1], 176
    %s420 = scalar_lea.vmem [#allocation0], 176
    %v421 = vld [vmem:[%s420] sm:$0xff]
    %422 = vperm.xlu0 %4, %v421
    %v423 = vpop.permute.xlu0 %422
    %424 = vst [vmem:[%s419] sm:$0xff] %v423
    %s425 = scalar_lea.vmem %s419, 8 [#allocation1]
    %s426 = scalar_lea.vmem %s420, 8 [#allocation0]
    %v427 = vld [vmem:[%s426] sm:$0xff]
    %428 = vperm.xlu0 %4, %v427
    %v429 = vpop.permute.xlu0 %428
    %430 = vst [vmem:[%s425] sm:$0xff] %v429
    %s431 = scalar_lea.vmem [#allocation1], 192
    %s432 = scalar_lea.vmem [#allocation0], 192
    %v433 = vld [vmem:[%s432] sm:$0xff]
    %434 = vperm.xlu0 %4, %v433
    %v435 = vpop.permute.xlu0 %434
    %436 = vst [vmem:[%s431] sm:$0xff] %v435
    %s437 = scalar_lea.vmem %s431, 8 [#allocation1]
    %s438 = scalar_lea.vmem %s432, 8 [#allocation0]
    %v439 = vld [vmem:[%s438] sm:$0xff]
    %440 = vperm.xlu0 %4, %v439
    %v441 = vpop.permute.xlu0 %440
    %442 = vst [vmem:[%s437] sm:$0xff] %v441
    %s443 = scalar_lea.vmem [#allocation1], 208
    %s444 = scalar_lea.vmem [#allocation0], 208
    %v445 = vld [vmem:[%s444] sm:$0xff]
    %446 = vperm.xlu0 %4, %v445
    %v447 = vpop.permute.xlu0 %446
    %448 = vst [vmem:[%s443] sm:$0xff] %v447
    %s449 = scalar_lea.vmem %s443, 8 [#allocation1]
    %s450 = scalar_lea.vmem %s444, 8 [#allocation0]
    %v451 = vld [vmem:[%s450] sm:$0xff]
    %452 = vperm.xlu0 %4, %v451
    %v453 = vpop.permute.xlu0 %452
    %454 = vst [vmem:[%s449] sm:$0xff] %v453
    %s455 = scalar_lea.vmem [#allocation1], 224
    %s456 = scalar_lea.vmem [#allocation0], 224
    %v457 = vld [vmem:[%s456] sm:$0xff]
    %458 = vperm.xlu0 %4, %v457
    %v459 = vpop.permute.xlu0 %458
    %460 = vst [vmem:[%s455] sm:$0xff] %v459
    %s461 = scalar_lea.vmem %s455, 8 [#allocation1]
    %s462 = scalar_lea.vmem %s456, 8 [#allocation0]
    %v463 = vld [vmem:[%s462] sm:$0xff]
    %464 = vperm.xlu0 %4, %v463
    %v465 = vpop.permute.xlu0 %464
    %466 = vst [vmem:[%s461] sm:$0xff] %v465
    %s467 = scalar_lea.vmem [#allocation1], 240
    %s468 = scalar_lea.vmem [#allocation0], 240
    %v469 = vld [vmem:[%s468] sm:$0xff]
    %470 = vperm.xlu0 %4, %v469
    %v471 = vpop.permute.xlu0 %470
    %472 = vst [vmem:[%s467] sm:$0xff] %v471
    %s473 = scalar_lea.vmem %s467, 8 [#allocation1]
    %s474 = scalar_lea.vmem %s468, 8 [#allocation0]
    %v475 = vld [vmem:[%s474] sm:$0xff]
    %476 = vperm.xlu0 %4, %v475
    %v477 = vpop.permute.xlu0 %476
    %478 = vst [vmem:[%s473] sm:$0xff] %v477
    %s479 = scalar_lea.vmem [#allocation1], 256
    %s480 = scalar_lea.vmem [#allocation0], 256
    %v481 = vld [vmem:[%s480] sm:$0xff]
    %482 = vperm.xlu0 %4, %v481
    %v483 = vpop.permute.xlu0 %482
    %484 = vst [vmem:[%s479] sm:$0xff] %v483
    %s485 = scalar_lea.vmem %s479, 8 [#allocation1]
    %s486 = scalar_lea.vmem %s480, 8 [#allocation0]
    %v487 = vld [vmem:[%s486] sm:$0xff]
    %488 = vperm.xlu0 %4, %v487
    %v489 = vpop.permute.xlu0 %488
    %490 = vst [vmem:[%s485] sm:$0xff] %v489
    %s491 = scalar_lea.vmem [#allocation1], 272
    %s492 = scalar_lea.vmem [#allocation0], 272
    %v493 = vld [vmem:[%s492] sm:$0xff]
    %494 = vperm.xlu0 %4, %v493
    %v495 = vpop.permute.xlu0 %494
    %496 = vst [vmem:[%s491] sm:$0xff] %v495
    %s497 = scalar_lea.vmem %s491, 8 [#allocation1]
    %s498 = scalar_lea.vmem %s492, 8 [#allocation0]
    %v499 = vld [vmem:[%s498] sm:$0xff]
    %500 = vperm.xlu0 %4, %v499
    %v501 = vpop.permute.xlu0 %500
    %502 = vst [vmem:[%s497] sm:$0xff] %v501
    %s503 = scalar_lea.vmem [#allocation1], 288
    %s504 = scalar_lea.vmem [#allocation0], 288
    %v505 = vld [vmem:[%s504] sm:$0xff]
    %506 = vperm.xlu0 %4, %v505
    %v507 = vpop.permute.xlu0 %506
    %508 = vst [vmem:[%s503] sm:$0xff] %v507
    %s509 = scalar_lea.vmem %s503, 8 [#allocation1]
    %s510 = scalar_lea.vmem %s504, 8 [#allocation0]
    %v511 = vld [vmem:[%s510] sm:$0xff]
    %512 = vperm.xlu0 %4, %v511
    %v513 = vpop.permute.xlu0 %512
    %514 = vst [vmem:[%s509] sm:$0xff] %v513
    %s515 = scalar_lea.vmem [#allocation1], 304
    %s516 = scalar_lea.vmem [#allocation0], 304
    %v517 = vld [vmem:[%s516] sm:$0xff]
    %518 = vperm.xlu0 %4, %v517
    %v519 = vpop.permute.xlu0 %518
    %520 = vst [vmem:[%s515] sm:$0xff] %v519
    %s521 = scalar_lea.vmem %s515, 8 [#allocation1]
    %s522 = scalar_lea.vmem %s516, 8 [#allocation0]
    %v523 = vld [vmem:[%s522] sm:$0xff]
    %524 = vperm.xlu0 %4, %v523
    %v525 = vpop.permute.xlu0 %524
    %526 = vst [vmem:[%s521] sm:$0xff] %v525
    %s527 = scalar_lea.vmem [#allocation1], 320
    %s528 = scalar_lea.vmem [#allocation0], 320
    %v529 = vld [vmem:[%s528] sm:$0xff]
    %530 = vperm.xlu0 %4, %v529
    %v531 = vpop.permute.xlu0 %530
    %532 = vst [vmem:[%s527] sm:$0xff] %v531
    %s533 = scalar_lea.vmem %s527, 8 [#allocation1]
    %s534 = scalar_lea.vmem %s528, 8 [#allocation0]
    %v535 = vld [vmem:[%s534] sm:$0xff]
    %536 = vperm.xlu0 %4, %v535
    %v537 = vpop.permute.xlu0 %536
    %538 = vst [vmem:[%s533] sm:$0xff] %v537
    %s539 = scalar_lea.vmem [#allocation1], 336
    %s540 = scalar_lea.vmem [#allocation0], 336
    %v541 = vld [vmem:[%s540] sm:$0xff]
    %542 = vperm.xlu0 %4, %v541
    %v543 = vpop.permute.xlu0 %542
    %544 = vst [vmem:[%s539] sm:$0xff] %v543
    %s545 = scalar_lea.vmem %s539, 8 [#allocation1]
    %s546 = scalar_lea.vmem %s540, 8 [#allocation0]
    %v547 = vld [vmem:[%s546] sm:$0xff]
    %548 = vperm.xlu0 %4, %v547
    %v549 = vpop.permute.xlu0 %548
    %550 = vst [vmem:[%s545] sm:$0xff] %v549
    %s551 = scalar_lea.vmem [#allocation1], 352
    %s552 = scalar_lea.vmem [#allocation0], 352
    %v553 = vld [vmem:[%s552] sm:$0xff]
    %554 = vperm.xlu0 %4, %v553
    %v555 = vpop.permute.xlu0 %554
    %556 = vst [vmem:[%s551] sm:$0xff] %v555
    %s557 = scalar_lea.vmem %s551, 8 [#allocation1]
    %s558 = scalar_lea.vmem %s552, 8 [#allocation0]
    %v559 = vld [vmem:[%s558] sm:$0xff]
    %560 = vperm.xlu0 %4, %v559
    %v561 = vpop.permute.xlu0 %560
    %562 = vst [vmem:[%s557] sm:$0xff] %v561
    %s563 = scalar_lea.vmem [#allocation1], 368
    %s564 = scalar_lea.vmem [#allocation0], 368
    %v565 = vld [vmem:[%s564] sm:$0xff]
    %566 = vperm.xlu0 %4, %v565
    %v567 = vpop.permute.xlu0 %566
    %568 = vst [vmem:[%s563] sm:$0xff] %v567
    %s569 = scalar_lea.vmem %s563, 8 [#allocation1]
    %s570 = scalar_lea.vmem %s564, 8 [#allocation0]
    %v571 = vld [vmem:[%s570] sm:$0xff]
    %572 = vperm.xlu0 %4, %v571
    %v573 = vpop.permute.xlu0 %572
    %574 = vst [vmem:[%s569] sm:$0xff] %v573
    %s575 = scalar_lea.vmem [#allocation1], 384
    %s576 = scalar_lea.vmem [#allocation0], 384
    %v577 = vld [vmem:[%s576] sm:$0xff]
    %578 = vperm.xlu0 %4, %v577
    %v579 = vpop.permute.xlu0 %578
    %580 = vst [vmem:[%s575] sm:$0xff] %v579
    %s581 = scalar_lea.vmem %s575, 8 [#allocation1]
    %s582 = scalar_lea.vmem %s576, 8 [#allocation0]
    %v583 = vld [vmem:[%s582] sm:$0xff]
    %584 = vperm.xlu0 %4, %v583
    %v585 = vpop.permute.xlu0 %584
    %586 = vst [vmem:[%s581] sm:$0xff] %v585
    %s587 = scalar_lea.vmem [#allocation1], 400
    %s588 = scalar_lea.vmem [#allocation0], 400
    %v589 = vld [vmem:[%s588] sm:$0xff]
    %590 = vperm.xlu0 %4, %v589
    %v591 = vpop.permute.xlu0 %590
    %592 = vst [vmem:[%s587] sm:$0xff] %v591
    %s593 = scalar_lea.vmem %s587, 8 [#allocation1]
    %s594 = scalar_lea.vmem %s588, 8 [#allocation0]
    %v595 = vld [vmem:[%s594] sm:$0xff]
    %596 = vperm.xlu0 %4, %v595
    %v597 = vpop.permute.xlu0 %596
    %598 = vst [vmem:[%s593] sm:$0xff] %v597
    %s599 = scalar_lea.vmem [#allocation1], 416
    %s600 = scalar_lea.vmem [#allocation0], 416
    %v601 = vld [vmem:[%s600] sm:$0xff]
    %602 = vperm.xlu0 %4, %v601
    %v603 = vpop.permute.xlu0 %602
    %604 = vst [vmem:[%s599] sm:$0xff] %v603
    %s605 = scalar_lea.vmem %s599, 8 [#allocation1]
    %s606 = scalar_lea.vmem %s600, 8 [#allocation0]
    %v607 = vld [vmem:[%s606] sm:$0xff]
    %608 = vperm.xlu0 %4, %v607
    %v609 = vpop.permute.xlu0 %608
    %610 = vst [vmem:[%s605] sm:$0xff] %v609
    %s611 = scalar_lea.vmem [#allocation1], 432
    %s612 = scalar_lea.vmem [#allocation0], 432
    %v613 = vld [vmem:[%s612] sm:$0xff]
    %614 = vperm.xlu0 %4, %v613
    %v615 = vpop.permute.xlu0 %614
    %616 = vst [vmem:[%s611] sm:$0xff] %v615
    %s617 = scalar_lea.vmem %s611, 8 [#allocation1]
    %s618 = scalar_lea.vmem %s612, 8 [#allocation0]
    %v619 = vld [vmem:[%s618] sm:$0xff]
    %620 = vperm.xlu0 %4, %v619
    %v621 = vpop.permute.xlu0 %620
    %622 = vst [vmem:[%s617] sm:$0xff] %v621
    %s623 = scalar_lea.vmem [#allocation1], 448
    %s624 = scalar_lea.vmem [#allocation0], 448
    %v625 = vld [vmem:[%s624] sm:$0xff]
    %626 = vperm.xlu0 %4, %v625
    %v627 = vpop.permute.xlu0 %626
    %628 = vst [vmem:[%s623] sm:$0xff] %v627
    %s629 = scalar_lea.vmem %s623, 8 [#allocation1]
    %s630 = scalar_lea.vmem %s624, 8 [#allocation0]
    %v631 = vld [vmem:[%s630] sm:$0xff]
    %632 = vperm.xlu0 %4, %v631
    %v633 = vpop.permute.xlu0 %632
    %634 = vst [vmem:[%s629] sm:$0xff] %v633
    %s635 = scalar_lea.vmem [#allocation1], 464
    %s636 = scalar_lea.vmem [#allocation0], 464
    %v637 = vld [vmem:[%s636] sm:$0xff]
    %638 = vperm.xlu0 %4, %v637
    %v639 = vpop.permute.xlu0 %638
    %640 = vst [vmem:[%s635] sm:$0xff] %v639
    %s641 = scalar_lea.vmem %s635, 8 [#allocation1]
    %s642 = scalar_lea.vmem %s636, 8 [#allocation0]
    %v643 = vld [vmem:[%s642] sm:$0xff]
    %644 = vperm.xlu0 %4, %v643
    %v645 = vpop.permute.xlu0 %644
    %646 = vst [vmem:[%s641] sm:$0xff] %v645
    %s647 = scalar_lea.vmem [#allocation1], 480
    %s648 = scalar_lea.vmem [#allocation0], 480
    %v649 = vld [vmem:[%s648] sm:$0xff]
    %650 = vperm.xlu0 %4, %v649
    %v651 = vpop.permute.xlu0 %650
    %652 = vst [vmem:[%s647] sm:$0xff] %v651
    %s653 = scalar_lea.vmem %s647, 8 [#allocation1]
    %s654 = scalar_lea.vmem %s648, 8 [#allocation0]
    %v655 = vld [vmem:[%s654] sm:$0xff]
    %656 = vperm.xlu0 %4, %v655
    %v657 = vpop.permute.xlu0 %656
    %658 = vst [vmem:[%s653] sm:$0xff] %v657
    %s659 = scalar_lea.vmem [#allocation1], 496
    %s660 = scalar_lea.vmem [#allocation0], 496
    %v661 = vld [vmem:[%s660] sm:$0xff]
    %662 = vperm.xlu0 %4, %v661
    %v663 = vpop.permute.xlu0 %662
    %664 = vst [vmem:[%s659] sm:$0xff] %v663
    %s665 = scalar_lea.vmem %s659, 8 [#allocation1]
    %s666 = scalar_lea.vmem %s660, 8 [#allocation0]
    %v667 = vld [vmem:[%s666] sm:$0xff]
    %668 = vperm.xlu0 %4, %v667
    %v669 = vpop.permute.xlu0 %668
    %670 = vst [vmem:[%s665] sm:$0xff] %v669
    // Predicated region
    $region36: #{reverse.1} parent=1 // pred_check
      _
    $region37: #{reverse.1} parent=1 // pred_check_branch
      %672 = sbr.rel (0) target = $region39
    $region38: #{reverse.1} parent=1 // pred_region
      // Predicated region
      $region40: #{reverse.1} parent=38 // pred_check
        _
      $region41: #{reverse.1} parent=38 // pred_check_branch
        %674 = sbr.rel (0) target = $region43
      $region42: #{reverse.1} parent=38 // pred_region
        // Predicated region
        $region55: #{reverse.1} parent=42 // pred_check
          _
        $region56: #{reverse.1} parent=42 // pred_check_branch
          %815 = sbr.rel (0) target = $region58
        $region57: #{reverse.1} parent=42 // pred_region
          loop: start=0, step=1, limit=1
          $region59: #{reverse.1} parent=57 // loop_pre_header
            _
          $region60: #{reverse.1} parent=57 // loop_header
            %s817 = sphi 0, %s821
            %p818 = scmp.ge.s32.totalorder %s817, 1
            %s822 = sphi [#allocation1], [#allocation1]
            %s823 = sphi %s1, %s1
          $region61: #{reverse.1} parent=57 // loop_header_branch
            %820 = sbr.rel (%p818) target = $region65
          $region62: #{reverse.1} parent=57 // loop_body
            %v824 = vld [vmem:[%s822] sm:$0xff]
            %825 = vst [vmem:[%s823] sm:$0xff] %v824
            %v826 = vld [vmem:[%s822 + $0x8] sm:$0xff]
            %827 = vst [vmem:[%s823 + $0x8] sm:$0xff] %v826
            %v828 = vld [vmem:[%s822 + $0x10] sm:$0xff]
            %829 = vst [vmem:[%s823 + $0x10] sm:$0xff] %v828
            %v830 = vld [vmem:[%s822 + $0x18] sm:$0xff]
            %831 = vst [vmem:[%s823 + $0x18] sm:$0xff] %v830
            %v832 = vld [vmem:[%s822 + $0x20] sm:$0xff]
            %833 = vst [vmem:[%s823 + $0x20] sm:$0xff] %v832
            %v834 = vld [vmem:[%s822 + $0x28] sm:$0xff]
            %835 = vst [vmem:[%s823 + $0x28] sm:$0xff] %v834
            %v836 = vld [vmem:[%s822 + $0x30] sm:$0xff]
            %837 = vst [vmem:[%s823 + $0x30] sm:$0xff] %v836
            %v838 = vld [vmem:[%s822 + $0x38] sm:$0xff]
            %839 = vst [vmem:[%s823 + $0x38] sm:$0xff] %v838
            %v840 = vld [vmem:[%s822 + $0x40] sm:$0xff]
            %841 = vst [vmem:[%s823 + $0x40] sm:$0xff] %v840
            %v842 = vld [vmem:[%s822 + $0x48] sm:$0xff]
            %843 = vst [vmem:[%s823 + $0x48] sm:$0xff] %v842
            %v844 = vld [vmem:[%s822 + $0x50] sm:$0xff]
            %845 = vst [vmem:[%s823 + $0x50] sm:$0xff] %v844
            %v846 = vld [vmem:[%s822 + $0x58] sm:$0xff]
            %847 = vst [vmem:[%s823 + $0x58] sm:$0xff] %v846
            %v848 = vld [vmem:[%s822 + $0x60] sm:$0xff]
            %849 = vst [vmem:[%s823 + $0x60] sm:$0xff] %v848
            %v850 = vld [vmem:[%s822 + $0x68] sm:$0xff]
            %851 = vst [vmem:[%s823 + $0x68] sm:$0xff] %v850
            %v852 = vld [vmem:[%s822 + $0x70] sm:$0xff]
            %853 = vst [vmem:[%s823 + $0x70] sm:$0xff] %v852
            %v854 = vld [vmem:[%s822 + $0x78] sm:$0xff]
            %855 = vst [vmem:[%s823 + $0x78] sm:$0xff] %v854
            %v856 = vld [vmem:[%s822 + $0x80] sm:$0xff]
            %857 = vst [vmem:[%s823 + $0x80] sm:$0xff] %v856
            %v858 = vld [vmem:[%s822 + $0x88] sm:$0xff]
            %859 = vst [vmem:[%s823 + $0x88] sm:$0xff] %v858
            %v860 = vld [vmem:[%s822 + $0x90] sm:$0xff]
            %861 = vst [vmem:[%s823 + $0x90] sm:$0xff] %v860
            %v862 = vld [vmem:[%s822 + $0x98] sm:$0xff]
            %863 = vst [vmem:[%s823 + $0x98] sm:$0xff] %v862
            %v864 = vld [vmem:[%s822 + $0xa0] sm:$0xff]
            %865 = vst [vmem:[%s823 + $0xa0] sm:$0xff] %v864
            %v866 = vld [vmem:[%s822 + $0xa8] sm:$0xff]
            %867 = vst [vmem:[%s823 + $0xa8] sm:$0xff] %v866
            %v868 = vld [vmem:[%s822 + $0xb0] sm:$0xff]
            %869 = vst [vmem:[%s823 + $0xb0] sm:$0xff] %v868
            %v870 = vld [vmem:[%s822 + $0xb8] sm:$0xff]
            %871 = vst [vmem:[%s823 + $0xb8] sm:$0xff] %v870
            %v872 = vld [vmem:[%s822 + $0xc0] sm:$0xff]
            %873 = vst [vmem:[%s823 + $0xc0] sm:$0xff] %v872
            %v874 = vld [vmem:[%s822 + $0xc8] sm:$0xff]
            %875 = vst [vmem:[%s823 + $0xc8] sm:$0xff] %v874
            %v876 = vld [vmem:[%s822 + $0xd0] sm:$0xff]
            %877 = vst [vmem:[%s823 + $0xd0] sm:$0xff] %v876
            %v878 = vld [vmem:[%s822 + $0xd8] sm:$0xff]
            %879 = vst [vmem:[%s823 + $0xd8] sm:$0xff] %v878
            %v880 = vld [vmem:[%s822 + $0xe0] sm:$0xff]
            %881 = vst [vmem:[%s823 + $0xe0] sm:$0xff] %v880
            %v882 = vld [vmem:[%s822 + $0xe8] sm:$0xff]
            %883 = vst [vmem:[%s823 + $0xe8] sm:$0xff] %v882
            %v884 = vld [vmem:[%s822 + $0xf0] sm:$0xff]
            %885 = vst [vmem:[%s823 + $0xf0] sm:$0xff] %v884
            %v886 = vld [vmem:[%s822 + $0xf8] sm:$0xff]
            %887 = vst [vmem:[%s823 + $0xf8] sm:$0xff] %v886
            %v888 = vld [vmem:[%s822 + $0x100] sm:$0xff]
            %889 = vst [vmem:[%s823 + $0x100] sm:$0xff] %v888
            %v890 = vld [vmem:[%s822 + $0x108] sm:$0xff]
            %891 = vst [vmem:[%s823 + $0x108] sm:$0xff] %v890
            %v892 = vld [vmem:[%s822 + $0x110] sm:$0xff]
            %893 = vst [vmem:[%s823 + $0x110] sm:$0xff] %v892
            %v894 = vld [vmem:[%s822 + $0x118] sm:$0xff]
            %895 = vst [vmem:[%s823 + $0x118] sm:$0xff] %v894
            %v896 = vld [vmem:[%s822 + $0x120] sm:$0xff]
            %897 = vst [vmem:[%s823 + $0x120] sm:$0xff] %v896
            %v898 = vld [vmem:[%s822 + $0x128] sm:$0xff]
            %899 = vst [vmem:[%s823 + $0x128] sm:$0xff] %v898
            %v900 = vld [vmem:[%s822 + $0x130] sm:$0xff]
            %901 = vst [vmem:[%s823 + $0x130] sm:$0xff] %v900
            %v902 = vld [vmem:[%s822 + $0x138] sm:$0xff]
            %903 = vst [vmem:[%s823 + $0x138] sm:$0xff] %v902
            %v904 = vld [vmem:[%s822 + $0x140] sm:$0xff]
            %905 = vst [vmem:[%s823 + $0x140] sm:$0xff] %v904
            %v906 = vld [vmem:[%s822 + $0x148] sm:$0xff]
            %907 = vst [vmem:[%s823 + $0x148] sm:$0xff] %v906
            %v908 = vld [vmem:[%s822 + $0x150] sm:$0xff]
            %909 = vst [vmem:[%s823 + $0x150] sm:$0xff] %v908
            %v910 = vld [vmem:[%s822 + $0x158] sm:$0xff]
            %911 = vst [vmem:[%s823 + $0x158] sm:$0xff] %v910
            %v912 = vld [vmem:[%s822 + $0x160] sm:$0xff]
            %913 = vst [vmem:[%s823 + $0x160] sm:$0xff] %v912
            %v914 = vld [vmem:[%s822 + $0x168] sm:$0xff]
            %915 = vst [vmem:[%s823 + $0x168] sm:$0xff] %v914
            %v916 = vld [vmem:[%s822 + $0x170] sm:$0xff]
            %917 = vst [vmem:[%s823 + $0x170] sm:$0xff] %v916
            %v918 = vld [vmem:[%s822 + $0x178] sm:$0xff]
            %919 = vst [vmem:[%s823 + $0x178] sm:$0xff] %v918
            %v920 = vld [vmem:[%s822 + $0x180] sm:$0xff]
            %921 = vst [vmem:[%s823 + $0x180] sm:$0xff] %v920
            %v922 = vld [vmem:[%s822 + $0x188] sm:$0xff]
            %923 = vst [vmem:[%s823 + $0x188] sm:$0xff] %v922
            %v924 = vld [vmem:[%s822 + $0x190] sm:$0xff]
            %925 = vst [vmem:[%s823 + $0x190] sm:$0xff] %v924
            %v926 = vld [vmem:[%s822 + $0x198] sm:$0xff]
            %927 = vst [vmem:[%s823 + $0x198] sm:$0xff] %v926
            %v928 = vld [vmem:[%s822 + $0x1a0] sm:$0xff]
            %929 = vst [vmem:[%s823 + $0x1a0] sm:$0xff] %v928
            %v930 = vld [vmem:[%s822 + $0x1a8] sm:$0xff]
            %931 = vst [vmem:[%s823 + $0x1a8] sm:$0xff] %v930
            %v932 = vld [vmem:[%s822 + $0x1b0] sm:$0xff]
            %933 = vst [vmem:[%s823 + $0x1b0] sm:$0xff] %v932
            %v934 = vld [vmem:[%s822 + $0x1b8] sm:$0xff]
            %935 = vst [vmem:[%s823 + $0x1b8] sm:$0xff] %v934
            %v936 = vld [vmem:[%s822 + $0x1c0] sm:$0xff]
            %937 = vst [vmem:[%s823 + $0x1c0] sm:$0xff] %v936
            %v938 = vld [vmem:[%s822 + $0x1c8] sm:$0xff]
            %939 = vst [vmem:[%s823 + $0x1c8] sm:$0xff] %v938
            %v940 = vld [vmem:[%s822 + $0x1d0] sm:$0xff]
            %941 = vst [vmem:[%s823 + $0x1d0] sm:$0xff] %v940
            %v942 = vld [vmem:[%s822 + $0x1d8] sm:$0xff]
            %943 = vst [vmem:[%s823 + $0x1d8] sm:$0xff] %v942
            %v944 = vld [vmem:[%s822 + $0x1e0] sm:$0xff]
            %945 = vst [vmem:[%s823 + $0x1e0] sm:$0xff] %v944
            %v946 = vld [vmem:[%s822 + $0x1e8] sm:$0xff]
            %947 = vst [vmem:[%s823 + $0x1e8] sm:$0xff] %v946
            %v948 = vld [vmem:[%s822 + $0x1f0] sm:$0xff]
            %949 = vst [vmem:[%s823 + $0x1f0] sm:$0xff] %v948
            %v950 = vld [vmem:[%s822 + $0x1f8] sm:$0xff]
            %951 = vst [vmem:[%s823 + $0x1f8] sm:$0xff] %v950
          $region63: #{reverse.1} parent=57 // loop_footer
            %s821 = sadd.s32 1, %s817
          $region64: #{reverse.1} parent=57 // loop_footer_branch
            %816 = sbr.rel target = $region60
          $region65: #{reverse.1} parent=57 // loop_exit
            _
        $region58: #{reverse.1} parent=42 // pred_fallthru
          _
        // Predicated region
        $region66: #{reverse.1} parent=42 // pred_check
          _
        $region67: #{reverse.1} parent=42 // pred_check_branch
          %953 = sbr.rel target = $region69
        $region68: #{reverse.1} parent=42 // pred_region
          _
        $region69: #{reverse.1} parent=42 // pred_fallthru
          _
      $region43: #{reverse.1} parent=38 // pred_fallthru
        _
      // Predicated region
      $region44: #{reverse.1} parent=38 // pred_check
        _
      $region45: #{reverse.1} parent=38 // pred_check_branch
        %676 = sbr.rel target = $region47
      $region46: #{reverse.1} parent=38 // pred_region
        loop: start=0, step=1, limit=1
        $region48: #{reverse.1} parent=46 // loop_pre_header
          _
        $region49: #{reverse.1} parent=46 // loop_header
          %s679 = sphi 0, %s683
          %p680 = scmp.ge.s32.totalorder %s679, 1
          %s684 = sphi [#allocation1], [#allocation1]
          %s685 = sphi %s1, %s1
        $region50: #{reverse.1} parent=46 // loop_header_branch
          %682 = sbr.rel (%p680) target = $region54
        $region51: #{reverse.1} parent=46 // loop_body
          %v686 = vld [vmem:[%s684] sm:$0xff]
          %687 = vst [vmem:[%s685] sm:$0xff] %v686
          %v688 = vld [vmem:[%s684 + $0x8] sm:$0xff]
          %689 = vst [vmem:[%s685 + $0x8] sm:$0xff] %v688
          %v690 = vld [vmem:[%s684 + $0x10] sm:$0xff]
          %691 = vst [vmem:[%s685 + $0x10] sm:$0xff] %v690
          %v692 = vld [vmem:[%s684 + $0x18] sm:$0xff]
          %693 = vst [vmem:[%s685 + $0x18] sm:$0xff] %v692
          %v694 = vld [vmem:[%s684 + $0x20] sm:$0xff]
          %695 = vst [vmem:[%s685 + $0x20] sm:$0xff] %v694
          %v696 = vld [vmem:[%s684 + $0x28] sm:$0xff]
          %697 = vst [vmem:[%s685 + $0x28] sm:$0xff] %v696
          %v698 = vld [vmem:[%s684 + $0x30] sm:$0xff]
          %699 = vst [vmem:[%s685 + $0x30] sm:$0xff] %v698
          %v700 = vld [vmem:[%s684 + $0x38] sm:$0xff]
          %701 = vst [vmem:[%s685 + $0x38] sm:$0xff] %v700
          %v702 = vld [vmem:[%s684 + $0x40] sm:$0xff]
          %703 = vst [vmem:[%s685 + $0x40] sm:$0xff] %v702
          %v704 = vld [vmem:[%s684 + $0x48] sm:$0xff]
          %705 = vst [vmem:[%s685 + $0x48] sm:$0xff] %v704
          %v706 = vld [vmem:[%s684 + $0x50] sm:$0xff]
          %707 = vst [vmem:[%s685 + $0x50] sm:$0xff] %v706
          %v708 = vld [vmem:[%s684 + $0x58] sm:$0xff]
          %709 = vst [vmem:[%s685 + $0x58] sm:$0xff] %v708
          %v710 = vld [vmem:[%s684 + $0x60] sm:$0xff]
          %711 = vst [vmem:[%s685 + $0x60] sm:$0xff] %v710
          %v712 = vld [vmem:[%s684 + $0x68] sm:$0xff]
          %713 = vst [vmem:[%s685 + $0x68] sm:$0xff] %v712
          %v714 = vld [vmem:[%s684 + $0x70] sm:$0xff]
          %715 = vst [vmem:[%s685 + $0x70] sm:$0xff] %v714
          %v716 = vld [vmem:[%s684 + $0x78] sm:$0xff]
          %717 = vst [vmem:[%s685 + $0x78] sm:$0xff] %v716
          %v718 = vld [vmem:[%s684 + $0x80] sm:$0xff]
          %719 = vst [vmem:[%s685 + $0x80] sm:$0xff] %v718
          %v720 = vld [vmem:[%s684 + $0x88] sm:$0xff]
          %721 = vst [vmem:[%s685 + $0x88] sm:$0xff] %v720
          %v722 = vld [vmem:[%s684 + $0x90] sm:$0xff]
          %723 = vst [vmem:[%s685 + $0x90] sm:$0xff] %v722
          %v724 = vld [vmem:[%s684 + $0x98] sm:$0xff]
          %725 = vst [vmem:[%s685 + $0x98] sm:$0xff] %v724
          %v726 = vld [vmem:[%s684 + $0xa0] sm:$0xff]
          %727 = vst [vmem:[%s685 + $0xa0] sm:$0xff] %v726
          %v728 = vld [vmem:[%s684 + $0xa8] sm:$0xff]
          %729 = vst [vmem:[%s685 + $0xa8] sm:$0xff] %v728
          %v730 = vld [vmem:[%s684 + $0xb0] sm:$0xff]
          %731 = vst [vmem:[%s685 + $0xb0] sm:$0xff] %v730
          %v732 = vld [vmem:[%s684 + $0xb8] sm:$0xff]
          %733 = vst [vmem:[%s685 + $0xb8] sm:$0xff] %v732
          %v734 = vld [vmem:[%s684 + $0xc0] sm:$0xff]
          %735 = vst [vmem:[%s685 + $0xc0] sm:$0xff] %v734
          %v736 = vld [vmem:[%s684 + $0xc8] sm:$0xff]
          %737 = vst [vmem:[%s685 + $0xc8] sm:$0xff] %v736
          %v738 = vld [vmem:[%s684 + $0xd0] sm:$0xff]
          %739 = vst [vmem:[%s685 + $0xd0] sm:$0xff] %v738
          %v740 = vld [vmem:[%s684 + $0xd8] sm:$0xff]
          %741 = vst [vmem:[%s685 + $0xd8] sm:$0xff] %v740
          %v742 = vld [vmem:[%s684 + $0xe0] sm:$0xff]
          %743 = vst [vmem:[%s685 + $0xe0] sm:$0xff] %v742
          %v744 = vld [vmem:[%s684 + $0xe8] sm:$0xff]
          %745 = vst [vmem:[%s685 + $0xe8] sm:$0xff] %v744
          %v746 = vld [vmem:[%s684 + $0xf0] sm:$0xff]
          %747 = vst [vmem:[%s685 + $0xf0] sm:$0xff] %v746
          %v748 = vld [vmem:[%s684 + $0xf8] sm:$0xff]
          %749 = vst [vmem:[%s685 + $0xf8] sm:$0xff] %v748
          %v750 = vld [vmem:[%s684 + $0x100] sm:$0xff]
          %751 = vst [vmem:[%s685 + $0x100] sm:$0xff] %v750
          %v752 = vld [vmem:[%s684 + $0x108] sm:$0xff]
          %753 = vst [vmem:[%s685 + $0x108] sm:$0xff] %v752
          %v754 = vld [vmem:[%s684 + $0x110] sm:$0xff]
          %755 = vst [vmem:[%s685 + $0x110] sm:$0xff] %v754
          %v756 = vld [vmem:[%s684 + $0x118] sm:$0xff]
          %757 = vst [vmem:[%s685 + $0x118] sm:$0xff] %v756
          %v758 = vld [vmem:[%s684 + $0x120] sm:$0xff]
          %759 = vst [vmem:[%s685 + $0x120] sm:$0xff] %v758
          %v760 = vld [vmem:[%s684 + $0x128] sm:$0xff]
          %761 = vst [vmem:[%s685 + $0x128] sm:$0xff] %v760
          %v762 = vld [vmem:[%s684 + $0x130] sm:$0xff]
          %763 = vst [vmem:[%s685 + $0x130] sm:$0xff] %v762
          %v764 = vld [vmem:[%s684 + $0x138] sm:$0xff]
          %765 = vst [vmem:[%s685 + $0x138] sm:$0xff] %v764
          %v766 = vld [vmem:[%s684 + $0x140] sm:$0xff]
          %767 = vst [vmem:[%s685 + $0x140] sm:$0xff] %v766
          %v768 = vld [vmem:[%s684 + $0x148] sm:$0xff]
          %769 = vst [vmem:[%s685 + $0x148] sm:$0xff] %v768
          %v770 = vld [vmem:[%s684 + $0x150] sm:$0xff]
          %771 = vst [vmem:[%s685 + $0x150] sm:$0xff] %v770
          %v772 = vld [vmem:[%s684 + $0x158] sm:$0xff]
          %773 = vst [vmem:[%s685 + $0x158] sm:$0xff] %v772
          %v774 = vld [vmem:[%s684 + $0x160] sm:$0xff]
          %775 = vst [vmem:[%s685 + $0x160] sm:$0xff] %v774
          %v776 = vld [vmem:[%s684 + $0x168] sm:$0xff]
          %777 = vst [vmem:[%s685 + $0x168] sm:$0xff] %v776
          %v778 = vld [vmem:[%s684 + $0x170] sm:$0xff]
          %779 = vst [vmem:[%s685 + $0x170] sm:$0xff] %v778
          %v780 = vld [vmem:[%s684 + $0x178] sm:$0xff]
          %781 = vst [vmem:[%s685 + $0x178] sm:$0xff] %v780
          %v782 = vld [vmem:[%s684 + $0x180] sm:$0xff]
          %783 = vst [vmem:[%s685 + $0x180] sm:$0xff] %v782
          %v784 = vld [vmem:[%s684 + $0x188] sm:$0xff]
          %785 = vst [vmem:[%s685 + $0x188] sm:$0xff] %v784
          %v786 = vld [vmem:[%s684 + $0x190] sm:$0xff]
          %787 = vst [vmem:[%s685 + $0x190] sm:$0xff] %v786
          %v788 = vld [vmem:[%s684 + $0x198] sm:$0xff]
          %789 = vst [vmem:[%s685 + $0x198] sm:$0xff] %v788
          %v790 = vld [vmem:[%s684 + $0x1a0] sm:$0xff]
          %791 = vst [vmem:[%s685 + $0x1a0] sm:$0xff] %v790
          %v792 = vld [vmem:[%s684 + $0x1a8] sm:$0xff]
          %793 = vst [vmem:[%s685 + $0x1a8] sm:$0xff] %v792
          %v794 = vld [vmem:[%s684 + $0x1b0] sm:$0xff]
          %795 = vst [vmem:[%s685 + $0x1b0] sm:$0xff] %v794
          %v796 = vld [vmem:[%s684 + $0x1b8] sm:$0xff]
          %797 = vst [vmem:[%s685 + $0x1b8] sm:$0xff] %v796
          %v798 = vld [vmem:[%s684 + $0x1c0] sm:$0xff]
          %799 = vst [vmem:[%s685 + $0x1c0] sm:$0xff] %v798
          %v800 = vld [vmem:[%s684 + $0x1c8] sm:$0xff]
          %801 = vst [vmem:[%s685 + $0x1c8] sm:$0xff] %v800
          %v802 = vld [vmem:[%s684 + $0x1d0] sm:$0xff]
          %803 = vst [vmem:[%s685 + $0x1d0] sm:$0xff] %v802
          %v804 = vld [vmem:[%s684 + $0x1d8] sm:$0xff]
          %805 = vst [vmem:[%s685 + $0x1d8] sm:$0xff] %v804
          %v806 = vld [vmem:[%s684 + $0x1e0] sm:$0xff]
          %807 = vst [vmem:[%s685 + $0x1e0] sm:$0xff] %v806
          %v808 = vld [vmem:[%s684 + $0x1e8] sm:$0xff]
          %809 = vst [vmem:[%s685 + $0x1e8] sm:$0xff] %v808
          %v810 = vld [vmem:[%s684 + $0x1f0] sm:$0xff]
          %811 = vst [vmem:[%s685 + $0x1f0] sm:$0xff] %v810
          %v812 = vld [vmem:[%s684 + $0x1f8] sm:$0xff]
          %813 = vst [vmem:[%s685 + $0x1f8] sm:$0xff] %v812
        $region52: #{reverse.1} parent=46 // loop_footer
          %s683 = sadd.s32 1, %s679
        $region53: #{reverse.1} parent=46 // loop_footer_branch
          %678 = sbr.rel target = $region49
        $region54: #{reverse.1} parent=46 // loop_exit
          _
      $region47: #{reverse.1} parent=38 // pred_fallthru
        _
    $region39: #{reverse.1} parent=1 // pred_fallthru
      _
    %954 = vnop

// kernel: separation_model_forward.1
$region0: #{separation_model_forward.1}
  #allocation0 [shape = 'u32[]', space=smem, size = 0x4, offset = 0x4, fixed_abs, tag = 'smem constant byte address 0x4 - core index']
  #allocation1 [shape = 'u32[144,128]{1,0:T(1,128)}', space=vmem, size = 0x12000, scoped, tag = 'internal scratch']
  %s0 = inlined_call_operand.vmem [shape: f32[9], index: 0, kind: input, shape index: {}]
  %s1 = inlined_call_operand.vmem [shape: f32[45,256], index: 1, kind: input, shape index: {}]
  %s2 = inlined_call_operand.vmem [shape: f32[9,256], index: 2, kind: input, shape index: {}]
  %s3 = inlined_call_operand.vmem [shape: f32[9,256], index: 3, kind: input, shape index: {}]
  %s4 = inlined_call_operand.vmem [shape: f32[45,2], index: 4, kind: input, shape index: {}]
  %s5 = inlined_call_operand.vmem [shape: f32[16,46], index: 5, kind: input, shape index: {}]
  %s6 = inlined_call_operand.vmem [shape: f32[18,17], index: 6, kind: input, shape index: {}]
  %s7 = inlined_call_operand.vmem [shape: f32[16,192], index: 7, kind: input, shape index: {}]
  %s8 = inlined_call_operand.vmem [shape: f32[16,64], index: 8, kind: input, shape index: {}]
  %s9 = inlined_call_operand.vmem [shape: f32[18,256], index: 9, kind: output, shape index: {0}]
  %s10 = inlined_call_operand.vmem [shape: f32[18,256], index: 10, kind: output, shape index: {1}]
  %11 = xla_tuple %s9, %s10
  %s12 = sld [smem:[#allocation0]]
  $region263: #{separation_model_forward.1} parent=0
    _
  %s14 = ssub.s32 1, %s12
  %s15 = scalar_select 0, %s14, %s12
  $region1: #{separation_model_forward.1} parent=0
    #allocation2 [shape = 'u8[512]{0}', space=smem, size = 0x200, scoped, tag = 'input window, operand 0, single buffered']
    #allocation3 [shape = 's32[2]{0}', space=sflag, size = 0x8, scoped, tag = 'scoped memory for separation_model_forward.1']
    #allocation4 [shape = 'u8[49152]{0}', space=vmem, size = 0xc000, scoped, tag = 'input window, operand 1']
    #allocation5 [shape = 'u8[16384]{0}', space=vmem, size = 0x4000, scoped, tag = 'input window, operand 2']
    #allocation6 [shape = 'u8[16384]{0}', space=vmem, size = 0x4000, scoped, tag = 'input window, operand 3']
    #allocation7 [shape = 'u8[24576]{0}', space=vmem, size = 0x6000, scoped, tag = 'output window, operand 0']
    #allocation8 [shape = 'u8[24576]{0}', space=vmem, size = 0x6000, scoped, tag = 'output window, operand 1']
    %16 = vsyncpa [#allocation3], 0
    loop: start=0, step=1, limit=4
    $region2: #{separation_model_forward.1} parent=1 // loop_pre_header
      _
    $region3: #{separation_model_forward.1} parent=1 // loop_header
      %s18 = sphi 0, %s22
      %p19 = scmp.ge.s32.totalorder %s18, 4
      %s26 = sphi 0, %s26
      %s28 = sphi 0, %s26
      %s29 = sphi 0, %s28
      %s43 = sphi 0, %s29
      %s49 = sphi 0, %s51
      %s52 = sphi 0, %s49
      %s53 = sphi 0, %s52
      %s69 = sphi 0, %s53
      %s75 = sphi 0, %s77
      %s78 = sphi 0, %s75
      %s79 = sphi 0, %s78
      %s95 = sphi 0, %s79
      %s101 = sphi 0, %s103
      %s104 = sphi 0, %s101
      %s105 = sphi 0, %s104
      %s121 = sphi 0, %s105
      %s125 = sphi 0, %s125
      %s127 = sphi 0, %s125
      %s128 = sphi 0, %s127
      %s142 = sphi 0, %s128
      %s146 = sphi 0, %s146
      %s148 = sphi 0, %s146
      %s149 = sphi 0, %s148
      %s163 = sphi 0, %s149
      %s167 = sphi 0, %s167
      %s169 = sphi 0, %s167
      %s170 = sphi 0, %s169
      %s184 = sphi 0, %s170
      %s188 = sphi 0, %s188
      %s190 = sphi 0, %s188
      %s191 = sphi 0, %s190
      %s205 = sphi 0, %s191
      %s209 = sphi 0, %s209
      %s211 = sphi 0, %s209
      %s212 = sphi 0, %s211
      %s226 = sphi 0, %s212
      %s232 = sphi 0, %s234
      %s235 = sphi 0, %s232
      %s236 = sphi 0, %s235
      %s252 = sphi 0, %s236
      %s258 = sphi 0, %s260
      %s261 = sphi 0, %s258
      %s262 = sphi 0, %s261
      %s278 = sphi 0, %s262
    $region4: #{separation_model_forward.1} parent=1 // loop_header_branch
      %21 = sbr.rel (%p19) target = $region8
    $region5: #{separation_model_forward.1} parent=1 // loop_body
      %s23 = ssub.s32 %s18, 1
      %s24 = ssub.s32 %s18, 2
      %s25 = sadd.s32 %s18, 1
      %s27 = sadd.s32 %s26, 1
      %p30 = scmp.eq.s32.totalorder %s18, 1
      %p31 = scmp.ne.s32.totalorder %s26, %s28
      %p32 = scmp.eq.s32.totalorder %s18, 0
      %p33 = por %p31, %p32
      %p34 = scmp.ne.s32.totalorder %s26, %s28
      %p35 = scmp.eq.s32.totalorder %s23, 1
      %p36 = por %p34, %p35
      %p37 = scmp.ne.s32.totalorder %s28, %s29
      %p38 = scmp.eq.s32.totalorder %s23, 0
      %p39 = por %p37, %p38
      %p40 = scmp.ne.s32.totalorder %s28, %s29
      %p41 = scmp.eq.s32.totalorder %s24, 1
      %p42 = por %p40, %p41
      %p44 = scmp.ne.s32.totalorder %s29, %s43
      %p45 = scmp.eq.s32.totalorder %s24, 0
      %p46 = por %p44, %p45
      %s47 = ssub.s32 %s18, %s25
      %p48 = scmp.eq.s32.totalorder %s47, 0
      %s50 = sadd.s32 %s49, 1
      %s51 = scalar_select %p48, %s49, %s50
      %p54 = pneg %p48
      %p55 = scmp.eq.s32.totalorder %s18, 1
      %p56 = por %p54, %p55
      %p57 = scmp.ne.s32.totalorder %s49, %s52
      %p58 = scmp.eq.s32.totalorder %s18, 0
      %p59 = por %p57, %p58
      %p60 = scmp.ne.s32.totalorder %s49, %s52
      %p61 = scmp.eq.s32.totalorder %s23, 1
      %p62 = por %p60, %p61
      %p63 = scmp.ne.s32.totalorder %s52, %s53
      %p64 = scmp.eq.s32.totalorder %s23, 0
      %p65 = por %p63, %p64
      %p66 = scmp.ne.s32.totalorder %s52, %s53
      %p67 = scmp.eq.s32.totalorder %s24, 1
      %p68 = por %p66, %p67
      %p70 = scmp.ne.s32.totalorder %s53, %s69
      %p71 = scmp.eq.s32.totalorder %s24, 0
      %p72 = por %p70, %p71
      %s73 = ssub.s32 %s18, %s25
      %p74 = scmp.eq.s32.totalorder %s73, 0
      %s76 = sadd.s32 %s75, 1
      %s77 = scalar_select %p74, %s75, %s76
      %p80 = pneg %p74
      %p81 = scmp.eq.s32.totalorder %s18, 1
      %p82 = por %p80, %p81
      %p83 = scmp.ne.s32.totalorder %s75, %s78
      %p84 = scmp.eq.s32.totalorder %s18, 0
      %p85 = por %p83, %p84
      %p86 = scmp.ne.s32.totalorder %s75, %s78
      %p87 = scmp.eq.s32.totalorder %s23, 1
      %p88 = por %p86, %p87
      %p89 = scmp.ne.s32.totalorder %s78, %s79
      %p90 = scmp.eq.s32.totalorder %s23, 0
      %p91 = por %p89, %p90
      %p92 = scmp.ne.s32.totalorder %s78, %s79
      %p93 = scmp.eq.s32.totalorder %s24, 1
      %p94 = por %p92, %p93
      %p96 = scmp.ne.s32.totalorder %s79, %s95
      %p97 = scmp.eq.s32.totalorder %s24, 0
      %p98 = por %p96, %p97
      %s99 = ssub.s32 %s18, %s25
      %p100 = scmp.eq.s32.totalorder %s99, 0
      %s102 = sadd.s32 %s101, 1
      %s103 = scalar_select %p100, %s101, %s102
      %p106 = pneg %p100
      %p107 = scmp.eq.s32.totalorder %s18, 1
      %p108 = por %p106, %p107
      %p109 = scmp.ne.s32.totalorder %s101, %s104
      %p110 = scmp.eq.s32.totalorder %s18, 0
      %p111 = por %p109, %p110
      %p112 = scmp.ne.s32.totalorder %s101, %s104
      %p113 = scmp.eq.s32.totalorder %s23, 1
      %p114 = por %p112, %p113
      %p115 = scmp.ne.s32.totalorder %s104, %s105
      %p116 = scmp.eq.s32.totalorder %s23, 0
      %p117 = por %p115, %p116
      %p118 = scmp.ne.s32.totalorder %s104, %s105
      %p119 = scmp.eq.s32.totalorder %s24, 1
      %p120 = por %p118, %p119
      %p122 = scmp.ne.s32.totalorder %s105, %s121
      %p123 = scmp.eq.s32.totalorder %s24, 0
      %p124 = por %p122, %p123
      %s126 = sadd.s32 %s125, 1
      %p129 = scmp.eq.s32.totalorder %s18, 1
      %p130 = scmp.ne.s32.totalorder %s125, %s127
      %p131 = scmp.eq.s32.totalorder %s18, 0
      %p132 = por %p130, %p131
      %p133 = scmp.ne.s32.totalorder %s125, %s127
      %p134 = scmp.eq.s32.totalorder %s23, 1
      %p135 = por %p133, %p134
      %p136 = scmp.ne.s32.totalorder %s127, %s128
      %p137 = scmp.eq.s32.totalorder %s23, 0
      %p138 = por %p136, %p137
      %p139 = scmp.ne.s32.totalorder %s127, %s128
      %p140 = scmp.eq.s32.totalorder %s24, 1
      %p141 = por %p139, %p140
      %p143 = scmp.ne.s32.totalorder %s128, %s142
      %p144 = scmp.eq.s32.totalorder %s24, 0
      %p145 = por %p143, %p144
      %s147 = sadd.s32 %s146, 1
      %p150 = scmp.eq.s32.totalorder %s18, 1
      %p151 = scmp.ne.s32.totalorder %s146, %s148
      %p152 = scmp.eq.s32.totalorder %s18, 0
      %p153 = por %p151, %p152
      %p154 = scmp.ne.s32.totalorder %s146, %s148
      %p155 = scmp.eq.s32.totalorder %s23, 1
      %p156 = por %p154, %p155
      %p157 = scmp.ne.s32.totalorder %s148, %s149
      %p158 = scmp.eq.s32.totalorder %s23, 0
      %p159 = por %p157, %p158
      %p160 = scmp.ne.s32.totalorder %s148, %s149
      %p161 = scmp.eq.s32.totalorder %s24, 1
      %p162 = por %p160, %p161
      %p164 = scmp.ne.s32.totalorder %s149, %s163
      %p165 = scmp.eq.s32.totalorder %s24, 0
      %p166 = por %p164, %p165
      %s168 = sadd.s32 %s167, 1
      %p171 = scmp.eq.s32.totalorder %s18, 1
      %p172 = scmp.ne.s32.totalorder %s167, %s169
      %p173 = scmp.eq.s32.totalorder %s18, 0
      %p174 = por %p172, %p173
      %p175 = scmp.ne.s32.totalorder %s167, %s169
      %p176 = scmp.eq.s32.totalorder %s23, 1
      %p177 = por %p175, %p176
      %p178 = scmp.ne.s32.totalorder %s169, %s170
      %p179 = scmp.eq.s32.totalorder %s23, 0
      %p180 = por %p178, %p179
      %p181 = scmp.ne.s32.totalorder %s169, %s170
      %p182 = scmp.eq.s32.totalorder %s24, 1
      %p183 = por %p181, %p182
      %p185 = scmp.ne.s32.totalorder %s170, %s184
      %p186 = scmp.eq.s32.totalorder %s24, 0
      %p187 = por %p185, %p186
      %s189 = sadd.s32 %s188, 1
      %p192 = scmp.eq.s32.totalorder %s18, 1
      %p193 = scmp.ne.s32.totalorder %s188, %s190
      %p194 = scmp.eq.s32.totalorder %s18, 0
      %p195 = por %p193, %p194
      %p196 = scmp.ne.s32.totalorder %s188, %s190
      %p197 = scmp.eq.s32.totalorder %s23, 1
      %p198 = por %p196, %p197
      %p199 = scmp.ne.s32.totalorder %s190, %s191
      %p200 = scmp.eq.s32.totalorder %s23, 0
      %p201 = por %p199, %p200
      %p202 = scmp.ne.s32.totalorder %s190, %s191
      %p203 = scmp.eq.s32.totalorder %s24, 1
      %p204 = por %p202, %p203
      %p206 = scmp.ne.s32.totalorder %s191, %s205
      %p207 = scmp.eq.s32.totalorder %s24, 0
      %p208 = por %p206, %p207
      %s210 = sadd.s32 %s209, 1
      %p213 = scmp.eq.s32.totalorder %s18, 1
      %p214 = scmp.ne.s32.totalorder %s209, %s211
      %p215 = scmp.eq.s32.totalorder %s18, 0
      %p216 = por %p214, %p215
      %p217 = scmp.ne.s32.totalorder %s209, %s211
      %p218 = scmp.eq.s32.totalorder %s23, 1
      %p219 = por %p217, %p218
      %p220 = scmp.ne.s32.totalorder %s211, %s212
      %p221 = scmp.eq.s32.totalorder %s23, 0
      %p222 = por %p220, %p221
      %p223 = scmp.ne.s32.totalorder %s211, %s212
      %p224 = scmp.eq.s32.totalorder %s24, 1
      %p225 = por %p223, %p224
      %p227 = scmp.ne.s32.totalorder %s212, %s226
      %p228 = scmp.eq.s32.totalorder %s24, 0
      %p229 = por %p227, %p228
      %s230 = ssub.s32 %s18, %s25
      %p231 = scmp.eq.s32.totalorder %s230, 0
      %s233 = sadd.s32 %s232, 1
      %s234 = scalar_select %p231, %s232, %s233
      %p237 = pneg %p231
      %p238 = scmp.eq.s32.totalorder %s18, 1
      %p239 = por %p237, %p238
      %p240 = scmp.ne.s32.totalorder %s232, %s235
      %p241 = scmp.eq.s32.totalorder %s18, 0
      %p242 = por %p240, %p241
      %p243 = scmp.ne.s32.totalorder %s232, %s235
      %p244 = scmp.eq.s32.totalorder %s23, 1
      %p245 = por %p243, %p244
      %p246 = scmp.ne.s32.totalorder %s235, %s236
      %p247 = scmp.eq.s32.totalorder %s23, 0
      %p248 = por %p246, %p247
      %p249 = scmp.ne.s32.totalorder %s235, %s236
      %p250 = scmp.eq.s32.totalorder %s24, 1
      %p251 = por %p249, %p250
      %p253 = scmp.ne.s32.totalorder %s236, %s252
      %p254 = scmp.eq.s32.totalorder %s24, 0
      %p255 = por %p253, %p254
      %s256 = ssub.s32 %s18, %s25
      %p257 = scmp.eq.s32.totalorder %s256, 0
      %s259 = sadd.s32 %s258, 1
      %s260 = scalar_select %p257, %s258, %s259
      %p263 = pneg %p257
      %p264 = scmp.eq.s32.totalorder %s18, 1
      %p265 = por %p263, %p264
      %p266 = scmp.ne.s32.totalorder %s258, %s261
      %p267 = scmp.eq.s32.totalorder %s18, 0
      %p268 = por %p266, %p267
      %p269 = scmp.ne.s32.totalorder %s258, %s261
      %p270 = scmp.eq.s32.totalorder %s23, 1
      %p271 = por %p269, %p270
      %p272 = scmp.ne.s32.totalorder %s261, %s262
      %p273 = scmp.eq.s32.totalorder %s23, 0
      %p274 = por %p272, %p273
      %p275 = scmp.ne.s32.totalorder %s261, %s262
      %p276 = scmp.eq.s32.totalorder %s24, 1
      %p277 = por %p275, %p276
      %p279 = scmp.ne.s32.totalorder %s262, %s278
      %p280 = scmp.eq.s32.totalorder %s24, 0
      %p281 = por %p279, %p280
      %p282 = scmp.le.s32.totalorder 1, %s18
      %p283 = scmp.lt.s32.totalorder %s18, 3
      %p284 = pnand %p282, %p283
      %p285 = pneg %p284
      // Predicated region
      $region9: #{separation_model_forward.1} parent=5 // pred_check
        _
      $region10: #{separation_model_forward.1} parent=5 // pred_check_branch
        %287 = sbr.rel (%p284) target = $region12
      $region11: #{separation_model_forward.1} parent=5 // pred_region
        %s288 = ssub.s32 %s18, 1
        // Predicated region
        $region13: #{separation_model_forward.1} parent=11 // pred_check
          %p289 = pneg %p39
        $region14: #{separation_model_forward.1} parent=11 // pred_check_branch
          %291 = sbr.rel (%p289) target = $region16
        $region15: #{separation_model_forward.1} parent=11 // pred_region
          %s293 = ssub.s32 16, 16
          %294 = vsyncadd [#allocation3], %s293
          %s296 = sshll.u32 %s0, 4
          %s297 = int_to_ptr.vmem [resolvable:$true] %s296
          %299 = dma.vmem_to_smem %s297, 16, [#allocation2], [#allocation3]
        $region16: #{separation_model_forward.1} parent=11 // pred_fallthru
          _
        // Predicated region
        $region17: #{separation_model_forward.1} parent=11 // pred_check
          %p300 = pneg %p138
        $region18: #{separation_model_forward.1} parent=11 // pred_check_branch
          %302 = sbr.rel (%p300) target = $region20
        $region19: #{separation_model_forward.1} parent=11 // pred_region
          _
        $region20: #{separation_model_forward.1} parent=11 // pred_fallthru
          _
        // Predicated region
        $region21: #{separation_model_forward.1} parent=11 // pred_check
          %p303 = pneg %p159
        $region22: #{separation_model_forward.1} parent=11 // pred_check_branch
          %305 = sbr.rel (%p303) target = $region24
        $region23: #{separation_model_forward.1} parent=11 // pred_region
          _
        $region24: #{separation_model_forward.1} parent=11 // pred_fallthru
          _
        // Predicated region
        $region25: #{separation_model_forward.1} parent=11 // pred_check
          %p306 = pneg %p180
        $region26: #{separation_model_forward.1} parent=11 // pred_check_branch
          %308 = sbr.rel (%p306) target = $region28
        $region27: #{separation_model_forward.1} parent=11 // pred_region
          _
        $region28: #{separation_model_forward.1} parent=11 // pred_fallthru
          _
        // Predicated region
        $region29: #{separation_model_forward.1} parent=11 // pred_check
          %p309 = pneg %p201
        $region30: #{separation_model_forward.1} parent=11 // pred_check_branch
          %311 = sbr.rel (%p309) target = $region32
        $region31: #{separation_model_forward.1} parent=11 // pred_region
          _
        $region32: #{separation_model_forward.1} parent=11 // pred_fallthru
          _
        // Predicated region
        $region33: #{separation_model_forward.1} parent=11 // pred_check
          %p312 = pneg %p222
        $region34: #{separation_model_forward.1} parent=11 // pred_check_branch
          %314 = sbr.rel (%p312) target = $region36
        $region35: #{separation_model_forward.1} parent=11 // pred_region
          _
        $region36: #{separation_model_forward.1} parent=11 // pred_fallthru
          _
      $region12: #{separation_model_forward.1} parent=5 // pred_fallthru
        _
      %p315 = scmp.lt.s32.totalorder %s18, 2
      // Predicated region
      $region37: #{separation_model_forward.1} parent=5 // pred_check
        %p316 = pneg %p315
      $region38: #{separation_model_forward.1} parent=5 // pred_check_branch
        %318 = sbr.rel (%p316) target = $region40
      $region39: #{separation_model_forward.1} parent=5 // pred_region
        // Predicated region
        $region41: #{separation_model_forward.1} parent=39 // pred_check
          %p319 = pneg %p59
        $region42: #{separation_model_forward.1} parent=39 // pred_check_branch
          %321 = sbr.rel (%p319) target = $region44
        $region43: #{separation_model_forward.1} parent=39 // pred_region
          %s322 = sand.u32 %s49, 1
          %s323 = sand.u32 %s49, 1
          %s324 = smul.addr %s323, 48
          %s325 = scalar_lea.vmem [#allocation4], %s324
          %s326 = smul.addr %s18, 8
          %s327 = scalar_lea.vmem %s1, %s326
          // Predicated region
          $region45: #{separation_model_forward.1} parent=43 // pred_check
            _
          $region46: #{separation_model_forward.1} parent=43 // pred_check_branch
            %329 = sbr.rel (0) target = $region48
          $region47: #{separation_model_forward.1} parent=43 // pred_region
            // Predicated region
            $region49: #{separation_model_forward.1} parent=47 // pred_check
              _
            $region50: #{separation_model_forward.1} parent=47 // pred_check_branch
              %331 = sbr.rel (0) target = $region52
            $region51: #{separation_model_forward.1} parent=47 // pred_region
              // Predicated region
              $region64: #{separation_model_forward.1} parent=51 // pred_check
                _
              $region65: #{separation_model_forward.1} parent=51 // pred_check_branch
                %356 = sbr.rel (0) target = $region67
              $region66: #{separation_model_forward.1} parent=51 // pred_region
                loop: start=0, step=1, limit=1
                $region68: #{separation_model_forward.1} parent=66 // loop_pre_header
                  _
                $region69: #{separation_model_forward.1} parent=66 // loop_header
                  %s358 = sphi 0, %s362
                  %p359 = scmp.ge.s32.totalorder %s358, 1
                  %s363 = sphi %s327, %s327
                  %s364 = sphi %s325, %s325
                $region70: #{separation_model_forward.1} parent=66 // loop_header_branch
                  %361 = sbr.rel (%p359) target = $region74
                $region71: #{separation_model_forward.1} parent=66 // loop_body
                  %v365 = vld [vmem:[%s363] sm:$0xff]
                  %366 = vst [vmem:[%s364] sm:$0xff] %v365
                  %v367 = vld [vmem:[%s363 + $0x10] sm:$0xff]
                  %368 = vst [vmem:[%s364 + $0x8] sm:$0xff] %v367
                  %v369 = vld [vmem:[%s363 + $0x20] sm:$0xff]
                  %370 = vst [vmem:[%s364 + $0x10] sm:$0xff] %v369
                  %v371 = vld [vmem:[%s363 + $0x30] sm:$0xff]
                  %372 = vst [vmem:[%s364 + $0x18] sm:$0xff] %v371
                  %v373 = vld [vmem:[%s363 + $0x40] sm:$0xff]
                  %374 = vst [vmem:[%s364 + $0x20] sm:$0xff] %v373
                  %v375 = vld [vmem:[%s363 + $0x50] sm:$0xff]
                  %376 = vst [vmem:[%s364 + $0x28] sm:$0xff] %v375
                $region72: #{separation_model_forward.1} parent=66 // loop_footer
                  %s362 = sadd.s32 1, %s358
                $region73: #{separation_model_forward.1} parent=66 // loop_footer_branch
                  %357 = sbr.rel target = $region69
                $region74: #{separation_model_forward.1} parent=66 // loop_exit
                  _
              $region67: #{separation_model_forward.1} parent=51 // pred_fallthru
                _
              // Predicated region
              $region75: #{separation_model_forward.1} parent=51 // pred_check
                _
              $region76: #{separation_model_forward.1} parent=51 // pred_check_branch
                %378 = sbr.rel target = $region78
              $region77: #{separation_model_forward.1} parent=51 // pred_region
                _
              $region78: #{separation_model_forward.1} parent=51 // pred_fallthru
                _
            $region52: #{separation_model_forward.1} parent=47 // pred_fallthru
              _
            // Predicated region
            $region53: #{separation_model_forward.1} parent=47 // pred_check
              _
            $region54: #{separation_model_forward.1} parent=47 // pred_check_branch
              %333 = sbr.rel target = $region56
            $region55: #{separation_model_forward.1} parent=47 // pred_region
              loop: start=0, step=1, limit=1
              $region57: #{separation_model_forward.1} parent=55 // loop_pre_header
                _
              $region58: #{separation_model_forward.1} parent=55 // loop_header
                %s336 = sphi 0, %s340
                %p337 = scmp.ge.s32.totalorder %s336, 1
                %s341 = sphi %s327, %s327
                %s342 = sphi %s325, %s325
              $region59: #{separation_model_forward.1} parent=55 // loop_header_branch
                %339 = sbr.rel (%p337) target = $region63
              $region60: #{separation_model_forward.1} parent=55 // loop_body
                %v343 = vld [vmem:[%s341] sm:$0xff]
                %344 = vst [vmem:[%s342] sm:$0xff] %v343
                %v345 = vld [vmem:[%s341 + $0x10] sm:$0xff]
                %346 = vst [vmem:[%s342 + $0x8] sm:$0xff] %v345
                %v347 = vld [vmem:[%s341 + $0x20] sm:$0xff]
                %348 = vst [vmem:[%s342 + $0x10] sm:$0xff] %v347
                %v349 = vld [vmem:[%s341 + $0x30] sm:$0xff]
                %350 = vst [vmem:[%s342 + $0x18] sm:$0xff] %v349
                %v351 = vld [vmem:[%s341 + $0x40] sm:$0xff]
                %352 = vst [vmem:[%s342 + $0x20] sm:$0xff] %v351
                %v353 = vld [vmem:[%s341 + $0x50] sm:$0xff]
                %354 = vst [vmem:[%s342 + $0x28] sm:$0xff] %v353
              $region61: #{separation_model_forward.1} parent=55 // loop_footer
                %s340 = sadd.s32 1, %s336
              $region62: #{separation_model_forward.1} parent=55 // loop_footer_branch
                %335 = sbr.rel target = $region58
              $region63: #{separation_model_forward.1} parent=55 // loop_exit
                _
            $region56: #{separation_model_forward.1} parent=47 // pred_fallthru
              _
          $region48: #{separation_model_forward.1} parent=43 // pred_fallthru
            _
          %379 = vnop
        $region44: #{separation_model_forward.1} parent=39 // pred_fallthru
          _
        // Predicated region
        $region79: #{separation_model_forward.1} parent=39 // pred_check
          %p380 = pneg %p85
        $region80: #{separation_model_forward.1} parent=39 // pred_check_branch
          %382 = sbr.rel (%p380) target = $region82
        $region81: #{separation_model_forward.1} parent=39 // pred_region
          %s383 = sand.u32 %s75, 1
          %s384 = sand.u32 %s75, 1
          %s385 = smul.addr %s384, 16
          %s386 = scalar_lea.vmem [#allocation5], %s385
          %s387 = smul.addr %s18, 8
          %s388 = scalar_lea.vmem %s2, %s387
          // Predicated region
          $region83: #{separation_model_forward.1} parent=81 // pred_check
            _
          $region84: #{separation_model_forward.1} parent=81 // pred_check_branch
            %390 = sbr.rel (0) target = $region86
          $region85: #{separation_model_forward.1} parent=81 // pred_region
            // Predicated region
            $region87: #{separation_model_forward.1} parent=85 // pred_check
              _
            $region88: #{separation_model_forward.1} parent=85 // pred_check_branch
              %392 = sbr.rel (0) target = $region90
            $region89: #{separation_model_forward.1} parent=85 // pred_region
              // Predicated region
              $region102: #{separation_model_forward.1} parent=89 // pred_check
                _
              $region103: #{separation_model_forward.1} parent=89 // pred_check_branch
                %409 = sbr.rel (0) target = $region105
              $region104: #{separation_model_forward.1} parent=89 // pred_region
                loop: start=0, step=1, limit=1
                $region106: #{separation_model_forward.1} parent=104 // loop_pre_header
                  _
                $region107: #{separation_model_forward.1} parent=104 // loop_header
                  %s411 = sphi 0, %s415
                  %p412 = scmp.ge.s32.totalorder %s411, 1
                  %s416 = sphi %s388, %s388
                  %s417 = sphi %s386, %s386
                $region108: #{separation_model_forward.1} parent=104 // loop_header_branch
                  %414 = sbr.rel (%p412) target = $region112
                $region109: #{separation_model_forward.1} parent=104 // loop_body
                  %v418 = vld [vmem:[%s416] sm:$0xff]
                  %419 = vst [vmem:[%s417] sm:$0xff] %v418
                  %v420 = vld [vmem:[%s416 + $0x10] sm:$0xff]
                  %421 = vst [vmem:[%s417 + $0x8] sm:$0xff] %v420
                $region110: #{separation_model_forward.1} parent=104 // loop_footer
                  %s415 = sadd.s32 1, %s411
                $region111: #{separation_model_forward.1} parent=104 // loop_footer_branch
                  %410 = sbr.rel target = $region107
                $region112: #{separation_model_forward.1} parent=104 // loop_exit
                  _
              $region105: #{separation_model_forward.1} parent=89 // pred_fallthru
                _
              // Predicated region
              $region113: #{separation_model_forward.1} parent=89 // pred_check
                _
              $region114: #{separation_model_forward.1} parent=89 // pred_check_branch
                %423 = sbr.rel target = $region116
              $region115: #{separation_model_forward.1} parent=89 // pred_region
                _
              $region116: #{separation_model_forward.1} parent=89 // pred_fallthru
                _
            $region90: #{separation_model_forward.1} parent=85 // pred_fallthru
              _
            // Predicated region
            $region91: #{separation_model_forward.1} parent=85 // pred_check
              _
            $region92: #{separation_model_forward.1} parent=85 // pred_check_branch
              %394 = sbr.rel target = $region94
            $region93: #{separation_model_forward.1} parent=85 // pred_region
              loop: start=0, step=1, limit=1
              $region95: #{separation_model_forward.1} parent=93 // loop_pre_header
                _
              $region96: #{separation_model_forward.1} parent=93 // loop_header
                %s397 = sphi 0, %s401
                %p398 = scmp.ge.s32.totalorder %s397, 1
                %s402 = sphi %s388, %s388
                %s403 = sphi %s386, %s386
              $region97: #{separation_model_forward.1} parent=93 // loop_header_branch
                %400 = sbr.rel (%p398) target = $region101
              $region98: #{separation_model_forward.1} parent=93 // loop_body
                %v404 = vld [vmem:[%s402] sm:$0xff]
                %405 = vst [vmem:[%s403] sm:$0xff] %v404
                %v406 = vld [vmem:[%s402 + $0x10] sm:$0xff]
                %407 = vst [vmem:[%s403 + $0x8] sm:$0xff] %v406
              $region99: #{separation_model_forward.1} parent=93 // loop_footer
                %s401 = sadd.s32 1, %s397
              $region100: #{separation_model_forward.1} parent=93 // loop_footer_branch
                %396 = sbr.rel target = $region96
              $region101: #{separation_model_forward.1} parent=93 // loop_exit
                _
            $region94: #{separation_model_forward.1} parent=85 // pred_fallthru
              _
          $region86: #{separation_model_forward.1} parent=81 // pred_fallthru
            _
          %424 = vnop
        $region82: #{separation_model_forward.1} parent=39 // pred_fallthru
          _
        // Predicated region
        $region117: #{separation_model_forward.1} parent=39 // pred_check
          %p425 = pneg %p111
        $region118: #{separation_model_forward.1} parent=39 // pred_check_branch
          %427 = sbr.rel (%p425) target = $region120
        $region119: #{separation_model_forward.1} parent=39 // pred_region
          %s428 = sand.u32 %s101, 1
          %s429 = sand.u32 %s101, 1
          %s430 = smul.addr %s429, 16
          %s431 = scalar_lea.vmem [#allocation6], %s430
          %s432 = smul.addr %s18, 8
          %s433 = scalar_lea.vmem %s3, %s432
          // Predicated region
          $region121: #{separation_model_forward.1} parent=119 // pred_check
            _
          $region122: #{separation_model_forward.1} parent=119 // pred_check_branch
            %435 = sbr.rel (0) target = $region124
          $region123: #{separation_model_forward.1} parent=119 // pred_region
            // Predicated region
            $region125: #{separation_model_forward.1} parent=123 // pred_check
              _
            $region126: #{separation_model_forward.1} parent=123 // pred_check_branch
              %437 = sbr.rel (0) target = $region128
            $region127: #{separation_model_forward.1} parent=123 // pred_region
              // Predicated region
              $region140: #{separation_model_forward.1} parent=127 // pred_check
                _
              $region141: #{separation_model_forward.1} parent=127 // pred_check_branch
                %454 = sbr.rel (0) target = $region143
              $region142: #{separation_model_forward.1} parent=127 // pred_region
                loop: start=0, step=1, limit=1
                $region144: #{separation_model_forward.1} parent=142 // loop_pre_header
                  _
                $region145: #{separation_model_forward.1} parent=142 // loop_header
                  %s456 = sphi 0, %s460
                  %p457 = scmp.ge.s32.totalorder %s456, 1
                  %s461 = sphi %s433, %s433
                  %s462 = sphi %s431, %s431
                $region146: #{separation_model_forward.1} parent=142 // loop_header_branch
                  %459 = sbr.rel (%p457) target = $region150
                $region147: #{separation_model_forward.1} parent=142 // loop_body
                  %v463 = vld [vmem:[%s461] sm:$0xff]
                  %464 = vst [vmem:[%s462] sm:$0xff] %v463
                  %v465 = vld [vmem:[%s461 + $0x10] sm:$0xff]
                  %466 = vst [vmem:[%s462 + $0x8] sm:$0xff] %v465
                $region148: #{separation_model_forward.1} parent=142 // loop_footer
                  %s460 = sadd.s32 1, %s456
                $region149: #{separation_model_forward.1} parent=142 // loop_footer_branch
                  %455 = sbr.rel target = $region145
                $region150: #{separation_model_forward.1} parent=142 // loop_exit
                  _
              $region143: #{separation_model_forward.1} parent=127 // pred_fallthru
                _
              // Predicated region
              $region151: #{separation_model_forward.1} parent=127 // pred_check
                _
              $region152: #{separation_model_forward.1} parent=127 // pred_check_branch
                %468 = sbr.rel target = $region154
              $region153: #{separation_model_forward.1} parent=127 // pred_region
                _
              $region154: #{separation_model_forward.1} parent=127 // pred_fallthru
                _
            $region128: #{separation_model_forward.1} parent=123 // pred_fallthru
              _
            // Predicated region
            $region129: #{separation_model_forward.1} parent=123 // pred_check
              _
            $region130: #{separation_model_forward.1} parent=123 // pred_check_branch
              %439 = sbr.rel target = $region132
            $region131: #{separation_model_forward.1} parent=123 // pred_region
              loop: start=0, step=1, limit=1
              $region133: #{separation_model_forward.1} parent=131 // loop_pre_header
                _
              $region134: #{separation_model_forward.1} parent=131 // loop_header
                %s442 = sphi 0, %s446
                %p443 = scmp.ge.s32.totalorder %s442, 1
                %s447 = sphi %s433, %s433
                %s448 = sphi %s431, %s431
              $region135: #{separation_model_forward.1} parent=131 // loop_header_branch
                %445 = sbr.rel (%p443) target = $region139
              $region136: #{separation_model_forward.1} parent=131 // loop_body
                %v449 = vld [vmem:[%s447] sm:$0xff]
                %450 = vst [vmem:[%s448] sm:$0xff] %v449
                %v451 = vld [vmem:[%s447 + $0x10] sm:$0xff]
                %452 = vst [vmem:[%s448 + $0x8] sm:$0xff] %v451
              $region137: #{separation_model_forward.1} parent=131 // loop_footer
                %s446 = sadd.s32 1, %s442
              $region138: #{separation_model_forward.1} parent=131 // loop_footer_branch
                %441 = sbr.rel target = $region134
              $region139: #{separation_model_forward.1} parent=131 // loop_exit
                _
            $region132: #{separation_model_forward.1} parent=123 // pred_fallthru
              _
          $region124: #{separation_model_forward.1} parent=119 // pred_fallthru
            _
          %469 = vnop
        $region120: #{separation_model_forward.1} parent=39 // pred_fallthru
          _
      $region40: #{separation_model_forward.1} parent=5 // pred_fallthru
        _
      %p470 = scmp.le.s32.totalorder 1, %s18
      %p471 = scmp.lt.s32.totalorder %s18, 3
      %p472 = pnand %p470, %p471
      %p473 = pneg %p472
      // Predicated region
      $region155: #{separation_model_forward.1} parent=5 // pred_check
        _
      $region156: #{separation_model_forward.1} parent=5 // pred_check_branch
        %475 = sbr.rel (%p472) target = $region158
      $region157: #{separation_model_forward.1} parent=5 // pred_region
        %s476 = ssub.s32 %s18, 1
        // Predicated region
        $region159: #{separation_model_forward.1} parent=157 // pred_check
          %p477 = pneg %p39
        $region160: #{separation_model_forward.1} parent=157 // pred_check_branch
          %479 = sbr.rel (%p477) target = $region162
        $region161: #{separation_model_forward.1} parent=157 // pred_region
          %480 = dma.done [#allocation3], 16
        $region162: #{separation_model_forward.1} parent=157 // pred_fallthru
          _
        %s481 = sand.u32 %s52, 1
        %s482 = sand.u32 %s52, 1
        %s483 = smul.addr %s482, 48
        %s484 = scalar_lea.vmem [#allocation4], %s483
        // Predicated region
        $region163: #{separation_model_forward.1} parent=157 // pred_check
          %p485 = pneg %p65
        $region164: #{separation_model_forward.1} parent=157 // pred_check_branch
          %487 = sbr.rel (%p485) target = $region166
        $region165: #{separation_model_forward.1} parent=157 // pred_region
          _
        $region166: #{separation_model_forward.1} parent=157 // pred_fallthru
          _
        %s488 = sand.u32 %s78, 1
        %s489 = sand.u32 %s78, 1
        %s490 = smul.addr %s489, 16
        %s491 = scalar_lea.vmem [#allocation5], %s490
        // Predicated region
        $region167: #{separation_model_forward.1} parent=157 // pred_check
          %p492 = pneg %p91
        $region168: #{separation_model_forward.1} parent=157 // pred_check_branch
          %494 = sbr.rel (%p492) target = $region170
        $region169: #{separation_model_forward.1} parent=157 // pred_region
          _
        $region170: #{separation_model_forward.1} parent=157 // pred_fallthru
          _
        %s495 = sand.u32 %s104, 1
        %s496 = sand.u32 %s104, 1
        %s497 = smul.addr %s496, 16
        %s498 = scalar_lea.vmem [#allocation6], %s497
        // Predicated region
        $region171: #{separation_model_forward.1} parent=157 // pred_check
          %p499 = pneg %p117
        $region172: #{separation_model_forward.1} parent=157 // pred_check_branch
          %501 = sbr.rel (%p499) target = $region174
        $region173: #{separation_model_forward.1} parent=157 // pred_region
          _
        $region174: #{separation_model_forward.1} parent=157 // pred_fallthru
          _
        %502 = sfence
        %p503 = pneg %p39
        %p504 = pneg %p36
        %s505 = sand.u32 %s52, 1
        %s506 = sand.u32 %s52, 1
        %s507 = smul.addr %s506, 48
        %s508 = scalar_lea.vmem [#allocation4], %s507
        %p509 = pneg %p65
        %p510 = pneg %p62
        %s511 = sand.u32 %s78, 1
        %s512 = sand.u32 %s78, 1
        %s513 = smul.addr %s512, 16
        %s514 = scalar_lea.vmem [#allocation5], %s513
        %p515 = pneg %p91
        %p516 = pneg %p88
        %s517 = sand.u32 %s104, 1
        %s518 = sand.u32 %s104, 1
        %s519 = smul.addr %s518, 16
        %s520 = scalar_lea.vmem [#allocation6], %s519
        %p521 = pneg %p117
        %p522 = pneg %p114
        %p523 = pneg %p138
        %p524 = pneg %p135
        %p525 = pneg %p159
        %p526 = pneg %p156
        %p527 = pneg %p180
        %p528 = pneg %p177
        %p529 = pneg %p201
        %p530 = pneg %p198
        %p531 = pneg %p222
        %p532 = pneg %p219
        %p533 = pneg %p248
        %p534 = pneg %p245
        %s535 = sand.u32 %s235, 1
        %s536 = sand.u32 %s235, 1
        %s537 = smul.addr %s536, 24
        %s538 = scalar_lea.vmem [#allocation7], %s537
        %p539 = pneg %p274
        %p540 = pneg %p271
        %s541 = sand.u32 %s261, 1
        %s542 = sand.u32 %s261, 1
        %s543 = smul.addr %s542, 24
        %s544 = scalar_lea.vmem [#allocation8], %s543
        %v545 = vlaneseq
        %v546 = vshrl.u32 %v545, 7
        %v547 = vadd.s32 %v546, 8
        %v548 = vadd.s32 %v546, 16
        %v549 = vadd.s32 %v546, 24
        %v550 = vadd.s32 %v546, 32
        %v551 = vadd.s32 %v546, 40
        %v552 = vadd.s32 %v546, 48
        %v553 = vadd.s32 %v546, 56
        %v554 = vadd.s32 %v546, 64
        %v555 = vadd.s32 %v546, 72
        %v556 = vadd.s32 %v546, 80
        %v557 = vadd.s32 %v546, 88
        %v558 = vadd.s32 %v546, 96
        %v559 = vadd.s32 %v546, 104
        %v560 = vadd.s32 %v546, 112
        %v561 = vadd.s32 %v546, 120
        %v562 = vshra.s32 %v546, 4
        %v563 = vshra.s32 %v547, 4
        %v564 = vshra.s32 %v548, 4
        %v565 = vshra.s32 %v549, 4
        %v566 = vshra.s32 %v550, 4
        %v567 = vshra.s32 %v551, 4
        %v568 = vshra.s32 %v552, 4
        %v569 = vshra.s32 %v553, 4
        %v570 = vshra.s32 %v554, 4
        %v571 = vshra.s32 %v555, 4
        %v572 = vshra.s32 %v556, 4
        %v573 = vshra.s32 %v557, 4
        %v574 = vshra.s32 %v558, 4
        %v575 = vshra.s32 %v559, 4
        %v576 = vshra.s32 %v560, 4
        %v577 = vshra.s32 %v561, 4
        %v578 = vlaneseq
        %v579 = vand.u32 %v578, 127
        %v580 = vshra.s32 %v579, 4
        %vm581 = vcmp.eq.s32.totalorder %v562, %v580
        %vm582 = vcmp.eq.s32.totalorder %v563, %v580
        %vm583 = vcmp.eq.s32.totalorder %v564, %v580
        %vm584 = vcmp.eq.s32.totalorder %v565, %v580
        %vm585 = vcmp.eq.s32.totalorder %v566, %v580
        %vm586 = vcmp.eq.s32.totalorder %v567, %v580
        %vm587 = vcmp.eq.s32.totalorder %v568, %v580
        %vm588 = vcmp.eq.s32.totalorder %v569, %v580
        %vm589 = vcmp.eq.s32.totalorder %v570, %v580
        %vm590 = vcmp.eq.s32.totalorder %v571, %v580
        %vm591 = vcmp.eq.s32.totalorder %v572, %v580
        %vm592 = vcmp.eq.s32.totalorder %v573, %v580
        %vm593 = vcmp.eq.s32.totalorder %v574, %v580
        %vm594 = vcmp.eq.s32.totalorder %v575, %v580
        %vm595 = vcmp.eq.s32.totalorder %v576, %v580
        %vm596 = vcmp.eq.s32.totalorder %v577, %v580
        %v597 = vsel %vm581, 1.0, 0.0
        %v598 = vsel %vm582, 1.0, 0.0
        %v599 = vsel %vm583, 1.0, 0.0
        %v600 = vsel %vm584, 1.0, 0.0
        %v601 = vsel %vm585, 1.0, 0.0
        %v602 = vsel %vm586, 1.0, 0.0
        %v603 = vsel %vm587, 1.0, 0.0
        %v604 = vsel %vm588, 1.0, 0.0
        %v605 = vsel %vm589, 1.0, 0.0
        %v606 = vsel %vm590, 1.0, 0.0
        %v607 = vsel %vm591, 1.0, 0.0
        %v608 = vsel %vm592, 1.0, 0.0
        %v609 = vsel %vm593, 1.0, 0.0
        %v610 = vsel %vm594, 1.0, 0.0
        %v611 = vsel %vm595, 1.0, 0.0
        %v612 = vsel %vm596, 1.0, 0.0
        %v613 = vand.u32 %v579, 15
        %v614 = vld [vmem:[%s484] sm:$0xff]
        %v615 = vld [vmem:[%s484 + $0x8] sm:$0xff]
        %v616 = vld [vmem:[%s484 + $0x10] sm:$0xff]
        %v617 = vld [vmem:[%s484 + $0x18] sm:$0xff]
        %v618 = vld [vmem:[%s484 + $0x20] sm:$0xff]
        %v619 = vld [vmem:[%s484 + $0x28] sm:$0x1f]
        %v620 = vld [vmem:[%s4] sm:$0xff]
        %v621 = vld [vmem:[%s4 + $0x8] sm:$0xff]
        %v622 = vld [vmem:[%s4 + $0x10] sm:$0xff]
        %v623 = vld [vmem:[%s4 + $0x18] sm:$0xff]
        %v624 = vld [vmem:[%s4 + $0x20] sm:$0xff]
        %v625 = vld [vmem:[%s4 + $0x28] sm:$0x1f]
        %v626 = vadd.f32 %v614, %v615
        %v627 = vadd.f32 %v626, %v616
        %v628 = vadd.f32 %v627, %v617
        %v629 = vadd.f32 %v628, %v618
        %vm630 = vcmask 1044480
        %v631 = vsel %vm630, %v619, 0.0
        %v632 = vadd.f32 %v629, %v631
        %v633 = vrot.slane %v632, 4
        %v634 = vadd.f32 %v632, %v633
        %v635 = vrot.slane %v634, 2
        %v636 = vadd.f32 %v634, %v635
        %v637 = vrot.slane %v636, 1
        %v638 = vadd.f32 %v636, %v637
        %v639 = vmul.f32 %v614, %v614
        %v640 = vmul.f32 %v615, %v615
        %v641 = vmul.f32 %v616, %v616
        %v642 = vmul.f32 %v617, %v617
        %v643 = vmul.f32 %v618, %v618
        %v644 = vmul.f32 %v619, %v619
        %v645 = vadd.f32 %v639, %v640
        %v646 = vadd.f32 %v645, %v641
        %v647 = vadd.f32 %v646, %v642
        %v648 = vadd.f32 %v647, %v643
        %v649 = vsel %vm630, %v644, 0.0
        %v650 = vadd.f32 %v648, %v649
        %v651 = vrot.slane %v650, 4
        %v652 = vadd.f32 %v650, %v651
        %v653 = vrot.slane %v652, 2
        %v654 = vadd.f32 %v652, %v653
        %v655 = vrot.slane %v654, 1
        %v656 = vadd.f32 %v654, %v655
        %vm657 = vcmask 1040384
        %v658 = vsel %vm657, %v638, %v656
        %659 = vmatprep.subr.mxu0 0.0
        %660 = vmatpush1.msra.mxu0 %v597
        %661 = vmatprep.subr.mxu0 0.0
        %662 = vmatpush1.msra.mxu0 %v598
        %663 = vmatprep.subr.mxu0 0.0
        %664 = vmatpush1.msra.mxu0 %v599
        %665 = vmatprep.subr.mxu0 0.0
        %666 = vmatpush1.msra.mxu0 %v600
        %667 = vmatprep.subr.mxu0 0.0
        %668 = vmatpush1.msra.mxu0 %v601
        %669 = vmatprep.subr.mxu0 0.0
        %670 = vmatpush1.msra.mxu0 %v602
        %671 = vmatprep.subr.mxu0 0.0
        %672 = vmatpush1.msra.mxu0 %v603
        %673 = vmatprep.subr.mxu0 0.0
        %674 = vmatpush1.msra.mxu0 %v604
        %675 = vmatprep.subr.mxu0 0.0
        %676 = vmatpush1.msra.mxu0 %v605
        %677 = vmatprep.subr.mxu0 0.0
        %678 = vmatpush1.msra.mxu0 %v606
        %679 = vmatprep.subr.mxu0 0.0
        %680 = vmatpush1.msra.mxu0 %v607
        %681 = vmatprep.subr.mxu0 0.0
        %682 = vmatpush1.msra.mxu0 %v608
        %683 = vmatprep.subr.mxu0 0.0
        %684 = vmatpush1.msra.mxu0 %v609
        %685 = vmatprep.subr.mxu0 0.0
        %686 = vmatpush1.msra.mxu0 %v610
        %687 = vmatprep.subr.mxu0 0.0
        %688 = vmatpush1.msra.mxu0 %v611
        %689 = vmatprep.subr.mxu0 0.0
        %690 = vmatpush1.msra.mxu0 %v612
        %691 = vmatprep.subr.mxu0 0.0
        %692 = vmatpush1.msra.mxu0 0.0
        %693 = vmatprep.subr.mxu0 0.0
        %694 = vmatpush1.msra.mxu0 0.0
        %695 = vmatprep.subr.mxu0 0.0
        %696 = vmatpush1.msra.mxu0 0.0
        %697 = vmatprep.subr.mxu0 0.0
        %698 = vmatpush1.msra.mxu0 0.0
        %699 = vmatprep.subr.mxu0 0.0
        %700 = vmatpush1.msra.mxu0 0.0
        %701 = vmatprep.subr.mxu0 0.0
        %702 = vmatpush1.msra.mxu0 0.0
        %703 = vmatprep.subr.mxu0 0.0
        %704 = vmatpush1.msra.mxu0 0.0
        %705 = vmatprep.subr.mxu0 0.0
        %706 = vmatpush1.msra.mxu0 0.0
        %707 = vmatprep.subr.mxu0 0.0
        %708 = vmatpush1.msra.mxu0 0.0
        %709 = vmatprep.subr.mxu0 0.0
        %710 = vmatpush1.msra.mxu0 0.0
        %711 = vmatprep.subr.mxu0 0.0
        %712 = vmatpush1.msra.mxu0 0.0
        %713 = vmatprep.subr.mxu0 0.0
        %714 = vmatpush1.msra.mxu0 0.0
        %715 = vmatprep.subr.mxu0 0.0
        %716 = vmatpush1.msra.mxu0 0.0
        %717 = vmatprep.subr.mxu0 0.0
        %718 = vmatpush1.msra.mxu0 0.0
        %719 = vmatprep.subr.mxu0 0.0
        %720 = vmatpush1.msra.mxu0 0.0
        %721 = vmatprep.subr.mxu0 0.0
        %722 = vmatpush1.msra.mxu0 0.0
        %723 = vmatprep.mubr.f32.mxu0 0.0
        %724 = vmatmul.mubr.f32.gmra.mrb[0].mxu0 %v658
        %v725 = vpop.f32.mrb[0].mxu0
        %v726 = vadd.f32 0.0, %v725
        %v727 = vpop.f32.mrb[0].mxu0
        %728 = vdwg.mxu0
        %v729 = vmul.f32 %v726, 0.0013888889
        %v730 = vmul.f32 %v729, %v729
        %v732 = vrot.slane %v730, 7
        %v734 = vsub.f32 %v729, %v732
        %v735 = vmax.f32 %v734, 0.0
        %v736 = vadd.f32 %v735, 1e-08
        %v737 = vrsqrt.pop %v736
        %v738 = vlaneseq
        %v739 = vshrl.u32 %v738, 7
        %v740 = vsub.s32 0, %v739
        %v741 = vrot.slane %v729, %v740
        %v742 = vsub.f32 %v614, %v741
        %v743 = vsub.f32 %v615, %v741
        %v744 = vsub.f32 %v616, %v741
        %v745 = vsub.f32 %v617, %v741
        %v746 = vsub.f32 %v618, %v741
        %v747 = vsub.f32 %v619, %v741
        %v748 = vlaneseq
        %v749 = vshrl.u32 %v748, 7
        %v750 = vsub.s32 1, %v749
        %v751 = vrot.slane %v737, %v750
        %v752 = vmul.f32 %v742, %v751
        %v753 = vmul.f32 %v743, %v751
        %v754 = vmul.f32 %v744, %v751
        %v755 = vmul.f32 %v745, %v751
        %v756 = vmul.f32 %v746, %v751
        %v757 = vmul.f32 %v747, %v751
        %759 = vset.pattern.permute.xlu0 0
        %760 = vperm.xlu0 %759, %v620
        %v761 = vpop.permute.xlu0 %760
        %764 = vset.pattern.permute.xlu0 0
        %765 = vperm.xlu0 %764, %v621
        %v766 = vpop.permute.xlu0 %765
        %769 = vset.pattern.permute.xlu0 0
        %770 = vperm.xlu0 %769, %v622
        %v771 = vpop.permute.xlu0 %770
        %774 = vset.pattern.permute.xlu0 0
        %775 = vperm.xlu0 %774, %v623
        %v776 = vpop.permute.xlu0 %775
        %779 = vset.pattern.permute.xlu0 0
        %780 = vperm.xlu0 %779, %v624
        %v781 = vpop.permute.xlu0 %780
        %784 = vset.pattern.permute.xlu0 0
        %785 = vperm.xlu0 %784, %v625
        %v786 = vpop.permute.xlu0 %785
        %v788 = vmul.f32 %v752, %v761
        %v789 = vmul.f32 %v753, %v766
        %v790 = vmul.f32 %v754, %v771
        %v791 = vmul.f32 %v755, %v776
        %v792 = vmul.f32 %v756, %v781
        %v793 = vmul.f32 %v757, %v786
        %794 = vset.pattern.permute.xlu0 1
        %795 = vperm.xlu0 %794, %v620
        %v796 = vpop.permute.xlu0 %795
        %798 = vset.pattern.permute.xlu0 1
        %799 = vperm.xlu0 %798, %v621
        %v800 = vpop.permute.xlu0 %799
        %802 = vset.pattern.permute.xlu0 1
        %803 = vperm.xlu0 %802, %v622
        %v804 = vpop.permute.xlu0 %803
        %806 = vset.pattern.permute.xlu0 1
        %807 = vperm.xlu0 %806, %v623
        %v808 = vpop.permute.xlu0 %807
        %810 = vset.pattern.permute.xlu0 1
        %811 = vperm.xlu0 %810, %v624
        %v812 = vpop.permute.xlu0 %811
        %814 = vset.pattern.permute.xlu0 1
        %815 = vperm.xlu0 %814, %v625
        %v816 = vpop.permute.xlu0 %815
        %v818 = vadd.f32 %v788, %v796
        %v819 = vadd.f32 %v789, %v800
        %v820 = vadd.f32 %v790, %v804
        %v821 = vadd.f32 %v791, %v808
        %v822 = vadd.f32 %v792, %v812
        %v823 = vadd.f32 %v793, %v816
        %v824 = vld [vmem:[%s5] sm:$0xff]
        %v825 = vld [vmem:[%s5 + $0x8] sm:$0xff]
        %827 = vset.pattern.permute.xlu0 45
        %828 = vperm.xlu0 %827, %v824
        %v829 = vpop.permute.xlu0 %828
        %832 = vset.pattern.permute.xlu0 45
        %833 = vperm.xlu0 %832, %v825
        %v834 = vpop.permute.xlu0 %833
        %vm836 = vcmask 367616
        %v837 = vsel %vm836, %v824, 0
        %v839 = vsel %vm836, %v825, 0
        %v842 = vsel %vm630, %v823, 0
        %844 = vmatprep.subr.mxu0 0.0
        %845 = vmatpush1.msra.mxu0 %v818
        %846 = vmatprep.subr.mxu0 0.0
        %847 = vmatpush1.msra.mxu0 %v819
        %848 = vmatprep.subr.mxu0 0.0
        %849 = vmatpush1.msra.mxu0 %v820
        %850 = vmatprep.subr.mxu0 0.0
        %851 = vmatpush1.msra.mxu0 %v821
        %852 = vmatprep.subr.mxu0 0.0
        %853 = vmatpush1.msra.mxu0 %v822
        %854 = vmatprep.subr.mxu0 0.0
        %855 = vmatpush1.msra.mxu0 %v842
        %856 = vmatprep.subr.mxu0 0.0
        %857 = vmatpush1.msra.mxu0 0.0
        %858 = vmatprep.subr.mxu0 0.0
        %859 = vmatpush1.msra.mxu0 0.0
        %860 = vmatprep.subr.mxu0 0.0
        %861 = vmatpush1.msra.mxu0 0.0
        %862 = vmatprep.subr.mxu0 0.0
        %863 = vmatpush1.msra.mxu0 0.0
        %864 = vmatprep.subr.mxu0 0.0
        %865 = vmatpush1.msra.mxu0 0.0
        %866 = vmatprep.subr.mxu0 0.0
        %867 = vmatpush1.msra.mxu0 0.0
        %868 = vmatprep.subr.mxu0 0.0
        %869 = vmatpush1.msra.mxu0 0.0
        %870 = vmatprep.subr.mxu0 0.0
        %871 = vmatpush1.msra.mxu0 0.0
        %872 = vmatprep.subr.mxu0 0.0
        %873 = vmatpush1.msra.mxu0 0.0
        %874 = vmatprep.subr.mxu0 0.0
        %875 = vmatpush1.msra.mxu0 0.0
        %876 = vmatprep.subr.mxu0 0.0
        %877 = vmatpush1.msra.mxu0 0.0
        %878 = vmatprep.subr.mxu0 0.0
        %879 = vmatpush1.msra.mxu0 0.0
        %880 = vmatprep.subr.mxu0 0.0
        %881 = vmatpush1.msra.mxu0 0.0
        %882 = vmatprep.subr.mxu0 0.0
        %883 = vmatpush1.msra.mxu0 0.0
        %884 = vmatprep.subr.mxu0 0.0
        %885 = vmatpush1.msra.mxu0 0.0
        %886 = vmatprep.subr.mxu0 0.0
        %887 = vmatpush1.msra.mxu0 0.0
        %888 = vmatprep.subr.mxu0 0.0
        %889 = vmatpush1.msra.mxu0 0.0
        %890 = vmatprep.subr.mxu0 0.0
        %891 = vmatpush1.msra.mxu0 0.0
        %892 = vmatprep.subr.mxu0 0.0
        %893 = vmatpush1.msra.mxu0 0.0
        %894 = vmatprep.subr.mxu0 0.0
        %895 = vmatpush1.msra.mxu0 0.0
        %896 = vmatprep.subr.mxu0 0.0
        %897 = vmatpush1.msra.mxu0 0.0
        %898 = vmatprep.subr.mxu0 0.0
        %899 = vmatpush1.msra.mxu0 0.0
        %900 = vmatprep.subr.mxu0 0.0
        %901 = vmatpush1.msra.mxu0 0.0
        %902 = vmatprep.subr.mxu0 0.0
        %903 = vmatpush1.msra.mxu0 0.0
        %904 = vmatprep.subr.mxu0 0.0
        %905 = vmatpush1.msra.mxu0 0.0
        %906 = vmatprep.subr.mxu0 0.0
        %907 = vmatpush1.msra.mxu0 0.0
        %908 = vmatprep.mubr.f32.mxu0 0.0
        %909 = vmatmul.mubr.f32.gmra.mrb[0].mxu0 %v837
        %v910 = vpop.f32.mrb[0].mxu0
        %v911 = vadd.f32 %v829, %v910
        %v912 = vpop.f32.mrb[0].mxu0
        %913 = vmatprep.mubr.f32.mxu0 0.0
        %914 = vmatmul.mubr.f32.gmra.mrb[0].mxu0 %v839
        %v915 = vpop.f32.mrb[0].mxu0
        %v916 = vadd.f32 %v834, %v915
        %v917 = vpop.f32.mrb[0].mxu0
        %918 = vdwg.mxu0
        %v919 = vld [vmem:[%s8] sm:$0xff]
        %v920 = vld [vmem:[%s8 + $0x8] sm:$0xff]
        %v921 = vld [vmem:[%s7] sm:$0xff]
        %v922 = vld [vmem:[%s7 + $0x10] sm:$0xff]
        %s923 = sld [smem:[#allocation2]]
        %s924 = sld [smem:[#allocation2 + $0x1]]
        %926 = vset.pattern.permute.xlu0 0
        %927 = vperm.xlu0 %926, %v919
        %v928 = vpop.permute.xlu0 %927
        %931 = vset.pattern.permute.xlu0 0
        %932 = vperm.xlu0 %931, %v920
        %v933 = vpop.permute.xlu0 %932
        %vm935 = vcmask 130048
        %v937 = vsel %vm935, %v921, 0
        %v940 = vsel %vm935, %v922, 0
        %942 = vmatprep.subr.mxu0 0.0
        %943 = vmatpush1.msra.mxu0 %v911
        %944 = vmatprep.subr.mxu0 0.0
        %945 = vmatpush1.msra.mxu0 %v916
        %946 = vmatprep.subr.mxu0 0.0
        %947 = vmatpush1.msra.mxu0 0.0
        %948 = vmatprep.subr.mxu0 0.0
        %949 = vmatpush1.msra.mxu0 0.0
        %950 = vmatprep.subr.mxu0 0.0
        %951 = vmatpush1.msra.mxu0 0.0
        %952 = vmatprep.subr.mxu0 0.0
        %953 = vmatpush1.msra.mxu0 0.0
        %954 = vmatprep.subr.mxu0 0.0
        %955 = vmatpush1.msra.mxu0 0.0
        %956 = vmatprep.subr.mxu0 0.0
        %957 = vmatpush1.msra.mxu0 0.0
        %958 = vmatprep.subr.mxu0 0.0
        %959 = vmatpush1.msra.mxu0 0.0
        %960 = vmatprep.subr.mxu0 0.0
        %961 = vmatpush1.msra.mxu0 0.0
        %962 = vmatprep.subr.mxu0 0.0
        %963 = vmatpush1.msra.mxu0 0.0
        %964 = vmatprep.subr.mxu0 0.0
        %965 = vmatpush1.msra.mxu0 0.0
        %966 = vmatprep.subr.mxu0 0.0
        %967 = vmatpush1.msra.mxu0 0.0
        %968 = vmatprep.subr.mxu0 0.0
        %969 = vmatpush1.msra.mxu0 0.0
        %970 = vmatprep.subr.mxu0 0.0
        %971 = vmatpush1.msra.mxu0 0.0
        %972 = vmatprep.subr.mxu0 0.0
        %973 = vmatpush1.msra.mxu0 0.0
        %974 = vmatprep.subr.mxu0 0.0
        %975 = vmatpush1.msra.mxu0 0.0
        %976 = vmatprep.subr.mxu0 0.0
        %977 = vmatpush1.msra.mxu0 0.0
        %978 = vmatprep.subr.mxu0 0.0
        %979 = vmatpush1.msra.mxu0 0.0
        %980 = vmatprep.subr.mxu0 0.0
        %981 = vmatpush1.msra.mxu0 0.0
        %982 = vmatprep.subr.mxu0 0.0
        %983 = vmatpush1.msra.mxu0 0.0
        %984 = vmatprep.subr.mxu0 0.0
        %985 = vmatpush1.msra.mxu0 0.0
        %986 = vmatprep.subr.mxu0 0.0
        %987 = vmatpush1.msra.mxu0 0.0
        %988 = vmatprep.subr.mxu0 0.0
        %989 = vmatpush1.msra.mxu0 0.0
        %990 = vmatprep.subr.mxu0 0.0
        %991 = vmatpush1.msra.mxu0 0.0
        %992 = vmatprep.subr.mxu0 0.0
        %993 = vmatpush1.msra.mxu0 0.0
        %994 = vmatprep.subr.mxu0 0.0
        %995 = vmatpush1.msra.mxu0 0.0
        %996 = vmatprep.subr.mxu0 0.0
        %997 = vmatpush1.msra.mxu0 0.0
        %998 = vmatprep.subr.mxu0 0.0
        %999 = vmatpush1.msra.mxu0 0.0
        %1000 = vmatprep.subr.mxu0 0.0
        %1001 = vmatpush1.msra.mxu0 0.0
        %1002 = vmatprep.subr.mxu0 0.0
        %1003 = vmatpush1.msra.mxu0 0.0
        %1004 = vmatprep.subr.mxu0 0.0
        %1005 = vmatpush1.msra.mxu0 0.0
        %1006 = vmatprep.mubr.f32.mxu0 0.0
        %1007 = vmatmul.mubr.f32.gmra.mrb[0].mxu0 %v937
        %v1008 = vpop.f32.mrb[0].mxu0
        %v1009 = vadd.f32 %v928, %v1008
        %v1010 = vpop.f32.mrb[0].mxu0
        %1011 = vmatprep.mubr.f32.mxu0 0.0
        %1012 = vmatmul.mubr.f32.gmra.mrb[0].mxu0 %v940
        %v1013 = vpop.f32.mrb[0].mxu0
        %v1014 = vadd.f32 %v933, %v1013
        %v1015 = vpop.f32.mrb[0].mxu0
        %1016 = vdwg.mxu0
        %vm1017 = vcmp.gt.f32.partialorder %v1009, 0.0
        %vm1018 = vcmp.gt.f32.partialorder %v1014, 0.0
        %v1019 = vstv %s923
        %v1020 = vmul.f32 %v1019, %v1009
        %v1021 = vmul.f32 %v1019, %v1014
        %v1022 = vsel %vm1017, %v1009, %v1020
        %v1023 = vsel %vm1018, %v1014, %v1021
        %v1024 = vadd.f32 %v1022, %v1023
        %v1025 = vrot.slane %v1024, 4
        %v1026 = vadd.f32 %v1024, %v1025
        %v1027 = vrot.slane %v1026, 2
        %v1028 = vadd.f32 %v1026, %v1027
        %v1029 = vrot.slane %v1028, 1
        %v1030 = vadd.f32 %v1028, %v1029
        %v1031 = vmul.f32 %v1022, %v1022
        %v1032 = vmul.f32 %v1023, %v1023
        %v1033 = vadd.f32 %v1031, %v1032
        %v1034 = vrot.slane %v1033, 4
        %v1035 = vadd.f32 %v1033, %v1034
        %v1036 = vrot.slane %v1035, 2
        %v1037 = vadd.f32 %v1035, %v1036
        %v1038 = vrot.slane %v1037, 1
        %v1039 = vadd.f32 %v1037, %v1038
        %v1040 = vsel %vm657, %v1030, %v1039
        %1041 = vmatprep.subr.mxu0 0.0
        %1042 = vmatpush1.msra.mxu0 %v597
        %1043 = vmatprep.subr.mxu0 0.0
        %1044 = vmatpush1.msra.mxu0 %v598
        %1045 = vmatprep.subr.mxu0 0.0
        %1046 = vmatpush1.msra.mxu0 %v599
        %1047 = vmatprep.subr.mxu0 0.0
        %1048 = vmatpush1.msra.mxu0 %v600
        %1049 = vmatprep.subr.mxu0 0.0
        %1050 = vmatpush1.msra.mxu0 %v601
        %1051 = vmatprep.subr.mxu0 0.0
        %1052 = vmatpush1.msra.mxu0 %v602
        %1053 = vmatprep.subr.mxu0 0.0
        %1054 = vmatpush1.msra.mxu0 %v603
        %1055 = vmatprep.subr.mxu0 0.0
        %1056 = vmatpush1.msra.mxu0 %v604
        %1057 = vmatprep.subr.mxu0 0.0
        %1058 = vmatpush1.msra.mxu0 %v605
        %1059 = vmatprep.subr.mxu0 0.0
        %1060 = vmatpush1.msra.mxu0 %v606
        %1061 = vmatprep.subr.mxu0 0.0
        %1062 = vmatpush1.msra.mxu0 %v607
        %1063 = vmatprep.subr.mxu0 0.0
        %1064 = vmatpush1.msra.mxu0 %v608
        %1065 = vmatprep.subr.mxu0 0.0
        %1066 = vmatpush1.msra.mxu0 %v609
        %1067 = vmatprep.subr.mxu0 0.0
        %1068 = vmatpush1.msra.mxu0 %v610
        %1069 = vmatprep.subr.mxu0 0.0
        %1070 = vmatpush1.msra.mxu0 %v611
        %1071 = vmatprep.subr.mxu0 0.0
        %1072 = vmatpush1.msra.mxu0 %v612
        %1073 = vmatprep.subr.mxu0 0.0
        %1074 = vmatpush1.msra.mxu0 0.0
        %1075 = vmatprep.subr.mxu0 0.0
        %1076 = vmatpush1.msra.mxu0 0.0
        %1077 = vmatprep.subr.mxu0 0.0
        %1078 = vmatpush1.msra.mxu0 0.0
        %1079 = vmatprep.subr.mxu0 0.0
        %1080 = vmatpush1.msra.mxu0 0.0
        %1081 = vmatprep.subr.mxu0 0.0
        %1082 = vmatpush1.msra.mxu0 0.0
        %1083 = vmatprep.subr.mxu0 0.0
        %1084 = vmatpush1.msra.mxu0 0.0
        %1085 = vmatprep.subr.mxu0 0.0
        %1086 = vmatpush1.msra.mxu0 0.0
        %1087 = vmatprep.subr.mxu0 0.0
        %1088 = vmatpush1.msra.mxu0 0.0
        %1089 = vmatprep.subr.mxu0 0.0
        %1090 = vmatpush1.msra.mxu0 0.0
        %1091 = vmatprep.subr.mxu0 0.0
        %1092 = vmatpush1.msra.mxu0 0.0
        %1093 = vmatprep.subr.mxu0 0.0
        %1094 = vmatpush1.msra.mxu0 0.0
        %1095 = vmatprep.subr.mxu0 0.0
        %1096 = vmatpush1.msra.mxu0 0.0
        %1097 = vmatprep.subr.mxu0 0.0
        %1098 = vmatpush1.msra.mxu0 0.0
        %1099 = vmatprep.subr.mxu0 0.0
        %1100 = vmatpush1.msra.mxu0 0.0
        %1101 = vmatprep.subr.mxu0 0.0
        %1102 = vmatpush1.msra.mxu0 0.0
        %1103 = vmatprep.subr.mxu0 0.0
        %1104 = vmatpush1.msra.mxu0 0.0
        %1105 = vmatprep.mubr.f32.mxu0 0.0
        %1106 = vmatmul.mubr.f32.gmra.mrb[0].mxu0 %v1040
        %v1107 = vpop.f32.mrb[0].mxu0
        %v1108 = vadd.f32 0.0, %v1107
        %v1109 = vpop.f32.mrb[0].mxu0
        %1110 = vdwg.mxu0
        %v1111 = vmul.f32 %v1108, 0.00390625
        %v1112 = vmul.f32 %v1111, %v1111
        %v1114 = vrot.slane %v1112, 7
        %v1116 = vsub.f32 %v1111, %v1114
        %v1117 = vmax.f32 %v1116, 0.0
        %v1118 = vadd.f32 %v1117, 1e-08
        %v1119 = vrsqrt.pop %v1118
        %v1120 = vlaneseq
        %v1121 = vshrl.u32 %v1120, 7
        %v1122 = vsub.s32 0, %v1121
        %v1123 = vrot.slane %v1111, %v1122
        %v1124 = vsub.f32 %v1022, %v1123
        %v1125 = vsub.f32 %v1023, %v1123
        %v1126 = vlaneseq
        %v1127 = vshrl.u32 %v1126, 7
        %v1128 = vsub.s32 1, %v1127
        %v1129 = vrot.slane %v1119, %v1128
        %v1130 = vmul.f32 %v1124, %v1129
        %v1131 = vmul.f32 %v1125, %v1129
        %1132 = vset.pattern.permute.xlu0 1
        %1133 = vperm.xlu0 %1132, %v919
        %v1134 = vpop.permute.xlu0 %1133
        %1136 = vset.pattern.permute.xlu0 1
        %1137 = vperm.xlu0 %1136, %v920
        %v1138 = vpop.permute.xlu0 %1137
        %v1140 = vmul.f32 %v1130, %v1134
        %v1141 = vmul.f32 %v1131, %v1138
        %1142 = vset.pattern.permute.xlu0 2
        %1143 = vperm.xlu0 %1142, %v919
        %v1144 = vpop.permute.xlu0 %1143
        %1146 = vset.pattern.permute.xlu0 2
        %1147 = vperm.xlu0 %1146, %v920
        %v1148 = vpop.permute.xlu0 %1147
        %v1150 = vadd.f32 %v1140, %v1144
        %v1151 = vadd.f32 %v1141, %v1148
        %vm1152 = vcmp.ge.s32.totalorder %v613, 1
        %1153 = vrot.lane.b32.xlu0 %v1150, 1
        %v1154 = vpop.permute.xlu0 %1153
        %1155 = vrot.lane.b32.xlu0 %v1151, 1
        %v1156 = vpop.permute.xlu0 %1155
        %v1157 = vsel %vm1152, 1, 0
        %vm1158 = vcmp.eq.s32.totalorder %v1157, 1
        %v1159 = vsel %vm1158, %v1154, 0.0
        %v1160 = vsel %vm1158, %v1156, 0.0
        %vm1161 = vcmp.lt.s32.totalorder %v613, 15
        %1162 = vrot.lane.b32.xlu0 %v1150, 127
        %v1163 = vpop.permute.xlu0 %1162
        %1164 = vrot.lane.b32.xlu0 %v1151, 127
        %v1165 = vpop.permute.xlu0 %1164
        %v1166 = vsel %vm1161, 1, 0
        %vm1167 = vcmp.eq.s32.totalorder %v1166, 1
        %v1168 = vsel %vm1167, %v1163, 0.0
        %v1169 = vsel %vm1167, %v1165, 0.0
        %1170 = vset.pattern.permute.xlu0 10
        %1171 = vperm.xlu0 %1170, %v919
        %v1172 = vpop.permute.xlu0 %1171
        %1174 = vset.pattern.permute.xlu0 10
        %1175 = vperm.xlu0 %1174, %v920
        %v1176 = vpop.permute.xlu0 %1175
        %v1178 = vmul.f32 %v1172, %v1159
        %v1179 = vmul.f32 %v1176, %v1160
        %1180 = vset.pattern.permute.xlu0 11
        %1181 = vperm.xlu0 %1180, %v919
        %v1182 = vpop.permute.xlu0 %1181
        %1184 = vset.pattern.permute.xlu0 11
        %1185 = vperm.xlu0 %1184, %v920
        %v1186 = vpop.permute.xlu0 %1185
        %v1188 = vmul.f32 %v1182, %v1150
        %v1189 = vmul.f32 %v1186, %v1151
        %v1190 = vadd.f32 %v1178, %v1188
        %v1191 = vadd.f32 %v1179, %v1189
        %1192 = vset.pattern.permute.xlu0 12
        %1193 = vperm.xlu0 %1192, %v919
        %v1194 = vpop.permute.xlu0 %1193
        %1196 = vset.pattern.permute.xlu0 12
        %1197 = vperm.xlu0 %1196, %v920
        %v1198 = vpop.permute.xlu0 %1197
        %v1200 = vmul.f32 %v1194, %v1168
        %v1201 = vmul.f32 %v1198, %v1169
        %v1202 = vadd.f32 %v1190, %v1200
        %v1203 = vadd.f32 %v1191, %v1201
        %1204 = vset.pattern.permute.xlu0 4
        %1205 = vperm.xlu0 %1204, %v919
        %v1206 = vpop.permute.xlu0 %1205
        %1208 = vset.pattern.permute.xlu0 4
        %1209 = vperm.xlu0 %1208, %v920
        %v1210 = vpop.permute.xlu0 %1209
        %v1212 = vadd.f32 %v1202, %v1206
        %v1213 = vadd.f32 %v1203, %v1210
        %1214 = vset.pattern.permute.xlu0 13
        %1215 = vperm.xlu0 %1214, %v919
        %v1216 = vpop.permute.xlu0 %1215
        %1218 = vset.pattern.permute.xlu0 13
        %1219 = vperm.xlu0 %1218, %v920
        %v1220 = vpop.permute.xlu0 %1219
        %v1222 = vmul.f32 %v1216, %v1159
        %v1223 = vmul.f32 %v1220, %v1160
        %1224 = vset.pattern.permute.xlu0 14
        %1225 = vperm.xlu0 %1224, %v919
        %v1226 = vpop.permute.xlu0 %1225
        %1228 = vset.pattern.permute.xlu0 14
        %1229 = vperm.xlu0 %1228, %v920
        %v1230 = vpop.permute.xlu0 %1229
        %v1232 = vmul.f32 %v1226, %v1150
        %v1233 = vmul.f32 %v1230, %v1151
        %v1234 = vadd.f32 %v1222, %v1232
        %v1235 = vadd.f32 %v1223, %v1233
        %1236 = vset.pattern.permute.xlu0 15
        %1237 = vperm.xlu0 %1236, %v919
        %v1238 = vpop.permute.xlu0 %1237
        %1240 = vset.pattern.permute.xlu0 15
        %1241 = vperm.xlu0 %1240, %v920
        %v1242 = vpop.permute.xlu0 %1241
        %v1244 = vmul.f32 %v1238, %v1168
        %v1245 = vmul.f32 %v1242, %v1169
        %v1246 = vadd.f32 %v1234, %v1244
        %v1247 = vadd.f32 %v1235, %v1245
        %1248 = vset.pattern.permute.xlu0 5
        %1249 = vperm.xlu0 %1248, %v919
        %v1250 = vpop.permute.xlu0 %1249
        %1252 = vset.pattern.permute.xlu0 5
        %1253 = vperm.xlu0 %1252, %v920
        %v1254 = vpop.permute.xlu0 %1253
        %v1256 = vadd.f32 %v1246, %v1250
        %v1257 = vadd.f32 %v1247, %v1254
        %vm1258 = vcmp.gt.f32.partialorder %v1212, 0.0
        %vm1259 = vcmp.gt.f32.partialorder %v1213, 0.0
        %v1260 = vstv %s924
        %v1261 = vmul.f32 %v1260, %v1212
        %v1262 = vmul.f32 %v1260, %v1213
        %v1263 = vsel %vm1258, %v1212, %v1261
        %v1264 = vsel %vm1259, %v1213, %v1262
        %vm1265 = vcmp.gt.f32.partialorder %v1256, 0.0
        %vm1266 = vcmp.gt.f32.partialorder %v1257, 0.0
        %v1267 = vmul.f32 %v1260, %v1256
        %v1268 = vmul.f32 %v1260, %v1257
        %v1269 = vsel %vm1265, %v1256, %v1267
        %v1270 = vsel %vm1266, %v1257, %v1268
        %v1271 = vadd.f32 %v1263, %v1264
        %v1272 = vrot.slane %v1271, 4
        %v1273 = vadd.f32 %v1271, %v1272
        %v1274 = vrot.slane %v1273, 2
        %v1275 = vadd.f32 %v1273, %v1274
        %v1276 = vrot.slane %v1275, 1
        %v1277 = vadd.f32 %v1275, %v1276
        %v1278 = vmul.f32 %v1263, %v1263
        %v1279 = vmul.f32 %v1264, %v1264
        %v1280 = vadd.f32 %v1278, %v1279
        %v1281 = vrot.slane %v1280, 4
        %v1282 = vadd.f32 %v1280, %v1281
        %v1283 = vrot.slane %v1282, 2
        %v1284 = vadd.f32 %v1282, %v1283
        %v1285 = vrot.slane %v1284, 1
        %v1286 = vadd.f32 %v1284, %v1285
        %v1287 = vadd.f32 %v1269, %v1270
        %v1288 = vrot.slane %v1287, 4
        %v1289 = vadd.f32 %v1287, %v1288
        %v1290 = vrot.slane %v1289, 2
        %v1291 = vadd.f32 %v1289, %v1290
        %v1292 = vrot.slane %v1291, 1
        %v1293 = vadd.f32 %v1291, %v1292
        %v1294 = vadd.f32 %v1277, %v1293
        %v1295 = vmul.f32 %v1269, %v1269
        %v1296 = vmul.f32 %v1270, %v1270
        %v1297 = vadd.f32 %v1295, %v1296
        %v1298 = vrot.slane %v1297, 4
        %v1299 = vadd.f32 %v1297, %v1298
        %v1300 = vrot.slane %v1299, 2
        %v1301 = vadd.f32 %v1299, %v1300
        %v1302 = vrot.slane %v1301, 1
        %v1303 = vadd.f32 %v1301, %v1302
        %v1304 = vadd.f32 %v1286, %v1303
        %v1305 = vsel %vm657, %v1294, %v1304
        %1306 = vmatprep.subr.mxu0 0.0
        %1307 = vmatpush1.msra.mxu0 %v597
        %1308 = vmatprep.subr.mxu0 0.0
        %1309 = vmatpush1.msra.mxu0 %v598
        %1310 = vmatprep.subr.mxu0 0.0
        %1311 = vmatpush1.msra.mxu0 %v599
        %1312 = vmatprep.subr.mxu0 0.0
        %1313 = vmatpush1.msra.mxu0 %v600
        %1314 = vmatprep.subr.mxu0 0.0
        %1315 = vmatpush1.msra.mxu0 %v601
        %1316 = vmatprep.subr.mxu0 0.0
        %1317 = vmatpush1.msra.mxu0 %v602
        %1318 = vmatprep.subr.mxu0 0.0
        %1319 = vmatpush1.msra.mxu0 %v603
        %1320 = vmatprep.subr.mxu0 0.0
        %1321 = vmatpush1.msra.mxu0 %v604
        %1322 = vmatprep.subr.mxu0 0.0
        %1323 = vmatpush1.msra.mxu0 %v605
        %1324 = vmatprep.subr.mxu0 0.0
        %1325 = vmatpush1.msra.mxu0 %v606
        %1326 = vmatprep.subr.mxu0 0.0
        %1327 = vmatpush1.msra.mxu0 %v607
        %1328 = vmatprep.subr.mxu0 0.0
        %1329 = vmatpush1.msra.mxu0 %v608
        %1330 = vmatprep.subr.mxu0 0.0
        %1331 = vmatpush1.msra.mxu0 %v609
        %1332 = vmatprep.subr.mxu0 0.0
        %1333 = vmatpush1.msra.mxu0 %v610
        %1334 = vmatprep.subr.mxu0 0.0
        %1335 = vmatpush1.msra.mxu0 %v611
        %1336 = vmatprep.subr.mxu0 0.0
        %1337 = vmatpush1.msra.mxu0 %v612
        %1338 = vmatprep.subr.mxu0 0.0
        %1339 = vmatpush1.msra.mxu0 0.0
        %1340 = vmatprep.subr.mxu0 0.0
        %1341 = vmatpush1.msra.mxu0 0.0
        %1342 = vmatprep.subr.mxu0 0.0
        %1343 = vmatpush1.msra.mxu0 0.0
        %1344 = vmatprep.subr.mxu0 0.0
        %1345 = vmatpush1.msra.mxu0 0.0
        %1346 = vmatprep.subr.mxu0 0.0
        %1347 = vmatpush1.msra.mxu0 0.0
        %1348 = vmatprep.subr.mxu0 0.0
        %1349 = vmatpush1.msra.mxu0 0.0
        %1350 = vmatprep.subr.mxu0 0.0
        %1351 = vmatpush1.msra.mxu0 0.0
        %1352 = vmatprep.subr.mxu0 0.0
        %1353 = vmatpush1.msra.mxu0 0.0
        %1354 = vmatprep.subr.mxu0 0.0
        %1355 = vmatpush1.msra.mxu0 0.0
        %1356 = vmatprep.subr.mxu0 0.0
        %1357 = vmatpush1.msra.mxu0 0.0
        %1358 = vmatprep.subr.mxu0 0.0
        %1359 = vmatpush1.msra.mxu0 0.0
        %1360 = vmatprep.subr.mxu0 0.0
        %1361 = vmatpush1.msra.mxu0 0.0
        %1362 = vmatprep.subr.mxu0 0.0
        %1363 = vmatpush1.msra.mxu0 0.0
        %1364 = vmatprep.subr.mxu0 0.0
        %1365 = vmatpush1.msra.mxu0 0.0
        %1366 = vmatprep.subr.mxu0 0.0
        %1367 = vmatpush1.msra.mxu0 0.0
        %1368 = vmatprep.subr.mxu0 0.0
        %1369 = vmatpush1.msra.mxu0 0.0
        %1370 = vmatprep.mubr.f32.mxu0 0.0
        %1371 = vmatmul.mubr.f32.gmra.mrb[0].mxu0 %v1305
        %v1372 = vpop.f32.mrb[0].mxu0
        %v1373 = vadd.f32 0.0, %v1372
        %v1374 = vpop.f32.mrb[0].mxu0
        %1375 = vdwg.mxu0
        %v1376 = vmul.f32 %v1373, 0.001953125
        %v1377 = vmul.f32 %v1376, %v1376
        %v1379 = vrot.slane %v1377, 7
        %v1381 = vsub.f32 %v1376, %v1379
        %v1382 = vmax.f32 %v1381, 0.0
        %v1383 = vadd.f32 %v1382, 1e-08
        %v1384 = vrsqrt.pop %v1383
        %v1385 = vlaneseq
        %v1386 = vshrl.u32 %v1385, 7
        %v1387 = vsub.s32 0, %v1386
        %v1388 = vrot.slane %v1376, %v1387
        %v1389 = vsub.f32 %v1263, %v1388
        %v1390 = vsub.f32 %v1264, %v1388
        %v1391 = vlaneseq
        %v1392 = vshrl.u32 %v1391, 7
        %v1393 = vsub.s32 1, %v1392
        %v1394 = vrot.slane %v1384, %v1393
        %v1395 = vmul.f32 %v1389, %v1394
        %v1396 = vmul.f32 %v1390, %v1394
        %1397 = vset.pattern.permute.xlu0 6
        %1398 = vperm.xlu0 %1397, %v919
        %v1399 = vpop.permute.xlu0 %1398
        %1401 = vset.pattern.permute.xlu0 6
        %1402 = vperm.xlu0 %1401, %v920
        %v1403 = vpop.permute.xlu0 %1402
        %v1405 = vmul.f32 %v1395, %v1399
        %v1406 = vmul.f32 %v1396, %v1403
        %1407 = vset.pattern.permute.xlu0 8
        %1408 = vperm.xlu0 %1407, %v919
        %v1409 = vpop.permute.xlu0 %1408
        %1411 = vset.pattern.permute.xlu0 8
        %1412 = vperm.xlu0 %1411, %v920
        %v1413 = vpop.permute.xlu0 %1412
        %v1415 = vadd.f32 %v1405, %v1409
        %v1416 = vadd.f32 %v1406, %v1413
        %v1417 = vsub.f32 %v1269, %v1388
        %v1418 = vsub.f32 %v1270, %v1388
        %v1419 = vmul.f32 %v1417, %v1394
        %v1420 = vmul.f32 %v1418, %v1394
        %1421 = vset.pattern.permute.xlu0 7
        %1422 = vperm.xlu0 %1421, %v919
        %v1423 = vpop.permute.xlu0 %1422
        %1425 = vset.pattern.permute.xlu0 7
        %1426 = vperm.xlu0 %1425, %v920
        %v1427 = vpop.permute.xlu0 %1426
        %v1429 = vmul.f32 %v1419, %v1423
        %v1430 = vmul.f32 %v1420, %v1427
        %1431 = vset.pattern.permute.xlu0 9
        %1432 = vperm.xlu0 %1431, %v919
        %v1433 = vpop.permute.xlu0 %1432
        %1435 = vset.pattern.permute.xlu0 9
        %1436 = vperm.xlu0 %1435, %v920
        %v1437 = vpop.permute.xlu0 %1436
        %v1439 = vadd.f32 %v1429, %v1433
        %v1440 = vadd.f32 %v1430, %v1437
        %1441 = vset.pattern.permute.xlu0 3
        %1442 = vperm.xlu0 %1441, %v919
        %v1443 = vpop.permute.xlu0 %1442
        %1445 = vset.pattern.permute.xlu0 3
        %1446 = vperm.xlu0 %1445, %v920
        %v1447 = vpop.permute.xlu0 %1446
        %v1449 = vadd.f32 %v911, %v1443
        %v1450 = vadd.f32 %v916, %v1447
        %1451 = vrot.lane.b32.xlu0 %v921, 112
        %v1452 = vpop.permute.xlu0 %1451
        %1453 = vrot.lane.b32.xlu0 %v922, 112
        %v1454 = vpop.permute.xlu0 %1453
        %v1455 = vsel %vm935, %v1452, 0
        %v1457 = vsel %vm935, %v1454, 0
        %1459 = vmatprep.subr.mxu0 0.0
        %1460 = vmatpush1.msra.mxu0 %v1415
        %1461 = vmatprep.subr.mxu0 0.0
        %1462 = vmatpush1.msra.mxu0 %v1416
        %1463 = vmatprep.subr.mxu0 0.0
        %1464 = vmatpush1.msra.mxu0 0.0
        %1465 = vmatprep.subr.mxu0 0.0
        %1466 = vmatpush1.msra.mxu0 0.0
        %1467 = vmatprep.subr.mxu0 0.0
        %1468 = vmatpush1.msra.mxu0 0.0
        %1469 = vmatprep.subr.mxu0 0.0
        %1470 = vmatpush1.msra.mxu0 0.0
        %1471 = vmatprep.subr.mxu0 0.0
        %1472 = vmatpush1.msra.mxu0 0.0
        %1473 = vmatprep.subr.mxu0 0.0
        %1474 = vmatpush1.msra.mxu0 0.0
        %1475 = vmatprep.subr.mxu0 0.0
        %1476 = vmatpush1.msra.mxu0 0.0
        %1477 = vmatprep.subr.mxu0 0.0
        %1478 = vmatpush1.msra.mxu0 0.0
        %1479 = vmatprep.subr.mxu0 0.0
        %1480 = vmatpush1.msra.mxu0 0.0
        %1481 = vmatprep.subr.mxu0 0.0
        %1482 = vmatpush1.msra.mxu0 0.0
        %1483 = vmatprep.subr.mxu0 0.0
        %1484 = vmatpush1.msra.mxu0 0.0
        %1485 = vmatprep.subr.mxu0 0.0
        %1486 = vmatpush1.msra.mxu0 0.0
        %1487 = vmatprep.subr.mxu0 0.0
        %1488 = vmatpush1.msra.mxu0 0.0
        %1489 = vmatprep.subr.mxu0 0.0
        %1490 = vmatpush1.msra.mxu0 0.0
        %1491 = vmatprep.subr.mxu0 0.0
        %1492 = vmatpush1.msra.mxu0 0.0
        %1493 = vmatprep.subr.mxu0 0.0
        %1494 = vmatpush1.msra.mxu0 0.0
        %1495 = vmatprep.subr.mxu0 0.0
        %1496 = vmatpush1.msra.mxu0 0.0
        %1497 = vmatprep.subr.mxu0 0.0
        %1498 = vmatpush1.msra.mxu0 0.0
        %1499 = vmatprep.subr.mxu0 0.0
        %1500 = vmatpush1.msra.mxu0 0.0
        %1501 = vmatprep.subr.mxu0 0.0
        %1502 = vmatpush1.msra.mxu0 0.0
        %1503 = vmatprep.subr.mxu0 0.0
        %1504 = vmatpush1.msra.mxu0 0.0
        %1505 = vmatprep.subr.mxu0 0.0
        %1506 = vmatpush1.msra.mxu0 0.0
        %1507 = vmatprep.subr.mxu0 0.0
        %1508 = vmatpush1.msra.mxu0 0.0
        %1509 = vmatprep.subr.mxu0 0.0
        %1510 = vmatpush1.msra.mxu0 0.0
        %1511 = vmatprep.subr.mxu0 0.0
        %1512 = vmatpush1.msra.mxu0 0.0
        %1513 = vmatprep.subr.mxu0 0.0
        %1514 = vmatpush1.msra.mxu0 0.0
        %1515 = vmatprep.subr.mxu0 0.0
        %1516 = vmatpush1.msra.mxu0 0.0
        %1517 = vmatprep.subr.mxu0 0.0
        %1518 = vmatpush1.msra.mxu0 0.0
        %1519 = vmatprep.subr.mxu0 0.0
        %1520 = vmatpush1.msra.mxu0 0.0
        %1521 = vmatprep.subr.mxu0 0.0
        %1522 = vmatpush1.msra.mxu0 0.0
        %1523 = vmatprep.mubr.f32.mxu0 0.0
        %1524 = vmatmul.mubr.f32.gmra.mrb[0].mxu0 %v1455
        %v1525 = vpop.f32.mrb[0].mxu0
        %v1526 = vadd.f32 0.0, %v1525
        %v1527 = vpop.f32.mrb[0].mxu0
        %1528 = vmatprep.mubr.f32.mxu0 0.0
        %1529 = vmatmul.mubr.f32.gmra.mrb[0].mxu0 %v1457
        %v1530 = vpop.f32.mrb[0].mxu0
        %v1531 = vadd.f32 0.0, %v1530
        %v1532 = vpop.f32.mrb[0].mxu0
        %1533 = vdwg.mxu0
        %v1534 = vadd.f32 %v1449, %v1526
        %v1535 = vadd.f32 %v1450, %v1531
        %1536 = vrot.lane.b32.xlu0 %v921, 96
        %v1537 = vpop.permute.xlu0 %1536
        %1538 = vrot.lane.b32.xlu0 %v922, 96
        %v1539 = vpop.permute.xlu0 %1538
        %v1540 = vsel %vm935, %v1537, 0
        %v1542 = vsel %vm935, %v1539, 0
        %1544 = vmatprep.subr.mxu0 0.0
        %1545 = vmatpush1.msra.mxu0 %v1439
        %1546 = vmatprep.subr.mxu0 0.0
        %1547 = vmatpush1.msra.mxu0 %v1440
        %1548 = vmatprep.subr.mxu0 0.0
        %1549 = vmatpush1.msra.mxu0 0.0
        %1550 = vmatprep.subr.mxu0 0.0
        %1551 = vmatpush1.msra.mxu0 0.0
        %1552 = vmatprep.subr.mxu0 0.0
        %1553 = vmatpush1.msra.mxu0 0.0
        %1554 = vmatprep.subr.mxu0 0.0
        %1555 = vmatpush1.msra.mxu0 0.0
        %1556 = vmatprep.subr.mxu0 0.0
        %1557 = vmatpush1.msra.mxu0 0.0
        %1558 = vmatprep.subr.mxu0 0.0
        %1559 = vmatpush1.msra.mxu0 0.0
        %1560 = vmatprep.subr.mxu0 0.0
        %1561 = vmatpush1.msra.mxu0 0.0
        %1562 = vmatprep.subr.mxu0 0.0
        %1563 = vmatpush1.msra.mxu0 0.0
        %1564 = vmatprep.subr.mxu0 0.0
        %1565 = vmatpush1.msra.mxu0 0.0
        %1566 = vmatprep.subr.mxu0 0.0
        %1567 = vmatpush1.msra.mxu0 0.0
        %1568 = vmatprep.subr.mxu0 0.0
        %1569 = vmatpush1.msra.mxu0 0.0
        %1570 = vmatprep.subr.mxu0 0.0
        %1571 = vmatpush1.msra.mxu0 0.0
        %1572 = vmatprep.subr.mxu0 0.0
        %1573 = vmatpush1.msra.mxu0 0.0
        %1574 = vmatprep.subr.mxu0 0.0
        %1575 = vmatpush1.msra.mxu0 0.0
        %1576 = vmatprep.subr.mxu0 0.0
        %1577 = vmatpush1.msra.mxu0 0.0
        %1578 = vmatprep.subr.mxu0 0.0
        %1579 = vmatpush1.msra.mxu0 0.0
        %1580 = vmatprep.subr.mxu0 0.0
        %1581 = vmatpush1.msra.mxu0 0.0
        %1582 = vmatprep.subr.mxu0 0.0
        %1583 = vmatpush1.msra.mxu0 0.0
        %1584 = vmatprep.subr.mxu0 0.0
        %1585 = vmatpush1.msra.mxu0 0.0
        %1586 = vmatprep.subr.mxu0 0.0
        %1587 = vmatpush1.msra.mxu0 0.0
        %1588 = vmatprep.subr.mxu0 0.0
        %1589 = vmatpush1.msra.mxu0 0.0
        %1590 = vmatprep.subr.mxu0 0.0
        %1591 = vmatpush1.msra.mxu0 0.0
        %1592 = vmatprep.subr.mxu0 0.0
        %1593 = vmatpush1.msra.mxu0 0.0
        %1594 = vmatprep.subr.mxu0 0.0
        %1595 = vmatpush1.msra.mxu0 0.0
        %1596 = vmatprep.subr.mxu0 0.0
        %1597 = vmatpush1.msra.mxu0 0.0
        %1598 = vmatprep.subr.mxu0 0.0
        %1599 = vmatpush1.msra.mxu0 0.0
        %1600 = vmatprep.subr.mxu0 0.0
        %1601 = vmatpush1.msra.mxu0 0.0
        %1602 = vmatprep.subr.mxu0 0.0
        %1603 = vmatpush1.msra.mxu0 0.0
        %1604 = vmatprep.subr.mxu0 0.0
        %1605 = vmatpush1.msra.mxu0 0.0
        %1606 = vmatprep.subr.mxu0 0.0
        %1607 = vmatpush1.msra.mxu0 0.0
        %1608 = vmatprep.mubr.f32.mxu0 0.0
        %1609 = vmatmul.mubr.f32.gmra.mrb[0].mxu0 %v1540
        %v1610 = vpop.f32.mrb[0].mxu0
        %v1611 = vadd.f32 0.0, %v1610
        %v1612 = vpop.f32.mrb[0].mxu0
        %1613 = vmatprep.mubr.f32.mxu0 0.0
        %1614 = vmatmul.mubr.f32.gmra.mrb[0].mxu0 %v1542
        %v1615 = vpop.f32.mrb[0].mxu0
        %v1616 = vadd.f32 0.0, %v1615
        %v1617 = vpop.f32.mrb[0].mxu0
        %1618 = vdwg.mxu0
        %v1619 = vadd.f32 %v1534, %v1611
        %v1620 = vadd.f32 %v1535, %v1616
        %s1621 = sld [smem:[#allocation2 + $0x2]]
        %s1622 = sld [smem:[#allocation2 + $0x3]]
        %1623 = vset.pattern.permute.xlu0 16
        %1624 = vperm.xlu0 %1623, %v919
        %v1625 = vpop.permute.xlu0 %1624
        %1627 = vset.pattern.permute.xlu0 16
        %1628 = vperm.xlu0 %1627, %v920
        %v1629 = vpop.permute.xlu0 %1628
        %1631 = vrot.lane.b32.xlu0 %v921, 80
        %v1632 = vpop.permute.xlu0 %1631
        %1633 = vrot.lane.b32.xlu0 %v922, 80
        %v1634 = vpop.permute.xlu0 %1633
        %v1635 = vsel %vm935, %v1632, 0
        %v1637 = vsel %vm935, %v1634, 0
        %1639 = vmatprep.subr.mxu0 0.0
        %1640 = vmatpush1.msra.mxu0 %v1619
        %1641 = vmatprep.subr.mxu0 0.0
        %1642 = vmatpush1.msra.mxu0 %v1620
        %1643 = vmatprep.subr.mxu0 0.0
        %1644 = vmatpush1.msra.mxu0 0.0
        %1645 = vmatprep.subr.mxu0 0.0
        %1646 = vmatpush1.msra.mxu0 0.0
        %1647 = vmatprep.subr.mxu0 0.0
        %1648 = vmatpush1.msra.mxu0 0.0
        %1649 = vmatprep.subr.mxu0 0.0
        %1650 = vmatpush1.msra.mxu0 0.0
        %1651 = vmatprep.subr.mxu0 0.0
        %1652 = vmatpush1.msra.mxu0 0.0
        %1653 = vmatprep.subr.mxu0 0.0
        %1654 = vmatpush1.msra.mxu0 0.0
        %1655 = vmatprep.subr.mxu0 0.0
        %1656 = vmatpush1.msra.mxu0 0.0
        %1657 = vmatprep.subr.mxu0 0.0
        %1658 = vmatpush1.msra.mxu0 0.0
        %1659 = vmatprep.subr.mxu0 0.0
        %1660 = vmatpush1.msra.mxu0 0.0
        %1661 = vmatprep.subr.mxu0 0.0
        %1662 = vmatpush1.msra.mxu0 0.0
        %1663 = vmatprep.subr.mxu0 0.0
        %1664 = vmatpush1.msra.mxu0 0.0
        %1665 = vmatprep.subr.mxu0 0.0
        %1666 = vmatpush1.msra.mxu0 0.0
        %1667 = vmatprep.subr.mxu0 0.0
        %1668 = vmatpush1.msra.mxu0 0.0
        %1669 = vmatprep.subr.mxu0 0.0
        %1670 = vmatpush1.msra.mxu0 0.0
        %1671 = vmatprep.subr.mxu0 0.0
        %1672 = vmatpush1.msra.mxu0 0.0
        %1673 = vmatprep.subr.mxu0 0.0
        %1674 = vmatpush1.msra.mxu0 0.0
        %1675 = vmatprep.subr.mxu0 0.0
        %1676 = vmatpush1.msra.mxu0 0.0
        %1677 = vmatprep.subr.mxu0 0.0
        %1678 = vmatpush1.msra.mxu0 0.0
        %1679 = vmatprep.subr.mxu0 0.0
        %1680 = vmatpush1.msra.mxu0 0.0
        %1681 = vmatprep.subr.mxu0 0.0
        %1682 = vmatpush1.msra.mxu0 0.0
        %1683 = vmatprep.subr.mxu0 0.0
        %1684 = vmatpush1.msra.mxu0 0.0
        %1685 = vmatprep.subr.mxu0 0.0
        %1686 = vmatpush1.msra.mxu0 0.0
        %1687 = vmatprep.subr.mxu0 0.0
        %1688 = vmatpush1.msra.mxu0 0.0
        %1689 = vmatprep.subr.mxu0 0.0
        %1690 = vmatpush1.msra.mxu0 0.0
        %1691 = vmatprep.subr.mxu0 0.0
        %1692 = vmatpush1.msra.mxu0 0.0
        %1693 = vmatprep.subr.mxu0 0.0
        %1694 = vmatpush1.msra.mxu0 0.0
        %1695 = vmatprep.subr.mxu0 0.0
        %1696 = vmatpush1.msra.mxu0 0.0
        %1697 = vmatprep.subr.mxu0 0.0
        %1698 = vmatpush1.msra.mxu0 0.0
        %1699 = vmatprep.subr.mxu0 0.0
        %1700 = vmatpush1.msra.mxu0 0.0
        %1701 = vmatprep.subr.mxu0 0.0
        %1702 = vmatpush1.msra.mxu0 0.0
        %1703 = vmatprep.mubr.f32.mxu0 0.0
        %1704 = vmatmul.mubr.f32.gmra.mrb[0].mxu0 %v1635
        %v1705 = vpop.f32.mrb[0].mxu0
        %v1706 = vadd.f32 %v1625, %v1705
        %v1707 = vpop.f32.mrb[0].mxu0
        %1708 = vmatprep.mubr.f32.mxu0 0.0
        %1709 = vmatmul.mubr.f32.gmra.mrb[0].mxu0 %v1637
        %v1710 = vpop.f32.mrb[0].mxu0
        %v1711 = vadd.f32 %v1629, %v1710
        %v1712 = vpop.f32.mrb[0].mxu0
        %1713 = vdwg.mxu0
        %vm1714 = vcmp.gt.f32.partialorder %v1706, 0.0
        %vm1715 = vcmp.gt.f32.partialorder %v1711, 0.0
        %v1716 = vstv %s1621
        %v1717 = vmul.f32 %v1716, %v1706
        %v1718 = vmul.f32 %v1716, %v1711
        %v1719 = vsel %vm1714, %v1706, %v1717
        %v1720 = vsel %vm1715, %v1711, %v1718
        %v1721 = vadd.f32 %v1719, %v1720
        %v1722 = vrot.slane %v1721, 4
        %v1723 = vadd.f32 %v1721, %v1722
        %v1724 = vrot.slane %v1723, 2
        %v1725 = vadd.f32 %v1723, %v1724
        %v1726 = vrot.slane %v1725, 1
        %v1727 = vadd.f32 %v1725, %v1726
        %v1728 = vmul.f32 %v1719, %v1719
        %v1729 = vmul.f32 %v1720, %v1720
        %v1730 = vadd.f32 %v1728, %v1729
        %v1731 = vrot.slane %v1730, 4
        %v1732 = vadd.f32 %v1730, %v1731
        %v1733 = vrot.slane %v1732, 2
        %v1734 = vadd.f32 %v1732, %v1733
        %v1735 = vrot.slane %v1734, 1
        %v1736 = vadd.f32 %v1734, %v1735
        %v1737 = vsel %vm657, %v1727, %v1736
        %1738 = vmatprep.subr.mxu0 0.0
        %1739 = vmatpush1.msra.mxu0 %v597
        %1740 = vmatprep.subr.mxu0 0.0
        %1741 = vmatpush1.msra.mxu0 %v598
        %1742 = vmatprep.subr.mxu0 0.0
        %1743 = vmatpush1.msra.mxu0 %v599
        %1744 = vmatprep.subr.mxu0 0.0
        %1745 = vmatpush1.msra.mxu0 %v600
        %1746 = vmatprep.subr.mxu0 0.0
        %1747 = vmatpush1.msra.mxu0 %v601
        %1748 = vmatprep.subr.mxu0 0.0
        %1749 = vmatpush1.msra.mxu0 %v602
        %1750 = vmatprep.subr.mxu0 0.0
        %1751 = vmatpush1.msra.mxu0 %v603
        %1752 = vmatprep.subr.mxu0 0.0
        %1753 = vmatpush1.msra.mxu0 %v604
        %1754 = vmatprep.subr.mxu0 0.0
        %1755 = vmatpush1.msra.mxu0 %v605
        %1756 = vmatprep.subr.mxu0 0.0
        %1757 = vmatpush1.msra.mxu0 %v606
        %1758 = vmatprep.subr.mxu0 0.0
        %1759 = vmatpush1.msra.mxu0 %v607
        %1760 = vmatprep.subr.mxu0 0.0
        %1761 = vmatpush1.msra.mxu0 %v608
        %1762 = vmatprep.subr.mxu0 0.0
        %1763 = vmatpush1.msra.mxu0 %v609
        %1764 = vmatprep.subr.mxu0 0.0
        %1765 = vmatpush1.msra.mxu0 %v610
        %1766 = vmatprep.subr.mxu0 0.0
        %1767 = vmatpush1.msra.mxu0 %v611
        %1768 = vmatprep.subr.mxu0 0.0
        %1769 = vmatpush1.msra.mxu0 %v612
        %1770 = vmatprep.subr.mxu0 0.0
        %1771 = vmatpush1.msra.mxu0 0.0
        %1772 = vmatprep.subr.mxu0 0.0
        %1773 = vmatpush1.msra.mxu0 0.0
        %1774 = vmatprep.subr.mxu0 0.0
        %1775 = vmatpush1.msra.mxu0 0.0
        %1776 = vmatprep.subr.mxu0 0.0
        %1777 = vmatpush1.msra.mxu0 0.0
        %1778 = vmatprep.subr.mxu0 0.0
        %1779 = vmatpush1.msra.mxu0 0.0
        %1780 = vmatprep.subr.mxu0 0.0
        %1781 = vmatpush1.msra.mxu0 0.0
        %1782 = vmatprep.subr.mxu0 0.0
        %1783 = vmatpush1.msra.mxu0 0.0
        %1784 = vmatprep.subr.mxu0 0.0
        %1785 = vmatpush1.msra.mxu0 0.0
        %1786 = vmatprep.subr.mxu0 0.0
        %1787 = vmatpush1.msra.mxu0 0.0
        %1788 = vmatprep.subr.mxu0 0.0
        %1789 = vmatpush1.msra.mxu0 0.0
        %1790 = vmatprep.subr.mxu0 0.0
        %1791 = vmatpush1.msra.mxu0 0.0
        %1792 = vmatprep.subr.mxu0 0.0
        %1793 = vmatpush1.msra.mxu0 0.0
        %1794 = vmatprep.subr.mxu0 0.0
        %1795 = vmatpush1.msra.mxu0 0.0
        %1796 = vmatprep.subr.mxu0 0.0
        %1797 = vmatpush1.msra.mxu0 0.0
        %1798 = vmatprep.subr.mxu0 0.0
        %1799 = vmatpush1.msra.mxu0 0.0
        %1800 = vmatprep.subr.mxu0 0.0
        %1801 = vmatpush1.msra.mxu0 0.0
        %1802 = vmatprep.mubr.f32.mxu0 0.0
        %1803 = vmatmul.mubr.f32.gmra.mrb[0].mxu0 %v1737
        %v1804 = vpop.f32.mrb[0].mxu0
        %v1805 = vadd.f32 0.0, %v1804
        %v1806 = vpop.f32.mrb[0].mxu0
        %1807 = vdwg.mxu0
        %v1808 = vmul.f32 %v1805, 0.00390625
        %v1809 = vmul.f32 %v1808, %v1808
        %v1811 = vrot.slane %v1809, 7
        %v1813 = vsub.f32 %v1808, %v1811
        %v1814 = vmax.f32 %v1813, 0.0
        %v1815 = vadd.f32 %v1814, 1e-08
        %v1816 = vrsqrt.pop %v1815
        %v1817 = vlaneseq
        %v1818 = vshrl.u32 %v1817, 7
        %v1819 = vsub.s32 0, %v1818
        %v1820 = vrot.slane %v1808, %v1819
        %v1821 = vsub.f32 %v1719, %v1820
        %v1822 = vsub.f32 %v1720, %v1820
        %v1823 = vlaneseq
        %v1824 = vshrl.u32 %v1823, 7
        %v1825 = vsub.s32 1, %v1824
        %v1826 = vrot.slane %v1816, %v1825
        %v1827 = vmul.f32 %v1821, %v1826
        %v1828 = vmul.f32 %v1822, %v1826
        %1829 = vset.pattern.permute.xlu0 17
        %1830 = vperm.xlu0 %1829, %v919
        %v1831 = vpop.permute.xlu0 %1830
        %1833 = vset.pattern.permute.xlu0 17
        %1834 = vperm.xlu0 %1833, %v920
        %v1835 = vpop.permute.xlu0 %1834
        %v1837 = vmul.f32 %v1827, %v1831
        %v1838 = vmul.f32 %v1828, %v1835
        %1839 = vset.pattern.permute.xlu0 18
        %1840 = vperm.xlu0 %1839, %v919
        %v1841 = vpop.permute.xlu0 %1840
        %1843 = vset.pattern.permute.xlu0 18
        %1844 = vperm.xlu0 %1843, %v920
        %v1845 = vpop.permute.xlu0 %1844
        %v1847 = vadd.f32 %v1837, %v1841
        %v1848 = vadd.f32 %v1838, %v1845
        %vm1849 = vcmp.ge.s32.totalorder %v613, 2
        %1850 = vrot.lane.b32.xlu0 %v1847, 2
        %v1851 = vpop.permute.xlu0 %1850
        %1852 = vrot.lane.b32.xlu0 %v1848, 2
        %v1853 = vpop.permute.xlu0 %1852
        %v1854 = vsel %vm1849, 1, 0
        %vm1855 = vcmp.eq.s32.totalorder %v1854, 1
        %v1856 = vsel %vm1855, %v1851, 0.0
        %v1857 = vsel %vm1855, %v1853, 0.0
        %vm1858 = vcmp.lt.s32.totalorder %v613, 14
        %1859 = vrot.lane.b32.xlu0 %v1847, 126
        %v1860 = vpop.permute.xlu0 %1859
        %1861 = vrot.lane.b32.xlu0 %v1848, 126
        %v1862 = vpop.permute.xlu0 %1861
        %v1863 = vsel %vm1858, 1, 0
        %vm1864 = vcmp.eq.s32.totalorder %v1863, 1
        %v1865 = vsel %vm1864, %v1860, 0.0
        %v1866 = vsel %vm1864, %v1862, 0.0
        %1867 = vset.pattern.permute.xlu0 26
        %1868 = vperm.xlu0 %1867, %v919
        %v1869 = vpop.permute.xlu0 %1868
        %1871 = vset.pattern.permute.xlu0 26
        %1872 = vperm.xlu0 %1871, %v920
        %v1873 = vpop.permute.xlu0 %1872
        %v1875 = vmul.f32 %v1869, %v1856
        %v1876 = vmul.f32 %v1873, %v1857
        %1877 = vset.pattern.permute.xlu0 27
        %1878 = vperm.xlu0 %1877, %v919
        %v1879 = vpop.permute.xlu0 %1878
        %1881 = vset.pattern.permute.xlu0 27
        %1882 = vperm.xlu0 %1881, %v920
        %v1883 = vpop.permute.xlu0 %1882
        %v1885 = vmul.f32 %v1879, %v1847
        %v1886 = vmul.f32 %v1883, %v1848
        %v1887 = vadd.f32 %v1875, %v1885
        %v1888 = vadd.f32 %v1876, %v1886
        %1889 = vset.pattern.permute.xlu0 28
        %1890 = vperm.xlu0 %1889, %v919
        %v1891 = vpop.permute.xlu0 %1890
        %1893 = vset.pattern.permute.xlu0 28
        %1894 = vperm.xlu0 %1893, %v920
        %v1895 = vpop.permute.xlu0 %1894
        %v1897 = vmul.f32 %v1891, %v1865
        %v1898 = vmul.f32 %v1895, %v1866
        %v1899 = vadd.f32 %v1887, %v1897
        %v1900 = vadd.f32 %v1888, %v1898
        %1901 = vset.pattern.permute.xlu0 20
        %1902 = vperm.xlu0 %1901, %v919
        %v1903 = vpop.permute.xlu0 %1902
        %1905 = vset.pattern.permute.xlu0 20
        %1906 = vperm.xlu0 %1905, %v920
        %v1907 = vpop.permute.xlu0 %1906
        %v1909 = vadd.f32 %v1899, %v1903
        %v1910 = vadd.f32 %v1900, %v1907
        %1911 = vset.pattern.permute.xlu0 29
        %1912 = vperm.xlu0 %1911, %v919
        %v1913 = vpop.permute.xlu0 %1912
        %1915 = vset.pattern.permute.xlu0 29
        %1916 = vperm.xlu0 %1915, %v920
        %v1917 = vpop.permute.xlu0 %1916
        %v1919 = vmul.f32 %v1913, %v1856
        %v1920 = vmul.f32 %v1917, %v1857
        %1921 = vset.pattern.permute.xlu0 30
        %1922 = vperm.xlu0 %1921, %v919
        %v1923 = vpop.permute.xlu0 %1922
        %1925 = vset.pattern.permute.xlu0 30
        %1926 = vperm.xlu0 %1925, %v920
        %v1927 = vpop.permute.xlu0 %1926
        %v1929 = vmul.f32 %v1923, %v1847
        %v1930 = vmul.f32 %v1927, %v1848
        %v1931 = vadd.f32 %v1919, %v1929
        %v1932 = vadd.f32 %v1920, %v1930
        %1933 = vset.pattern.permute.xlu0 31
        %1934 = vperm.xlu0 %1933, %v919
        %v1935 = vpop.permute.xlu0 %1934
        %1937 = vset.pattern.permute.xlu0 31
        %1938 = vperm.xlu0 %1937, %v920
        %v1939 = vpop.permute.xlu0 %1938
        %v1941 = vmul.f32 %v1935, %v1865
        %v1942 = vmul.f32 %v1939, %v1866
        %v1943 = vadd.f32 %v1931, %v1941
        %v1944 = vadd.f32 %v1932, %v1942
        %1945 = vset.pattern.permute.xlu0 21
        %1946 = vperm.xlu0 %1945, %v919
        %v1947 = vpop.permute.xlu0 %1946
        %1949 = vset.pattern.permute.xlu0 21
        %1950 = vperm.xlu0 %1949, %v920
        %v1951 = vpop.permute.xlu0 %1950
        %v1953 = vadd.f32 %v1943, %v1947
        %v1954 = vadd.f32 %v1944, %v1951
        %vm1955 = vcmp.gt.f32.partialorder %v1909, 0.0
        %vm1956 = vcmp.gt.f32.partialorder %v1910, 0.0
        %v1957 = vstv %s1622
        %v1958 = vmul.f32 %v1957, %v1909
        %v1959 = vmul.f32 %v1957, %v1910
        %v1960 = vsel %vm1955, %v1909, %v1958
        %v1961 = vsel %vm1956, %v1910, %v1959
        %vm1962 = vcmp.gt.f32.partialorder %v1953, 0.0
        %vm1963 = vcmp.gt.f32.partialorder %v1954, 0.0
        %v1964 = vmul.f32 %v1957, %v1953
        %v1965 = vmul.f32 %v1957, %v1954
        %v1966 = vsel %vm1962, %v1953, %v1964
        %v1967 = vsel %vm1963, %v1954, %v1965
        %v1968 = vadd.f32 %v1960, %v1961
        %v1969 = vrot.slane %v1968, 4
        %v1970 = vadd.f32 %v1968, %v1969
        %v1971 = vrot.slane %v1970, 2
        %v1972 = vadd.f32 %v1970, %v1971
        %v1973 = vrot.slane %v1972, 1
        %v1974 = vadd.f32 %v1972, %v1973
        %v1975 = vmul.f32 %v1960, %v1960
        %v1976 = vmul.f32 %v1961, %v1961
        %v1977 = vadd.f32 %v1975, %v1976
        %v1978 = vrot.slane %v1977, 4
        %v1979 = vadd.f32 %v1977, %v1978
        %v1980 = vrot.slane %v1979, 2
        %v1981 = vadd.f32 %v1979, %v1980
        %v1982 = vrot.slane %v1981, 1
        %v1983 = vadd.f32 %v1981, %v1982
        %v1984 = vadd.f32 %v1966, %v1967
        %v1985 = vrot.slane %v1984, 4
        %v1986 = vadd.f32 %v1984, %v1985
        %v1987 = vrot.slane %v1986, 2
        %v1988 = vadd.f32 %v1986, %v1987
        %v1989 = vrot.slane %v1988, 1
        %v1990 = vadd.f32 %v1988, %v1989
        %v1991 = vadd.f32 %v1974, %v1990
        %v1992 = vmul.f32 %v1966, %v1966
        %v1993 = vmul.f32 %v1967, %v1967
        %v1994 = vadd.f32 %v1992, %v1993
        %v1995 = vrot.slane %v1994, 4
        %v1996 = vadd.f32 %v1994, %v1995
        %v1997 = vrot.slane %v1996, 2
        %v1998 = vadd.f32 %v1996, %v1997
        %v1999 = vrot.slane %v1998, 1
        %v2000 = vadd.f32 %v1998, %v1999
        %v2001 = vadd.f32 %v1983, %v2000
        %v2002 = vsel %vm657, %v1991, %v2001
        %2003 = vmatprep.subr.mxu0 0.0
        %2004 = vmatpush1.msra.mxu0 %v597
        %2005 = vmatprep.subr.mxu0 0.0
        %2006 = vmatpush1.msra.mxu0 %v598
        %2007 = vmatprep.subr.mxu0 0.0
        %2008 = vmatpush1.msra.mxu0 %v599
        %2009 = vmatprep.subr.mxu0 0.0
        %2010 = vmatpush1.msra.mxu0 %v600
        %2011 = vmatprep.subr.mxu0 0.0
        %2012 = vmatpush1.msra.mxu0 %v601
        %2013 = vmatprep.subr.mxu0 0.0
        %2014 = vmatpush1.msra.mxu0 %v602
        %2015 = vmatprep.subr.mxu0 0.0
        %2016 = vmatpush1.msra.mxu0 %v603
        %2017 = vmatprep.subr.mxu0 0.0
        %2018 = vmatpush1.msra.mxu0 %v604
        %2019 = vmatprep.subr.mxu0 0.0
        %2020 = vmatpush1.msra.mxu0 %v605
        %2021 = vmatprep.subr.mxu0 0.0
        %2022 = vmatpush1.msra.mxu0 %v606
        %2023 = vmatprep.subr.mxu0 0.0
        %2024 = vmatpush1.msra.mxu0 %v607
        %2025 = vmatprep.subr.mxu0 0.0
        %2026 = vmatpush1.msra.mxu0 %v608
        %2027 = vmatprep.subr.mxu0 0.0
        %2028 = vmatpush1.msra.mxu0 %v609
        %2029 = vmatprep.subr.mxu0 0.0
        %2030 = vmatpush1.msra.mxu0 %v610
        %2031 = vmatprep.subr.mxu0 0.0
        %2032 = vmatpush1.msra.mxu0 %v611
        %2033 = vmatprep.subr.mxu0 0.0
        %2034 = vmatpush1.msra.mxu0 %v612
        %2035 = vmatprep.subr.mxu0 0.0
        %2036 = vmatpush1.msra.mxu0 0.0
        %2037 = vmatprep.subr.mxu0 0.0
        %2038 = vmatpush1.msra.mxu0 0.0
        %2039 = vmatprep.subr.mxu0 0.0
        %2040 = vmatpush1.msra.mxu0 0.0
        %2041 = vmatprep.subr.mxu0 0.0
        %2042 = vmatpush1.msra.mxu0 0.0
        %2043 = vmatprep.subr.mxu0 0.0
        %2044 = vmatpush1.msra.mxu0 0.0
        %2045 = vmatprep.subr.mxu0 0.0
        %2046 = vmatpush1.msra.mxu0 0.0
        %2047 = vmatprep.subr.mxu0 0.0
        %2048 = vmatpush1.msra.mxu0 0.0
        %2049 = vmatprep.subr.mxu0 0.0
        %2050 = vmatpush1.msra.mxu0 0.0
        %2051 = vmatprep.subr.mxu0 0.0
        %2052 = vmatpush1.msra.mxu0 0.0
        %2053 = vmatprep.subr.mxu0 0.0
        %2054 = vmatpush1.msra.mxu0 0.0
        %2055 = vmatprep.subr.mxu0 0.0
        %2056 = vmatpush1.msra.mxu0 0.0
        %2057 = vmatprep.subr.mxu0 0.0
        %2058 = vmatpush1.msra.mxu0 0.0
        %2059 = vmatprep.subr.mxu0 0.0
        %2060 = vmatpush1.msra.mxu0 0.0
        %2061 = vmatprep.subr.mxu0 0.0
        %2062 = vmatpush1.msra.mxu0 0.0
        %2063 = vmatprep.subr.mxu0 0.0
        %2064 = vmatpush1.msra.mxu0 0.0
        %2065 = vmatprep.subr.mxu0 0.0
        %2066 = vmatpush1.msra.mxu0 0.0
        %2067 = vmatprep.mubr.f32.mxu0 0.0
        %2068 = vmatmul.mubr.f32.gmra.mrb[0].mxu0 %v2002
        %v2069 = vpop.f32.mrb[0].mxu0
        %v2070 = vadd.f32 0.0, %v2069
        %v2071 = vpop.f32.mrb[0].mxu0
        %2072 = vdwg.mxu0
        %v2073 = vmul.f32 %v2070, 0.001953125
        %v2074 = vmul.f32 %v2073, %v2073
        %v2076 = vrot.slane %v2074, 7
        %v2078 = vsub.f32 %v2073, %v2076
        %v2079 = vmax.f32 %v2078, 0.0
        %v2080 = vadd.f32 %v2079, 1e-08
        %v2081 = vrsqrt.pop %v2080
        %v2082 = vlaneseq
        %v2083 = vshrl.u32 %v2082, 7
        %v2084 = vsub.s32 0, %v2083
        %v2085 = vrot.slane %v2073, %v2084
        %v2086 = vsub.f32 %v1960, %v2085
        %v2087 = vsub.f32 %v1961, %v2085
        %v2088 = vlaneseq
        %v2089 = vshrl.u32 %v2088, 7
        %v2090 = vsub.s32 1, %v2089
        %v2091 = vrot.slane %v2081, %v2090
        %v2092 = vmul.f32 %v2086, %v2091
        %v2093 = vmul.f32 %v2087, %v2091
        %2094 = vset.pattern.permute.xlu0 22
        %2095 = vperm.xlu0 %2094, %v919
        %v2096 = vpop.permute.xlu0 %2095
        %2098 = vset.pattern.permute.xlu0 22
        %2099 = vperm.xlu0 %2098, %v920
        %v2100 = vpop.permute.xlu0 %2099
        %v2102 = vmul.f32 %v2092, %v2096
        %v2103 = vmul.f32 %v2093, %v2100
        %2104 = vset.pattern.permute.xlu0 24
        %2105 = vperm.xlu0 %2104, %v919
        %v2106 = vpop.permute.xlu0 %2105
        %2108 = vset.pattern.permute.xlu0 24
        %2109 = vperm.xlu0 %2108, %v920
        %v2110 = vpop.permute.xlu0 %2109
        %v2112 = vadd.f32 %v2102, %v2106
        %v2113 = vadd.f32 %v2103, %v2110
        %v2114 = vsub.f32 %v1966, %v2085
        %v2115 = vsub.f32 %v1967, %v2085
        %v2116 = vmul.f32 %v2114, %v2091
        %v2117 = vmul.f32 %v2115, %v2091
        %2118 = vset.pattern.permute.xlu0 23
        %2119 = vperm.xlu0 %2118, %v919
        %v2120 = vpop.permute.xlu0 %2119
        %2122 = vset.pattern.permute.xlu0 23
        %2123 = vperm.xlu0 %2122, %v920
        %v2124 = vpop.permute.xlu0 %2123
        %v2126 = vmul.f32 %v2116, %v2120
        %v2127 = vmul.f32 %v2117, %v2124
        %2128 = vset.pattern.permute.xlu0 25
        %2129 = vperm.xlu0 %2128, %v919
        %v2130 = vpop.permute.xlu0 %2129
        %2132 = vset.pattern.permute.xlu0 25
        %2133 = vperm.xlu0 %2132, %v920
        %v2134 = vpop.permute.xlu0 %2133
        %v2136 = vadd.f32 %v2126, %v2130
        %v2137 = vadd.f32 %v2127, %v2134
        %2138 = vset.pattern.permute.xlu0 19
        %2139 = vperm.xlu0 %2138, %v919
        %v2140 = vpop.permute.xlu0 %2139
        %2142 = vset.pattern.permute.xlu0 19
        %2143 = vperm.xlu0 %2142, %v920
        %v2144 = vpop.permute.xlu0 %2143
        %v2146 = vadd.f32 %v1619, %v2140
        %v2147 = vadd.f32 %v1620, %v2144
        %2148 = vrot.lane.b32.xlu0 %v921, 64
        %v2149 = vpop.permute.xlu0 %2148
        %2150 = vrot.lane.b32.xlu0 %v922, 64
        %v2151 = vpop.permute.xlu0 %2150
        %v2152 = vsel %vm935, %v2149, 0
        %v2154 = vsel %vm935, %v2151, 0
        %2156 = vmatprep.subr.mxu0 0.0
        %2157 = vmatpush1.msra.mxu0 %v2112
        %2158 = vmatprep.subr.mxu0 0.0
        %2159 = vmatpush1.msra.mxu0 %v2113
        %2160 = vmatprep.subr.mxu0 0.0
        %2161 = vmatpush1.msra.mxu0 0.0
        %2162 = vmatprep.subr.mxu0 0.0
        %2163 = vmatpush1.msra.mxu0 0.0
        %2164 = vmatprep.subr.mxu0 0.0
        %2165 = vmatpush1.msra.mxu0 0.0
        %2166 = vmatprep.subr.mxu0 0.0
        %2167 = vmatpush1.msra.mxu0 0.0
        %2168 = vmatprep.subr.mxu0 0.0
        %2169 = vmatpush1.msra.mxu0 0.0
        %2170 = vmatprep.subr.mxu0 0.0
        %2171 = vmatpush1.msra.mxu0 0.0
        %2172 = vmatprep.subr.mxu0 0.0
        %2173 = vmatpush1.msra.mxu0 0.0
        %2174 = vmatprep.subr.mxu0 0.0
        %2175 = vmatpush1.msra.mxu0 0.0
        %2176 = vmatprep.subr.mxu0 0.0
        %2177 = vmatpush1.msra.mxu0 0.0
        %2178 = vmatprep.subr.mxu0 0.0
        %2179 = vmatpush1.msra.mxu0 0.0
        %2180 = vmatprep.subr.mxu0 0.0
        %2181 = vmatpush1.msra.mxu0 0.0
        %2182 = vmatprep.subr.mxu0 0.0
        %2183 = vmatpush1.msra.mxu0 0.0
        %2184 = vmatprep.subr.mxu0 0.0
        %2185 = vmatpush1.msra.mxu0 0.0
        %2186 = vmatprep.subr.mxu0 0.0
        %2187 = vmatpush1.msra.mxu0 0.0
        %2188 = vmatprep.subr.mxu0 0.0
        %2189 = vmatpush1.msra.mxu0 0.0
        %2190 = vmatprep.subr.mxu0 0.0
        %2191 = vmatpush1.msra.mxu0 0.0
        %2192 = vmatprep.subr.mxu0 0.0
        %2193 = vmatpush1.msra.mxu0 0.0
        %2194 = vmatprep.subr.mxu0 0.0
        %2195 = vmatpush1.msra.mxu0 0.0
        %2196 = vmatprep.subr.mxu0 0.0
        %2197 = vmatpush1.msra.mxu0 0.0
        %2198 = vmatprep.subr.mxu0 0.0
        %2199 = vmatpush1.msra.mxu0 0.0
        %2200 = vmatprep.subr.mxu0 0.0
        %2201 = vmatpush1.msra.mxu0 0.0
        %2202 = vmatprep.subr.mxu0 0.0
        %2203 = vmatpush1.msra.mxu0 0.0
        %2204 = vmatprep.subr.mxu0 0.0
        %2205 = vmatpush1.msra.mxu0 0.0
        %2206 = vmatprep.subr.mxu0 0.0
        %2207 = vmatpush1.msra.mxu0 0.0
        %2208 = vmatprep.subr.mxu0 0.0
        %2209 = vmatpush1.msra.mxu0 0.0
        %2210 = vmatprep.subr.mxu0 0.0
        %2211 = vmatpush1.msra.mxu0 0.0
        %2212 = vmatprep.subr.mxu0 0.0
        %2213 = vmatpush1.msra.mxu0 0.0
        %2214 = vmatprep.subr.mxu0 0.0
        %2215 = vmatpush1.msra.mxu0 0.0
        %2216 = vmatprep.subr.mxu0 0.0
        %2217 = vmatpush1.msra.mxu0 0.0
        %2218 = vmatprep.subr.mxu0 0.0
        %2219 = vmatpush1.msra.mxu0 0.0
        %2220 = vmatprep.mubr.f32.mxu0 0.0
        %2221 = vmatmul.mubr.f32.gmra.mrb[0].mxu0 %v2152
        %v2222 = vpop.f32.mrb[0].mxu0
        %v2223 = vadd.f32 0.0, %v2222
        %v2224 = vpop.f32.mrb[0].mxu0
        %2225 = vmatprep.mubr.f32.mxu0 0.0
        %2226 = vmatmul.mubr.f32.gmra.mrb[0].mxu0 %v2154
        %v2227 = vpop.f32.mrb[0].mxu0
        %v2228 = vadd.f32 0.0, %v2227
        %v2229 = vpop.f32.mrb[0].mxu0
        %2230 = vdwg.mxu0
        %v2231 = vadd.f32 %v2146, %v2223
        %v2232 = vadd.f32 %v2147, %v2228
        %2233 = vrot.lane.b32.xlu0 %v921, 48
        %v2234 = vpop.permute.xlu0 %2233
        %2235 = vrot.lane.b32.xlu0 %v922, 48
        %v2236 = vpop.permute.xlu0 %2235
        %v2237 = vsel %vm935, %v2234, 0
        %v2239 = vsel %vm935, %v2236, 0
        %2241 = vmatprep.subr.mxu0 0.0
        %2242 = vmatpush1.msra.mxu0 %v2136
        %2243 = vmatprep.subr.mxu0 0.0
        %2244 = vmatpush1.msra.mxu0 %v2137
        %2245 = vmatprep.subr.mxu0 0.0
        %2246 = vmatpush1.msra.mxu0 0.0
        %2247 = vmatprep.subr.mxu0 0.0
        %2248 = vmatpush1.msra.mxu0 0.0
        %2249 = vmatprep.subr.mxu0 0.0
        %2250 = vmatpush1.msra.mxu0 0.0
        %2251 = vmatprep.subr.mxu0 0.0
        %2252 = vmatpush1.msra.mxu0 0.0
        %2253 = vmatprep.subr.mxu0 0.0
        %2254 = vmatpush1.msra.mxu0 0.0
        %2255 = vmatprep.subr.mxu0 0.0
        %2256 = vmatpush1.msra.mxu0 0.0
        %2257 = vmatprep.subr.mxu0 0.0
        %2258 = vmatpush1.msra.mxu0 0.0
        %2259 = vmatprep.subr.mxu0 0.0
        %2260 = vmatpush1.msra.mxu0 0.0
        %2261 = vmatprep.subr.mxu0 0.0
        %2262 = vmatpush1.msra.mxu0 0.0
        %2263 = vmatprep.subr.mxu0 0.0
        %2264 = vmatpush1.msra.mxu0 0.0
        %2265 = vmatprep.subr.mxu0 0.0
        %2266 = vmatpush1.msra.mxu0 0.0
        %2267 = vmatprep.subr.mxu0 0.0
        %2268 = vmatpush1.msra.mxu0 0.0
        %2269 = vmatprep.subr.mxu0 0.0
        %2270 = vmatpush1.msra.mxu0 0.0
        %2271 = vmatprep.subr.mxu0 0.0
        %2272 = vmatpush1.msra.mxu0 0.0
        %2273 = vmatprep.subr.mxu0 0.0
        %2274 = vmatpush1.msra.mxu0 0.0
        %2275 = vmatprep.subr.mxu0 0.0
        %2276 = vmatpush1.msra.mxu0 0.0
        %2277 = vmatprep.subr.mxu0 0.0
        %2278 = vmatpush1.msra.mxu0 0.0
        %2279 = vmatprep.subr.mxu0 0.0
        %2280 = vmatpush1.msra.mxu0 0.0
        %2281 = vmatprep.subr.mxu0 0.0
        %2282 = vmatpush1.msra.mxu0 0.0
        %2283 = vmatprep.subr.mxu0 0.0
        %2284 = vmatpush1.msra.mxu0 0.0
        %2285 = vmatprep.subr.mxu0 0.0
        %2286 = vmatpush1.msra.mxu0 0.0
        %2287 = vmatprep.subr.mxu0 0.0
        %2288 = vmatpush1.msra.mxu0 0.0
        %2289 = vmatprep.subr.mxu0 0.0
        %2290 = vmatpush1.msra.mxu0 0.0
        %2291 = vmatprep.subr.mxu0 0.0
        %2292 = vmatpush1.msra.mxu0 0.0
        %2293 = vmatprep.subr.mxu0 0.0
        %2294 = vmatpush1.msra.mxu0 0.0
        %2295 = vmatprep.subr.mxu0 0.0
        %2296 = vmatpush1.msra.mxu0 0.0
        %2297 = vmatprep.subr.mxu0 0.0
        %2298 = vmatpush1.msra.mxu0 0.0
        %2299 = vmatprep.subr.mxu0 0.0
        %2300 = vmatpush1.msra.mxu0 0.0
        %2301 = vmatprep.subr.mxu0 0.0
        %2302 = vmatpush1.msra.mxu0 0.0
        %2303 = vmatprep.subr.mxu0 0.0
        %2304 = vmatpush1.msra.mxu0 0.0
        %2305 = vmatprep.mubr.f32.mxu0 0.0
        %2306 = vmatmul.mubr.f32.gmra.mrb[0].mxu0 %v2237
        %v2307 = vpop.f32.mrb[0].mxu0
        %v2308 = vadd.f32 0.0, %v2307
        %v2309 = vpop.f32.mrb[0].mxu0
        %2310 = vmatprep.mubr.f32.mxu0 0.0
        %2311 = vmatmul.mubr.f32.gmra.mrb[0].mxu0 %v2239
        %v2312 = vpop.f32.mrb[0].mxu0
        %v2313 = vadd.f32 0.0, %v2312
        %v2314 = vpop.f32.mrb[0].mxu0
        %2315 = vdwg.mxu0
        %v2316 = vadd.f32 %v2231, %v2308
        %v2317 = vadd.f32 %v2232, %v2313
        %v2318 = vld [vmem:[%s7 + $0x8] sm:$0xff]
        %v2319 = vld [vmem:[%s7 + $0x18] sm:$0xff]
        %s2320 = sld [smem:[#allocation2 + $0x4]]
        %s2321 = sld [smem:[#allocation2 + $0x5]]
        %2322 = vset.pattern.permute.xlu0 32
        %2323 = vperm.xlu0 %2322, %v919
        %v2324 = vpop.permute.xlu0 %2323
        %2326 = vset.pattern.permute.xlu0 32
        %2327 = vperm.xlu0 %2326, %v920
        %v2328 = vpop.permute.xlu0 %2327
        %2330 = vrot.lane.b32.xlu0 %v921, 32
        %v2331 = vpop.permute.xlu0 %2330
        %2332 = vrot.lane.b32.xlu0 %v922, 32
        %v2333 = vpop.permute.xlu0 %2332
        %v2334 = vsel %vm935, %v2331, 0
        %v2336 = vsel %vm935, %v2333, 0
        %2338 = vmatprep.subr.mxu0 0.0
        %2339 = vmatpush1.msra.mxu0 %v2316
        %2340 = vmatprep.subr.mxu0 0.0
        %2341 = vmatpush1.msra.mxu0 %v2317
        %2342 = vmatprep.subr.mxu0 0.0
        %2343 = vmatpush1.msra.mxu0 0.0
        %2344 = vmatprep.subr.mxu0 0.0
        %2345 = vmatpush1.msra.mxu0 0.0
        %2346 = vmatprep.subr.mxu0 0.0
        %2347 = vmatpush1.msra.mxu0 0.0
        %2348 = vmatprep.subr.mxu0 0.0
        %2349 = vmatpush1.msra.mxu0 0.0
        %2350 = vmatprep.subr.mxu0 0.0
        %2351 = vmatpush1.msra.mxu0 0.0
        %2352 = vmatprep.subr.mxu0 0.0
        %2353 = vmatpush1.msra.mxu0 0.0
        %2354 = vmatprep.subr.mxu0 0.0
        %2355 = vmatpush1.msra.mxu0 0.0
        %2356 = vmatprep.subr.mxu0 0.0
        %2357 = vmatpush1.msra.mxu0 0.0
        %2358 = vmatprep.subr.mxu0 0.0
        %2359 = vmatpush1.msra.mxu0 0.0
        %2360 = vmatprep.subr.mxu0 0.0
        %2361 = vmatpush1.msra.mxu0 0.0
        %2362 = vmatprep.subr.mxu0 0.0
        %2363 = vmatpush1.msra.mxu0 0.0
        %2364 = vmatprep.subr.mxu0 0.0
        %2365 = vmatpush1.msra.mxu0 0.0
        %2366 = vmatprep.subr.mxu0 0.0
        %2367 = vmatpush1.msra.mxu0 0.0
        %2368 = vmatprep.subr.mxu0 0.0
        %2369 = vmatpush1.msra.mxu0 0.0
        %2370 = vmatprep.subr.mxu0 0.0
        %2371 = vmatpush1.msra.mxu0 0.0
        %2372 = vmatprep.subr.mxu0 0.0
        %2373 = vmatpush1.msra.mxu0 0.0
        %2374 = vmatprep.subr.mxu0 0.0
        %2375 = vmatpush1.msra.mxu0 0.0
        %2376 = vmatprep.subr.mxu0 0.0
        %2377 = vmatpush1.msra.mxu0 0.0
        %2378 = vmatprep.subr.mxu0 0.0
        %2379 = vmatpush1.msra.mxu0 0.0
        %2380 = vmatprep.subr.mxu0 0.0
        %2381 = vmatpush1.msra.mxu0 0.0
        %2382 = vmatprep.subr.mxu0 0.0
        %2383 = vmatpush1.msra.mxu0 0.0
        %2384 = vmatprep.subr.mxu0 0.0
        %2385 = vmatpush1.msra.mxu0 0.0
        %2386 = vmatprep.subr.mxu0 0.0
        %2387 = vmatpush1.msra.mxu0 0.0
        %2388 = vmatprep.subr.mxu0 0.0
        %2389 = vmatpush1.msra.mxu0 0.0
        %2390 = vmatprep.subr.mxu0 0.0
        %2391 = vmatpush1.msra.mxu0 0.0
        %2392 = vmatprep.subr.mxu0 0.0
        %2393 = vmatpush1.msra.mxu0 0.0
        %2394 = vmatprep.subr.mxu0 0.0
        %2395 = vmatpush1.msra.mxu0 0.0
        %2396 = vmatprep.subr.mxu0 0.0
        %2397 = vmatpush1.msra.mxu0 0.0
        %2398 = vmatprep.subr.mxu0 0.0
        %2399 = vmatpush1.msra.mxu0 0.0
        %2400 = vmatprep.subr.mxu0 0.0
        %2401 = vmatpush1.msra.mxu0 0.0
        %2402 = vmatprep.mubr.f32.mxu0 0.0
        %2403 = vmatmul.mubr.f32.gmra.mrb[0].mxu0 %v2334
        %v2404 = vpop.f32.mrb[0].mxu0
        %v2405 = vadd.f32 %v2324, %v2404
        %v2406 = vpop.f32.mrb[0].mxu0
        %2407 = vmatprep.mubr.f32.mxu0 0.0
        %2408 = vmatmul.mubr.f32.gmra.mrb[0].mxu0 %v2336
        %v2409 = vpop.f32.mrb[0].mxu0
        %v2410 = vadd.f32 %v2328, %v2409
        %v2411 = vpop.f32.mrb[0].mxu0
        %2412 = vdwg.mxu0
        %vm2413 = vcmp.gt.f32.partialorder %v2405, 0.0
        %vm2414 = vcmp.gt.f32.partialorder %v2410, 0.0
        %v2415 = vstv %s2320
        %v2416 = vmul.f32 %v2415, %v2405
        %v2417 = vmul.f32 %v2415, %v2410
        %v2418 = vsel %vm2413, %v2405, %v2416
        %v2419 = vsel %vm2414, %v2410, %v2417
        %v2420 = vadd.f32 %v2418, %v2419
        %v2421 = vrot.slane %v2420, 4
        %v2422 = vadd.f32 %v2420, %v2421
        %v2423 = vrot.slane %v2422, 2
        %v2424 = vadd.f32 %v2422, %v2423
        %v2425 = vrot.slane %v2424, 1
        %v2426 = vadd.f32 %v2424, %v2425
        %v2427 = vmul.f32 %v2418, %v2418
        %v2428 = vmul.f32 %v2419, %v2419
        %v2429 = vadd.f32 %v2427, %v2428
        %v2430 = vrot.slane %v2429, 4
        %v2431 = vadd.f32 %v2429, %v2430
        %v2432 = vrot.slane %v2431, 2
        %v2433 = vadd.f32 %v2431, %v2432
        %v2434 = vrot.slane %v2433, 1
        %v2435 = vadd.f32 %v2433, %v2434
        %v2436 = vsel %vm657, %v2426, %v2435
        %2437 = vmatprep.subr.mxu0 0.0
        %2438 = vmatpush1.msra.mxu0 %v597
        %2439 = vmatprep.subr.mxu0 0.0
        %2440 = vmatpush1.msra.mxu0 %v598
        %2441 = vmatprep.subr.mxu0 0.0
        %2442 = vmatpush1.msra.mxu0 %v599
        %2443 = vmatprep.subr.mxu0 0.0
        %2444 = vmatpush1.msra.mxu0 %v600
        %2445 = vmatprep.subr.mxu0 0.0
        %2446 = vmatpush1.msra.mxu0 %v601
        %2447 = vmatprep.subr.mxu0 0.0
        %2448 = vmatpush1.msra.mxu0 %v602
        %2449 = vmatprep.subr.mxu0 0.0
        %2450 = vmatpush1.msra.mxu0 %v603
        %2451 = vmatprep.subr.mxu0 0.0
        %2452 = vmatpush1.msra.mxu0 %v604
        %2453 = vmatprep.subr.mxu0 0.0
        %2454 = vmatpush1.msra.mxu0 %v605
        %2455 = vmatprep.subr.mxu0 0.0
        %2456 = vmatpush1.msra.mxu0 %v606
        %2457 = vmatprep.subr.mxu0 0.0
        %2458 = vmatpush1.msra.mxu0 %v607
        %2459 = vmatprep.subr.mxu0 0.0
        %2460 = vmatpush1.msra.mxu0 %v608
        %2461 = vmatprep.subr.mxu0 0.0
        %2462 = vmatpush1.msra.mxu0 %v609
        %2463 = vmatprep.subr.mxu0 0.0
        %2464 = vmatpush1.msra.mxu0 %v610
        %2465 = vmatprep.subr.mxu0 0.0
        %2466 = vmatpush1.msra.mxu0 %v611
        %2467 = vmatprep.subr.mxu0 0.0
        %2468 = vmatpush1.msra.mxu0 %v612
        %2469 = vmatprep.subr.mxu0 0.0
        %2470 = vmatpush1.msra.mxu0 0.0
        %2471 = vmatprep.subr.mxu0 0.0
        %2472 = vmatpush1.msra.mxu0 0.0
        %2473 = vmatprep.subr.mxu0 0.0
        %2474 = vmatpush1.msra.mxu0 0.0
        %2475 = vmatprep.subr.mxu0 0.0
        %2476 = vmatpush1.msra.mxu0 0.0
        %2477 = vmatprep.subr.mxu0 0.0
        %2478 = vmatpush1.msra.mxu0 0.0
        %2479 = vmatprep.subr.mxu0 0.0
        %2480 = vmatpush1.msra.mxu0 0.0
        %2481 = vmatprep.subr.mxu0 0.0
        %2482 = vmatpush1.msra.mxu0 0.0
        %2483 = vmatprep.subr.mxu0 0.0
        %2484 = vmatpush1.msra.mxu0 0.0
        %2485 = vmatprep.subr.mxu0 0.0
        %2486 = vmatpush1.msra.mxu0 0.0
        %2487 = vmatprep.subr.mxu0 0.0
        %2488 = vmatpush1.msra.mxu0 0.0
        %2489 = vmatprep.subr.mxu0 0.0
        %2490 = vmatpush1.msra.mxu0 0.0
        %2491 = vmatprep.subr.mxu0 0.0
        %2492 = vmatpush1.msra.mxu0 0.0
        %2493 = vmatprep.subr.mxu0 0.0
        %2494 = vmatpush1.msra.mxu0 0.0
        %2495 = vmatprep.subr.mxu0 0.0
        %2496 = vmatpush1.msra.mxu0 0.0
        %2497 = vmatprep.subr.mxu0 0.0
        %2498 = vmatpush1.msra.mxu0 0.0
        %2499 = vmatprep.subr.mxu0 0.0
        %2500 = vmatpush1.msra.mxu0 0.0
        %2501 = vmatprep.mubr.f32.mxu0 0.0
        %2502 = vmatmul.mubr.f32.gmra.mrb[0].mxu0 %v2436
        %v2503 = vpop.f32.mrb[0].mxu0
        %v2504 = vadd.f32 0.0, %v2503
        %v2505 = vpop.f32.mrb[0].mxu0
        %2506 = vdwg.mxu0
        %v2507 = vmul.f32 %v2504, 0.00390625
        %v2508 = vmul.f32 %v2507, %v2507
        %v2510 = vrot.slane %v2508, 7
        %v2512 = vsub.f32 %v2507, %v2510
        %v2513 = vmax.f32 %v2512, 0.0
        %v2514 = vadd.f32 %v2513, 1e-08
        %v2515 = vrsqrt.pop %v2514
        %v2516 = vlaneseq
        %v2517 = vshrl.u32 %v2516, 7
        %v2518 = vsub.s32 0, %v2517
        %v2519 = vrot.slane %v2507, %v2518
        %v2520 = vsub.f32 %v2418, %v2519
        %v2521 = vsub.f32 %v2419, %v2519
        %v2522 = vlaneseq
        %v2523 = vshrl.u32 %v2522, 7
        %v2524 = vsub.s32 1, %v2523
        %v2525 = vrot.slane %v2515, %v2524
        %v2526 = vmul.f32 %v2520, %v2525
        %v2527 = vmul.f32 %v2521, %v2525
        %2528 = vset.pattern.permute.xlu0 33
        %2529 = vperm.xlu0 %2528, %v919
        %v2530 = vpop.permute.xlu0 %2529
        %2532 = vset.pattern.permute.xlu0 33
        %2533 = vperm.xlu0 %2532, %v920
        %v2534 = vpop.permute.xlu0 %2533
        %v2536 = vmul.f32 %v2526, %v2530
        %v2537 = vmul.f32 %v2527, %v2534
        %2538 = vset.pattern.permute.xlu0 34
        %2539 = vperm.xlu0 %2538, %v919
        %v2540 = vpop.permute.xlu0 %2539
        %2542 = vset.pattern.permute.xlu0 34
        %2543 = vperm.xlu0 %2542, %v920
        %v2544 = vpop.permute.xlu0 %2543
        %v2546 = vadd.f32 %v2536, %v2540
        %v2547 = vadd.f32 %v2537, %v2544
        %2548 = vrot.lane.b32.xlu0 %v2546, 1
        %v2549 = vpop.permute.xlu0 %2548
        %2550 = vrot.lane.b32.xlu0 %v2547, 1
        %v2551 = vpop.permute.xlu0 %2550
        %v2552 = vsel %vm1158, %v2549, 0.0
        %v2553 = vsel %vm1158, %v2551, 0.0
        %2554 = vrot.lane.b32.xlu0 %v2546, 127
        %v2555 = vpop.permute.xlu0 %2554
        %2556 = vrot.lane.b32.xlu0 %v2547, 127
        %v2557 = vpop.permute.xlu0 %2556
        %v2558 = vsel %vm1167, %v2555, 0.0
        %v2559 = vsel %vm1167, %v2557, 0.0
        %2560 = vset.pattern.permute.xlu0 42
        %2561 = vperm.xlu0 %2560, %v919
        %v2562 = vpop.permute.xlu0 %2561
        %2564 = vset.pattern.permute.xlu0 42
        %2565 = vperm.xlu0 %2564, %v920
        %v2566 = vpop.permute.xlu0 %2565
        %v2568 = vmul.f32 %v2562, %v2552
        %v2569 = vmul.f32 %v2566, %v2553
        %2570 = vset.pattern.permute.xlu0 43
        %2571 = vperm.xlu0 %2570, %v919
        %v2572 = vpop.permute.xlu0 %2571
        %2574 = vset.pattern.permute.xlu0 43
        %2575 = vperm.xlu0 %2574, %v920
        %v2576 = vpop.permute.xlu0 %2575
        %v2578 = vmul.f32 %v2572, %v2546
        %v2579 = vmul.f32 %v2576, %v2547
        %v2580 = vadd.f32 %v2568, %v2578
        %v2581 = vadd.f32 %v2569, %v2579
        %2582 = vset.pattern.permute.xlu0 44
        %2583 = vperm.xlu0 %2582, %v919
        %v2584 = vpop.permute.xlu0 %2583
        %2586 = vset.pattern.permute.xlu0 44
        %2587 = vperm.xlu0 %2586, %v920
        %v2588 = vpop.permute.xlu0 %2587
        %v2590 = vmul.f32 %v2584, %v2558
        %v2591 = vmul.f32 %v2588, %v2559
        %v2592 = vadd.f32 %v2580, %v2590
        %v2593 = vadd.f32 %v2581, %v2591
        %2594 = vset.pattern.permute.xlu0 36
        %2595 = vperm.xlu0 %2594, %v919
        %v2596 = vpop.permute.xlu0 %2595
        %2598 = vset.pattern.permute.xlu0 36
        %2599 = vperm.xlu0 %2598, %v920
        %v2600 = vpop.permute.xlu0 %2599
        %v2602 = vadd.f32 %v2592, %v2596
        %v2603 = vadd.f32 %v2593, %v2600
        %2604 = vset.pattern.permute.xlu0 45
        %2605 = vperm.xlu0 %2604, %v919
        %v2606 = vpop.permute.xlu0 %2605
        %2608 = vset.pattern.permute.xlu0 45
        %2609 = vperm.xlu0 %2608, %v920
        %v2610 = vpop.permute.xlu0 %2609
        %v2612 = vmul.f32 %v2606, %v2552
        %v2613 = vmul.f32 %v2610, %v2553
        %2614 = vset.pattern.permute.xlu0 46
        %2615 = vperm.xlu0 %2614, %v919
        %v2616 = vpop.permute.xlu0 %2615
        %2618 = vset.pattern.permute.xlu0 46
        %2619 = vperm.xlu0 %2618, %v920
        %v2620 = vpop.permute.xlu0 %2619
        %v2622 = vmul.f32 %v2616, %v2546
        %v2623 = vmul.f32 %v2620, %v2547
        %v2624 = vadd.f32 %v2612, %v2622
        %v2625 = vadd.f32 %v2613, %v2623
        %2626 = vset.pattern.permute.xlu0 47
        %2627 = vperm.xlu0 %2626, %v919
        %v2628 = vpop.permute.xlu0 %2627
        %2630 = vset.pattern.permute.xlu0 47
        %2631 = vperm.xlu0 %2630, %v920
        %v2632 = vpop.permute.xlu0 %2631
        %v2634 = vmul.f32 %v2628, %v2558
        %v2635 = vmul.f32 %v2632, %v2559
        %v2636 = vadd.f32 %v2624, %v2634
        %v2637 = vadd.f32 %v2625, %v2635
        %2638 = vset.pattern.permute.xlu0 37
        %2639 = vperm.xlu0 %2638, %v919
        %v2640 = vpop.permute.xlu0 %2639
        %2642 = vset.pattern.permute.xlu0 37
        %2643 = vperm.xlu0 %2642, %v920
        %v2644 = vpop.permute.xlu0 %2643
        %v2646 = vadd.f32 %v2636, %v2640
        %v2647 = vadd.f32 %v2637, %v2644
        %vm2648 = vcmp.gt.f32.partialorder %v2602, 0.0
        %vm2649 = vcmp.gt.f32.partialorder %v2603, 0.0
        %v2650 = vstv %s2321
        %v2651 = vmul.f32 %v2650, %v2602
        %v2652 = vmul.f32 %v2650, %v2603
        %v2653 = vsel %vm2648, %v2602, %v2651
        %v2654 = vsel %vm2649, %v2603, %v2652
        %vm2655 = vcmp.gt.f32.partialorder %v2646, 0.0
        %vm2656 = vcmp.gt.f32.partialorder %v2647, 0.0
        %v2657 = vmul.f32 %v2650, %v2646
        %v2658 = vmul.f32 %v2650, %v2647
        %v2659 = vsel %vm2655, %v2646, %v2657
        %v2660 = vsel %vm2656, %v2647, %v2658
        %v2661 = vadd.f32 %v2653, %v2654
        %v2662 = vrot.slane %v2661, 4
        %v2663 = vadd.f32 %v2661, %v2662
        %v2664 = vrot.slane %v2663, 2
        %v2665 = vadd.f32 %v2663, %v2664
        %v2666 = vrot.slane %v2665, 1
        %v2667 = vadd.f32 %v2665, %v2666
        %v2668 = vmul.f32 %v2653, %v2653
        %v2669 = vmul.f32 %v2654, %v2654
        %v2670 = vadd.f32 %v2668, %v2669
        %v2671 = vrot.slane %v2670, 4
        %v2672 = vadd.f32 %v2670, %v2671
        %v2673 = vrot.slane %v2672, 2
        %v2674 = vadd.f32 %v2672, %v2673
        %v2675 = vrot.slane %v2674, 1
        %v2676 = vadd.f32 %v2674, %v2675
        %v2677 = vadd.f32 %v2659, %v2660
        %v2678 = vrot.slane %v2677, 4
        %v2679 = vadd.f32 %v2677, %v2678
        %v2680 = vrot.slane %v2679, 2
        %v2681 = vadd.f32 %v2679, %v2680
        %v2682 = vrot.slane %v2681, 1
        %v2683 = vadd.f32 %v2681, %v2682
        %v2684 = vadd.f32 %v2667, %v2683
        %v2685 = vmul.f32 %v2659, %v2659
        %v2686 = vmul.f32 %v2660, %v2660
        %v2687 = vadd.f32 %v2685, %v2686
        %v2688 = vrot.slane %v2687, 4
        %v2689 = vadd.f32 %v2687, %v2688
        %v2690 = vrot.slane %v2689, 2
        %v2691 = vadd.f32 %v2689, %v2690
        %v2692 = vrot.slane %v2691, 1
        %v2693 = vadd.f32 %v2691, %v2692
        %v2694 = vadd.f32 %v2676, %v2693
        %v2695 = vsel %vm657, %v2684, %v2694
        %2696 = vmatprep.subr.mxu0 0.0
        %2697 = vmatpush1.msra.mxu0 %v597
        %2698 = vmatprep.subr.mxu0 0.0
        %2699 = vmatpush1.msra.mxu0 %v598
        %2700 = vmatprep.subr.mxu0 0.0
        %2701 = vmatpush1.msra.mxu0 %v599
        %2702 = vmatprep.subr.mxu0 0.0
        %2703 = vmatpush1.msra.mxu0 %v600
        %2704 = vmatprep.subr.mxu0 0.0
        %2705 = vmatpush1.msra.mxu0 %v601
        %2706 = vmatprep.subr.mxu0 0.0
        %2707 = vmatpush1.msra.mxu0 %v602
        %2708 = vmatprep.subr.mxu0 0.0
        %2709 = vmatpush1.msra.mxu0 %v603
        %2710 = vmatprep.subr.mxu0 0.0
        %2711 = vmatpush1.msra.mxu0 %v604
        %2712 = vmatprep.subr.mxu0 0.0
        %2713 = vmatpush1.msra.mxu0 %v605
        %2714 = vmatprep.subr.mxu0 0.0
        %2715 = vmatpush1.msra.mxu0 %v606
        %2716 = vmatprep.subr.mxu0 0.0
        %2717 = vmatpush1.msra.mxu0 %v607
        %2718 = vmatprep.subr.mxu0 0.0
        %2719 = vmatpush1.msra.mxu0 %v608
        %2720 = vmatprep.subr.mxu0 0.0
        %2721 = vmatpush1.msra.mxu0 %v609
        %2722 = vmatprep.subr.mxu0 0.0
        %2723 = vmatpush1.msra.mxu0 %v610
        %2724 = vmatprep.subr.mxu0 0.0
        %2725 = vmatpush1.msra.mxu0 %v611
        %2726 = vmatprep.subr.mxu0 0.0
        %2727 = vmatpush1.msra.mxu0 %v612
        %2728 = vmatprep.subr.mxu0 0.0
        %2729 = vmatpush1.msra.mxu0 0.0
        %2730 = vmatprep.subr.mxu0 0.0
        %2731 = vmatpush1.msra.mxu0 0.0
        %2732 = vmatprep.subr.mxu0 0.0
        %2733 = vmatpush1.msra.mxu0 0.0
        %2734 = vmatprep.subr.mxu0 0.0
        %2735 = vmatpush1.msra.mxu0 0.0
        %2736 = vmatprep.subr.mxu0 0.0
        %2737 = vmatpush1.msra.mxu0 0.0
        %2738 = vmatprep.subr.mxu0 0.0
        %2739 = vmatpush1.msra.mxu0 0.0
        %2740 = vmatprep.subr.mxu0 0.0
        %2741 = vmatpush1.msra.mxu0 0.0
        %2742 = vmatprep.subr.mxu0 0.0
        %2743 = vmatpush1.msra.mxu0 0.0
        %2744 = vmatprep.subr.mxu0 0.0
        %2745 = vmatpush1.msra.mxu0 0.0
        %2746 = vmatprep.subr.mxu0 0.0
        %2747 = vmatpush1.msra.mxu0 0.0
        %2748 = vmatprep.subr.mxu0 0.0
        %2749 = vmatpush1.msra.mxu0 0.0
        %2750 = vmatprep.subr.mxu0 0.0
        %2751 = vmatpush1.msra.mxu0 0.0
        %2752 = vmatprep.subr.mxu0 0.0
        %2753 = vmatpush1.msra.mxu0 0.0
        %2754 = vmatprep.subr.mxu0 0.0
        %2755 = vmatpush1.msra.mxu0 0.0
        %2756 = vmatprep.subr.mxu0 0.0
        %2757 = vmatpush1.msra.mxu0 0.0
        %2758 = vmatprep.subr.mxu0 0.0
        %2759 = vmatpush1.msra.mxu0 0.0
        %2760 = vmatprep.mubr.f32.mxu0 0.0
        %2761 = vmatmul.mubr.f32.gmra.mrb[0].mxu0 %v2695
        %v2762 = vpop.f32.mrb[0].mxu0
        %v2763 = vadd.f32 0.0, %v2762
        %v2764 = vpop.f32.mrb[0].mxu0
        %2765 = vdwg.mxu0
        %v2766 = vmul.f32 %v2763, 0.001953125
        %v2767 = vmul.f32 %v2766, %v2766
        %v2769 = vrot.slane %v2767, 7
        %v2771 = vsub.f32 %v2766, %v2769
        %v2772 = vmax.f32 %v2771, 0.0
        %v2773 = vadd.f32 %v2772, 1e-08
        %v2774 = vrsqrt.pop %v2773
        %v2775 = vlaneseq
        %v2776 = vshrl.u32 %v2775, 7
        %v2777 = vsub.s32 0, %v2776
        %v2778 = vrot.slane %v2766, %v2777
        %v2779 = vsub.f32 %v2653, %v2778
        %v2780 = vsub.f32 %v2654, %v2778
        %v2781 = vlaneseq
        %v2782 = vshrl.u32 %v2781, 7
        %v2783 = vsub.s32 1, %v2782
        %v2784 = vrot.slane %v2774, %v2783
        %v2785 = vmul.f32 %v2779, %v2784
        %v2786 = vmul.f32 %v2780, %v2784
        %2787 = vset.pattern.permute.xlu0 38
        %2788 = vperm.xlu0 %2787, %v919
        %v2789 = vpop.permute.xlu0 %2788
        %2791 = vset.pattern.permute.xlu0 38
        %2792 = vperm.xlu0 %2791, %v920
        %v2793 = vpop.permute.xlu0 %2792
        %v2795 = vmul.f32 %v2785, %v2789
        %v2796 = vmul.f32 %v2786, %v2793
        %2797 = vset.pattern.permute.xlu0 40
        %2798 = vperm.xlu0 %2797, %v919
        %v2799 = vpop.permute.xlu0 %2798
        %2801 = vset.pattern.permute.xlu0 40
        %2802 = vperm.xlu0 %2801, %v920
        %v2803 = vpop.permute.xlu0 %2802
        %v2805 = vadd.f32 %v2795, %v2799
        %v2806 = vadd.f32 %v2796, %v2803
        %v2807 = vsub.f32 %v2659, %v2778
        %v2808 = vsub.f32 %v2660, %v2778
        %v2809 = vmul.f32 %v2807, %v2784
        %v2810 = vmul.f32 %v2808, %v2784
        %2811 = vset.pattern.permute.xlu0 39
        %2812 = vperm.xlu0 %2811, %v919
        %v2813 = vpop.permute.xlu0 %2812
        %2815 = vset.pattern.permute.xlu0 39
        %2816 = vperm.xlu0 %2815, %v920
        %v2817 = vpop.permute.xlu0 %2816
        %v2819 = vmul.f32 %v2809, %v2813
        %v2820 = vmul.f32 %v2810, %v2817
        %2821 = vset.pattern.permute.xlu0 41
        %2822 = vperm.xlu0 %2821, %v919
        %v2823 = vpop.permute.xlu0 %2822
        %2825 = vset.pattern.permute.xlu0 41
        %2826 = vperm.xlu0 %2825, %v920
        %v2827 = vpop.permute.xlu0 %2826
        %v2829 = vadd.f32 %v2819, %v2823
        %v2830 = vadd.f32 %v2820, %v2827
        %2831 = vset.pattern.permute.xlu0 35
        %2832 = vperm.xlu0 %2831, %v919
        %v2833 = vpop.permute.xlu0 %2832
        %2835 = vset.pattern.permute.xlu0 35
        %2836 = vperm.xlu0 %2835, %v920
        %v2837 = vpop.permute.xlu0 %2836
        %v2839 = vadd.f32 %v2316, %v2833
        %v2840 = vadd.f32 %v2317, %v2837
        %2841 = vrot.lane.b32.xlu0 %v921, 16
        %v2842 = vpop.permute.xlu0 %2841
        %2843 = vrot.lane.b32.xlu0 %v922, 16
        %v2844 = vpop.permute.xlu0 %2843
        %v2845 = vsel %vm935, %v2842, 0
        %v2847 = vsel %vm935, %v2844, 0
        %2849 = vmatprep.subr.mxu0 0.0
        %2850 = vmatpush1.msra.mxu0 %v2805
        %2851 = vmatprep.subr.mxu0 0.0
        %2852 = vmatpush1.msra.mxu0 %v2806
        %2853 = vmatprep.subr.mxu0 0.0
        %2854 = vmatpush1.msra.mxu0 0.0
        %2855 = vmatprep.subr.mxu0 0.0
        %2856 = vmatpush1.msra.mxu0 0.0
        %2857 = vmatprep.subr.mxu0 0.0
        %2858 = vmatpush1.msra.mxu0 0.0
        %2859 = vmatprep.subr.mxu0 0.0
        %2860 = vmatpush1.msra.mxu0 0.0
        %2861 = vmatprep.subr.mxu0 0.0
        %2862 = vmatpush1.msra.mxu0 0.0
        %2863 = vmatprep.subr.mxu0 0.0
        %2864 = vmatpush1.msra.mxu0 0.0
        %2865 = vmatprep.subr.mxu0 0.0
        %2866 = vmatpush1.msra.mxu0 0.0
        %2867 = vmatprep.subr.mxu0 0.0
        %2868 = vmatpush1.msra.mxu0 0.0
        %2869 = vmatprep.subr.mxu0 0.0
        %2870 = vmatpush1.msra.mxu0 0.0
        %2871 = vmatprep.subr.mxu0 0.0
        %2872 = vmatpush1.msra.mxu0 0.0
        %2873 = vmatprep.subr.mxu0 0.0
        %2874 = vmatpush1.msra.mxu0 0.0
        %2875 = vmatprep.subr.mxu0 0.0
        %2876 = vmatpush1.msra.mxu0 0.0
        %2877 = vmatprep.subr.mxu0 0.0
        %2878 = vmatpush1.msra.mxu0 0.0
        %2879 = vmatprep.subr.mxu0 0.0
        %2880 = vmatpush1.msra.mxu0 0.0
        %2881 = vmatprep.subr.mxu0 0.0
        %2882 = vmatpush1.msra.mxu0 0.0
        %2883 = vmatprep.subr.mxu0 0.0
        %2884 = vmatpush1.msra.mxu0 0.0
        %2885 = vmatprep.subr.mxu0 0.0
        %2886 = vmatpush1.msra.mxu0 0.0
        %2887 = vmatprep.subr.mxu0 0.0
        %2888 = vmatpush1.msra.mxu0 0.0
        %2889 = vmatprep.subr.mxu0 0.0
        %2890 = vmatpush1.msra.mxu0 0.0
        %2891 = vmatprep.subr.mxu0 0.0
        %2892 = vmatpush1.msra.mxu0 0.0
        %2893 = vmatprep.subr.mxu0 0.0
        %2894 = vmatpush1.msra.mxu0 0.0
        %2895 = vmatprep.subr.mxu0 0.0
        %2896 = vmatpush1.msra.mxu0 0.0
        %2897 = vmatprep.subr.mxu0 0.0
        %2898 = vmatpush1.msra.mxu0 0.0
        %2899 = vmatprep.subr.mxu0 0.0
        %2900 = vmatpush1.msra.mxu0 0.0
        %2901 = vmatprep.subr.mxu0 0.0
        %2902 = vmatpush1.msra.mxu0 0.0
        %2903 = vmatprep.subr.mxu0 0.0
        %2904 = vmatpush1.msra.mxu0 0.0
        %2905 = vmatprep.subr.mxu0 0.0
        %2906 = vmatpush1.msra.mxu0 0.0
        %2907 = vmatprep.subr.mxu0 0.0
        %2908 = vmatpush1.msra.mxu0 0.0
        %2909 = vmatprep.subr.mxu0 0.0
        %2910 = vmatpush1.msra.mxu0 0.0
        %2911 = vmatprep.subr.mxu0 0.0
        %2912 = vmatpush1.msra.mxu0 0.0
        %2913 = vmatprep.mubr.f32.mxu0 0.0
        %2914 = vmatmul.mubr.f32.gmra.mrb[0].mxu0 %v2845
        %v2915 = vpop.f32.mrb[0].mxu0
        %v2916 = vadd.f32 0.0, %v2915
        %v2917 = vpop.f32.mrb[0].mxu0
        %2918 = vmatprep.mubr.f32.mxu0 0.0
        %2919 = vmatmul.mubr.f32.gmra.mrb[0].mxu0 %v2847
        %v2920 = vpop.f32.mrb[0].mxu0
        %v2921 = vadd.f32 0.0, %v2920
        %v2922 = vpop.f32.mrb[0].mxu0
        %2923 = vdwg.mxu0
        %v2924 = vadd.f32 %v2839, %v2916
        %v2925 = vadd.f32 %v2840, %v2921
        %v2927 = vsel %vm935, %v2318, 0
        %v2930 = vsel %vm935, %v2319, 0
        %2932 = vmatprep.subr.mxu0 0.0
        %2933 = vmatpush1.msra.mxu0 %v2829
        %2934 = vmatprep.subr.mxu0 0.0
        %2935 = vmatpush1.msra.mxu0 %v2830
        %2936 = vmatprep.subr.mxu0 0.0
        %2937 = vmatpush1.msra.mxu0 0.0
        %2938 = vmatprep.subr.mxu0 0.0
        %2939 = vmatpush1.msra.mxu0 0.0
        %2940 = vmatprep.subr.mxu0 0.0
        %2941 = vmatpush1.msra.mxu0 0.0
        %2942 = vmatprep.subr.mxu0 0.0
        %2943 = vmatpush1.msra.mxu0 0.0
        %2944 = vmatprep.subr.mxu0 0.0
        %2945 = vmatpush1.msra.mxu0 0.0
        %2946 = vmatprep.subr.mxu0 0.0
        %2947 = vmatpush1.msra.mxu0 0.0
        %2948 = vmatprep.subr.mxu0 0.0
        %2949 = vmatpush1.msra.mxu0 0.0
        %2950 = vmatprep.subr.mxu0 0.0
        %2951 = vmatpush1.msra.mxu0 0.0
        %2952 = vmatprep.subr.mxu0 0.0
        %2953 = vmatpush1.msra.mxu0 0.0
        %2954 = vmatprep.subr.mxu0 0.0
        %2955 = vmatpush1.msra.mxu0 0.0
        %2956 = vmatprep.subr.mxu0 0.0
        %2957 = vmatpush1.msra.mxu0 0.0
        %2958 = vmatprep.subr.mxu0 0.0
        %2959 = vmatpush1.msra.mxu0 0.0
        %2960 = vmatprep.subr.mxu0 0.0
        %2961 = vmatpush1.msra.mxu0 0.0
        %2962 = vmatprep.subr.mxu0 0.0
        %2963 = vmatpush1.msra.mxu0 0.0
        %2964 = vmatprep.subr.mxu0 0.0
        %2965 = vmatpush1.msra.mxu0 0.0
        %2966 = vmatprep.subr.mxu0 0.0
        %2967 = vmatpush1.msra.mxu0 0.0
        %2968 = vmatprep.subr.mxu0 0.0
        %2969 = vmatpush1.msra.mxu0 0.0
        %2970 = vmatprep.subr.mxu0 0.0
        %2971 = vmatpush1.msra.mxu0 0.0
        %2972 = vmatprep.subr.mxu0 0.0
        %2973 = vmatpush1.msra.mxu0 0.0
        %2974 = vmatprep.subr.mxu0 0.0
        %2975 = vmatpush1.msra.mxu0 0.0
        %2976 = vmatprep.subr.mxu0 0.0
        %2977 = vmatpush1.msra.mxu0 0.0
        %2978 = vmatprep.subr.mxu0 0.0
        %2979 = vmatpush1.msra.mxu0 0.0
        %2980 = vmatprep.subr.mxu0 0.0
        %2981 = vmatpush1.msra.mxu0 0.0
        %2982 = vmatprep.subr.mxu0 0.0
        %2983 = vmatpush1.msra.mxu0 0.0
        %2984 = vmatprep.subr.mxu0 0.0
        %2985 = vmatpush1.msra.mxu0 0.0
        %2986 = vmatprep.subr.mxu0 0.0
        %2987 = vmatpush1.msra.mxu0 0.0
        %2988 = vmatprep.subr.mxu0 0.0
        %2989 = vmatpush1.msra.mxu0 0.0
        %2990 = vmatprep.subr.mxu0 0.0
        %2991 = vmatpush1.msra.mxu0 0.0
        %2992 = vmatprep.subr.mxu0 0.0
        %2993 = vmatpush1.msra.mxu0 0.0
        %2994 = vmatprep.subr.mxu0 0.0
        %2995 = vmatpush1.msra.mxu0 0.0
        %2996 = vmatprep.mubr.f32.mxu0 0.0
        %2997 = vmatmul.mubr.f32.gmra.mrb[0].mxu0 %v2927
        %v2998 = vpop.f32.mrb[0].mxu0
        %v2999 = vadd.f32 0.0, %v2998
        %v3000 = vpop.f32.mrb[0].mxu0
        %3001 = vmatprep.mubr.f32.mxu0 0.0
        %3002 = vmatmul.mubr.f32.gmra.mrb[0].mxu0 %v2930
        %v3003 = vpop.f32.mrb[0].mxu0
        %v3004 = vadd.f32 0.0, %v3003
        %v3005 = vpop.f32.mrb[0].mxu0
        %3006 = vdwg.mxu0
        %v3007 = vadd.f32 %v2924, %v2999
        %v3008 = vadd.f32 %v2925, %v3004
        %s3009 = sld [smem:[#allocation2 + $0x6]]
        %s3010 = sld [smem:[#allocation2 + $0x7]]
        %3011 = vset.pattern.permute.xlu0 48
        %3012 = vperm.xlu0 %3011, %v919
        %v3013 = vpop.permute.xlu0 %3012
        %3015 = vset.pattern.permute.xlu0 48
        %3016 = vperm.xlu0 %3015, %v920
        %v3017 = vpop.permute.xlu0 %3016
        %3019 = vrot.lane.b32.xlu0 %v2318, 112
        %v3020 = vpop.permute.xlu0 %3019
        %3021 = vrot.lane.b32.xlu0 %v2319, 112
        %v3022 = vpop.permute.xlu0 %3021
        %v3023 = vsel %vm935, %v3020, 0
        %v3025 = vsel %vm935, %v3022, 0
        %3027 = vmatprep.subr.mxu0 0.0
        %3028 = vmatpush1.msra.mxu0 %v3007
        %3029 = vmatprep.subr.mxu0 0.0
        %3030 = vmatpush1.msra.mxu0 %v3008
        %3031 = vmatprep.subr.mxu0 0.0
        %3032 = vmatpush1.msra.mxu0 0.0
        %3033 = vmatprep.subr.mxu0 0.0
        %3034 = vmatpush1.msra.mxu0 0.0
        %3035 = vmatprep.subr.mxu0 0.0
        %3036 = vmatpush1.msra.mxu0 0.0
        %3037 = vmatprep.subr.mxu0 0.0
        %3038 = vmatpush1.msra.mxu0 0.0
        %3039 = vmatprep.subr.mxu0 0.0
        %3040 = vmatpush1.msra.mxu0 0.0
        %3041 = vmatprep.subr.mxu0 0.0
        %3042 = vmatpush1.msra.mxu0 0.0
        %3043 = vmatprep.subr.mxu0 0.0
        %3044 = vmatpush1.msra.mxu0 0.0
        %3045 = vmatprep.subr.mxu0 0.0
        %3046 = vmatpush1.msra.mxu0 0.0
        %3047 = vmatprep.subr.mxu0 0.0
        %3048 = vmatpush1.msra.mxu0 0.0
        %3049 = vmatprep.subr.mxu0 0.0
        %3050 = vmatpush1.msra.mxu0 0.0
        %3051 = vmatprep.subr.mxu0 0.0
        %3052 = vmatpush1.msra.mxu0 0.0
        %3053 = vmatprep.subr.mxu0 0.0
        %3054 = vmatpush1.msra.mxu0 0.0
        %3055 = vmatprep.subr.mxu0 0.0
        %3056 = vmatpush1.msra.mxu0 0.0
        %3057 = vmatprep.subr.mxu0 0.0
        %3058 = vmatpush1.msra.mxu0 0.0
        %3059 = vmatprep.subr.mxu0 0.0
        %3060 = vmatpush1.msra.mxu0 0.0
        %3061 = vmatprep.subr.mxu0 0.0
        %3062 = vmatpush1.msra.mxu0 0.0
        %3063 = vmatprep.subr.mxu0 0.0
        %3064 = vmatpush1.msra.mxu0 0.0
        %3065 = vmatprep.subr.mxu0 0.0
        %3066 = vmatpush1.msra.mxu0 0.0
        %3067 = vmatprep.subr.mxu0 0.0
        %3068 = vmatpush1.msra.mxu0 0.0
        %3069 = vmatprep.subr.mxu0 0.0
        %3070 = vmatpush1.msra.mxu0 0.0
        %3071 = vmatprep.subr.mxu0 0.0
        %3072 = vmatpush1.msra.mxu0 0.0
        %3073 = vmatprep.subr.mxu0 0.0
        %3074 = vmatpush1.msra.mxu0 0.0
        %3075 = vmatprep.subr.mxu0 0.0
        %3076 = vmatpush1.msra.mxu0 0.0
        %3077 = vmatprep.subr.mxu0 0.0
        %3078 = vmatpush1.msra.mxu0 0.0
        %3079 = vmatprep.subr.mxu0 0.0
        %3080 = vmatpush1.msra.mxu0 0.0
        %3081 = vmatprep.subr.mxu0 0.0
        %3082 = vmatpush1.msra.mxu0 0.0
        %3083 = vmatprep.subr.mxu0 0.0
        %3084 = vmatpush1.msra.mxu0 0.0
        %3085 = vmatprep.subr.mxu0 0.0
        %3086 = vmatpush1.msra.mxu0 0.0
        %3087 = vmatprep.subr.mxu0 0.0
        %3088 = vmatpush1.msra.mxu0 0.0
        %3089 = vmatprep.subr.mxu0 0.0
        %3090 = vmatpush1.msra.mxu0 0.0
        %3091 = vmatprep.mubr.f32.mxu0 0.0
        %3092 = vmatmul.mubr.f32.gmra.mrb[0].mxu0 %v3023
        %v3093 = vpop.f32.mrb[0].mxu0
        %v3094 = vadd.f32 %v3013, %v3093
        %v3095 = vpop.f32.mrb[0].mxu0
        %3096 = vmatprep.mubr.f32.mxu0 0.0
        %3097 = vmatmul.mubr.f32.gmra.mrb[0].mxu0 %v3025
        %v3098 = vpop.f32.mrb[0].mxu0
        %v3099 = vadd.f32 %v3017, %v3098
        %v3100 = vpop.f32.mrb[0].mxu0
        %3101 = vdwg.mxu0
        %vm3102 = vcmp.gt.f32.partialorder %v3094, 0.0
        %vm3103 = vcmp.gt.f32.partialorder %v3099, 0.0
        %v3104 = vstv %s3009
        %v3105 = vmul.f32 %v3104, %v3094
        %v3106 = vmul.f32 %v3104, %v3099
        %v3107 = vsel %vm3102, %v3094, %v3105
        %v3108 = vsel %vm3103, %v3099, %v3106
        %v3109 = vadd.f32 %v3107, %v3108
        %v3110 = vrot.slane %v3109, 4
        %v3111 = vadd.f32 %v3109, %v3110
        %v3112 = vrot.slane %v3111, 2
        %v3113 = vadd.f32 %v3111, %v3112
        %v3114 = vrot.slane %v3113, 1
        %v3115 = vadd.f32 %v3113, %v3114
        %v3116 = vmul.f32 %v3107, %v3107
        %v3117 = vmul.f32 %v3108, %v3108
        %v3118 = vadd.f32 %v3116, %v3117
        %v3119 = vrot.slane %v3118, 4
        %v3120 = vadd.f32 %v3118, %v3119
        %v3121 = vrot.slane %v3120, 2
        %v3122 = vadd.f32 %v3120, %v3121
        %v3123 = vrot.slane %v3122, 1
        %v3124 = vadd.f32 %v3122, %v3123
        %v3125 = vsel %vm657, %v3115, %v3124
        %3126 = vmatprep.subr.mxu0 0.0
        %3127 = vmatpush1.msra.mxu0 %v597
        %3128 = vmatprep.subr.mxu0 0.0
        %3129 = vmatpush1.msra.mxu0 %v598
        %3130 = vmatprep.subr.mxu0 0.0
        %3131 = vmatpush1.msra.mxu0 %v599
        %3132 = vmatprep.subr.mxu0 0.0
        %3133 = vmatpush1.msra.mxu0 %v600
        %3134 = vmatprep.subr.mxu0 0.0
        %3135 = vmatpush1.msra.mxu0 %v601
        %3136 = vmatprep.subr.mxu0 0.0
        %3137 = vmatpush1.msra.mxu0 %v602
        %3138 = vmatprep.subr.mxu0 0.0
        %3139 = vmatpush1.msra.mxu0 %v603
        %3140 = vmatprep.subr.mxu0 0.0
        %3141 = vmatpush1.msra.mxu0 %v604
        %3142 = vmatprep.subr.mxu0 0.0
        %3143 = vmatpush1.msra.mxu0 %v605
        %3144 = vmatprep.subr.mxu0 0.0
        %3145 = vmatpush1.msra.mxu0 %v606
        %3146 = vmatprep.subr.mxu0 0.0
        %3147 = vmatpush1.msra.mxu0 %v607
        %3148 = vmatprep.subr.mxu0 0.0
        %3149 = vmatpush1.msra.mxu0 %v608
        %3150 = vmatprep.subr.mxu0 0.0
        %3151 = vmatpush1.msra.mxu0 %v609
        %3152 = vmatprep.subr.mxu0 0.0
        %3153 = vmatpush1.msra.mxu0 %v610
        %3154 = vmatprep.subr.mxu0 0.0
        %3155 = vmatpush1.msra.mxu0 %v611
        %3156 = vmatprep.subr.mxu0 0.0
        %3157 = vmatpush1.msra.mxu0 %v612
        %3158 = vmatprep.subr.mxu0 0.0
        %3159 = vmatpush1.msra.mxu0 0.0
        %3160 = vmatprep.subr.mxu0 0.0
        %3161 = vmatpush1.msra.mxu0 0.0
        %3162 = vmatprep.subr.mxu0 0.0
        %3163 = vmatpush1.msra.mxu0 0.0
        %3164 = vmatprep.subr.mxu0 0.0
        %3165 = vmatpush1.msra.mxu0 0.0
        %3166 = vmatprep.subr.mxu0 0.0
        %3167 = vmatpush1.msra.mxu0 0.0
        %3168 = vmatprep.subr.mxu0 0.0
        %3169 = vmatpush1.msra.mxu0 0.0
        %3170 = vmatprep.subr.mxu0 0.0
        %3171 = vmatpush1.msra.mxu0 0.0
        %3172 = vmatprep.subr.mxu0 0.0
        %3173 = vmatpush1.msra.mxu0 0.0
        %3174 = vmatprep.subr.mxu0 0.0
        %3175 = vmatpush1.msra.mxu0 0.0
        %3176 = vmatprep.subr.mxu0 0.0
        %3177 = vmatpush1.msra.mxu0 0.0
        %3178 = vmatprep.subr.mxu0 0.0
        %3179 = vmatpush1.msra.mxu0 0.0
        %3180 = vmatprep.subr.mxu0 0.0
        %3181 = vmatpush1.msra.mxu0 0.0
        %3182 = vmatprep.subr.mxu0 0.0
        %3183 = vmatpush1.msra.mxu0 0.0
        %3184 = vmatprep.subr.mxu0 0.0
        %3185 = vmatpush1.msra.mxu0 0.0
        %3186 = vmatprep.subr.mxu0 0.0
        %3187 = vmatpush1.msra.mxu0 0.0
        %3188 = vmatprep.subr.mxu0 0.0
        %3189 = vmatpush1.msra.mxu0 0.0
        %3190 = vmatprep.mubr.f32.mxu0 0.0
        %3191 = vmatmul.mubr.f32.gmra.mrb[0].mxu0 %v3125
        %v3192 = vpop.f32.mrb[0].mxu0
        %v3193 = vadd.f32 0.0, %v3192
        %v3194 = vpop.f32.mrb[0].mxu0
        %3195 = vdwg.mxu0
        %v3196 = vmul.f32 %v3193, 0.00390625
        %v3197 = vmul.f32 %v3196, %v3196
        %v3199 = vrot.slane %v3197, 7
        %v3201 = vsub.f32 %v3196, %v3199
        %v3202 = vmax.f32 %v3201, 0.0
        %v3203 = vadd.f32 %v3202, 1e-08
        %v3204 = vrsqrt.pop %v3203
        %v3205 = vlaneseq
        %v3206 = vshrl.u32 %v3205, 7
        %v3207 = vsub.s32 0, %v3206
        %v3208 = vrot.slane %v3196, %v3207
        %v3209 = vsub.f32 %v3107, %v3208
        %v3210 = vsub.f32 %v3108, %v3208
        %v3211 = vlaneseq
        %v3212 = vshrl.u32 %v3211, 7
        %v3213 = vsub.s32 1, %v3212
        %v3214 = vrot.slane %v3204, %v3213
        %v3215 = vmul.f32 %v3209, %v3214
        %v3216 = vmul.f32 %v3210, %v3214
        %3217 = vset.pattern.permute.xlu0 49
        %3218 = vperm.xlu0 %3217, %v919
        %v3219 = vpop.permute.xlu0 %3218
        %3221 = vset.pattern.permute.xlu0 49
        %3222 = vperm.xlu0 %3221, %v920
        %v3223 = vpop.permute.xlu0 %3222
        %v3225 = vmul.f32 %v3215, %v3219
        %v3226 = vmul.f32 %v3216, %v3223
        %3227 = vset.pattern.permute.xlu0 50
        %3228 = vperm.xlu0 %3227, %v919
        %v3229 = vpop.permute.xlu0 %3228
        %3231 = vset.pattern.permute.xlu0 50
        %3232 = vperm.xlu0 %3231, %v920
        %v3233 = vpop.permute.xlu0 %3232
        %v3235 = vadd.f32 %v3225, %v3229
        %v3236 = vadd.f32 %v3226, %v3233
        %3237 = vrot.lane.b32.xlu0 %v3235, 2
        %v3238 = vpop.permute.xlu0 %3237
        %3239 = vrot.lane.b32.xlu0 %v3236, 2
        %v3240 = vpop.permute.xlu0 %3239
        %v3241 = vsel %vm1855, %v3238, 0.0
        %v3242 = vsel %vm1855, %v3240, 0.0
        %3243 = vrot.lane.b32.xlu0 %v3235, 126
        %v3244 = vpop.permute.xlu0 %3243
        %3245 = vrot.lane.b32.xlu0 %v3236, 126
        %v3246 = vpop.permute.xlu0 %3245
        %v3247 = vsel %vm1864, %v3244, 0.0
        %v3248 = vsel %vm1864, %v3246, 0.0
        %3249 = vset.pattern.permute.xlu0 58
        %3250 = vperm.xlu0 %3249, %v919
        %v3251 = vpop.permute.xlu0 %3250
        %3253 = vset.pattern.permute.xlu0 58
        %3254 = vperm.xlu0 %3253, %v920
        %v3255 = vpop.permute.xlu0 %3254
        %v3257 = vmul.f32 %v3251, %v3241
        %v3258 = vmul.f32 %v3255, %v3242
        %3259 = vset.pattern.permute.xlu0 59
        %3260 = vperm.xlu0 %3259, %v919
        %v3261 = vpop.permute.xlu0 %3260
        %3263 = vset.pattern.permute.xlu0 59
        %3264 = vperm.xlu0 %3263, %v920
        %v3265 = vpop.permute.xlu0 %3264
        %v3267 = vmul.f32 %v3261, %v3235
        %v3268 = vmul.f32 %v3265, %v3236
        %v3269 = vadd.f32 %v3257, %v3267
        %v3270 = vadd.f32 %v3258, %v3268
        %3271 = vset.pattern.permute.xlu0 60
        %3272 = vperm.xlu0 %3271, %v919
        %v3273 = vpop.permute.xlu0 %3272
        %3275 = vset.pattern.permute.xlu0 60
        %3276 = vperm.xlu0 %3275, %v920
        %v3277 = vpop.permute.xlu0 %3276
        %v3279 = vmul.f32 %v3273, %v3247
        %v3280 = vmul.f32 %v3277, %v3248
        %v3281 = vadd.f32 %v3269, %v3279
        %v3282 = vadd.f32 %v3270, %v3280
        %3283 = vset.pattern.permute.xlu0 52
        %3284 = vperm.xlu0 %3283, %v919
        %v3285 = vpop.permute.xlu0 %3284
        %3287 = vset.pattern.permute.xlu0 52
        %3288 = vperm.xlu0 %3287, %v920
        %v3289 = vpop.permute.xlu0 %3288
        %v3291 = vadd.f32 %v3281, %v3285
        %v3292 = vadd.f32 %v3282, %v3289
        %3293 = vset.pattern.permute.xlu0 61
        %3294 = vperm.xlu0 %3293, %v919
        %v3295 = vpop.permute.xlu0 %3294
        %3297 = vset.pattern.permute.xlu0 61
        %3298 = vperm.xlu0 %3297, %v920
        %v3299 = vpop.permute.xlu0 %3298
        %v3301 = vmul.f32 %v3295, %v3241
        %v3302 = vmul.f32 %v3299, %v3242
        %3303 = vset.pattern.permute.xlu0 62
        %3304 = vperm.xlu0 %3303, %v919
        %v3305 = vpop.permute.xlu0 %3304
        %3307 = vset.pattern.permute.xlu0 62
        %3308 = vperm.xlu0 %3307, %v920
        %v3309 = vpop.permute.xlu0 %3308
        %v3311 = vmul.f32 %v3305, %v3235
        %v3312 = vmul.f32 %v3309, %v3236
        %v3313 = vadd.f32 %v3301, %v3311
        %v3314 = vadd.f32 %v3302, %v3312
        %3315 = vset.pattern.permute.xlu0 63
        %3316 = vperm.xlu0 %3315, %v919
        %v3317 = vpop.permute.xlu0 %3316
        %3319 = vset.pattern.permute.xlu0 63
        %3320 = vperm.xlu0 %3319, %v920
        %v3321 = vpop.permute.xlu0 %3320
        %v3323 = vmul.f32 %v3317, %v3247
        %v3324 = vmul.f32 %v3321, %v3248
        %v3325 = vadd.f32 %v3313, %v3323
        %v3326 = vadd.f32 %v3314, %v3324
        %3327 = vset.pattern.permute.xlu0 53
        %3328 = vperm.xlu0 %3327, %v919
        %v3329 = vpop.permute.xlu0 %3328
        %3331 = vset.pattern.permute.xlu0 53
        %3332 = vperm.xlu0 %3331, %v920
        %v3333 = vpop.permute.xlu0 %3332
        %v3335 = vadd.f32 %v3325, %v3329
        %v3336 = vadd.f32 %v3326, %v3333
        %vm3337 = vcmp.gt.f32.partialorder %v3291, 0.0
        %vm3338 = vcmp.gt.f32.partialorder %v3292, 0.0
        %v3339 = vstv %s3010
        %v3340 = vmul.f32 %v3339, %v3291
        %v3341 = vmul.f32 %v3339, %v3292
        %v3342 = vsel %vm3337, %v3291, %v3340
        %v3343 = vsel %vm3338, %v3292, %v3341
        %vm3344 = vcmp.gt.f32.partialorder %v3335, 0.0
        %vm3345 = vcmp.gt.f32.partialorder %v3336, 0.0
        %v3346 = vmul.f32 %v3339, %v3335
        %v3347 = vmul.f32 %v3339, %v3336
        %v3348 = vsel %vm3344, %v3335, %v3346
        %v3349 = vsel %vm3345, %v3336, %v3347
        %v3350 = vadd.f32 %v3342, %v3343
        %v3351 = vrot.slane %v3350, 4
        %v3352 = vadd.f32 %v3350, %v3351
        %v3353 = vrot.slane %v3352, 2
        %v3354 = vadd.f32 %v3352, %v3353
        %v3355 = vrot.slane %v3354, 1
        %v3356 = vadd.f32 %v3354, %v3355
        %v3357 = vmul.f32 %v3342, %v3342
        %v3358 = vmul.f32 %v3343, %v3343
        %v3359 = vadd.f32 %v3357, %v3358
        %v3360 = vrot.slane %v3359, 4
        %v3361 = vadd.f32 %v3359, %v3360
        %v3362 = vrot.slane %v3361, 2
        %v3363 = vadd.f32 %v3361, %v3362
        %v3364 = vrot.slane %v3363, 1
        %v3365 = vadd.f32 %v3363, %v3364
        %v3366 = vadd.f32 %v3348, %v3349
        %v3367 = vrot.slane %v3366, 4
        %v3368 = vadd.f32 %v3366, %v3367
        %v3369 = vrot.slane %v3368, 2
        %v3370 = vadd.f32 %v3368, %v3369
        %v3371 = vrot.slane %v3370, 1
        %v3372 = vadd.f32 %v3370, %v3371
        %v3373 = vadd.f32 %v3356, %v3372
        %v3374 = vmul.f32 %v3348, %v3348
        %v3375 = vmul.f32 %v3349, %v3349
        %v3376 = vadd.f32 %v3374, %v3375
        %v3377 = vrot.slane %v3376, 4
        %v3378 = vadd.f32 %v3376, %v3377
        %v3379 = vrot.slane %v3378, 2
        %v3380 = vadd.f32 %v3378, %v3379
        %v3381 = vrot.slane %v3380, 1
        %v3382 = vadd.f32 %v3380, %v3381
        %v3383 = vadd.f32 %v3365, %v3382
        %v3384 = vsel %vm657, %v3373, %v3383
        %3385 = vmatprep.subr.mxu0 0.0
        %3386 = vmatpush1.msra.mxu0 %v597
        %3387 = vmatprep.subr.mxu0 0.0
        %3388 = vmatpush1.msra.mxu0 %v598
        %3389 = vmatprep.subr.mxu0 0.0
        %3390 = vmatpush1.msra.mxu0 %v599
        %3391 = vmatprep.subr.mxu0 0.0
        %3392 = vmatpush1.msra.mxu0 %v600
        %3393 = vmatprep.subr.mxu0 0.0
        %3394 = vmatpush1.msra.mxu0 %v601
        %3395 = vmatprep.subr.mxu0 0.0
        %3396 = vmatpush1.msra.mxu0 %v602
        %3397 = vmatprep.subr.mxu0 0.0
        %3398 = vmatpush1.msra.mxu0 %v603
        %3399 = vmatprep.subr.mxu0 0.0
        %3400 = vmatpush1.msra.mxu0 %v604
        %3401 = vmatprep.subr.mxu0 0.0
        %3402 = vmatpush1.msra.mxu0 %v605
        %3403 = vmatprep.subr.mxu0 0.0
        %3404 = vmatpush1.msra.mxu0 %v606
        %3405 = vmatprep.subr.mxu0 0.0
        %3406 = vmatpush1.msra.mxu0 %v607
        %3407 = vmatprep.subr.mxu0 0.0
        %3408 = vmatpush1.msra.mxu0 %v608
        %3409 = vmatprep.subr.mxu0 0.0
        %3410 = vmatpush1.msra.mxu0 %v609
        %3411 = vmatprep.subr.mxu0 0.0
        %3412 = vmatpush1.msra.mxu0 %v610
        %3413 = vmatprep.subr.mxu0 0.0
        %3414 = vmatpush1.msra.mxu0 %v611
        %3415 = vmatprep.subr.mxu0 0.0
        %3416 = vmatpush1.msra.mxu0 %v612
        %3417 = vmatprep.subr.mxu0 0.0
        %3418 = vmatpush1.msra.mxu0 0.0
        %3419 = vmatprep.subr.mxu0 0.0
        %3420 = vmatpush1.msra.mxu0 0.0
        %3421 = vmatprep.subr.mxu0 0.0
        %3422 = vmatpush1.msra.mxu0 0.0
        %3423 = vmatprep.subr.mxu0 0.0
        %3424 = vmatpush1.msra.mxu0 0.0
        %3425 = vmatprep.subr.mxu0 0.0
        %3426 = vmatpush1.msra.mxu0 0.0
        %3427 = vmatprep.subr.mxu0 0.0
        %3428 = vmatpush1.msra.mxu0 0.0
        %3429 = vmatprep.subr.mxu0 0.0
        %3430 = vmatpush1.msra.mxu0 0.0
        %3431 = vmatprep.subr.mxu0 0.0
        %3432 = vmatpush1.msra.mxu0 0.0
        %3433 = vmatprep.subr.mxu0 0.0
        %3434 = vmatpush1.msra.mxu0 0.0
        %3435 = vmatprep.subr.mxu0 0.0
        %3436 = vmatpush1.msra.mxu0 0.0
        %3437 = vmatprep.subr.mxu0 0.0
        %3438 = vmatpush1.msra.mxu0 0.0
        %3439 = vmatprep.subr.mxu0 0.0
        %3440 = vmatpush1.msra.mxu0 0.0
        %3441 = vmatprep.subr.mxu0 0.0
        %3442 = vmatpush1.msra.mxu0 0.0
        %3443 = vmatprep.subr.mxu0 0.0
        %3444 = vmatpush1.msra.mxu0 0.0
        %3445 = vmatprep.subr.mxu0 0.0
        %3446 = vmatpush1.msra.mxu0 0.0
        %3447 = vmatprep.subr.mxu0 0.0
        %3448 = vmatpush1.msra.mxu0 0.0
        %3449 = vmatprep.mubr.f32.mxu0 0.0
        %3450 = vmatmul.mubr.f32.gmra.mrb[0].mxu0 %v3384
        %v3451 = vpop.f32.mrb[0].mxu0
        %v3452 = vadd.f32 0.0, %v3451
        %v3453 = vpop.f32.mrb[0].mxu0
        %3454 = vdwg.mxu0
        %v3455 = vmul.f32 %v3452, 0.001953125
        %v3456 = vmul.f32 %v3455, %v3455
        %v3458 = vrot.slane %v3456, 7
        %v3460 = vsub.f32 %v3455, %v3458
        %v3461 = vmax.f32 %v3460, 0.0
        %v3462 = vadd.f32 %v3461, 1e-08
        %v3463 = vrsqrt.pop %v3462
        %v3464 = vlaneseq
        %v3465 = vshrl.u32 %v3464, 7
        %v3466 = vsub.s32 0, %v3465
        %v3467 = vrot.slane %v3455, %v3466
        %v3468 = vsub.f32 %v3342, %v3467
        %v3469 = vsub.f32 %v3343, %v3467
        %v3470 = vlaneseq
        %v3471 = vshrl.u32 %v3470, 7
        %v3472 = vsub.s32 1, %v3471
        %v3473 = vrot.slane %v3463, %v3472
        %v3474 = vmul.f32 %v3468, %v3473
        %v3475 = vmul.f32 %v3469, %v3473
        %3476 = vset.pattern.permute.xlu0 54
        %3477 = vperm.xlu0 %3476, %v919
        %v3478 = vpop.permute.xlu0 %3477
        %3480 = vset.pattern.permute.xlu0 54
        %3481 = vperm.xlu0 %3480, %v920
        %v3482 = vpop.permute.xlu0 %3481
        %v3484 = vmul.f32 %v3474, %v3478
        %v3485 = vmul.f32 %v3475, %v3482
        %3486 = vset.pattern.permute.xlu0 56
        %3487 = vperm.xlu0 %3486, %v919
        %v3488 = vpop.permute.xlu0 %3487
        %3490 = vset.pattern.permute.xlu0 56
        %3491 = vperm.xlu0 %3490, %v920
        %v3492 = vpop.permute.xlu0 %3491
        %v3494 = vadd.f32 %v3484, %v3488
        %v3495 = vadd.f32 %v3485, %v3492
        %v3496 = vsub.f32 %v3348, %v3467
        %v3497 = vsub.f32 %v3349, %v3467
        %v3498 = vmul.f32 %v3496, %v3473
        %v3499 = vmul.f32 %v3497, %v3473
        %3500 = vset.pattern.permute.xlu0 55
        %3501 = vperm.xlu0 %3500, %v919
        %v3502 = vpop.permute.xlu0 %3501
        %3504 = vset.pattern.permute.xlu0 55
        %3505 = vperm.xlu0 %3504, %v920
        %v3506 = vpop.permute.xlu0 %3505
        %v3508 = vmul.f32 %v3498, %v3502
        %v3509 = vmul.f32 %v3499, %v3506
        %3510 = vset.pattern.permute.xlu0 57
        %3511 = vperm.xlu0 %3510, %v919
        %v3512 = vpop.permute.xlu0 %3511
        %3514 = vset.pattern.permute.xlu0 57
        %3515 = vperm.xlu0 %3514, %v920
        %v3516 = vpop.permute.xlu0 %3515
        %v3518 = vadd.f32 %v3508, %v3512
        %v3519 = vadd.f32 %v3509, %v3516
        %3520 = vset.pattern.permute.xlu0 51
        %3521 = vperm.xlu0 %3520, %v919
        %v3522 = vpop.permute.xlu0 %3521
        %3524 = vset.pattern.permute.xlu0 51
        %3525 = vperm.xlu0 %3524, %v920
        %v3526 = vpop.permute.xlu0 %3525
        %v3528 = vadd.f32 %v3007, %v3522
        %v3529 = vadd.f32 %v3008, %v3526
        %3530 = vrot.lane.b32.xlu0 %v2318, 96
        %v3531 = vpop.permute.xlu0 %3530
        %3532 = vrot.lane.b32.xlu0 %v2319, 96
        %v3533 = vpop.permute.xlu0 %3532
        %v3534 = vsel %vm935, %v3531, 0
        %v3536 = vsel %vm935, %v3533, 0
        %3538 = vmatprep.subr.mxu0 0.0
        %3539 = vmatpush1.msra.mxu0 %v3494
        %3540 = vmatprep.subr.mxu0 0.0
        %3541 = vmatpush1.msra.mxu0 %v3495
        %3542 = vmatprep.subr.mxu0 0.0
        %3543 = vmatpush1.msra.mxu0 0.0
        %3544 = vmatprep.subr.mxu0 0.0
        %3545 = vmatpush1.msra.mxu0 0.0
        %3546 = vmatprep.subr.mxu0 0.0
        %3547 = vmatpush1.msra.mxu0 0.0
        %3548 = vmatprep.subr.mxu0 0.0
        %3549 = vmatpush1.msra.mxu0 0.0
        %3550 = vmatprep.subr.mxu0 0.0
        %3551 = vmatpush1.msra.mxu0 0.0
        %3552 = vmatprep.subr.mxu0 0.0
        %3553 = vmatpush1.msra.mxu0 0.0
        %3554 = vmatprep.subr.mxu0 0.0
        %3555 = vmatpush1.msra.mxu0 0.0
        %3556 = vmatprep.subr.mxu0 0.0
        %3557 = vmatpush1.msra.mxu0 0.0
        %3558 = vmatprep.subr.mxu0 0.0
        %3559 = vmatpush1.msra.mxu0 0.0
        %3560 = vmatprep.subr.mxu0 0.0
        %3561 = vmatpush1.msra.mxu0 0.0
        %3562 = vmatprep.subr.mxu0 0.0
        %3563 = vmatpush1.msra.mxu0 0.0
        %3564 = vmatprep.subr.mxu0 0.0
        %3565 = vmatpush1.msra.mxu0 0.0
        %3566 = vmatprep.subr.mxu0 0.0
        %3567 = vmatpush1.msra.mxu0 0.0
        %3568 = vmatprep.subr.mxu0 0.0
        %3569 = vmatpush1.msra.mxu0 0.0
        %3570 = vmatprep.subr.mxu0 0.0
        %3571 = vmatpush1.msra.mxu0 0.0
        %3572 = vmatprep.subr.mxu0 0.0
        %3573 = vmatpush1.msra.mxu0 0.0
        %3574 = vmatprep.subr.mxu0 0.0
        %3575 = vmatpush1.msra.mxu0 0.0
        %3576 = vmatprep.subr.mxu0 0.0
        %3577 = vmatpush1.msra.mxu0 0.0
        %3578 = vmatprep.subr.mxu0 0.0
        %3579 = vmatpush1.msra.mxu0 0.0
        %3580 = vmatprep.subr.mxu0 0.0
        %3581 = vmatpush1.msra.mxu0 0.0
        %3582 = vmatprep.subr.mxu0 0.0
        %3583 = vmatpush1.msra.mxu0 0.0
        %3584 = vmatprep.subr.mxu0 0.0
        %3585 = vmatpush1.msra.mxu0 0.0
        %3586 = vmatprep.subr.mxu0 0.0
        %3587 = vmatpush1.msra.mxu0 0.0
        %3588 = vmatprep.subr.mxu0 0.0
        %3589 = vmatpush1.msra.mxu0 0.0
        %3590 = vmatprep.subr.mxu0 0.0
        %3591 = vmatpush1.msra.mxu0 0.0
        %3592 = vmatprep.subr.mxu0 0.0
        %3593 = vmatpush1.msra.mxu0 0.0
        %3594 = vmatprep.subr.mxu0 0.0
        %3595 = vmatpush1.msra.mxu0 0.0
        %3596 = vmatprep.subr.mxu0 0.0
        %3597 = vmatpush1.msra.mxu0 0.0
        %3598 = vmatprep.subr.mxu0 0.0
        %3599 = vmatpush1.msra.mxu0 0.0
        %3600 = vmatprep.subr.mxu0 0.0
        %3601 = vmatpush1.msra.mxu0 0.0
        %3602 = vmatprep.mubr.f32.mxu0 0.0
        %3603 = vmatmul.mubr.f32.gmra.mrb[0].mxu0 %v3534
        %v3604 = vpop.f32.mrb[0].mxu0
        %v3605 = vadd.f32 0.0, %v3604
        %v3606 = vpop.f32.mrb[0].mxu0
        %3607 = vmatprep.mubr.f32.mxu0 0.0
        %3608 = vmatmul.mubr.f32.gmra.mrb[0].mxu0 %v3536
        %v3609 = vpop.f32.mrb[0].mxu0
        %v3610 = vadd.f32 0.0, %v3609
        %v3611 = vpop.f32.mrb[0].mxu0
        %3612 = vdwg.mxu0
        %v3613 = vadd.f32 %v3528, %v3605
        %v3614 = vadd.f32 %v3529, %v3610
        %3615 = vrot.lane.b32.xlu0 %v2318, 80
        %v3616 = vpop.permute.xlu0 %3615
        %3617 = vrot.lane.b32.xlu0 %v2319, 80
        %v3618 = vpop.permute.xlu0 %3617
        %v3619 = vsel %vm935, %v3616, 0
        %v3621 = vsel %vm935, %v3618, 0
        %3623 = vmatprep.subr.mxu0 0.0
        %3624 = vmatpush1.msra.mxu0 %v3518
        %3625 = vmatprep.subr.mxu0 0.0
        %3626 = vmatpush1.msra.mxu0 %v3519
        %3627 = vmatprep.subr.mxu0 0.0
        %3628 = vmatpush1.msra.mxu0 0.0
        %3629 = vmatprep.subr.mxu0 0.0
        %3630 = vmatpush1.msra.mxu0 0.0
        %3631 = vmatprep.subr.mxu0 0.0
        %3632 = vmatpush1.msra.mxu0 0.0
        %3633 = vmatprep.subr.mxu0 0.0
        %3634 = vmatpush1.msra.mxu0 0.0
        %3635 = vmatprep.subr.mxu0 0.0
        %3636 = vmatpush1.msra.mxu0 0.0
        %3637 = vmatprep.subr.mxu0 0.0
        %3638 = vmatpush1.msra.mxu0 0.0
        %3639 = vmatprep.subr.mxu0 0.0
        %3640 = vmatpush1.msra.mxu0 0.0
        %3641 = vmatprep.subr.mxu0 0.0
        %3642 = vmatpush1.msra.mxu0 0.0
        %3643 = vmatprep.subr.mxu0 0.0
        %3644 = vmatpush1.msra.mxu0 0.0
        %3645 = vmatprep.subr.mxu0 0.0
        %3646 = vmatpush1.msra.mxu0 0.0
        %3647 = vmatprep.subr.mxu0 0.0
        %3648 = vmatpush1.msra.mxu0 0.0
        %3649 = vmatprep.subr.mxu0 0.0
        %3650 = vmatpush1.msra.mxu0 0.0
        %3651 = vmatprep.subr.mxu0 0.0
        %3652 = vmatpush1.msra.mxu0 0.0
        %3653 = vmatprep.subr.mxu0 0.0
        %3654 = vmatpush1.msra.mxu0 0.0
        %3655 = vmatprep.subr.mxu0 0.0
        %3656 = vmatpush1.msra.mxu0 0.0
        %3657 = vmatprep.subr.mxu0 0.0
        %3658 = vmatpush1.msra.mxu0 0.0
        %3659 = vmatprep.subr.mxu0 0.0
        %3660 = vmatpush1.msra.mxu0 0.0
        %3661 = vmatprep.subr.mxu0 0.0
        %3662 = vmatpush1.msra.mxu0 0.0
        %3663 = vmatprep.subr.mxu0 0.0
        %3664 = vmatpush1.msra.mxu0 0.0
        %3665 = vmatprep.subr.mxu0 0.0
        %3666 = vmatpush1.msra.mxu0 0.0
        %3667 = vmatprep.subr.mxu0 0.0
        %3668 = vmatpush1.msra.mxu0 0.0
        %3669 = vmatprep.subr.mxu0 0.0
        %3670 = vmatpush1.msra.mxu0 0.0
        %3671 = vmatprep.subr.mxu0 0.0
        %3672 = vmatpush1.msra.mxu0 0.0
        %3673 = vmatprep.subr.mxu0 0.0
        %3674 = vmatpush1.msra.mxu0 0.0
        %3675 = vmatprep.subr.mxu0 0.0
        %3676 = vmatpush1.msra.mxu0 0.0
        %3677 = vmatprep.subr.mxu0 0.0
        %3678 = vmatpush1.msra.mxu0 0.0
        %3679 = vmatprep.subr.mxu0 0.0
        %3680 = vmatpush1.msra.mxu0 0.0
        %3681 = vmatprep.subr.mxu0 0.0
        %3682 = vmatpush1.msra.mxu0 0.0
        %3683 = vmatprep.subr.mxu0 0.0
        %3684 = vmatpush1.msra.mxu0 0.0
        %3685 = vmatprep.subr.mxu0 0.0
        %3686 = vmatpush1.msra.mxu0 0.0
        %3687 = vmatprep.mubr.f32.mxu0 0.0
        %3688 = vmatmul.mubr.f32.gmra.mrb[0].mxu0 %v3619
        %v3689 = vpop.f32.mrb[0].mxu0
        %v3690 = vadd.f32 0.0, %v3689
        %v3691 = vpop.f32.mrb[0].mxu0
        %3692 = vmatprep.mubr.f32.mxu0 0.0
        %3693 = vmatmul.mubr.f32.gmra.mrb[0].mxu0 %v3621
        %v3694 = vpop.f32.mrb[0].mxu0
        %v3695 = vadd.f32 0.0, %v3694
        %v3696 = vpop.f32.mrb[0].mxu0
        %3697 = vdwg.mxu0
        %v3698 = vadd.f32 %v3613, %v3690
        %v3699 = vadd.f32 %v3614, %v3695
        %s3700 = sld [smem:[#allocation2 + $0x8]]
        %vm3701 = vcmp.gt.f32.partialorder %v3698, 0.0
        %vm3702 = vcmp.gt.f32.partialorder %v3699, 0.0
        %v3703 = vstv %s3700
        %v3704 = vmul.f32 %v3703, %v3698
        %v3705 = vmul.f32 %v3703, %v3699
        %v3706 = vsel %vm3701, %v3698, %v3704
        %v3707 = vsel %vm3702, %v3699, %v3705
        %v3708 = vld [vmem:[%s6] sm:$0xff]
        %v3709 = vld [vmem:[%s6 + $0x8] sm:$0xff]
        %v3710 = vld [vmem:[%s6 + $0x10] sm:$0x3]
        %3712 = vset.pattern.permute.xlu0 16
        %3713 = vperm.xlu0 %3712, %v3708
        %v3714 = vpop.permute.xlu0 %3713
        %3717 = vset.pattern.permute.xlu0 16
        %3718 = vperm.xlu0 %3717, %v3709
        %v3719 = vpop.permute.xlu0 %3718
        %3722 = vset.pattern.permute.xlu0 16
        %3723 = vperm.xlu0 %3722, %v3710
        %v3724 = vpop.permute.xlu0 %3723
        %v3726 = vsel %vm935, %v3708, 0
        %v3728 = vsel %vm935, %v3709, 0
        %v3730 = vsel %vm935, %v3710, 0
        %3732 = vmatprep.subr.mxu0 0.0
        %3733 = vmatpush1.msra.mxu0 %v3706
        %3734 = vmatprep.subr.mxu0 0.0
        %3735 = vmatpush1.msra.mxu0 %v3707
        %3736 = vmatprep.subr.mxu0 0.0
        %3737 = vmatpush1.msra.mxu0 0.0
        %3738 = vmatprep.subr.mxu0 0.0
        %3739 = vmatpush1.msra.mxu0 0.0
        %3740 = vmatprep.subr.mxu0 0.0
        %3741 = vmatpush1.msra.mxu0 0.0
        %3742 = vmatprep.subr.mxu0 0.0
        %3743 = vmatpush1.msra.mxu0 0.0
        %3744 = vmatprep.subr.mxu0 0.0
        %3745 = vmatpush1.msra.mxu0 0.0
        %3746 = vmatprep.subr.mxu0 0.0
        %3747 = vmatpush1.msra.mxu0 0.0
        %3748 = vmatprep.subr.mxu0 0.0
        %3749 = vmatpush1.msra.mxu0 0.0
        %3750 = vmatprep.subr.mxu0 0.0
        %3751 = vmatpush1.msra.mxu0 0.0
        %3752 = vmatprep.subr.mxu0 0.0
        %3753 = vmatpush1.msra.mxu0 0.0
        %3754 = vmatprep.subr.mxu0 0.0
        %3755 = vmatpush1.msra.mxu0 0.0
        %3756 = vmatprep.subr.mxu0 0.0
        %3757 = vmatpush1.msra.mxu0 0.0
        %3758 = vmatprep.subr.mxu0 0.0
        %3759 = vmatpush1.msra.mxu0 0.0
        %3760 = vmatprep.subr.mxu0 0.0
        %3761 = vmatpush1.msra.mxu0 0.0
        %3762 = vmatprep.subr.mxu0 0.0
        %3763 = vmatpush1.msra.mxu0 0.0
        %3764 = vmatprep.subr.mxu0 0.0
        %3765 = vmatpush1.msra.mxu0 0.0
        %3766 = vmatprep.subr.mxu0 0.0
        %3767 = vmatpush1.msra.mxu0 0.0
        %3768 = vmatprep.subr.mxu0 0.0
        %3769 = vmatpush1.msra.mxu0 0.0
        %3770 = vmatprep.subr.mxu0 0.0
        %3771 = vmatpush1.msra.mxu0 0.0
        %3772 = vmatprep.subr.mxu0 0.0
        %3773 = vmatpush1.msra.mxu0 0.0
        %3774 = vmatprep.subr.mxu0 0.0
        %3775 = vmatpush1.msra.mxu0 0.0
        %3776 = vmatprep.subr.mxu0 0.0
        %3777 = vmatpush1.msra.mxu0 0.0
        %3778 = vmatprep.subr.mxu0 0.0
        %3779 = vmatpush1.msra.mxu0 0.0
        %3780 = vmatprep.subr.mxu0 0.0
        %3781 = vmatpush1.msra.mxu0 0.0
        %3782 = vmatprep.subr.mxu0 0.0
        %3783 = vmatpush1.msra.mxu0 0.0
        %3784 = vmatprep.subr.mxu0 0.0
        %3785 = vmatpush1.msra.mxu0 0.0
        %3786 = vmatprep.subr.mxu0 0.0
        %3787 = vmatpush1.msra.mxu0 0.0
        %3788 = vmatprep.subr.mxu0 0.0
        %3789 = vmatpush1.msra.mxu0 0.0
        %3790 = vmatprep.subr.mxu0 0.0
        %3791 = vmatpush1.msra.mxu0 0.0
        %3792 = vmatprep.subr.mxu0 0.0
        %3793 = vmatpush1.msra.mxu0 0.0
        %3794 = vmatprep.subr.mxu0 0.0
        %3795 = vmatpush1.msra.mxu0 0.0
        %3796 = vmatprep.mubr.f32.mxu0 0.0
        %3797 = vmatmul.mubr.f32.gmra.mrb[0].mxu0 %v3726
        %v3798 = vpop.f32.mrb[0].mxu0
        %v3799 = vadd.f32 %v3714, %v3798
        %v3800 = vpop.f32.mrb[0].mxu0
        %3801 = vmatprep.mubr.f32.mxu0 0.0
        %3802 = vmatmul.mubr.f32.gmra.mrb[0].mxu0 %v3728
        %v3803 = vpop.f32.mrb[0].mxu0
        %v3804 = vadd.f32 %v3719, %v3803
        %v3805 = vpop.f32.mrb[0].mxu0
        %3806 = vmatprep.mubr.f32.mxu0 0.0
        %3807 = vmatmul.mubr.f32.gmra.mrb[0].mxu0 %v3730
        %v3808 = vpop.f32.mrb[0].mxu0
        %v3809 = vadd.f32 %v3724, %v3808
        %v3810 = vpop.f32.mrb[0].mxu0
        %3811 = vdwg.mxu0
        %v3812 = vxor.u32 %v3799, 2147483648
        %v3813 = vxor.u32 %v3804, 2147483648
        %v3814 = vxor.u32 %v3809, 2147483648
        %v3815 = vmul.f32 %v3812, 1.442695
        %v3816 = vpow.pop %v3815
        %v3817 = vmul.f32 %v3813, 1.442695
        %v3818 = vpow.pop %v3817
        %v3819 = vmul.f32 %v3814, 1.442695
        %v3820 = vpow.pop %v3819
        %v3821 = vadd.f32 %v3816, 1.0
        %v3822 = vadd.f32 %v3818, 1.0
        %v3823 = vadd.f32 %v3820, 1.0
        %v3824 = vrcp.pop %v3821
        %v3825 = vmul.f32 1.0, %v3824
        %v3826 = vrcp.pop %v3822
        %v3827 = vmul.f32 1.0, %v3826
        %v3828 = vrcp.pop %v3823
        %v3829 = vmul.f32 1.0, %v3828
        %v3830 = vld [vmem:[%s491] sm:$0xff]
        %v3831 = vld [vmem:[%s491 + $0x8] sm:$0x1]
        %v3832 = vld [vmem:[%s498] sm:$0xff]
        %v3833 = vld [vmem:[%s498 + $0x8] sm:$0x1]
        %v3836 = vrot.slane %v3830, 7
        %v3837 = vrot.slane %v3831, 7
        %v3838 = vsel %vm657, %v3836, %v3837
        %v3841 = vsel %vm657, %v3831, %v3836
        %v3844 = vrot.slane %v3832, 7
        %v3845 = vrot.slane %v3833, 7
        %v3846 = vsel %vm657, %v3844, %v3845
        %v3849 = vsel %vm657, %v3833, %v3844
        %v3850 = vmul.f32 %v3825, %v3830
        %v3851 = vmul.f32 %v3827, %v3841
        %v3852 = vmul.f32 %v3829, %v3838
        %3853 = vst [vmem:[%s538] sm:$0xff] %v3850
        %3854 = vst [vmem:[%s538 + $0x8] sm:$0xff] %v3851
        %3855 = vst [vmem:[%s538 + $0x10] sm:$0x3] %v3852
        %v3856 = vmul.f32 %v3825, %v3832
        %v3857 = vmul.f32 %v3827, %v3849
        %v3858 = vmul.f32 %v3829, %v3846
        %3859 = vst [vmem:[%s544] sm:$0xff] %v3856
        %3860 = vst [vmem:[%s544 + $0x8] sm:$0xff] %v3857
        %3861 = vst [vmem:[%s544 + $0x10] sm:$0x3] %v3858
        %s3862 = sand.u32 %s235, 1
        %s3863 = sand.u32 %s235, 1
        %s3864 = smul.addr %s3863, 24
        %s3865 = scalar_lea.vmem [#allocation7], %s3864
        %s3866 = sand.u32 %s261, 1
        %s3867 = sand.u32 %s261, 1
        %s3868 = smul.addr %s3867, 24
        %s3869 = scalar_lea.vmem [#allocation8], %s3868
        // Predicated region
        $region175: #{separation_model_forward.1} parent=157 // pred_check
          %p3870 = pneg %p245
        $region176: #{separation_model_forward.1} parent=157 // pred_check_branch
          %3872 = sbr.rel (%p3870) target = $region178
        $region177: #{separation_model_forward.1} parent=157 // pred_region
          %s3873 = smul.addr %s23, 8
          %s3874 = scalar_lea.vmem %s9, %s3873
          // Predicated region
          $region179: #{separation_model_forward.1} parent=177 // pred_check
            _
          $region180: #{separation_model_forward.1} parent=177 // pred_check_branch
            %3876 = sbr.rel (0) target = $region182
          $region181: #{separation_model_forward.1} parent=177 // pred_region
            // Predicated region
            $region183: #{separation_model_forward.1} parent=181 // pred_check
              _
            $region184: #{separation_model_forward.1} parent=181 // pred_check_branch
              %3878 = sbr.rel (0) target = $region186
            $region185: #{separation_model_forward.1} parent=181 // pred_region
              // Predicated region
              $region198: #{separation_model_forward.1} parent=185 // pred_check
                _
              $region199: #{separation_model_forward.1} parent=185 // pred_check_branch
                %3897 = sbr.rel (0) target = $region201
              $region200: #{separation_model_forward.1} parent=185 // pred_region
                loop: start=0, step=1, limit=1
                $region202: #{separation_model_forward.1} parent=200 // loop_pre_header
                  _
                $region203: #{separation_model_forward.1} parent=200 // loop_header
                  %s3899 = sphi 0, %s3903
                  %p3900 = scmp.ge.s32.totalorder %s3899, 1
                  %s3904 = sphi %s3865, %s3865
                  %s3905 = sphi %s3874, %s3874
                $region204: #{separation_model_forward.1} parent=200 // loop_header_branch
                  %3902 = sbr.rel (%p3900) target = $region208
                $region205: #{separation_model_forward.1} parent=200 // loop_body
                  %v3906 = vld [vmem:[%s3904] sm:$0xff]
                  %3907 = vst [vmem:[%s3905] sm:$0xff] %v3906
                  %v3908 = vld [vmem:[%s3904 + $0x8] sm:$0xff]
                  %3909 = vst [vmem:[%s3905 + $0x10] sm:$0xff] %v3908
                  %v3910 = vld [vmem:[%s3904 + $0x10] sm:$0xff]
                  %3911 = vst [vmem:[%s3905 + $0x20] sm:$0xff] %v3910
                $region206: #{separation_model_forward.1} parent=200 // loop_footer
                  %s3903 = sadd.s32 1, %s3899
                $region207: #{separation_model_forward.1} parent=200 // loop_footer_branch
                  %3898 = sbr.rel target = $region203
                $region208: #{separation_model_forward.1} parent=200 // loop_exit
                  _
              $region201: #{separation_model_forward.1} parent=185 // pred_fallthru
                _
              // Predicated region
              $region209: #{separation_model_forward.1} parent=185 // pred_check
                _
              $region210: #{separation_model_forward.1} parent=185 // pred_check_branch
                %3913 = sbr.rel target = $region212
              $region211: #{separation_model_forward.1} parent=185 // pred_region
                _
              $region212: #{separation_model_forward.1} parent=185 // pred_fallthru
                _
            $region186: #{separation_model_forward.1} parent=181 // pred_fallthru
              _
            // Predicated region
            $region187: #{separation_model_forward.1} parent=181 // pred_check
              _
            $region188: #{separation_model_forward.1} parent=181 // pred_check_branch
              %3880 = sbr.rel target = $region190
            $region189: #{separation_model_forward.1} parent=181 // pred_region
              loop: start=0, step=1, limit=1
              $region191: #{separation_model_forward.1} parent=189 // loop_pre_header
                _
              $region192: #{separation_model_forward.1} parent=189 // loop_header
                %s3883 = sphi 0, %s3887
                %p3884 = scmp.ge.s32.totalorder %s3883, 1
                %s3888 = sphi %s3865, %s3865
                %s3889 = sphi %s3874, %s3874
              $region193: #{separation_model_forward.1} parent=189 // loop_header_branch
                %3886 = sbr.rel (%p3884) target = $region197
              $region194: #{separation_model_forward.1} parent=189 // loop_body
                %v3890 = vld [vmem:[%s3888] sm:$0xff]
                %3891 = vst [vmem:[%s3889] sm:$0xff] %v3890
                %v3892 = vld [vmem:[%s3888 + $0x8] sm:$0xff]
                %3893 = vst [vmem:[%s3889 + $0x10] sm:$0xff] %v3892
                %v3894 = vld [vmem:[%s3888 + $0x10] sm:$0xff]
                %3895 = vst [vmem:[%s3889 + $0x20] sm:$0xff] %v3894
              $region195: #{separation_model_forward.1} parent=189 // loop_footer
                %s3887 = sadd.s32 1, %s3883
              $region196: #{separation_model_forward.1} parent=189 // loop_footer_branch
                %3882 = sbr.rel target = $region192
              $region197: #{separation_model_forward.1} parent=189 // loop_exit
                _
            $region190: #{separation_model_forward.1} parent=181 // pred_fallthru
              _
          $region182: #{separation_model_forward.1} parent=177 // pred_fallthru
            _
          %3914 = vnop
        $region178: #{separation_model_forward.1} parent=157 // pred_fallthru
          _
        // Predicated region
        $region213: #{separation_model_forward.1} parent=157 // pred_check
          %p3915 = pneg %p271
        $region214: #{separation_model_forward.1} parent=157 // pred_check_branch
          %3917 = sbr.rel (%p3915) target = $region216
        $region215: #{separation_model_forward.1} parent=157 // pred_region
          %s3918 = smul.addr %s23, 8
          %s3919 = scalar_lea.vmem %s10, %s3918
          // Predicated region
          $region217: #{separation_model_forward.1} parent=215 // pred_check
            _
          $region218: #{separation_model_forward.1} parent=215 // pred_check_branch
            %3921 = sbr.rel (0) target = $region220
          $region219: #{separation_model_forward.1} parent=215 // pred_region
            // Predicated region
            $region221: #{separation_model_forward.1} parent=219 // pred_check
              _
            $region222: #{separation_model_forward.1} parent=219 // pred_check_branch
              %3923 = sbr.rel (0) target = $region224
            $region223: #{separation_model_forward.1} parent=219 // pred_region
              // Predicated region
              $region236: #{separation_model_forward.1} parent=223 // pred_check
                _
              $region237: #{separation_model_forward.1} parent=223 // pred_check_branch
                %3942 = sbr.rel (0) target = $region239
              $region238: #{separation_model_forward.1} parent=223 // pred_region
                loop: start=0, step=1, limit=1
                $region240: #{separation_model_forward.1} parent=238 // loop_pre_header
                  _
                $region241: #{separation_model_forward.1} parent=238 // loop_header
                  %s3944 = sphi 0, %s3948
                  %p3945 = scmp.ge.s32.totalorder %s3944, 1
                  %s3949 = sphi %s3869, %s3869
                  %s3950 = sphi %s3919, %s3919
                $region242: #{separation_model_forward.1} parent=238 // loop_header_branch
                  %3947 = sbr.rel (%p3945) target = $region246
                $region243: #{separation_model_forward.1} parent=238 // loop_body
                  %v3951 = vld [vmem:[%s3949] sm:$0xff]
                  %3952 = vst [vmem:[%s3950] sm:$0xff] %v3951
                  %v3953 = vld [vmem:[%s3949 + $0x8] sm:$0xff]
                  %3954 = vst [vmem:[%s3950 + $0x10] sm:$0xff] %v3953
                  %v3955 = vld [vmem:[%s3949 + $0x10] sm:$0xff]
                  %3956 = vst [vmem:[%s3950 + $0x20] sm:$0xff] %v3955
                $region244: #{separation_model_forward.1} parent=238 // loop_footer
                  %s3948 = sadd.s32 1, %s3944
                $region245: #{separation_model_forward.1} parent=238 // loop_footer_branch
                  %3943 = sbr.rel target = $region241
                $region246: #{separation_model_forward.1} parent=238 // loop_exit
                  _
              $region239: #{separation_model_forward.1} parent=223 // pred_fallthru
                _
              // Predicated region
              $region247: #{separation_model_forward.1} parent=223 // pred_check
                _
              $region248: #{separation_model_forward.1} parent=223 // pred_check_branch
                %3958 = sbr.rel target = $region250
              $region249: #{separation_model_forward.1} parent=223 // pred_region
                _
              $region250: #{separation_model_forward.1} parent=223 // pred_fallthru
                _
            $region224: #{separation_model_forward.1} parent=219 // pred_fallthru
              _
            // Predicated region
            $region225: #{separation_model_forward.1} parent=219 // pred_check
              _
            $region226: #{separation_model_forward.1} parent=219 // pred_check_branch
              %3925 = sbr.rel target = $region228
            $region227: #{separation_model_forward.1} parent=219 // pred_region
              loop: start=0, step=1, limit=1
              $region229: #{separation_model_forward.1} parent=227 // loop_pre_header
                _
              $region230: #{separation_model_forward.1} parent=227 // loop_header
                %s3928 = sphi 0, %s3932
                %p3929 = scmp.ge.s32.totalorder %s3928, 1
                %s3933 = sphi %s3869, %s3869
                %s3934 = sphi %s3919, %s3919
              $region231: #{separation_model_forward.1} parent=227 // loop_header_branch
                %3931 = sbr.rel (%p3929) target = $region235
              $region232: #{separation_model_forward.1} parent=227 // loop_body
                %v3935 = vld [vmem:[%s3933] sm:$0xff]
                %3936 = vst [vmem:[%s3934] sm:$0xff] %v3935
                %v3937 = vld [vmem:[%s3933 + $0x8] sm:$0xff]
                %3938 = vst [vmem:[%s3934 + $0x10] sm:$0xff] %v3937
                %v3939 = vld [vmem:[%s3933 + $0x10] sm:$0xff]
                %3940 = vst [vmem:[%s3934 + $0x20] sm:$0xff] %v3939
              $region233: #{separation_model_forward.1} parent=227 // loop_footer
                %s3932 = sadd.s32 1, %s3928
              $region234: #{separation_model_forward.1} parent=227 // loop_footer_branch
                %3927 = sbr.rel target = $region230
              $region235: #{separation_model_forward.1} parent=227 // loop_exit
                _
            $region228: #{separation_model_forward.1} parent=219 // pred_fallthru
              _
          $region220: #{separation_model_forward.1} parent=215 // pred_fallthru
            _
          %3959 = vnop
        $region216: #{separation_model_forward.1} parent=157 // pred_fallthru
          _
      $region158: #{separation_model_forward.1} parent=5 // pred_fallthru
        _
      %p3960 = scmp.le.s32.totalorder 2, %s18
      // Predicated region
      $region251: #{separation_model_forward.1} parent=5 // pred_check
        %p3961 = pneg %p3960
      $region252: #{separation_model_forward.1} parent=5 // pred_check_branch
        %3963 = sbr.rel (%p3961) target = $region254
      $region253: #{separation_model_forward.1} parent=5 // pred_region
        %s3964 = ssub.s32 %s18, 2
        // Predicated region
        $region255: #{separation_model_forward.1} parent=253 // pred_check
          %p3965 = pneg %p251
        $region256: #{separation_model_forward.1} parent=253 // pred_check_branch
          %3967 = sbr.rel (%p3965) target = $region258
        $region257: #{separation_model_forward.1} parent=253 // pred_region
          %s3968 = sand.u32 %s236, 1
          %s3969 = sand.u32 %s236, 1
          %s3970 = smul.addr %s3969, 24
          %s3971 = scalar_lea.vmem [#allocation7], %s3970
        $region258: #{separation_model_forward.1} parent=253 // pred_fallthru
          _
        // Predicated region
        $region259: #{separation_model_forward.1} parent=253 // pred_check
          %p3972 = pneg %p277
        $region260: #{separation_model_forward.1} parent=253 // pred_check_branch
          %3974 = sbr.rel (%p3972) target = $region262
        $region261: #{separation_model_forward.1} parent=253 // pred_region
          %s3975 = sand.u32 %s262, 1
          %s3976 = sand.u32 %s262, 1
          %s3977 = smul.addr %s3976, 24
          %s3978 = scalar_lea.vmem [#allocation8], %s3977
        $region262: #{separation_model_forward.1} parent=253 // pred_fallthru
          _
      $region254: #{separation_model_forward.1} parent=5 // pred_fallthru
        _
    $region6: #{separation_model_forward.1} parent=1 // loop_footer
      %s22 = sadd.s32 1, %s18
    $region7: #{separation_model_forward.1} parent=1 // loop_footer_branch
      %17 = sbr.rel target = $region3
    $region8: #{separation_model_forward.1} parent=1 // loop_exit
      _
    %3979 = vsyncpa [#allocation3], 1
    %s3980 = scalar_lea.sflag [#allocation3], 1
    %3981 = vsyncpa %s3980, 1

</llo_original>
